<compile_context>
chip_gen: v5e
topology: v5e:2x2
jax: 0.10.0
libtpu: 0.0.40
codegen_flags: <defaults>
</compile_context>

<pallas_src>
import functools

import jax
import jax.numpy as jnp
from jax.experimental import pallas as pl
from jax.experimental.pallas import tpu as pltpu

PROJ_DIM = 128  # forced by self.linear = nn.Linear(128, 2) applied to |x1-x2|
_VMEM_LIMIT = 32 * 1024 * 1024  # real need < ~16 MiB even at tn=2048; safe on v7x


def _choose_tile(n):
    """Largest point tile in {2048..128} whose replication padding stays small."""
    for t in (2048, 1024, 512, 256, 128):
        n_pad = -(-n // t) * t
        if t == 128 or (n_pad - n) <= max(n // 8, 128):
            return t, n_pad


# ---------------------------------------------------------------------------
# Shared body: per-point MLP (c1->c2->c3, BN folded) + running max over points.
# conv3 bias / ReLU are NOT applied here (hoisted past the max into epilogues).
# ---------------------------------------------------------------------------

def _mlp_max_update(x_ref, w1_ref, b1_ref, w2_ref, b2_ref, w3_ref, acc_ref):
    t = pl.program_id(1)
    h = jnp.dot(x_ref[0], w1_ref[0],
                preferred_element_type=jnp.float32) + b1_ref[...]
    h = jnp.maximum(h, 0.0)
    h = jnp.dot(h.astype(jnp.bfloat16), w2_ref[...],
                preferred_element_type=jnp.float32) + b2_ref[...]
    h = jnp.maximum(h, 0.0)
    # conv3: raw matmul only — bias (+ ReLU) commute with max-over-points.
    h = jnp.dot(h.astype(jnp.bfloat16), w3_ref[...],
                preferred_element_type=jnp.float32)
    tile_max = jnp.max(h, axis=0, keepdims=True)            # (1, 1024)

    @pl.when(t == 0)
    def _():
        acc_ref[...] = tile_max

    @pl.when(t > 0)
    def _():
        acc_ref[...] = jnp.maximum(acc_ref[...], tile_max)


# ---------------------------------------------------------------------------
# Kernel A: STN3d = point-MLP + max  ->  (epilogue) bias+ReLU + fc1/fc2/fc3.
#   grid = (batch, point_tiles); output (1,1,9) written once per batch.
# ---------------------------------------------------------------------------

def _stn_pass_kernel(x_ref, w1_ref, b1_ref, w2_ref, b2_ref, w3_ref, b3_ref,
                     f1w_ref, f1b_ref, f2w_ref, f2b_ref, f3w_ref, f3b_ref,
                     o_ref, acc_ref):
    _mlp_max_update(x_ref, w1_ref, b1_ref, w2_ref, b2_ref, w3_ref, acc_ref)

    @pl.when(pl.program_id(1) == pl.num_programs(1) - 1)
    def _():
        # hoisted conv3 bias + ReLU, applied once per batch after the max
        pooled = jnp.maximum(acc_ref[...] + b3_ref[...], 0.0)       # (1, 1024)
        h = jnp.dot(pooled.astype(jnp.bfloat16), f1w_ref[...],
                    preferred_element_type=jnp.float32) + f1b_ref[...]
        h = jnp.maximum(h, 0.0)
        h = jnp.dot(h.astype(jnp.bfloat16), f2w_ref[...],
                    preferred_element_type=jnp.float32) + f2b_ref[...]
        h = jnp.maximum(h, 0.0)
        # tiny 256->9 layer kept f32
        y = jnp.dot(h, f3w_ref[...],
                    preferred_element_type=jnp.float32) + f3b_ref[...]
        o_ref[...] = y[None]                                         # (1,1,9)


def stn_pass(x_pad, p, tn):
    NB, n_pad, cp = x_pad.shape
    nt = n_pad // tn
    out = pl.pallas_call(
        _stn_pass_kernel,
        out_shape=jax.ShapeDtypeStruct((NB, 1, 9), jnp.float32),
        grid_spec=pltpu.PrefetchScalarGridSpec(
            num_scalar_prefetch=0,
            grid=(NB, nt),
            in_specs=[
                pl.BlockSpec((1, tn, cp), lambda b, t: (b, t, 0)),   # points
                pl.BlockSpec((1, cp, 64), lambda b, t: (0, 0, 0)),   # shared W1
                pl.BlockSpec((1, 64), lambda b, t: (0, 0)),
                pl.BlockSpec((64, 128), lambda b, t: (0, 0)),
                pl.BlockSpec((1, 128), lambda b, t: (0, 0)),
                pl.BlockSpec((128, 1024), lambda b, t: (0, 0)),
                pl.BlockSpec((1, 1024), lambda b, t: (0, 0)),
                pl.BlockSpec((1024, 512), lambda b, t: (0, 0)),
                pl.BlockSpec((1, 512), lambda b, t: (0, 0)),
                pl.BlockSpec((512, 256), lambda b, t: (0, 0)),
                pl.BlockSpec((1, 256), lambda b, t: (0, 0)),
                pl.BlockSpec((256, 9), lambda b, t: (0, 0)),
                pl.BlockSpec((1, 9), lambda b, t: (0, 0)),
            ],
            out_specs=pl.BlockSpec((1, 1, 9), lambda b, t: (b, 0, 0)),
            scratch_shapes=[pltpu.VMEM((1, 1024), jnp.float32)]),
        compiler_params=pltpu.CompilerParams(
            dimension_semantics=("parallel", "arbitrary"),
            vmem_limit_bytes=_VMEM_LIMIT),
    )(x_pad, p["stn_c1_w_pad"], p["stn_c1_b"], p["stn_c2_w"], p["stn_c2_b"],
      p["stn_c3_w"], p["stn_c3_b"], p["stn_f1_w"], p["stn_f1_b"],
      p["stn_f2_w"], p["stn_f2_b"], p["stn_f3_w"], p["stn_f3_b"])
    return out.reshape(NB, 9)


# ---------------------------------------------------------------------------
# Kernel B: PointNetfeat convs (with bmm folded into W1) + max ->
#           (epilogue) bias + proj_head (Linear/BN/ReLU/Linear/BN) + F.normalize.
# ---------------------------------------------------------------------------

def _feat_proj_kernel(x_ref, w1_ref, b1_ref, w2_ref, b2_ref, w3_ref, b3_ref,
                      p1w_ref, p1b_ref, p2w_ref, p2b_ref,
                      o_ref, acc_ref):
    _mlp_max_update(x_ref, w1_ref, b1_ref, w2_ref, b2_ref, w3_ref, acc_ref)

    @pl.when(pl.program_id(1) == pl.num_programs(1) - 1)
    def _():
        pooled = acc_ref[...] + b3_ref[...]      # bn3 folded, no ReLU (spec)
        h = jnp.dot(pooled.astype(jnp.bfloat16), p1w_ref[...],
                    preferred_element_type=jnp.float32) + p1b_ref[...]
        h = jnp.maximum(h, 0.0)                   # Linear+BN+ReLU
        z = jnp.dot(h.astype(jnp.bfloat16), p2w_ref[...],
                    preferred_element_type=jnp.float32) + p2b_ref[...]  # Linear+BN
        # F.normalize(dim=1), eps=1e-12 as in PyTorch
        norm = jnp.sqrt(jnp.sum(z * z, axis=1, keepdims=True))
        z = z / jnp.maximum(norm, 1e-12)
        o_ref[...] = z[None]                      # (1, 1, 128)


def feat_proj_pass(x_pad, foldw1, p, tn):
    NB, n_pad, cp = x_pad.shape
    nt = n_pad // tn
    out = pl.pallas_call(
        _feat_proj_kernel,
        out_shape=jax.ShapeDtypeStruct((NB, 1, PROJ_DIM), jnp.float32),
        grid_spec=pltpu.PrefetchScalarGridSpec(
            num_scalar_prefetch=0,
            grid=(NB, nt),
            in_specs=[
                pl.BlockSpec((1, tn, cp), lambda b, t: (b, t, 0)),   # points
                pl.BlockSpec((1, cp, 64), lambda b, t: (b, 0, 0)),   # per-batch T@W1
                pl.BlockSpec((1, 64), lambda b, t: (0, 0)),
                pl.BlockSpec((64, 128), lambda b, t: (0, 0)),
                pl.BlockSpec((1, 128), lambda b, t: (0, 0)),
                pl.BlockSpec((128, 1024), lambda b, t: (0, 0)),
                pl.BlockSpec((1, 1024), lambda b, t: (0, 0)),
                pl.BlockSpec((1024, 512), lambda b, t: (0, 0)),
                pl.BlockSpec((1, 512), lambda b, t: (0, 0)),
                pl.BlockSpec((512, PROJ_DIM), lambda b, t: (0, 0)),
                pl.BlockSpec((1, PROJ_DIM), lambda b, t: (0, 0)),
            ],
            out_specs=pl.BlockSpec((1, 1, PROJ_DIM), lambda b, t: (b, 0, 0)),
            scratch_shapes=[pltpu.VMEM((1, 1024), jnp.float32)]),
        compiler_params=pltpu.CompilerParams(
            dimension_semantics=("parallel", "arbitrary"),
            vmem_limit_bytes=_VMEM_LIMIT),
    )(x_pad, foldw1, p["feat_c1_b"], p["feat_c2_w"], p["feat_c2_b"],
      p["feat_c3_w"], p["feat_c3_b"], p["ph1_w"], p["ph1_b"],
      p["ph2_w"], p["ph2_b"])
    return out.reshape(NB, PROJ_DIM)


# ---------------------------------------------------------------------------
# Kernel C: |x1 - x2| + Linear(128,2) + sigmoid.  (Tiny; gridless single-TC —
# fine at small B; give it a batch grid only if B grows large on v7x.)
# ---------------------------------------------------------------------------

def _head_kernel(z_ref, lw_ref, lb_ref, o_ref, *, half):
    z = z_ref[...]
    d = jnp.abs(z[:half] - z[half:])                         # |x1 - x2|
    y = jnp.dot(d, lw_ref[...],
                preferred_element_type=jnp.float32) + lb_ref[...]
    o_ref[...] = jax.nn.sigmoid(y)


def head(z, p, half):
    return pl.pallas_call(
        functools.partial(_head_kernel, half=half),
        out_shape=jax.ShapeDtypeStruct((half, 2), jnp.float32),
    )(z, p["lin_w"], p["lin_b"])


# ---------------------------------------------------------------------------
# Model forward (glue in plain JAX: transposes, padding, 3x3 transform fold)
# ---------------------------------------------------------------------------

def forward(x1, x2, p):
    B, _, N = x1.shape
    NB = 2 * B
    x = jnp.concatenate([x1, x2], axis=0)                 # (2B, 3, N)
    x_pts = jnp.transpose(x, (0, 2, 1))                   # (2B, N, 3)

    # Pad points to a tile multiple by replicating the last point
    # (max-over-points is invariant to duplicated points).
    tn, n_pad = _choose_tile(N)
    if n_pad != N:
        rep = jnp.broadcast_to(x_pts[:, -1:, :], (NB, n_pad - N, 3))
        x_pts = jnp.concatenate([x_pts, rep], axis=1)
    # Pad Cin 3 -> 8 with zero channels (matching weight rows are zero too).
    x_pad = jnp.pad(x_pts, ((0, 0), (0, 0), (0, 5))).astype(jnp.bfloat16)

    # ---- STN3d fully fused: point-MLP + maxpool + fc stack in one kernel ----
    trans9 = stn_pass(x_pad, p, tn)                                   # (2B, 9)
    trans = trans9.reshape(NB, 3, 3) + jnp.eye(3, dtype=jnp.float32)[None]

    # ---- fold torch.bmm(x, trans) into feat.conv1: x @ (T @ W1) ----
    foldw1 = jnp.einsum("bij,jk->bik", trans, p["feat_c1_w"])          # (2B,3,64)
    foldw1 = jnp.pad(foldw1, ((0, 0), (0, 5), (0, 0))).astype(jnp.bfloat16)

    # ---- feat convs + maxpool + proj head + normalize in one kernel ----
    z = feat_proj_pass(x_pad, foldw1, p, tn)                           # (2B, 128)

    # ---- |x1-x2| + Linear(128,2) + sigmoid ----
    return head(z, p, B)


# ---------------------------------------------------------------------------
# Deterministic parameter initialization (PyTorch-style uniform, BN folded)
# ---------------------------------------------------------------------------

def _init_layer(key, cin, cout, bn):
    k1, k2 = jax.random.split(key)
    bound = 1.0 / float(cin) ** 0.5
    w = jax.random.uniform(k1, (cin, cout), jnp.float32, -bound, bound)
    b = jax.random.uniform(k2, (cout,), jnp.float32, -bound, bound)
    if bn:  # fold eval-mode BatchNorm1d (mean=0, var=1, gamma=1, beta=0)
        s = 1.0 / jnp.sqrt(jnp.ones((cout,), jnp.float32) + 1e-5)
        w = w * s[None, :]
        b = b * s
    return w, b.reshape(1, cout)


def init_params(seed=42):
    keys = jax.random.split(jax.random.PRNGKey(seed), 12)
    bf16 = jnp.bfloat16
    p = {}
    # STN3d
    w, b = _init_layer(keys[0], 3, 64, True)
    p["stn_c1_w_pad"] = jnp.pad(w, ((0, 5), (0, 0))).astype(bf16)[None]  # (1,8,64)
    p["stn_c1_b"] = b
    w, b = _init_layer(keys[1], 64, 128, True)
    p["stn_c2_w"], p["stn_c2_b"] = w.astype(bf16), b
    w, b = _init_layer(keys[2], 128, 1024, True)
    p["stn_c3_w"], p["stn_c3_b"] = w.astype(bf16), b
    w, b = _init_layer(keys[3], 1024, 512, True)
    p["stn_f1_w"], p["stn_f1_b"] = w.astype(bf16), b
    w, b = _init_layer(keys[4], 512, 256, True)
    p["stn_f2_w"], p["stn_f2_b"] = w.astype(bf16), b
    w, b = _init_layer(keys[5], 256, 9, False)
    p["stn_f3_w"], p["stn_f3_b"] = w, b                       # f32 (lane=9)
    # PointNetfeat
    w, b = _init_layer(keys[6], 3, 64, True)
    p["feat_c1_w"], p["feat_c1_b"] = w, b                     # f32: folded with T
    w, b = _init_layer(keys[7], 64, 128, True)
    p["feat_c2_w"], p["feat_c2_b"] = w.astype(bf16), b
    w, b = _init_layer(keys[8], 128, 1024, True)
    p["feat_c3_w"], p["feat_c3_b"] = w.astype(bf16), b
    # projection head + contrastive linear
    w, b = _init_layer(keys[9], 1024, 512, True)
    p["ph1_w"], p["ph1_b"] = w.astype(bf16), b
    w, b = _init_layer(keys[10], 512, PROJ_DIM, True)
    p["ph2_w"], p["ph2_b"] = w.astype(bf16), b
    w, b = _init_layer(keys[11], PROJ_DIM, 2, False)
    p["lin_w"], p["lin_b"] = w, b                             # f32 (lane=2)
    return p


# TODO(synk): the `classifier` branch and Dropout(p=0.3) are unused in
# PointNet_Contrastive.forward and therefore not implemented.

if __name__ == "__main__":
    B, N = 2, 128  # batch=2, 3D coords, 128 points per cloud
    k1, k2 = jax.random.split(jax.random.PRNGKey(0))
    x1 = jax.random.normal(k1, (B, 3, N), dtype=jnp.float32)
    x2 = jax.random.normal(k2, (B, 3, N), dtype=jnp.float32)
    params = init_params()

    out = jax.jit(forward)(x1, x2, params)
    out = jax.block_until_ready(out)
    assert out.shape == (B, 2) and out.dtype == jnp.float32
    assert bool(jnp.all(jnp.isfinite(out)))
    print("KERNEL_OK")
</pallas_src>

<mosaic_0001>
module attributes {stable_mosaic.version = 11 : i64} {
  func.func @_stn_pass_kernel(%arg0: i32, %arg1: i32, %arg2: memref<1x256x8xbf16, #tpu.memory_space<vmem>>, %arg3: memref<1x8x64xbf16, #tpu.memory_space<vmem>>, %arg4: memref<1x64xf32, #tpu.memory_space<vmem>>, %arg5: memref<64x128xbf16, #tpu.memory_space<vmem>>, %arg6: memref<1x128xf32, #tpu.memory_space<vmem>>, %arg7: memref<128x1024xbf16, #tpu.memory_space<vmem>>, %arg8: memref<1x1024xf32, #tpu.memory_space<vmem>>, %arg9: memref<1024x512xbf16, #tpu.memory_space<vmem>>, %arg10: memref<1x512xf32, #tpu.memory_space<vmem>>, %arg11: memref<512x256xbf16, #tpu.memory_space<vmem>>, %arg12: memref<1x256xf32, #tpu.memory_space<vmem>>, %arg13: memref<256x9xf32, #tpu.memory_space<vmem>>, %arg14: memref<1x9xf32, #tpu.memory_space<vmem>>, %arg15: memref<1x1x9xf32, #tpu.memory_space<vmem>>, %arg16: memref<1x1024xf32, #tpu.memory_space<vmem>>) attributes {dimension_semantics = [#tpu.dimension_semantics<parallel>, #tpu.dimension_semantics<arbitrary>], iteration_bounds = array<i64: 4, 1>, scalar_prefetch = 0 : i64, scratch_operands = 1 : i64, tpu.core_type = #tpu.core_type<tc>, window_params = [{transform_indices = @transform_0, window_bounds = array<i64: 1, 256, 8>}, {pipeline_mode = #tpu.pipeline_mode<synchronous>, transform_indices = @transform_1, window_bounds = array<i64: 1, 8, 64>}, {pipeline_mode = #tpu.pipeline_mode<synchronous>, transform_indices = @transform_2, window_bounds = array<i64: 1, 64>}, {pipeline_mode = #tpu.pipeline_mode<synchronous>, transform_indices = @transform_3, window_bounds = array<i64: 64, 128>}, {pipeline_mode = #tpu.pipeline_mode<synchronous>, transform_indices = @transform_4, window_bounds = array<i64: 1, 128>}, {pipeline_mode = #tpu.pipeline_mode<synchronous>, transform_indices = @transform_5, window_bounds = array<i64: 128, 1024>}, {pipeline_mode = #tpu.pipeline_mode<synchronous>, transform_indices = @transform_6, window_bounds = array<i64: 1, 1024>}, {pipeline_mode = #tpu.pipeline_mode<synchronous>, transform_indices = @transform_7, window_bounds = array<i64: 1024, 512>}, {pipeline_mode = #tpu.pipeline_mode<synchronous>, transform_indices = @transform_8, window_bounds = array<i64: 1, 512>}, {pipeline_mode = #tpu.pipeline_mode<synchronous>, transform_indices = @transform_9, window_bounds = array<i64: 512, 256>}, {pipeline_mode = #tpu.pipeline_mode<synchronous>, transform_indices = @transform_10, window_bounds = array<i64: 1, 256>}, {pipeline_mode = #tpu.pipeline_mode<synchronous>, transform_indices = @transform_11, window_bounds = array<i64: 256, 9>}, {pipeline_mode = #tpu.pipeline_mode<synchronous>, transform_indices = @transform_12, window_bounds = array<i64: 1, 9>}, {transform_indices = @transform_13, window_bounds = array<i64: 1, 1, 9>}]} {
    %c0 = arith.constant 0 : index
    %c0_0 = arith.constant 0 : index
    %c0_1 = arith.constant 0 : index
    %0 = vector.load %arg2[%c0, %c0_0, %c0_1] : memref<1x256x8xbf16, #tpu.memory_space<vmem>>, vector<1x256x8xbf16>
    %1 = vector.shape_cast %0 : vector<1x256x8xbf16> to vector<256x8xbf16>
    %c0_2 = arith.constant 0 : index
    %c0_3 = arith.constant 0 : index
    %c0_4 = arith.constant 0 : index
    %2 = vector.load %arg3[%c0_2, %c0_3, %c0_4] : memref<1x8x64xbf16, #tpu.memory_space<vmem>>, vector<1x8x64xbf16>
    %3 = vector.shape_cast %2 : vector<1x8x64xbf16> to vector<8x64xbf16>
    %cst = arith.constant dense<0.000000e+00> : vector<256x64xf32>
    %4 = tpu.matmul %1, %3, %cst {dimension_numbers = #tpu.dot_dimension_numbers<[1], [0], [0], [1], [0, 0, 1, 1], [], []>} : vector<256x8xbf16>, vector<8x64xbf16>, vector<256x64xf32> -> vector<256x64xf32>
    %c0_5 = arith.constant 0 : index
    %c0_6 = arith.constant 0 : index
    %5 = vector.load %arg4[%c0_5, %c0_6] : memref<1x64xf32, #tpu.memory_space<vmem>>, vector<1x64xf32>
    %6 = vector.broadcast %5 : vector<1x64xf32> to vector<256x64xf32>
    %7 = arith.addf %4, %6 : vector<256x64xf32>
    %cst_7 = arith.constant 0.000000e+00 : f32
    %8 = vector.broadcast %cst_7 : f32 to vector<256x64xf32>
    %9 = arith.maximumf %7, %8 : vector<256x64xf32>
    %10 = arith.truncf %9 : vector<256x64xf32> to vector<256x64xbf16>
    %c0_8 = arith.constant 0 : index
    %c0_9 = arith.constant 0 : index
    %11 = vector.load %arg5[%c0_8, %c0_9] : memref<64x128xbf16, #tpu.memory_space<vmem>>, vector<64x128xbf16>
    %cst_10 = arith.constant dense<0.000000e+00> : vector<256x128xf32>
    %12 = tpu.matmul %10, %11, %cst_10 {dimension_numbers = #tpu.dot_dimension_numbers<[1], [0], [0], [1], [0, 0, 1, 1], [], []>} : vector<256x64xbf16>, vector<64x128xbf16>, vector<256x128xf32> -> vector<256x128xf32>
    %c0_11 = arith.constant 0 : index
    %c0_12 = arith.constant 0 : index
    %13 = vector.load %arg6[%c0_11, %c0_12] : memref<1x128xf32, #tpu.memory_space<vmem>>, vector<1x128xf32>
    %14 = vector.broadcast %13 : vector<1x128xf32> to vector<256x128xf32>
    %15 = arith.addf %12, %14 : vector<256x128xf32>
    %cst_13 = arith.constant 0.000000e+00 : f32
    %16 = vector.broadcast %cst_13 : f32 to vector<256x128xf32>
    %17 = arith.maximumf %15, %16 : vector<256x128xf32>
    %18 = arith.truncf %17 : vector<256x128xf32> to vector<256x128xbf16>
    %c0_14 = arith.constant 0 : index
    %c0_15 = arith.constant 0 : index
    %19 = vector.load %arg7[%c0_14, %c0_15] : memref<128x1024xbf16, #tpu.memory_space<vmem>>, vector<128x1024xbf16>
    %cst_16 = arith.constant dense<0.000000e+00> : vector<256x1024xf32>
    %20 = tpu.matmul %18, %19, %cst_16 {dimension_numbers = #tpu.dot_dimension_numbers<[1], [0], [0], [1], [0, 0, 1, 1], [], []>} : vector<256x128xbf16>, vector<128x1024xbf16>, vector<256x1024xf32> -> vector<256x1024xf32>
    %cst_17 = arith.constant dense<0xFF800000> : vector<1024xf32>
    %21 = vector.multi_reduction <maximumf>, %20, %cst_17 [0] : vector<256x1024xf32> to vector<1024xf32>
    %22 = vector.shape_cast %21 : vector<1024xf32> to vector<1x1024xf32>
    %c0_i32 = arith.constant 0 : i32
    %23 = arith.cmpi eq, %arg1, %c0_i32 : i32
    %24 = arith.extui %23 : i1 to i32
    %c0_i32_18 = arith.constant 0 : i32
    %25 = arith.cmpi ne, %24, %c0_i32_18 : i32
    scf.if %25 {
      %c0_23 = arith.constant 0 : index
      %c0_24 = arith.constant 0 : index
      %32 = vector.load %arg16[%c0_23, %c0_24] : memref<1x1024xf32, #tpu.memory_space<vmem>>, vector<1x1024xf32>
      tpu.vector_store %arg16[%c0_23, %c0_24], %22 {strides = array<i32>} : memref<1x1024xf32, #tpu.memory_space<vmem>>, vector<1x1024xf32>,
    } else {
    }
    %c0_i32_19 = arith.constant 0 : i32
    %26 = arith.cmpi sgt, %arg1, %c0_i32_19 : i32
    %27 = arith.extui %26 : i1 to i32
    %c0_i32_20 = arith.constant 0 : i32
    %28 = arith.cmpi ne, %27, %c0_i32_20 : i32
    scf.if %28 {
      %c0_23 = arith.constant 0 : index
      %c0_24 = arith.constant 0 : index
      %32 = vector.load %arg16[%c0_23, %c0_24] : memref<1x1024xf32, #tpu.memory_space<vmem>>, vector<1x1024xf32>
      %33 = arith.maximumf %32, %22 : vector<1x1024xf32>
      %c0_25 = arith.constant 0 : index
      %c0_26 = arith.constant 0 : index
      %34 = vector.load %arg16[%c0_25, %c0_26] : memref<1x1024xf32, #tpu.memory_space<vmem>>, vector<1x1024xf32>
      tpu.vector_store %arg16[%c0_25, %c0_26], %33 {strides = array<i32>} : memref<1x1024xf32, #tpu.memory_space<vmem>>, vector<1x1024xf32>,
    } else {
    }
    %c0_i32_21 = arith.constant 0 : i32
    %29 = arith.cmpi eq, %arg1, %c0_i32_21 : i32
    %30 = arith.extui %29 : i1 to i32
    %c0_i32_22 = arith.constant 0 : i32
    %31 = arith.cmpi ne, %30, %c0_i32_22 : i32
    scf.if %31 {
      %c0_23 = arith.constant 0 : index
      %c0_24 = arith.constant 0 : index
      %32 = vector.load %arg16[%c0_23, %c0_24] : memref<1x1024xf32, #tpu.memory_space<vmem>>, vector<1x1024xf32>
      %c0_25 = arith.constant 0 : index
      %c0_26 = arith.constant 0 : index
      %33 = vector.load %arg8[%c0_25, %c0_26] : memref<1x1024xf32, #tpu.memory_space<vmem>>, vector<1x1024xf32>
      %34 = arith.addf %32, %33 : vector<1x1024xf32>
      %cst_27 = arith.constant 0.000000e+00 : f32
      %35 = vector.broadcast %cst_27 : f32 to vector<1x1024xf32>
      %36 = arith.maximumf %34, %35 : vector<1x1024xf32>
      %37 = arith.truncf %36 : vector<1x1024xf32> to vector<1x1024xbf16>
      %c0_28 = arith.constant 0 : index
      %c0_29 = arith.constant 0 : index
      %38 = vector.load %arg9[%c0_28, %c0_29] : memref<1024x512xbf16, #tpu.memory_space<vmem>>, vector<1024x512xbf16>
      %cst_30 = arith.constant dense<0.000000e+00> : vector<1x512xf32>
      %39 = tpu.matmul %37, %38, %cst_30 {dimension_numbers = #tpu.dot_dimension_numbers<[1], [0], [0], [1], [0, 0, 1, 1], [], []>} : vector<1x1024xbf16>, vector<1024x512xbf16>, vector<1x512xf32> -> vector<1x512xf32>
      %c0_31 = arith.constant 0 : index
      %c0_32 = arith.constant 0 : index
      %40 = vector.load %arg10[%c0_31, %c0_32] : memref<1x512xf32, #tpu.memory_space<vmem>>, vector<1x512xf32>
      %41 = arith.addf %39, %40 : vector<1x512xf32>
      %cst_33 = arith.constant 0.000000e+00 : f32
      %42 = vector.broadcast %cst_33 : f32 to vector<1x512xf32>
      %43 = arith.maximumf %41, %42 : vector<1x512xf32>
      %44 = arith.truncf %43 : vector<1x512xf32> to vector<1x512xbf16>
      %c0_34 = arith.constant 0 : index
      %c0_35 = arith.constant 0 : index
      %45 = vector.load %arg11[%c0_34, %c0_35] : memref<512x256xbf16, #tpu.memory_space<vmem>>, vector<512x256xbf16>
      %cst_36 = arith.constant dense<0.000000e+00> : vector<1x256xf32>
      %46 = tpu.matmul %44, %45, %cst_36 {dimension_numbers = #tpu.dot_dimension_numbers<[1], [0], [0], [1], [0, 0, 1, 1], [], []>} : vector<1x512xbf16>, vector<512x256xbf16>, vector<1x256xf32> -> vector<1x256xf32>
      %c0_37 = arith.constant 0 : index
      %c0_38 = arith.constant 0 : index
      %47 = vector.load %arg12[%c0_37, %c0_38] : memref<1x256xf32, #tpu.memory_space<vmem>>, vector<1x256xf32>
      %48 = arith.addf %46, %47 : vector<1x256xf32>
      %cst_39 = arith.constant 0.000000e+00 : f32
      %49 = vector.broadcast %cst_39 : f32 to vector<1x256xf32>
      %50 = arith.maximumf %48, %49 : vector<1x256xf32>
      %c0_40 = arith.constant 0 : index
      %c0_41 = arith.constant 0 : index
      %51 = vector.load %arg13[%c0_40, %c0_41] : memref<256x9xf32, #tpu.memory_space<vmem>>, vector<256x9xf32>
      %cst_42 = arith.constant dense<0.000000e+00> : vector<1x9xf32>
      %52 = tpu.matmul %50, %51, %cst_42 {dimension_numbers = #tpu.dot_dimension_numbers<[1], [0], [0], [1], [0, 0, 1, 1], [], []>} : vector<1x256xf32>, vector<256x9xf32>, vector<1x9xf32> -> vector<1x9xf32>
      %c0_43 = arith.constant 0 : index
      %c0_44 = arith.constant 0 : index
      %53 = vector.load %arg14[%c0_43, %c0_44] : memref<1x9xf32, #tpu.memory_space<vmem>>, vector<1x9xf32>
      %54 = arith.addf %52, %53 : vector<1x9xf32>
      %55 = vector.shape_cast %54 : vector<1x9xf32> to vector<1x1x9xf32>
      %c0_45 = arith.constant 0 : index
      %c0_46 = arith.constant 0 : index
      %c0_47 = arith.constant 0 : index
      %56 = vector.load %arg15[%c0_45, %c0_46, %c0_47] : memref<1x1x9xf32, #tpu.memory_space<vmem>>, vector<1x1x9xf32>
      tpu.vector_store %arg15[%c0_45, %c0_46, %c0_47], %55 {strides = array<i32>} : memref<1x1x9xf32, #tpu.memory_space<vmem>>, vector<1x1x9xf32>,
    } else {
    }
    return
  }
  func.func @transform_0(%arg0: i32, %arg1: i32) -> (i32, i32, i32) {
    %c0_i32 = arith.constant 0 : i32
    %c0_i32_0 = arith.constant 0 : i32
    return %arg0, %arg1, %c0_i32 : i32, i32, i32
  }
  func.func @transform_1(%arg0: i32, %arg1: i32) -> (i32, i32, i32) {
    %c0_i32 = arith.constant 0 : i32
    %c0_i32_0 = arith.constant 0 : i32
    %c0_i32_1 = arith.constant 0 : i32
    %c0_i32_2 = arith.constant 0 : i32
    return %c0_i32, %c0_i32_0, %c0_i32_1 : i32, i32, i32
  }
  func.func @transform_2(%arg0: i32, %arg1: i32) -> (i32, i32) {
    %c0_i32 = arith.constant 0 : i32
    %c0_i32_0 = arith.constant 0 : i32
    %c0_i32_1 = arith.constant 0 : i32
    return %c0_i32, %c0_i32_0 : i32, i32
  }
  func.func @transform_3(%arg0: i32, %arg1: i32) -> (i32, i32) {
    %c0_i32 = arith.constant 0 : i32
    %c0_i32_0 = arith.constant 0 : i32
    %c0_i32_1 = arith.constant 0 : i32
    return %c0_i32, %c0_i32_0 : i32, i32
  }
  func.func @transform_4(%arg0: i32, %arg1: i32) -> (i32, i32) {
    %c0_i32 = arith.constant 0 : i32
    %c0_i32_0 = arith.constant 0 : i32
    %c0_i32_1 = arith.constant 0 : i32
    return %c0_i32, %c0_i32_0 : i32, i32
  }
  func.func @transform_5(%arg0: i32, %arg1: i32) -> (i32, i32) {
    %c0_i32 = arith.constant 0 : i32
    %c0_i32_0 = arith.constant 0 : i32
    %c0_i32_1 = arith.constant 0 : i32
    return %c0_i32, %c0_i32_0 : i32, i32
  }
  func.func @transform_6(%arg0: i32, %arg1: i32) -> (i32, i32) {
    %c0_i32 = arith.constant 0 : i32
    %c0_i32_0 = arith.constant 0 : i32
    %c0_i32_1 = arith.constant 0 : i32
    return %c0_i32, %c0_i32_0 : i32, i32
  }
  func.func @transform_7(%arg0: i32, %arg1: i32) -> (i32, i32) {
    %c0_i32 = arith.constant 0 : i32
    %c0_i32_0 = arith.constant 0 : i32
    %c0_i32_1 = arith.constant 0 : i32
    return %c0_i32, %c0_i32_0 : i32, i32
  }
  func.func @transform_8(%arg0: i32, %arg1: i32) -> (i32, i32) {
    %c0_i32 = arith.constant 0 : i32
    %c0_i32_0 = arith.constant 0 : i32
    %c0_i32_1 = arith.constant 0 : i32
    return %c0_i32, %c0_i32_0 : i32, i32
  }
  func.func @transform_9(%arg0: i32, %arg1: i32) -> (i32, i32) {
    %c0_i32 = arith.constant 0 : i32
    %c0_i32_0 = arith.constant 0 : i32
    %c0_i32_1 = arith.constant 0 : i32
    return %c0_i32, %c0_i32_0 : i32, i32
  }
  func.func @transform_10(%arg0: i32, %arg1: i32) -> (i32, i32) {
    %c0_i32 = arith.constant 0 : i32
    %c0_i32_0 = arith.constant 0 : i32
    %c0_i32_1 = arith.constant 0 : i32
    return %c0_i32, %c0_i32_0 : i32, i32
  }
  func.func @transform_11(%arg0: i32, %arg1: i32) -> (i32, i32) {
    %c0_i32 = arith.constant 0 : i32
    %c0_i32_0 = arith.constant 0 : i32
    %c0_i32_1 = arith.constant 0 : i32
    return %c0_i32, %c0_i32_0 : i32, i32
  }
  func.func @transform_12(%arg0: i32, %arg1: i32) -> (i32, i32) {
    %c0_i32 = arith.constant 0 : i32
    %c0_i32_0 = arith.constant 0 : i32
    %c0_i32_1 = arith.constant 0 : i32
    return %c0_i32, %c0_i32_0 : i32, i32
  }
  func.func @transform_13(%arg0: i32, %arg1: i32) -> (i32, i32, i32) {
    %c0_i32 = arith.constant 0 : i32
    %c0_i32_0 = arith.constant 0 : i32
    %c0_i32_1 = arith.constant 0 : i32
    return %arg0, %c0_i32, %c0_i32_0 : i32, i32, i32
  }
}

module attributes {stable_mosaic.version = 11 : i64} {
  func.func @_feat_proj_kernel(%arg0: i32, %arg1: i32, %arg2: memref<1x256x8xbf16, #tpu.memory_space<vmem>>, %arg3: memref<1x8x64xbf16, #tpu.memory_space<vmem>>, %arg4: memref<1x64xf32, #tpu.memory_space<vmem>>, %arg5: memref<64x128xbf16, #tpu.memory_space<vmem>>, %arg6: memref<1x128xf32, #tpu.memory_space<vmem>>, %arg7: memref<128x1024xbf16, #tpu.memory_space<vmem>>, %arg8: memref<1x1024xf32, #tpu.memory_space<vmem>>, %arg9: memref<1024x512xbf16, #tpu.memory_space<vmem>>, %arg10: memref<1x512xf32, #tpu.memory_space<vmem>>, %arg11: memref<512x128xbf16, #tpu.memory_space<vmem>>, %arg12: memref<1x128xf32, #tpu.memory_space<vmem>>, %arg13: memref<1x1x128xf32, #tpu.memory_space<vmem>>, %arg14: memref<1x1024xf32, #tpu.memory_space<vmem>>) attributes {dimension_semantics = [#tpu.dimension_semantics<parallel>, #tpu.dimension_semantics<arbitrary>], iteration_bounds = array<i64: 4, 1>, scalar_prefetch = 0 : i64, scratch_operands = 1 : i64, tpu.core_type = #tpu.core_type<tc>, window_params = [{transform_indices = @transform_0, window_bounds = array<i64: 1, 256, 8>}, {transform_indices = @transform_1, window_bounds = array<i64: 1, 8, 64>}, {pipeline_mode = #tpu.pipeline_mode<synchronous>, transform_indices = @transform_2, window_bounds = array<i64: 1, 64>}, {pipeline_mode = #tpu.pipeline_mode<synchronous>, transform_indices = @transform_3, window_bounds = array<i64: 64, 128>}, {pipeline_mode = #tpu.pipeline_mode<synchronous>, transform_indices = @transform_4, window_bounds = array<i64: 1, 128>}, {pipeline_mode = #tpu.pipeline_mode<synchronous>, transform_indices = @transform_5, window_bounds = array<i64: 128, 1024>}, {pipeline_mode = #tpu.pipeline_mode<synchronous>, transform_indices = @transform_6, window_bounds = array<i64: 1, 1024>}, {pipeline_mode = #tpu.pipeline_mode<synchronous>, transform_indices = @transform_7, window_bounds = array<i64: 1024, 512>}, {pipeline_mode = #tpu.pipeline_mode<synchronous>, transform_indices = @transform_8, window_bounds = array<i64: 1, 512>}, {pipeline_mode = #tpu.pipeline_mode<synchronous>, transform_indices = @transform_9, window_bounds = array<i64: 512, 128>}, {pipeline_mode = #tpu.pipeline_mode<synchronous>, transform_indices = @transform_10, window_bounds = array<i64: 1, 128>}, {transform_indices = @transform_11, window_bounds = array<i64: 1, 1, 128>}]} {
    %c0 = arith.constant 0 : index
    %c0_0 = arith.constant 0 : index
    %c0_1 = arith.constant 0 : index
    %0 = vector.load %arg2[%c0, %c0_0, %c0_1] : memref<1x256x8xbf16, #tpu.memory_space<vmem>>, vector<1x256x8xbf16>
    %1 = vector.shape_cast %0 : vector<1x256x8xbf16> to vector<256x8xbf16>
    %c0_2 = arith.constant 0 : index
    %c0_3 = arith.constant 0 : index
    %c0_4 = arith.constant 0 : index
    %2 = vector.load %arg3[%c0_2, %c0_3, %c0_4] : memref<1x8x64xbf16, #tpu.memory_space<vmem>>, vector<1x8x64xbf16>
    %3 = vector.shape_cast %2 : vector<1x8x64xbf16> to vector<8x64xbf16>
    %cst = arith.constant dense<0.000000e+00> : vector<256x64xf32>
    %4 = tpu.matmul %1, %3, %cst {dimension_numbers = #tpu.dot_dimension_numbers<[1], [0], [0], [1], [0, 0, 1, 1], [], []>} : vector<256x8xbf16>, vector<8x64xbf16>, vector<256x64xf32> -> vector<256x64xf32>
    %c0_5 = arith.constant 0 : index
    %c0_6 = arith.constant 0 : index
    %5 = vector.load %arg4[%c0_5, %c0_6] : memref<1x64xf32, #tpu.memory_space<vmem>>, vector<1x64xf32>
    %6 = vector.broadcast %5 : vector<1x64xf32> to vector<256x64xf32>
    %7 = arith.addf %4, %6 : vector<256x64xf32>
    %cst_7 = arith.constant 0.000000e+00 : f32
    %8 = vector.broadcast %cst_7 : f32 to vector<256x64xf32>
    %9 = arith.maximumf %7, %8 : vector<256x64xf32>
    %10 = arith.truncf %9 : vector<256x64xf32> to vector<256x64xbf16>
    %c0_8 = arith.constant 0 : index
    %c0_9 = arith.constant 0 : index
    %11 = vector.load %arg5[%c0_8, %c0_9] : memref<64x128xbf16, #tpu.memory_space<vmem>>, vector<64x128xbf16>
    %cst_10 = arith.constant dense<0.000000e+00> : vector<256x128xf32>
    %12 = tpu.matmul %10, %11, %cst_10 {dimension_numbers = #tpu.dot_dimension_numbers<[1], [0], [0], [1], [0, 0, 1, 1], [], []>} : vector<256x64xbf16>, vector<64x128xbf16>, vector<256x128xf32> -> vector<256x128xf32>
    %c0_11 = arith.constant 0 : index
    %c0_12 = arith.constant 0 : index
    %13 = vector.load %arg6[%c0_11, %c0_12] : memref<1x128xf32, #tpu.memory_space<vmem>>, vector<1x128xf32>
    %14 = vector.broadcast %13 : vector<1x128xf32> to vector<256x128xf32>
    %15 = arith.addf %12, %14 : vector<256x128xf32>
    %cst_13 = arith.constant 0.000000e+00 : f32
    %16 = vector.broadcast %cst_13 : f32 to vector<256x128xf32>
    %17 = arith.maximumf %15, %16 : vector<256x128xf32>
    %18 = arith.truncf %17 : vector<256x128xf32> to vector<256x128xbf16>
    %c0_14 = arith.constant 0 : index
    %c0_15 = arith.constant 0 : index
    %19 = vector.load %arg7[%c0_14, %c0_15] : memref<128x1024xbf16, #tpu.memory_space<vmem>>, vector<128x1024xbf16>
    %cst_16 = arith.constant dense<0.000000e+00> : vector<256x1024xf32>
    %20 = tpu.matmul %18, %19, %cst_16 {dimension_numbers = #tpu.dot_dimension_numbers<[1], [0], [0], [1], [0, 0, 1, 1], [], []>} : vector<256x128xbf16>, vector<128x1024xbf16>, vector<256x1024xf32> -> vector<256x1024xf32>
    %cst_17 = arith.constant dense<0xFF800000> : vector<1024xf32>
    %21 = vector.multi_reduction <maximumf>, %20, %cst_17 [0] : vector<256x1024xf32> to vector<1024xf32>
    %22 = vector.shape_cast %21 : vector<1024xf32> to vector<1x1024xf32>
    %c0_i32 = arith.constant 0 : i32
    %23 = arith.cmpi eq, %arg1, %c0_i32 : i32
    %24 = arith.extui %23 : i1 to i32
    %c0_i32_18 = arith.constant 0 : i32
    %25 = arith.cmpi ne, %24, %c0_i32_18 : i32
    scf.if %25 {
      %c0_23 = arith.constant 0 : index
      %c0_24 = arith.constant 0 : index
      %32 = vector.load %arg14[%c0_23, %c0_24] : memref<1x1024xf32, #tpu.memory_space<vmem>>, vector<1x1024xf32>
      tpu.vector_store %arg14[%c0_23, %c0_24], %22 {strides = array<i32>} : memref<1x1024xf32, #tpu.memory_space<vmem>>, vector<1x1024xf32>,
    } else {
    }
    %c0_i32_19 = arith.constant 0 : i32
    %26 = arith.cmpi sgt, %arg1, %c0_i32_19 : i32
    %27 = arith.extui %26 : i1 to i32
    %c0_i32_20 = arith.constant 0 : i32
    %28 = arith.cmpi ne, %27, %c0_i32_20 : i32
    scf.if %28 {
      %c0_23 = arith.constant 0 : index
      %c0_24 = arith.constant 0 : index
      %32 = vector.load %arg14[%c0_23, %c0_24] : memref<1x1024xf32, #tpu.memory_space<vmem>>, vector<1x1024xf32>
      %33 = arith.maximumf %32, %22 : vector<1x1024xf32>
      %c0_25 = arith.constant 0 : index
      %c0_26 = arith.constant 0 : index
      %34 = vector.load %arg14[%c0_25, %c0_26] : memref<1x1024xf32, #tpu.memory_space<vmem>>, vector<1x1024xf32>
      tpu.vector_store %arg14[%c0_25, %c0_26], %33 {strides = array<i32>} : memref<1x1024xf32, #tpu.memory_space<vmem>>, vector<1x1024xf32>,
    } else {
    }
    %c0_i32_21 = arith.constant 0 : i32
    %29 = arith.cmpi eq, %arg1, %c0_i32_21 : i32
    %30 = arith.extui %29 : i1 to i32
    %c0_i32_22 = arith.constant 0 : i32
    %31 = arith.cmpi ne, %30, %c0_i32_22 : i32
    scf.if %31 {
      %c0_23 = arith.constant 0 : index
      %c0_24 = arith.constant 0 : index
      %32 = vector.load %arg14[%c0_23, %c0_24] : memref<1x1024xf32, #tpu.memory_space<vmem>>, vector<1x1024xf32>
      %c0_25 = arith.constant 0 : index
      %c0_26 = arith.constant 0 : index
      %33 = vector.load %arg8[%c0_25, %c0_26] : memref<1x1024xf32, #tpu.memory_space<vmem>>, vector<1x1024xf32>
      %34 = arith.addf %32, %33 : vector<1x1024xf32>
      %35 = arith.truncf %34 : vector<1x1024xf32> to vector<1x1024xbf16>
      %c0_27 = arith.constant 0 : index
      %c0_28 = arith.constant 0 : index
      %36 = vector.load %arg9[%c0_27, %c0_28] : memref<1024x512xbf16, #tpu.memory_space<vmem>>, vector<1024x512xbf16>
      %cst_29 = arith.constant dense<0.000000e+00> : vector<1x512xf32>
      %37 = tpu.matmul %35, %36, %cst_29 {dimension_numbers = #tpu.dot_dimension_numbers<[1], [0], [0], [1], [0, 0, 1, 1], [], []>} : vector<1x1024xbf16>, vector<1024x512xbf16>, vector<1x512xf32> -> vector<1x512xf32>
      %c0_30 = arith.constant 0 : index
      %c0_31 = arith.constant 0 : index
      %38 = vector.load %arg10[%c0_30, %c0_31] : memref<1x512xf32, #tpu.memory_space<vmem>>, vector<1x512xf32>
      %39 = arith.addf %37, %38 : vector<1x512xf32>
      %cst_32 = arith.constant 0.000000e+00 : f32
      %40 = vector.broadcast %cst_32 : f32 to vector<1x512xf32>
      %41 = arith.maximumf %39, %40 : vector<1x512xf32>
      %42 = arith.truncf %41 : vector<1x512xf32> to vector<1x512xbf16>
      %c0_33 = arith.constant 0 : index
      %c0_34 = arith.constant 0 : index
      %43 = vector.load %arg11[%c0_33, %c0_34] : memref<512x128xbf16, #tpu.memory_space<vmem>>, vector<512x128xbf16>
      %cst_35 = arith.constant dense<0.000000e+00> : vector<1x128xf32>
      %44 = tpu.matmul %42, %43, %cst_35 {dimension_numbers = #tpu.dot_dimension_numbers<[1], [0], [0], [1], [0, 0, 1, 1], [], []>} : vector<1x512xbf16>, vector<512x128xbf16>, vector<1x128xf32> -> vector<1x128xf32>
      %c0_36 = arith.constant 0 : index
      %c0_37 = arith.constant 0 : index
      %45 = vector.load %arg12[%c0_36, %c0_37] : memref<1x128xf32, #tpu.memory_space<vmem>>, vector<1x128xf32>
      %46 = arith.addf %44, %45 : vector<1x128xf32>
      %47 = arith.mulf %46, %46 : vector<1x128xf32>
      %cst_38 = arith.constant dense<0.000000e+00> : vector<1xf32>
      %48 = vector.multi_reduction <add>, %47, %cst_38 [1] : vector<1x128xf32> to vector<1xf32>
      %49 = vector.shape_cast %48 : vector<1xf32> to vector<1x1xf32>
      %50 = math.sqrt %49 : vector<1x1xf32>
      %cst_39 = arith.constant 9.99999996E-13 : f32
      %51 = vector.broadcast %cst_39 : f32 to vector<1x1xf32>
      %52 = arith.maximumf %50, %51 : vector<1x1xf32>
      %53 = vector.broadcast %52 : vector<1x1xf32> to vector<1x128xf32>
      %54 = arith.divf %46, %53 : vector<1x128xf32>
      %55 = vector.shape_cast %54 : vector<1x128xf32> to vector<1x1x128xf32>
      %c0_40 = arith.constant 0 : index
      %c0_41 = arith.constant 0 : index
      %c0_42 = arith.constant 0 : index
      %56 = vector.load %arg13[%c0_40, %c0_41, %c0_42] : memref<1x1x128xf32, #tpu.memory_space<vmem>>, vector<1x1x128xf32>
      tpu.vector_store %arg13[%c0_40, %c0_41, %c0_42], %55 {strides = array<i32>} : memref<1x1x128xf32, #tpu.memory_space<vmem>>, vector<1x1x128xf32>,
    } else {
    }
    return
  }
  func.func @transform_0(%arg0: i32, %arg1: i32) -> (i32, i32, i32) {
    %c0_i32 = arith.constant 0 : i32
    %c0_i32_0 = arith.constant 0 : i32
    return %arg0, %arg1, %c0_i32 : i32, i32, i32
  }
  func.func @transform_1(%arg0: i32, %arg1: i32) -> (i32, i32, i32) {
    %c0_i32 = arith.constant 0 : i32
    %c0_i32_0 = arith.constant 0 : i32
    %c0_i32_1 = arith.constant 0 : i32
    return %arg0, %c0_i32, %c0_i32_0 : i32, i32, i32
  }
  func.func @transform_2(%arg0: i32, %arg1: i32) -> (i32, i32) {
    %c0_i32 = arith.constant 0 : i32
    %c0_i32_0 = arith.constant 0 : i32
    %c0_i32_1 = arith.constant 0 : i32
    return %c0_i32, %c0_i32_0 : i32, i32
  }
  func.func @transform_3(%arg0: i32, %arg1: i32) -> (i32, i32) {
    %c0_i32 = arith.constant 0 : i32
    %c0_i32_0 = arith.constant 0 : i32
    %c0_i32_1 = arith.constant 0 : i32
    return %c0_i32, %c0_i32_0 : i32, i32
  }
  func.func @transform_4(%arg0: i32, %arg1: i32) -> (i32, i32) {
    %c0_i32 = arith.constant 0 : i32
    %c0_i32_0 = arith.constant 0 : i32
    %c0_i32_1 = arith.constant 0 : i32
    return %c0_i32, %c0_i32_0 : i32, i32
  }
  func.func @transform_5(%arg0: i32, %arg1: i32) -> (i32, i32) {
    %c0_i32 = arith.constant 0 : i32
    %c0_i32_0 = arith.constant 0 : i32
    %c0_i32_1 = arith.constant 0 : i32
    return %c0_i32, %c0_i32_0 : i32, i32
  }
  func.func @transform_6(%arg0: i32, %arg1: i32) -> (i32, i32) {
    %c0_i32 = arith.constant 0 : i32
    %c0_i32_0 = arith.constant 0 : i32
    %c0_i32_1 = arith.constant 0 : i32
    return %c0_i32, %c0_i32_0 : i32, i32
  }
  func.func @transform_7(%arg0: i32, %arg1: i32) -> (i32, i32) {
    %c0_i32 = arith.constant 0 : i32
    %c0_i32_0 = arith.constant 0 : i32
    %c0_i32_1 = arith.constant 0 : i32
    return %c0_i32, %c0_i32_0 : i32, i32
  }
  func.func @transform_8(%arg0: i32, %arg1: i32) -> (i32, i32) {
    %c0_i32 = arith.constant 0 : i32
    %c0_i32_0 = arith.constant 0 : i32
    %c0_i32_1 = arith.constant 0 : i32
    return %c0_i32, %c0_i32_0 : i32, i32
  }
  func.func @transform_9(%arg0: i32, %arg1: i32) -> (i32, i32) {
    %c0_i32 = arith.constant 0 : i32
    %c0_i32_0 = arith.constant 0 : i32
    %c0_i32_1 = arith.constant 0 : i32
    return %c0_i32, %c0_i32_0 : i32, i32
  }
  func.func @transform_10(%arg0: i32, %arg1: i32) -> (i32, i32) {
    %c0_i32 = arith.constant 0 : i32
    %c0_i32_0 = arith.constant 0 : i32
    %c0_i32_1 = arith.constant 0 : i32
    return %c0_i32, %c0_i32_0 : i32, i32
  }
  func.func @transform_11(%arg0: i32, %arg1: i32) -> (i32, i32, i32) {
    %c0_i32 = arith.constant 0 : i32
    %c0_i32_0 = arith.constant 0 : i32
    %c0_i32_1 = arith.constant 0 : i32
    return %arg0, %c0_i32, %c0_i32_0 : i32, i32, i32
  }
}

module attributes {stable_mosaic.version = 11 : i64} {
  func.func @_head_kernel(%arg0: memref<4x128xf32, #tpu.memory_space<vmem>>, %arg1: memref<128x2xf32, #tpu.memory_space<vmem>>, %arg2: memref<1x2xf32, #tpu.memory_space<vmem>>, %arg3: memref<2x2xf32, #tpu.memory_space<vmem>>) attributes {dimension_semantics = [], scalar_prefetch = 0 : i64, scratch_operands = 0 : i64, tpu.core_type = #tpu.core_type<tc>} {
    %c0 = arith.constant 0 : index
    %c0_0 = arith.constant 0 : index
    %0 = vector.load %arg0[%c0, %c0_0] : memref<4x128xf32, #tpu.memory_space<vmem>>, vector<4x128xf32>
    %1 = vector.extract_strided_slice %0 {offsets = [0, 0], sizes = [2, 128], strides = [1, 1]} : vector<4x128xf32> to vector<2x128xf32>
    %2 = vector.extract_strided_slice %0 {offsets = [2, 0], sizes = [2, 128], strides = [1, 1]} : vector<4x128xf32> to vector<2x128xf32>
    %3 = arith.subf %1, %2 : vector<2x128xf32>
    %4 = math.absf %3 : vector<2x128xf32>
    %c0_1 = arith.constant 0 : index
    %c0_2 = arith.constant 0 : index
    %5 = vector.load %arg1[%c0_1, %c0_2] : memref<128x2xf32, #tpu.memory_space<vmem>>, vector<128x2xf32>
    %cst = arith.constant dense<0.000000e+00> : vector<2x2xf32>
    %6 = tpu.matmul %4, %5, %cst {dimension_numbers = #tpu.dot_dimension_numbers<[1], [0], [0], [1], [0, 0, 1, 1], [], []>} : vector<2x128xf32>, vector<128x2xf32>, vector<2x2xf32> -> vector<2x2xf32>
    %c0_3 = arith.constant 0 : index
    %c0_4 = arith.constant 0 : index
    %7 = vector.load %arg2[%c0_3, %c0_4] : memref<1x2xf32, #tpu.memory_space<vmem>>, vector<1x2xf32>
    %8 = vector.broadcast %7 : vector<1x2xf32> to vector<2x2xf32>
    %9 = arith.addf %6, %8 : vector<2x2xf32>
    %10 = arith.negf %9 : vector<2x2xf32>
    %11 = math.exp %10 : vector<2x2xf32>
    %cst_5 = arith.constant 1.000000e+00 : f32
    %12 = vector.broadcast %cst_5 : f32 to vector<2x2xf32>
    %13 = arith.addf %12, %11 : vector<2x2xf32>
    %14 = arith.divf %12, %13 : vector<2x2xf32>
    %c0_6 = arith.constant 0 : index
    %c0_7 = arith.constant 0 : index
    %15 = vector.load %arg3[%c0_6, %c0_7] : memref<2x2xf32, #tpu.memory_space<vmem>>, vector<2x2xf32>
    tpu.vector_store %arg3[%c0_6, %c0_7], %14 {strides = array<i32>} : memref<2x2xf32, #tpu.memory_space<vmem>>, vector<2x2xf32>,
    return
  }
}

</mosaic_0001>

<llo_original>
// kernel: forward.5
$region0: #{forward.5}
  #allocation0 [shape = 'u32[]', space=smem, size = 0x4, offset = 0x4, fixed_abs, tag = 'smem constant byte address 0x4 - core index']
  #allocation1 [shape = 'u32[72,128]{1,0:T(1,128)}', space=vmem, size = 0x9000, scoped, tag = 'internal scratch']
  %s0 = inlined_call_operand.vmem [shape: f32[4,128], index: 0, kind: input, shape index: {}]
  %s1 = inlined_call_operand.vmem [shape: f32[128,2], index: 1, kind: input, shape index: {}]
  %s2 = inlined_call_operand.vmem [shape: f32[1,2], index: 2, kind: input, shape index: {}]
  %s3 = inlined_call_operand.hbm [shape: f32[2,2], index: 3, kind: output, shape index: {}]
  %s4 = sld [smem:[#allocation0]]
  $region22: #{forward.5} parent=0
    _
  %s6 = ssub.s32 1, %s4
  %s7 = scalar_select 0, %s6, %s4
  $region1: #{forward.5} parent=0
    #allocation2 [shape = 'u8[1024]{0}', space=vmem, size = 0x400, scoped, tag = 'output window, operand 0, single buffered']
    #allocation3 [shape = 's32[1]{0}', space=sflag, size = 0x4, scoped, tag = 'scoped memory for forward.5']
    %8 = vsyncpa [#allocation3], 0
    // Predicated region
    $region2: #{forward.5} parent=1 // pred_check
      _
    $region3: #{forward.5} parent=1 // pred_check_branch
      %10 = sbr.rel (0) target = $region5
    $region4: #{forward.5} parent=1 // pred_region
      _
    $region5: #{forward.5} parent=1 // pred_fallthru
      _
    // Predicated region
    $region6: #{forward.5} parent=1 // pred_check
      _
    $region7: #{forward.5} parent=1 // pred_check_branch
      %12 = sbr.rel (0) target = $region9
    $region8: #{forward.5} parent=1 // pred_region
      _
    $region9: #{forward.5} parent=1 // pred_fallthru
      _
    // Predicated region
    $region10: #{forward.5} parent=1 // pred_check
      _
    $region11: #{forward.5} parent=1 // pred_check_branch
      %14 = sbr.rel (0) target = $region13
    $region12: #{forward.5} parent=1 // pred_region
      _
    $region13: #{forward.5} parent=1 // pred_fallthru
      _
    %v15 = vld [vmem:[%s0] sm:$0xf]
    %v17 = vrot.slane %v15, 2
    %v19 = vsub.f32 %v15, %v17
    %v20 = vand.u32 2147483647, %v19
    %v21 = vld [vmem:[%s1] sm:$0xff]
    %v22 = vld [vmem:[%s1 + $0x8] sm:$0xff]
    %v23 = vld [vmem:[%s1 + $0x10] sm:$0xff]
    %v24 = vld [vmem:[%s1 + $0x18] sm:$0xff]
    %v25 = vld [vmem:[%s1 + $0x20] sm:$0xff]
    %v26 = vld [vmem:[%s1 + $0x28] sm:$0xff]
    %v27 = vld [vmem:[%s1 + $0x30] sm:$0xff]
    %v28 = vld [vmem:[%s1 + $0x38] sm:$0xff]
    %v29 = vld [vmem:[%s1 + $0x40] sm:$0xff]
    %v30 = vld [vmem:[%s1 + $0x48] sm:$0xff]
    %v31 = vld [vmem:[%s1 + $0x50] sm:$0xff]
    %v32 = vld [vmem:[%s1 + $0x58] sm:$0xff]
    %v33 = vld [vmem:[%s1 + $0x60] sm:$0xff]
    %v34 = vld [vmem:[%s1 + $0x68] sm:$0xff]
    %v35 = vld [vmem:[%s1 + $0x70] sm:$0xff]
    %v36 = vld [vmem:[%s1 + $0x78] sm:$0xff]
    %v37 = vld [vmem:[%s2] sm:$0x1]
    %v39 = vperm.slane %v37, 0
    %41 = vmatpush.msra.mxu0 %v36
    %42 = vmatpush.msra.mxu0 %v35
    %43 = vmatpush.msra.mxu0 %v34
    %44 = vmatpush.msra.mxu0 %v33
    %45 = vmatpush.msra.mxu0 %v32
    %46 = vmatpush.msra.mxu0 %v31
    %47 = vmatpush.msra.mxu0 %v30
    %48 = vmatpush.msra.mxu0 %v29
    %49 = vmatpush.msra.mxu0 %v28
    %50 = vmatpush.msra.mxu0 %v27
    %51 = vmatpush.msra.mxu0 %v26
    %52 = vmatpush.msra.mxu0 %v25
    %53 = vmatpush.msra.mxu0 %v24
    %54 = vmatpush.msra.mxu0 %v23
    %55 = vmatpush.msra.mxu0 %v22
    %56 = vmatpush.msra.mxu0 %v21
    %57 = vmatmul.f32.gmra.mxu0 %v20
    %v58 = vpop.f32.mrf.mxu0
    %v59 = vadd.f32 %v39, %v58
    %60 = vdwg.mxu0
    %v61 = vxor.u32 %v59, 2147483648
    %v62 = vmul.f32 %v61, 1.442695
    %v63 = vpow.pop %v62
    %v64 = vadd.f32 %v63, 1.0
    %v65 = vrcp.pop %v64
    %v66 = vmul.f32 %v64, %v65
    %v67 = vsub.f32 1.0, %v66
    %v68 = vmul.f32 %v65, %v67
    %v69 = vadd.f32 %v65, %v68
    %vm70 = vweird.f32 %v64
    %vm71 = vweird.f32 %v65
    %vm72 = vmor %vm70, %vm71
    %v73 = vsel %vm72, %v65, %v69
    %v74 = vand.u32 2147483647, %v64
    %vm75 = vcmp.eq.f32.partialorder %v74, 8.507059e+37
    %v76 = vand.u32 %v64, 2147483648
    %v77 = vor.u32 1.1754944e-38, %v76
    %v78 = vsel %vm75, %v77, %v73
    %v79 = vmul.f32 1.0, %v78
    %vm80 = vcmask 9216
    %81 = vst.msk [vmem:[#allocation2] sm:$0x3] %vm80, %v79
    // Predicated region
    $region14: #{forward.5} parent=1 // pred_check
      _
    $region15: #{forward.5} parent=1 // pred_check_branch
      %83 = sbr.rel (0) target = $region17
    $region16: #{forward.5} parent=1 // pred_region
      %85 = vsyncadd [#allocation3], 0
      %s87 = sshll.u32 [#allocation2], 4
      %s88 = int_to_ptr.vmem [resolvable:$true] %s87
      %s89 = sshll.u32 %s3, 4
      %s90 = int_to_ptr.hbm [resolvable:$true] %s89
      %92 = dma.vmem_to_hbm [thread:$0]  %s88, 32, %s90, [#allocation3]
    $region17: #{forward.5} parent=1 // pred_fallthru
      _
    // Predicated region
    $region18: #{forward.5} parent=1 // pred_check
      _
    $region19: #{forward.5} parent=1 // pred_check_branch
      %94 = sbr.rel (0) target = $region21
    $region20: #{forward.5} parent=1 // pred_region
      %96 = dma.done [#allocation3], 32
    $region21: #{forward.5} parent=1 // pred_fallthru
      _
    %97 = vsyncpa [#allocation3], 1

// kernel: forward.4
$region0: #{forward.4}
  #allocation0 [shape = 'u32[]', space=smem, size = 0x4, offset = 0x4, fixed_abs, tag = 'smem constant byte address 0x4 - core index']
  #allocation1 [shape = 'u32[72,128]{1,0:T(1,128)}', space=vmem, size = 0x9000, scoped, tag = 'internal scratch']
  #allocation2 [shape = 'f32[1,1024]{1,0:T(1,128)}', space=vmem, size = 0x1000, scoped, tag = 'scratch operand']
  %s0 = inlined_call_operand.vmem [shape: bf16[4,256,8], index: 0, kind: input, shape index: {}]
  %s1 = inlined_call_operand.vmem [shape: bf16[4,8,64], index: 1, kind: input, shape index: {}]
  %s2 = inlined_call_operand.vmem [shape: f32[1,64], index: 2, kind: input, shape index: {}]
  %s3 = inlined_call_operand.vmem [shape: bf16[64,128], index: 3, kind: input, shape index: {}]
  %s4 = inlined_call_operand.vmem [shape: f32[1,128], index: 4, kind: input, shape index: {}]
  %s5 = inlined_call_operand.vmem [shape: bf16[128,1024], index: 5, kind: input, shape index: {}]
  %s6 = inlined_call_operand.vmem [shape: f32[1,1024], index: 6, kind: input, shape index: {}]
  %s7 = inlined_call_operand.hbm [shape: bf16[1024,512], index: 7, kind: input, shape index: {}]
  %s8 = inlined_call_operand.vmem [shape: f32[1,512], index: 8, kind: input, shape index: {}]
  %s9 = inlined_call_operand.vmem [shape: bf16[512,128], index: 9, kind: input, shape index: {}]
  %s10 = inlined_call_operand.vmem [shape: f32[1,128], index: 10, kind: input, shape index: {}]
  %s11 = inlined_call_operand.vmem [shape: f32[4,1,128], index: 11, kind: output, shape index: {}]
  %s12 = sld [smem:[#allocation0]]
  $region93: #{forward.4} parent=0
    _
  %s14 = ssub.s32 1, %s12
  %s15 = scalar_select 0, %s14, %s12
  $region1: #{forward.4} parent=0
    #allocation3 [shape = 'u8[1048576]{0}', space=vmem, size = 0x100000, scoped, tag = 'input window, operand 7, single buffered']
    #allocation4 [shape = 's32[2]{0}', space=sflag, size = 0x8, scoped, tag = 'scoped memory for forward.4']
    %16 = vsyncpa [#allocation4], 0
    loop: start=0, step=1, limit=6
    $region2: #{forward.4} parent=1 // loop_pre_header
      _
    $region3: #{forward.4} parent=1 // loop_header
      %s18 = sphi 0, %s22
      %p19 = scmp.ge.s32.totalorder %s18, 6
      %s25 = sphi 0, %s37
      %s26 = sphi 0, %s33
      %s27 = sphi 0, %s25
      %s28 = sphi 0, %s26
      %s29 = sphi 0, %s27
      %s30 = sphi 0, %s28
      %s42 = sphi 0, %s44
      %s45 = sphi 0, %s42
      %s46 = sphi 0, %s45
      %s62 = sphi 0, %s46
      %s68 = sphi 0, %s70
      %s71 = sphi 0, %s68
      %s72 = sphi 0, %s71
      %s88 = sphi 0, %s72
      %s92 = sphi 0, %s92
      %s94 = sphi 0, %s92
      %s95 = sphi 0, %s94
      %s109 = sphi 0, %s95
      %s113 = sphi 0, %s113
      %s115 = sphi 0, %s113
      %s116 = sphi 0, %s115
      %s130 = sphi 0, %s116
      %s134 = sphi 0, %s134
      %s136 = sphi 0, %s134
      %s137 = sphi 0, %s136
      %s151 = sphi 0, %s137
      %s155 = sphi 0, %s155
      %s157 = sphi 0, %s155
      %s158 = sphi 0, %s157
      %s172 = sphi 0, %s158
      %s176 = sphi 0, %s176
      %s178 = sphi 0, %s176
      %s179 = sphi 0, %s178
      %s193 = sphi 0, %s179
      %s197 = sphi 0, %s197
      %s199 = sphi 0, %s197
      %s200 = sphi 0, %s199
      %s214 = sphi 0, %s200
      %s218 = sphi 0, %s218
      %s220 = sphi 0, %s218
      %s221 = sphi 0, %s220
      %s235 = sphi 0, %s221
      %s239 = sphi 0, %s239
      %s241 = sphi 0, %s239
      %s242 = sphi 0, %s241
      %s256 = sphi 0, %s242
      %s260 = sphi 0, %s260
      %s262 = sphi 0, %s260
      %s263 = sphi 0, %s262
      %s277 = sphi 0, %s263
      %s283 = sphi 0, %s285
      %s286 = sphi 0, %s283
      %s287 = sphi 0, %s286
      %s303 = sphi 0, %s287
    $region4: #{forward.4} parent=1 // loop_header_branch
      %21 = sbr.rel (%p19) target = $region8
    $region5: #{forward.4} parent=1 // loop_body
      %s23 = ssub.s32 %s18, 1
      %s24 = ssub.s32 %s18, 2
      %s31 = sadd.s32 1, %s26
      %p32 = scmp.ge.s32.totalorder %s31, 1
      %s33 = scalar_select %p32, 0, %s31
      %s34 = sadd.s32 1, %s25
      %s35 = scalar_select %p32, %s34, %s25
      %p36 = scmp.ge.s32.totalorder %s35, 4
      %s37 = scalar_select %p36, 0, %s35
      %s38 = ssub.s32 %s25, %s37
      %s39 = ssub.s32 %s26, %s33
      %s40 = sor.u32 %s38, %s39
      %p41 = scmp.eq.s32.totalorder %s40, 0
      %s43 = sadd.s32 %s42, 1
      %s44 = scalar_select %p41, %s42, %s43
      %p47 = pneg %p41
      %p48 = scmp.eq.s32.totalorder %s18, 3
      %p49 = por %p47, %p48
      %p50 = scmp.ne.s32.totalorder %s42, %s45
      %p51 = scmp.eq.s32.totalorder %s18, 0
      %p52 = por %p50, %p51
      %p53 = scmp.ne.s32.totalorder %s42, %s45
      %p54 = scmp.eq.s32.totalorder %s23, 3
      %p55 = por %p53, %p54
      %p56 = scmp.ne.s32.totalorder %s45, %s46
      %p57 = scmp.eq.s32.totalorder %s23, 0
      %p58 = por %p56, %p57
      %p59 = scmp.ne.s32.totalorder %s45, %s46
      %p60 = scmp.eq.s32.totalorder %s24, 3
      %p61 = por %p59, %p60
      %p63 = scmp.ne.s32.totalorder %s46, %s62
      %p64 = scmp.eq.s32.totalorder %s24, 0
      %p65 = por %p63, %p64
      %s66 = ssub.s32 %s25, %s37
      %p67 = scmp.eq.s32.totalorder %s66, 0
      %s69 = sadd.s32 %s68, 1
      %s70 = scalar_select %p67, %s68, %s69
      %p73 = pneg %p67
      %p74 = scmp.eq.s32.totalorder %s18, 3
      %p75 = por %p73, %p74
      %p76 = scmp.ne.s32.totalorder %s68, %s71
      %p77 = scmp.eq.s32.totalorder %s18, 0
      %p78 = por %p76, %p77
      %p79 = scmp.ne.s32.totalorder %s68, %s71
      %p80 = scmp.eq.s32.totalorder %s23, 3
      %p81 = por %p79, %p80
      %p82 = scmp.ne.s32.totalorder %s71, %s72
      %p83 = scmp.eq.s32.totalorder %s23, 0
      %p84 = por %p82, %p83
      %p85 = scmp.ne.s32.totalorder %s71, %s72
      %p86 = scmp.eq.s32.totalorder %s24, 3
      %p87 = por %p85, %p86
      %p89 = scmp.ne.s32.totalorder %s72, %s88
      %p90 = scmp.eq.s32.totalorder %s24, 0
      %p91 = por %p89, %p90
      %s93 = sadd.s32 %s92, 1
      %p96 = scmp.eq.s32.totalorder %s18, 3
      %p97 = scmp.ne.s32.totalorder %s92, %s94
      %p98 = scmp.eq.s32.totalorder %s18, 0
      %p99 = por %p97, %p98
      %p100 = scmp.ne.s32.totalorder %s92, %s94
      %p101 = scmp.eq.s32.totalorder %s23, 3
      %p102 = por %p100, %p101
      %p103 = scmp.ne.s32.totalorder %s94, %s95
      %p104 = scmp.eq.s32.totalorder %s23, 0
      %p105 = por %p103, %p104
      %p106 = scmp.ne.s32.totalorder %s94, %s95
      %p107 = scmp.eq.s32.totalorder %s24, 3
      %p108 = por %p106, %p107
      %p110 = scmp.ne.s32.totalorder %s95, %s109
      %p111 = scmp.eq.s32.totalorder %s24, 0
      %p112 = por %p110, %p111
      %s114 = sadd.s32 %s113, 1
      %p117 = scmp.eq.s32.totalorder %s18, 3
      %p118 = scmp.ne.s32.totalorder %s113, %s115
      %p119 = scmp.eq.s32.totalorder %s18, 0
      %p120 = por %p118, %p119
      %p121 = scmp.ne.s32.totalorder %s113, %s115
      %p122 = scmp.eq.s32.totalorder %s23, 3
      %p123 = por %p121, %p122
      %p124 = scmp.ne.s32.totalorder %s115, %s116
      %p125 = scmp.eq.s32.totalorder %s23, 0
      %p126 = por %p124, %p125
      %p127 = scmp.ne.s32.totalorder %s115, %s116
      %p128 = scmp.eq.s32.totalorder %s24, 3
      %p129 = por %p127, %p128
      %p131 = scmp.ne.s32.totalorder %s116, %s130
      %p132 = scmp.eq.s32.totalorder %s24, 0
      %p133 = por %p131, %p132
      %s135 = sadd.s32 %s134, 1
      %p138 = scmp.eq.s32.totalorder %s18, 3
      %p139 = scmp.ne.s32.totalorder %s134, %s136
      %p140 = scmp.eq.s32.totalorder %s18, 0
      %p141 = por %p139, %p140
      %p142 = scmp.ne.s32.totalorder %s134, %s136
      %p143 = scmp.eq.s32.totalorder %s23, 3
      %p144 = por %p142, %p143
      %p145 = scmp.ne.s32.totalorder %s136, %s137
      %p146 = scmp.eq.s32.totalorder %s23, 0
      %p147 = por %p145, %p146
      %p148 = scmp.ne.s32.totalorder %s136, %s137
      %p149 = scmp.eq.s32.totalorder %s24, 3
      %p150 = por %p148, %p149
      %p152 = scmp.ne.s32.totalorder %s137, %s151
      %p153 = scmp.eq.s32.totalorder %s24, 0
      %p154 = por %p152, %p153
      %s156 = sadd.s32 %s155, 1
      %p159 = scmp.eq.s32.totalorder %s18, 3
      %p160 = scmp.ne.s32.totalorder %s155, %s157
      %p161 = scmp.eq.s32.totalorder %s18, 0
      %p162 = por %p160, %p161
      %p163 = scmp.ne.s32.totalorder %s155, %s157
      %p164 = scmp.eq.s32.totalorder %s23, 3
      %p165 = por %p163, %p164
      %p166 = scmp.ne.s32.totalorder %s157, %s158
      %p167 = scmp.eq.s32.totalorder %s23, 0
      %p168 = por %p166, %p167
      %p169 = scmp.ne.s32.totalorder %s157, %s158
      %p170 = scmp.eq.s32.totalorder %s24, 3
      %p171 = por %p169, %p170
      %p173 = scmp.ne.s32.totalorder %s158, %s172
      %p174 = scmp.eq.s32.totalorder %s24, 0
      %p175 = por %p173, %p174
      %s177 = sadd.s32 %s176, 1
      %p180 = scmp.eq.s32.totalorder %s18, 3
      %p181 = scmp.ne.s32.totalorder %s176, %s178
      %p182 = scmp.eq.s32.totalorder %s18, 0
      %p183 = por %p181, %p182
      %p184 = scmp.ne.s32.totalorder %s176, %s178
      %p185 = scmp.eq.s32.totalorder %s23, 3
      %p186 = por %p184, %p185
      %p187 = scmp.ne.s32.totalorder %s178, %s179
      %p188 = scmp.eq.s32.totalorder %s23, 0
      %p189 = por %p187, %p188
      %p190 = scmp.ne.s32.totalorder %s178, %s179
      %p191 = scmp.eq.s32.totalorder %s24, 3
      %p192 = por %p190, %p191
      %p194 = scmp.ne.s32.totalorder %s179, %s193
      %p195 = scmp.eq.s32.totalorder %s24, 0
      %p196 = por %p194, %p195
      %s198 = sadd.s32 %s197, 1
      %p201 = scmp.eq.s32.totalorder %s18, 3
      %p202 = scmp.ne.s32.totalorder %s197, %s199
      %p203 = scmp.eq.s32.totalorder %s18, 0
      %p204 = por %p202, %p203
      %p205 = scmp.ne.s32.totalorder %s197, %s199
      %p206 = scmp.eq.s32.totalorder %s23, 3
      %p207 = por %p205, %p206
      %p208 = scmp.ne.s32.totalorder %s199, %s200
      %p209 = scmp.eq.s32.totalorder %s23, 0
      %p210 = por %p208, %p209
      %p211 = scmp.ne.s32.totalorder %s199, %s200
      %p212 = scmp.eq.s32.totalorder %s24, 3
      %p213 = por %p211, %p212
      %p215 = scmp.ne.s32.totalorder %s200, %s214
      %p216 = scmp.eq.s32.totalorder %s24, 0
      %p217 = por %p215, %p216
      %s219 = sadd.s32 %s218, 1
      %p222 = scmp.eq.s32.totalorder %s18, 3
      %p223 = scmp.ne.s32.totalorder %s218, %s220
      %p224 = scmp.eq.s32.totalorder %s18, 0
      %p225 = por %p223, %p224
      %p226 = scmp.ne.s32.totalorder %s218, %s220
      %p227 = scmp.eq.s32.totalorder %s23, 3
      %p228 = por %p226, %p227
      %p229 = scmp.ne.s32.totalorder %s220, %s221
      %p230 = scmp.eq.s32.totalorder %s23, 0
      %p231 = por %p229, %p230
      %p232 = scmp.ne.s32.totalorder %s220, %s221
      %p233 = scmp.eq.s32.totalorder %s24, 3
      %p234 = por %p232, %p233
      %p236 = scmp.ne.s32.totalorder %s221, %s235
      %p237 = scmp.eq.s32.totalorder %s24, 0
      %p238 = por %p236, %p237
      %s240 = sadd.s32 %s239, 1
      %p243 = scmp.eq.s32.totalorder %s18, 3
      %p244 = scmp.ne.s32.totalorder %s239, %s241
      %p245 = scmp.eq.s32.totalorder %s18, 0
      %p246 = por %p244, %p245
      %p247 = scmp.ne.s32.totalorder %s239, %s241
      %p248 = scmp.eq.s32.totalorder %s23, 3
      %p249 = por %p247, %p248
      %p250 = scmp.ne.s32.totalorder %s241, %s242
      %p251 = scmp.eq.s32.totalorder %s23, 0
      %p252 = por %p250, %p251
      %p253 = scmp.ne.s32.totalorder %s241, %s242
      %p254 = scmp.eq.s32.totalorder %s24, 3
      %p255 = por %p253, %p254
      %p257 = scmp.ne.s32.totalorder %s242, %s256
      %p258 = scmp.eq.s32.totalorder %s24, 0
      %p259 = por %p257, %p258
      %s261 = sadd.s32 %s260, 1
      %p264 = scmp.eq.s32.totalorder %s18, 3
      %p265 = scmp.ne.s32.totalorder %s260, %s262
      %p266 = scmp.eq.s32.totalorder %s18, 0
      %p267 = por %p265, %p266
      %p268 = scmp.ne.s32.totalorder %s260, %s262
      %p269 = scmp.eq.s32.totalorder %s23, 3
      %p270 = por %p268, %p269
      %p271 = scmp.ne.s32.totalorder %s262, %s263
      %p272 = scmp.eq.s32.totalorder %s23, 0
      %p273 = por %p271, %p272
      %p274 = scmp.ne.s32.totalorder %s262, %s263
      %p275 = scmp.eq.s32.totalorder %s24, 3
      %p276 = por %p274, %p275
      %p278 = scmp.ne.s32.totalorder %s263, %s277
      %p279 = scmp.eq.s32.totalorder %s24, 0
      %p280 = por %p278, %p279
      %s281 = ssub.s32 %s25, %s37
      %p282 = scmp.eq.s32.totalorder %s281, 0
      %s284 = sadd.s32 %s283, 1
      %s285 = scalar_select %p282, %s283, %s284
      %p288 = pneg %p282
      %p289 = scmp.eq.s32.totalorder %s18, 3
      %p290 = por %p288, %p289
      %p291 = scmp.ne.s32.totalorder %s283, %s286
      %p292 = scmp.eq.s32.totalorder %s18, 0
      %p293 = por %p291, %p292
      %p294 = scmp.ne.s32.totalorder %s283, %s286
      %p295 = scmp.eq.s32.totalorder %s23, 3
      %p296 = por %p294, %p295
      %p297 = scmp.ne.s32.totalorder %s286, %s287
      %p298 = scmp.eq.s32.totalorder %s23, 0
      %p299 = por %p297, %p298
      %p300 = scmp.ne.s32.totalorder %s286, %s287
      %p301 = scmp.eq.s32.totalorder %s24, 3
      %p302 = por %p300, %p301
      %p304 = scmp.ne.s32.totalorder %s287, %s303
      %p305 = scmp.eq.s32.totalorder %s24, 0
      %p306 = por %p304, %p305
      %p307 = scmp.le.s32.totalorder 1, %s18
      %p308 = scmp.lt.s32.totalorder %s18, 5
      %p309 = pnand %p307, %p308
      %p310 = pneg %p309
      // Predicated region
      $region9: #{forward.4} parent=5 // pred_check
        _
      $region10: #{forward.4} parent=5 // pred_check_branch
        %312 = sbr.rel (%p309) target = $region12
      $region11: #{forward.4} parent=5 // pred_region
        %s313 = ssub.s32 %s18, 1
        // Predicated region
        $region13: #{forward.4} parent=11 // pred_check
          %p314 = pneg %p105
        $region14: #{forward.4} parent=11 // pred_check_branch
          %316 = sbr.rel (%p314) target = $region16
        $region15: #{forward.4} parent=11 // pred_region
          _
        $region16: #{forward.4} parent=11 // pred_fallthru
          _
        // Predicated region
        $region17: #{forward.4} parent=11 // pred_check
          %p317 = pneg %p126
        $region18: #{forward.4} parent=11 // pred_check_branch
          %319 = sbr.rel (%p317) target = $region20
        $region19: #{forward.4} parent=11 // pred_region
          _
        $region20: #{forward.4} parent=11 // pred_fallthru
          _
        // Predicated region
        $region21: #{forward.4} parent=11 // pred_check
          %p320 = pneg %p147
        $region22: #{forward.4} parent=11 // pred_check_branch
          %322 = sbr.rel (%p320) target = $region24
        $region23: #{forward.4} parent=11 // pred_region
          _
        $region24: #{forward.4} parent=11 // pred_fallthru
          _
        // Predicated region
        $region25: #{forward.4} parent=11 // pred_check
          %p323 = pneg %p168
        $region26: #{forward.4} parent=11 // pred_check_branch
          %325 = sbr.rel (%p323) target = $region28
        $region27: #{forward.4} parent=11 // pred_region
          _
        $region28: #{forward.4} parent=11 // pred_fallthru
          _
        // Predicated region
        $region29: #{forward.4} parent=11 // pred_check
          %p326 = pneg %p189
        $region30: #{forward.4} parent=11 // pred_check_branch
          %328 = sbr.rel (%p326) target = $region32
        $region31: #{forward.4} parent=11 // pred_region
          _
        $region32: #{forward.4} parent=11 // pred_fallthru
          _
        // Predicated region
        $region33: #{forward.4} parent=11 // pred_check
          %p329 = pneg %p210
        $region34: #{forward.4} parent=11 // pred_check_branch
          %331 = sbr.rel (%p329) target = $region36
        $region35: #{forward.4} parent=11 // pred_region
          %333 = vsyncadd [#allocation4], 0
          %s334 = sshll.u32 %s7, 4
          %s335 = int_to_ptr.hbm [resolvable:$true] %s334
          %s336 = sshll.u32 [#allocation3], 4
          %s337 = int_to_ptr.vmem [resolvable:$true] %s336
          %342 = dma.hbm_to_vmem [thread:$0]  %s335, 32768, %s337, [#allocation4], 256, 256, 16
        $region36: #{forward.4} parent=11 // pred_fallthru
          _
        // Predicated region
        $region37: #{forward.4} parent=11 // pred_check
          %p343 = pneg %p231
        $region38: #{forward.4} parent=11 // pred_check_branch
          %345 = sbr.rel (%p343) target = $region40
        $region39: #{forward.4} parent=11 // pred_region
          _
        $region40: #{forward.4} parent=11 // pred_fallthru
          _
        // Predicated region
        $region41: #{forward.4} parent=11 // pred_check
          %p346 = pneg %p252
        $region42: #{forward.4} parent=11 // pred_check_branch
          %348 = sbr.rel (%p346) target = $region44
        $region43: #{forward.4} parent=11 // pred_region
          _
        $region44: #{forward.4} parent=11 // pred_fallthru
          _
        // Predicated region
        $region45: #{forward.4} parent=11 // pred_check
          %p349 = pneg %p273
        $region46: #{forward.4} parent=11 // pred_check_branch
          %351 = sbr.rel (%p349) target = $region48
        $region47: #{forward.4} parent=11 // pred_region
          _
        $region48: #{forward.4} parent=11 // pred_fallthru
          _
      $region12: #{forward.4} parent=5 // pred_fallthru
        _
      %p352 = scmp.lt.s32.totalorder %s18, 4
      // Predicated region
      $region49: #{forward.4} parent=5 // pred_check
        %p353 = pneg %p352
      $region50: #{forward.4} parent=5 // pred_check_branch
        %355 = sbr.rel (%p353) target = $region52
      $region51: #{forward.4} parent=5 // pred_region
        // Predicated region
        $region53: #{forward.4} parent=51 // pred_check
          %p356 = pneg %p52
        $region54: #{forward.4} parent=51 // pred_check_branch
          %358 = sbr.rel (%p356) target = $region56
        $region55: #{forward.4} parent=51 // pred_region
          %s359 = smul.u32 32, %s26
          %p360 = scmp.lt.s32.totalorder %s25, 3
          %s361 = scalar_select %p360, %s25, 3
          %p362 = scmp.lt.s32.totalorder %s359, 31
          %s363 = scalar_select %p362, %s359, 31
          %s364 = smul.addr %s361, 32
          %s365 = sadd.s32 %s363, %s364
          %s366 = smul.addr %s365, 4
          %s367 = scalar_lea.vmem %s0, %s366
          %s368 = smul.u32 32, %s26
        $region56: #{forward.4} parent=51 // pred_fallthru
          _
        // Predicated region
        $region57: #{forward.4} parent=51 // pred_check
          %p369 = pneg %p78
        $region58: #{forward.4} parent=51 // pred_check_branch
          %371 = sbr.rel (%p369) target = $region60
        $region59: #{forward.4} parent=51 // pred_region
          %p372 = scmp.lt.s32.totalorder %s25, 3
          %s373 = scalar_select %p372, %s25, 3
          %s374 = smul.addr %s373, 4
          %s375 = scalar_lea.vmem %s1, %s374
        $region60: #{forward.4} parent=51 // pred_fallthru
          _
      $region52: #{forward.4} parent=5 // pred_fallthru
        _
      %p376 = scmp.le.s32.totalorder 1, %s18
      %p377 = scmp.lt.s32.totalorder %s18, 5
      %p378 = pnand %p376, %p377
      %p379 = pneg %p378
      // Predicated region
      $region61: #{forward.4} parent=5 // pred_check
        _
      $region62: #{forward.4} parent=5 // pred_check_branch
        %381 = sbr.rel (%p378) target = $region64
      $region63: #{forward.4} parent=5 // pred_region
        %s382 = ssub.s32 %s18, 1
        // Predicated region
        $region65: #{forward.4} parent=63 // pred_check
          %p383 = pneg %p210
        $region66: #{forward.4} parent=63 // pred_check_branch
          %385 = sbr.rel (%p383) target = $region68
        $region67: #{forward.4} parent=63 // pred_region
          %387 = dma.done [#allocation4], 32768
        $region68: #{forward.4} parent=63 // pred_fallthru
          _
        %s388 = smul.u32 32, %s28
        %p389 = scmp.lt.s32.totalorder %s27, 3
        %s390 = scalar_select %p389, %s27, 3
        %p391 = scmp.lt.s32.totalorder %s388, 31
        %s392 = scalar_select %p391, %s388, 31
        %s393 = smul.addr %s390, 32
        %s394 = sadd.s32 %s392, %s393
        %s395 = smul.addr %s394, 4
        %s396 = scalar_lea.vmem %s0, %s395
        %p397 = pneg %p58
        %p398 = pneg %p55
        %p399 = scmp.lt.s32.totalorder %s27, 3
        %s400 = scalar_select %p399, %s27, 3
        %s401 = smul.addr %s400, 4
        %s402 = scalar_lea.vmem %s1, %s401
        %p403 = pneg %p84
        %p404 = pneg %p81
        %p405 = pneg %p105
        %p406 = pneg %p102
        %p407 = pneg %p126
        %p408 = pneg %p123
        %p409 = pneg %p147
        %p410 = pneg %p144
        %p411 = pneg %p168
        %p412 = pneg %p165
        %p413 = pneg %p189
        %p414 = pneg %p186
        %p415 = pneg %p210
        %p416 = pneg %p207
        %p417 = pneg %p231
        %p418 = pneg %p228
        %p419 = pneg %p252
        %p420 = pneg %p249
        %p421 = pneg %p273
        %p422 = pneg %p270
        %p423 = pneg %p299
        %p424 = pneg %p296
        %p425 = scmp.lt.s32.totalorder %s27, 3
        %s426 = scalar_select %p425, %s27, 3
        %s427 = scalar_lea.vmem %s11, %s426
        %s428 = smul.u32 32, %s28
        %p429 = scmp.lt.s32.totalorder %s27, 3
        %s430 = scalar_select %p429, %s27, 3
        %p431 = scmp.lt.s32.totalorder %s428, 31
        %s432 = scalar_select %p431, %s428, 31
        %s433 = smul.addr %s430, 32
        %s434 = sadd.s32 %s432, %s433
        %s435 = smul.addr %s434, 4
        %s436 = scalar_lea.vmem %s0, %s435
        %s437 = smul.u32 32, %s28
        %p438 = scmp.lt.s32.totalorder %s27, 3
        %s439 = scalar_select %p438, %s27, 3
        %s440 = smul.addr %s439, 4
        %s441 = scalar_lea.vmem %s1, %s440
        %p442 = scmp.lt.s32.totalorder %s27, 3
        %s443 = scalar_select %p442, %s27, 3
        %s444 = scalar_lea.vmem %s11, %s443
        %v446 = vld [vmem:[%s436] sm:$0xf]
        %v447 = vld [vmem:[%s436 + $0x4] sm:$0xf]
        %v448 = vld [vmem:[%s436 + $0x8] sm:$0xf]
        %v449 = vld [vmem:[%s436 + $0xc] sm:$0xf]
        %v450 = vld [vmem:[%s436 + $0x10] sm:$0xf]
        %v451 = vld [vmem:[%s436 + $0x14] sm:$0xf]
        %v452 = vld [vmem:[%s436 + $0x18] sm:$0xf]
        %v453 = vld [vmem:[%s436 + $0x1c] sm:$0xf]
        %v454 = vld [vmem:[%s436 + $0x20] sm:$0xf]
        %v455 = vld [vmem:[%s436 + $0x24] sm:$0xf]
        %v456 = vld [vmem:[%s436 + $0x28] sm:$0xf]
        %v457 = vld [vmem:[%s436 + $0x2c] sm:$0xf]
        %v458 = vld [vmem:[%s436 + $0x30] sm:$0xf]
        %v459 = vld [vmem:[%s436 + $0x34] sm:$0xf]
        %v460 = vld [vmem:[%s436 + $0x38] sm:$0xf]
        %v461 = vld [vmem:[%s436 + $0x3c] sm:$0xf]
        %v462 = vld [vmem:[%s436 + $0x40] sm:$0xf]
        %v463 = vld [vmem:[%s436 + $0x44] sm:$0xf]
        %v464 = vld [vmem:[%s436 + $0x48] sm:$0xf]
        %v465 = vld [vmem:[%s436 + $0x4c] sm:$0xf]
        %v466 = vld [vmem:[%s436 + $0x50] sm:$0xf]
        %v467 = vld [vmem:[%s436 + $0x54] sm:$0xf]
        %v468 = vld [vmem:[%s436 + $0x58] sm:$0xf]
        %v469 = vld [vmem:[%s436 + $0x5c] sm:$0xf]
        %v470 = vld [vmem:[%s436 + $0x60] sm:$0xf]
        %v471 = vld [vmem:[%s436 + $0x64] sm:$0xf]
        %v472 = vld [vmem:[%s436 + $0x68] sm:$0xf]
        %v473 = vld [vmem:[%s436 + $0x6c] sm:$0xf]
        %v474 = vld [vmem:[%s436 + $0x70] sm:$0xf]
        %v475 = vld [vmem:[%s436 + $0x74] sm:$0xf]
        %v476 = vld [vmem:[%s436 + $0x78] sm:$0xf]
        %v477 = vld [vmem:[%s436 + $0x7c] sm:$0xf]
        %v478 = vld [vmem:[%s441] sm:$0xf]
        %v479 = vld [vmem:[%s2] sm:$0x1]
        %v481 = vperm.slane %v479, 0
        %v515 = vunpack.c.l.b16 %v446
        %v516 = vunpack.c.l.b16 %v447
        %v517 = vunpack.c.l.b16 %v448
        %v518 = vunpack.c.l.b16 %v449
        %v519 = vunpack.c.l.b16 %v450
        %v520 = vunpack.c.l.b16 %v451
        %v521 = vunpack.c.l.b16 %v452
        %v522 = vunpack.c.l.b16 %v453
        %v523 = vunpack.c.l.b16 %v454
        %v524 = vunpack.c.l.b16 %v455
        %v525 = vunpack.c.l.b16 %v456
        %v526 = vunpack.c.l.b16 %v457
        %v527 = vunpack.c.l.b16 %v458
        %v528 = vunpack.c.l.b16 %v459
        %v529 = vunpack.c.l.b16 %v460
        %v530 = vunpack.c.l.b16 %v461
        %v531 = vunpack.c.l.b16 %v462
        %v532 = vunpack.c.l.b16 %v463
        %v533 = vunpack.c.l.b16 %v464
        %v534 = vunpack.c.l.b16 %v465
        %v535 = vunpack.c.l.b16 %v466
        %v536 = vunpack.c.l.b16 %v467
        %v537 = vunpack.c.l.b16 %v468
        %v538 = vunpack.c.l.b16 %v469
        %v539 = vunpack.c.l.b16 %v470
        %v540 = vunpack.c.l.b16 %v471
        %v541 = vunpack.c.l.b16 %v472
        %v542 = vunpack.c.l.b16 %v473
        %v543 = vunpack.c.l.b16 %v474
        %v544 = vunpack.c.l.b16 %v475
        %v545 = vunpack.c.l.b16 %v476
        %v546 = vunpack.c.l.b16 %v477
        %v547 = vpack.c.b16 %v516, %v515
        %v548 = vpack.c.b16 %v518, %v517
        %v549 = vpack.c.b16 %v520, %v519
        %v550 = vpack.c.b16 %v522, %v521
        %v551 = vpack.c.b16 %v524, %v523
        %v552 = vpack.c.b16 %v526, %v525
        %v553 = vpack.c.b16 %v528, %v527
        %v554 = vpack.c.b16 %v530, %v529
        %v555 = vpack.c.b16 %v532, %v531
        %v556 = vpack.c.b16 %v534, %v533
        %v557 = vpack.c.b16 %v536, %v535
        %v558 = vpack.c.b16 %v538, %v537
        %v559 = vpack.c.b16 %v540, %v539
        %v560 = vpack.c.b16 %v542, %v541
        %v561 = vpack.c.b16 %v544, %v543
        %v562 = vpack.c.b16 %v546, %v545
        %vm563 = vcmask 64512
        %v565 = vsel %vm563, %v547, 0
        %v568 = vsel %vm563, %v548, 0
        %v571 = vsel %vm563, %v549, 0
        %v574 = vsel %vm563, %v550, 0
        %v577 = vsel %vm563, %v551, 0
        %v580 = vsel %vm563, %v552, 0
        %v583 = vsel %vm563, %v553, 0
        %v586 = vsel %vm563, %v554, 0
        %v589 = vsel %vm563, %v555, 0
        %v592 = vsel %vm563, %v556, 0
        %v595 = vsel %vm563, %v557, 0
        %v598 = vsel %vm563, %v558, 0
        %v601 = vsel %vm563, %v559, 0
        %v604 = vsel %vm563, %v560, 0
        %v607 = vsel %vm563, %v561, 0
        %v610 = vsel %vm563, %v562, 0
        %vm612 = vcmask 1043456
        %v614 = vsel %vm612, %v478, 0
        %616 = vmatpush.bf16.msra.mxu0 0
        %617 = vmatpush.bf16.msra.mxu0 0
        %618 = vmatpush.bf16.msra.mxu0 0
        %619 = vmatpush.bf16.msra.mxu0 0
        %620 = vmatpush.bf16.msra.mxu0 0
        %621 = vmatpush.bf16.msra.mxu0 0
        %622 = vmatpush.bf16.msra.mxu0 0
        %623 = vmatpush.bf16.msra.mxu0 %v614
        %624 = vmatmul.bf16.gmra.mxu0 %v565
        %v625 = vpop.f32.mrf.mxu0
        %v626 = vadd.f32 %v481, %v625
        %v627 = vpop.f32.mrf.mxu0
        %v628 = vadd.f32 %v481, %v627
        %629 = vmatmul.bf16.gmra.mxu0 %v568
        %v630 = vpop.f32.mrf.mxu0
        %v631 = vadd.f32 %v481, %v630
        %v632 = vpop.f32.mrf.mxu0
        %v633 = vadd.f32 %v481, %v632
        %634 = vmatmul.bf16.gmra.mxu0 %v571
        %v635 = vpop.f32.mrf.mxu0
        %v636 = vadd.f32 %v481, %v635
        %v637 = vpop.f32.mrf.mxu0
        %v638 = vadd.f32 %v481, %v637
        %639 = vmatmul.bf16.gmra.mxu0 %v574
        %v640 = vpop.f32.mrf.mxu0
        %v641 = vadd.f32 %v481, %v640
        %v642 = vpop.f32.mrf.mxu0
        %v643 = vadd.f32 %v481, %v642
        %644 = vmatmul.bf16.gmra.mxu0 %v577
        %v645 = vpop.f32.mrf.mxu0
        %v646 = vadd.f32 %v481, %v645
        %v647 = vpop.f32.mrf.mxu0
        %v648 = vadd.f32 %v481, %v647
        %649 = vmatmul.bf16.gmra.mxu0 %v580
        %v650 = vpop.f32.mrf.mxu0
        %v651 = vadd.f32 %v481, %v650
        %v652 = vpop.f32.mrf.mxu0
        %v653 = vadd.f32 %v481, %v652
        %654 = vmatmul.bf16.gmra.mxu0 %v583
        %v655 = vpop.f32.mrf.mxu0
        %v656 = vadd.f32 %v481, %v655
        %v657 = vpop.f32.mrf.mxu0
        %v658 = vadd.f32 %v481, %v657
        %659 = vmatmul.bf16.gmra.mxu0 %v586
        %v660 = vpop.f32.mrf.mxu0
        %v661 = vadd.f32 %v481, %v660
        %v662 = vpop.f32.mrf.mxu0
        %v663 = vadd.f32 %v481, %v662
        %664 = vmatmul.bf16.gmra.mxu0 %v589
        %v665 = vpop.f32.mrf.mxu0
        %v666 = vadd.f32 %v481, %v665
        %v667 = vpop.f32.mrf.mxu0
        %v668 = vadd.f32 %v481, %v667
        %669 = vmatmul.bf16.gmra.mxu0 %v592
        %v670 = vpop.f32.mrf.mxu0
        %v671 = vadd.f32 %v481, %v670
        %v672 = vpop.f32.mrf.mxu0
        %v673 = vadd.f32 %v481, %v672
        %674 = vmatmul.bf16.gmra.mxu0 %v595
        %v675 = vpop.f32.mrf.mxu0
        %v676 = vadd.f32 %v481, %v675
        %v677 = vpop.f32.mrf.mxu0
        %v678 = vadd.f32 %v481, %v677
        %679 = vmatmul.bf16.gmra.mxu0 %v598
        %v680 = vpop.f32.mrf.mxu0
        %v681 = vadd.f32 %v481, %v680
        %v682 = vpop.f32.mrf.mxu0
        %v683 = vadd.f32 %v481, %v682
        %684 = vmatmul.bf16.gmra.mxu0 %v601
        %v685 = vpop.f32.mrf.mxu0
        %v686 = vadd.f32 %v481, %v685
        %v687 = vpop.f32.mrf.mxu0
        %v688 = vadd.f32 %v481, %v687
        %689 = vmatmul.bf16.gmra.mxu0 %v604
        %v690 = vpop.f32.mrf.mxu0
        %v691 = vadd.f32 %v481, %v690
        %v692 = vpop.f32.mrf.mxu0
        %v693 = vadd.f32 %v481, %v692
        %694 = vmatmul.bf16.gmra.mxu0 %v607
        %v695 = vpop.f32.mrf.mxu0
        %v696 = vadd.f32 %v481, %v695
        %v697 = vpop.f32.mrf.mxu0
        %v698 = vadd.f32 %v481, %v697
        %699 = vmatmul.bf16.gmra.mxu0 %v610
        %v700 = vpop.f32.mrf.mxu0
        %v701 = vadd.f32 %v481, %v700
        %v702 = vpop.f32.mrf.mxu0
        %v703 = vadd.f32 %v481, %v702
        %704 = vdwg.mxu0
        %v705 = vmax.f32 %v626, 0.0
        %v706 = vmax.f32 %v628, 0.0
        %v707 = vmax.f32 %v631, 0.0
        %v708 = vmax.f32 %v633, 0.0
        %v709 = vmax.f32 %v636, 0.0
        %v710 = vmax.f32 %v638, 0.0
        %v711 = vmax.f32 %v641, 0.0
        %v712 = vmax.f32 %v643, 0.0
        %v713 = vmax.f32 %v646, 0.0
        %v714 = vmax.f32 %v648, 0.0
        %v715 = vmax.f32 %v651, 0.0
        %v716 = vmax.f32 %v653, 0.0
        %v717 = vmax.f32 %v656, 0.0
        %v718 = vmax.f32 %v658, 0.0
        %v719 = vmax.f32 %v661, 0.0
        %v720 = vmax.f32 %v663, 0.0
        %v721 = vmax.f32 %v666, 0.0
        %v722 = vmax.f32 %v668, 0.0
        %v723 = vmax.f32 %v671, 0.0
        %v724 = vmax.f32 %v673, 0.0
        %v725 = vmax.f32 %v676, 0.0
        %v726 = vmax.f32 %v678, 0.0
        %v727 = vmax.f32 %v681, 0.0
        %v728 = vmax.f32 %v683, 0.0
        %v729 = vmax.f32 %v686, 0.0
        %v730 = vmax.f32 %v688, 0.0
        %v731 = vmax.f32 %v691, 0.0
        %v732 = vmax.f32 %v693, 0.0
        %v733 = vmax.f32 %v696, 0.0
        %v734 = vmax.f32 %v698, 0.0
        %v735 = vmax.f32 %v701, 0.0
        %v736 = vmax.f32 %v703, 0.0
        %v737 = vpack.c.bf16 %v706, %v705
        %v738 = vpack.c.bf16 %v708, %v707
        %v739 = vpack.c.bf16 %v710, %v709
        %v740 = vpack.c.bf16 %v712, %v711
        %v741 = vpack.c.bf16 %v714, %v713
        %v742 = vpack.c.bf16 %v716, %v715
        %v743 = vpack.c.bf16 %v718, %v717
        %v744 = vpack.c.bf16 %v720, %v719
        %v745 = vpack.c.bf16 %v722, %v721
        %v746 = vpack.c.bf16 %v724, %v723
        %v747 = vpack.c.bf16 %v726, %v725
        %v748 = vpack.c.bf16 %v728, %v727
        %v749 = vpack.c.bf16 %v730, %v729
        %v750 = vpack.c.bf16 %v732, %v731
        %v751 = vpack.c.bf16 %v734, %v733
        %v752 = vpack.c.bf16 %v736, %v735
        %v753 = vld [vmem:[%s3] sm:$0xf]
        %v754 = vld [vmem:[%s3 + $0x4] sm:$0xf]
        %v755 = vld [vmem:[%s3 + $0x8] sm:$0xf]
        %v756 = vld [vmem:[%s3 + $0xc] sm:$0xf]
        %v757 = vld [vmem:[%s3 + $0x10] sm:$0xf]
        %v758 = vld [vmem:[%s3 + $0x14] sm:$0xf]
        %v759 = vld [vmem:[%s3 + $0x18] sm:$0xf]
        %v760 = vld [vmem:[%s3 + $0x1c] sm:$0xf]
        %v761 = vld [vmem:[%s4] sm:$0x1]
        %v763 = vperm.slane %v761, 0
        %v773 = vunpack.c.l.b16 %v753
        %v774 = vunpack.c.l.b16 %v754
        %v775 = vunpack.c.l.b16 %v755
        %v776 = vunpack.c.l.b16 %v756
        %v777 = vunpack.c.l.b16 %v757
        %v778 = vunpack.c.l.b16 %v758
        %v779 = vunpack.c.l.b16 %v759
        %v780 = vunpack.c.l.b16 %v760
        %v781 = vpack.c.b16 %v774, %v773
        %v782 = vpack.c.b16 %v776, %v775
        %v783 = vpack.c.b16 %v778, %v777
        %v784 = vpack.c.b16 %v780, %v779
        %vm789 = vcmask 523264
        %v791 = vsel %vm789, %v737, 0
        %v794 = vsel %vm789, %v738, 0
        %v797 = vsel %vm789, %v739, 0
        %v800 = vsel %vm789, %v740, 0
        %v803 = vsel %vm789, %v741, 0
        %v806 = vsel %vm789, %v742, 0
        %v809 = vsel %vm789, %v743, 0
        %v812 = vsel %vm789, %v744, 0
        %v815 = vsel %vm789, %v745, 0
        %v818 = vsel %vm789, %v746, 0
        %v821 = vsel %vm789, %v747, 0
        %v824 = vsel %vm789, %v748, 0
        %v827 = vsel %vm789, %v749, 0
        %v830 = vsel %vm789, %v750, 0
        %v833 = vsel %vm789, %v751, 0
        %v836 = vsel %vm789, %v752, 0
        %838 = vmatpush.bf16.msra.mxu0 0
        %839 = vmatpush.bf16.msra.mxu0 0
        %840 = vmatpush.bf16.msra.mxu0 0
        %841 = vmatpush.bf16.msra.mxu0 0
        %842 = vmatpush.bf16.msra.mxu0 %v784
        %843 = vmatpush.bf16.msra.mxu0 %v783
        %844 = vmatpush.bf16.msra.mxu0 %v782
        %845 = vmatpush.bf16.msra.mxu0 %v781
        %846 = vmatmul.bf16.gmra.mxu0 %v791
        %v847 = vpop.f32.mrf.mxu0
        %v848 = vadd.f32 %v763, %v847
        %v849 = vpop.f32.mrf.mxu0
        %v850 = vadd.f32 %v763, %v849
        %851 = vmatmul.bf16.gmra.mxu0 %v794
        %v852 = vpop.f32.mrf.mxu0
        %v853 = vadd.f32 %v763, %v852
        %v854 = vpop.f32.mrf.mxu0
        %v855 = vadd.f32 %v763, %v854
        %856 = vmatmul.bf16.gmra.mxu0 %v797
        %v857 = vpop.f32.mrf.mxu0
        %v858 = vadd.f32 %v763, %v857
        %v859 = vpop.f32.mrf.mxu0
        %v860 = vadd.f32 %v763, %v859
        %861 = vmatmul.bf16.gmra.mxu0 %v800
        %v862 = vpop.f32.mrf.mxu0
        %v863 = vadd.f32 %v763, %v862
        %v864 = vpop.f32.mrf.mxu0
        %v865 = vadd.f32 %v763, %v864
        %866 = vmatmul.bf16.gmra.mxu0 %v803
        %v867 = vpop.f32.mrf.mxu0
        %v868 = vadd.f32 %v763, %v867
        %v869 = vpop.f32.mrf.mxu0
        %v870 = vadd.f32 %v763, %v869
        %871 = vmatmul.bf16.gmra.mxu0 %v806
        %v872 = vpop.f32.mrf.mxu0
        %v873 = vadd.f32 %v763, %v872
        %v874 = vpop.f32.mrf.mxu0
        %v875 = vadd.f32 %v763, %v874
        %876 = vmatmul.bf16.gmra.mxu0 %v809
        %v877 = vpop.f32.mrf.mxu0
        %v878 = vadd.f32 %v763, %v877
        %v879 = vpop.f32.mrf.mxu0
        %v880 = vadd.f32 %v763, %v879
        %881 = vmatmul.bf16.gmra.mxu0 %v812
        %v882 = vpop.f32.mrf.mxu0
        %v883 = vadd.f32 %v763, %v882
        %v884 = vpop.f32.mrf.mxu0
        %v885 = vadd.f32 %v763, %v884
        %886 = vmatmul.bf16.gmra.mxu0 %v815
        %v887 = vpop.f32.mrf.mxu0
        %v888 = vadd.f32 %v763, %v887
        %v889 = vpop.f32.mrf.mxu0
        %v890 = vadd.f32 %v763, %v889
        %891 = vmatmul.bf16.gmra.mxu0 %v818
        %v892 = vpop.f32.mrf.mxu0
        %v893 = vadd.f32 %v763, %v892
        %v894 = vpop.f32.mrf.mxu0
        %v895 = vadd.f32 %v763, %v894
        %896 = vmatmul.bf16.gmra.mxu0 %v821
        %v897 = vpop.f32.mrf.mxu0
        %v898 = vadd.f32 %v763, %v897
        %v899 = vpop.f32.mrf.mxu0
        %v900 = vadd.f32 %v763, %v899
        %901 = vmatmul.bf16.gmra.mxu0 %v824
        %v902 = vpop.f32.mrf.mxu0
        %v903 = vadd.f32 %v763, %v902
        %v904 = vpop.f32.mrf.mxu0
        %v905 = vadd.f32 %v763, %v904
        %906 = vmatmul.bf16.gmra.mxu0 %v827
        %v907 = vpop.f32.mrf.mxu0
        %v908 = vadd.f32 %v763, %v907
        %v909 = vpop.f32.mrf.mxu0
        %v910 = vadd.f32 %v763, %v909
        %911 = vmatmul.bf16.gmra.mxu0 %v830
        %v912 = vpop.f32.mrf.mxu0
        %v913 = vadd.f32 %v763, %v912
        %v914 = vpop.f32.mrf.mxu0
        %v915 = vadd.f32 %v763, %v914
        %916 = vmatmul.bf16.gmra.mxu0 %v833
        %v917 = vpop.f32.mrf.mxu0
        %v918 = vadd.f32 %v763, %v917
        %v919 = vpop.f32.mrf.mxu0
        %v920 = vadd.f32 %v763, %v919
        %921 = vmatmul.bf16.gmra.mxu0 %v836
        %v922 = vpop.f32.mrf.mxu0
        %v923 = vadd.f32 %v763, %v922
        %v924 = vpop.f32.mrf.mxu0
        %v925 = vadd.f32 %v763, %v924
        %926 = vdwg.mxu0
        %v927 = vmax.f32 %v848, 0.0
        %v928 = vmax.f32 %v850, 0.0
        %v929 = vmax.f32 %v853, 0.0
        %v930 = vmax.f32 %v855, 0.0
        %v931 = vmax.f32 %v858, 0.0
        %v932 = vmax.f32 %v860, 0.0
        %v933 = vmax.f32 %v863, 0.0
        %v934 = vmax.f32 %v865, 0.0
        %v935 = vmax.f32 %v868, 0.0
        %v936 = vmax.f32 %v870, 0.0
        %v937 = vmax.f32 %v873, 0.0
        %v938 = vmax.f32 %v875, 0.0
        %v939 = vmax.f32 %v878, 0.0
        %v940 = vmax.f32 %v880, 0.0
        %v941 = vmax.f32 %v883, 0.0
        %v942 = vmax.f32 %v885, 0.0
        %v943 = vmax.f32 %v888, 0.0
        %v944 = vmax.f32 %v890, 0.0
        %v945 = vmax.f32 %v893, 0.0
        %v946 = vmax.f32 %v895, 0.0
        %v947 = vmax.f32 %v898, 0.0
        %v948 = vmax.f32 %v900, 0.0
        %v949 = vmax.f32 %v903, 0.0
        %v950 = vmax.f32 %v905, 0.0
        %v951 = vmax.f32 %v908, 0.0
        %v952 = vmax.f32 %v910, 0.0
        %v953 = vmax.f32 %v913, 0.0
        %v954 = vmax.f32 %v915, 0.0
        %v955 = vmax.f32 %v918, 0.0
        %v956 = vmax.f32 %v920, 0.0
        %v957 = vmax.f32 %v923, 0.0
        %v958 = vmax.f32 %v925, 0.0
        %v959 = vpack.c.bf16 %v928, %v927
        %v960 = vpack.c.bf16 %v930, %v929
        %v961 = vpack.c.bf16 %v932, %v931
        %v962 = vpack.c.bf16 %v934, %v933
        %v963 = vpack.c.bf16 %v936, %v935
        %v964 = vpack.c.bf16 %v938, %v937
        %v965 = vpack.c.bf16 %v940, %v939
        %v966 = vpack.c.bf16 %v942, %v941
        %v967 = vpack.c.bf16 %v944, %v943
        %v968 = vpack.c.bf16 %v946, %v945
        %v969 = vpack.c.bf16 %v948, %v947
        %v970 = vpack.c.bf16 %v950, %v949
        %v971 = vpack.c.bf16 %v952, %v951
        %v972 = vpack.c.bf16 %v954, %v953
        %v973 = vpack.c.bf16 %v956, %v955
        %v974 = vpack.c.bf16 %v958, %v957
        %v975 = vld [vmem:[%s5] sm:$0xff]
        %v976 = vld [vmem:[%s5 + $0x8] sm:$0xff]
        %v977 = vld [vmem:[%s5 + $0x10] sm:$0xff]
        %v978 = vld [vmem:[%s5 + $0x18] sm:$0xff]
        %v979 = vld [vmem:[%s5 + $0x20] sm:$0xff]
        %v980 = vld [vmem:[%s5 + $0x28] sm:$0xff]
        %v981 = vld [vmem:[%s5 + $0x30] sm:$0xff]
        %v982 = vld [vmem:[%s5 + $0x38] sm:$0xff]
        %v983 = vld [vmem:[%s5 + $0x40] sm:$0xff]
        %v984 = vld [vmem:[%s5 + $0x48] sm:$0xff]
        %v985 = vld [vmem:[%s5 + $0x50] sm:$0xff]
        %v986 = vld [vmem:[%s5 + $0x58] sm:$0xff]
        %v987 = vld [vmem:[%s5 + $0x60] sm:$0xff]
        %v988 = vld [vmem:[%s5 + $0x68] sm:$0xff]
        %v989 = vld [vmem:[%s5 + $0x70] sm:$0xff]
        %v990 = vld [vmem:[%s5 + $0x78] sm:$0xff]
        %v991 = vld [vmem:[%s5 + $0x80] sm:$0xff]
        %v992 = vld [vmem:[%s5 + $0x88] sm:$0xff]
        %v993 = vld [vmem:[%s5 + $0x90] sm:$0xff]
        %v994 = vld [vmem:[%s5 + $0x98] sm:$0xff]
        %v995 = vld [vmem:[%s5 + $0xa0] sm:$0xff]
        %v996 = vld [vmem:[%s5 + $0xa8] sm:$0xff]
        %v997 = vld [vmem:[%s5 + $0xb0] sm:$0xff]
        %v998 = vld [vmem:[%s5 + $0xb8] sm:$0xff]
        %v999 = vld [vmem:[%s5 + $0xc0] sm:$0xff]
        %v1000 = vld [vmem:[%s5 + $0xc8] sm:$0xff]
        %v1001 = vld [vmem:[%s5 + $0xd0] sm:$0xff]
        %v1002 = vld [vmem:[%s5 + $0xd8] sm:$0xff]
        %v1003 = vld [vmem:[%s5 + $0xe0] sm:$0xff]
        %v1004 = vld [vmem:[%s5 + $0xe8] sm:$0xff]
        %v1005 = vld [vmem:[%s5 + $0xf0] sm:$0xff]
        %v1006 = vld [vmem:[%s5 + $0xf8] sm:$0xff]
        %v1007 = vld [vmem:[%s5 + $0x100] sm:$0xff]
        %v1008 = vld [vmem:[%s5 + $0x108] sm:$0xff]
        %v1009 = vld [vmem:[%s5 + $0x110] sm:$0xff]
        %v1010 = vld [vmem:[%s5 + $0x118] sm:$0xff]
        %v1011 = vld [vmem:[%s5 + $0x120] sm:$0xff]
        %v1012 = vld [vmem:[%s5 + $0x128] sm:$0xff]
        %v1013 = vld [vmem:[%s5 + $0x130] sm:$0xff]
        %v1014 = vld [vmem:[%s5 + $0x138] sm:$0xff]
        %v1015 = vld [vmem:[%s5 + $0x140] sm:$0xff]
        %v1016 = vld [vmem:[%s5 + $0x148] sm:$0xff]
        %v1017 = vld [vmem:[%s5 + $0x150] sm:$0xff]
        %v1018 = vld [vmem:[%s5 + $0x158] sm:$0xff]
        %v1019 = vld [vmem:[%s5 + $0x160] sm:$0xff]
        %v1020 = vld [vmem:[%s5 + $0x168] sm:$0xff]
        %v1021 = vld [vmem:[%s5 + $0x170] sm:$0xff]
        %v1022 = vld [vmem:[%s5 + $0x178] sm:$0xff]
        %v1023 = vld [vmem:[%s5 + $0x180] sm:$0xff]
        %v1024 = vld [vmem:[%s5 + $0x188] sm:$0xff]
        %v1025 = vld [vmem:[%s5 + $0x190] sm:$0xff]
        %v1026 = vld [vmem:[%s5 + $0x198] sm:$0xff]
        %v1027 = vld [vmem:[%s5 + $0x1a0] sm:$0xff]
        %v1028 = vld [vmem:[%s5 + $0x1a8] sm:$0xff]
        %v1029 = vld [vmem:[%s5 + $0x1b0] sm:$0xff]
        %v1030 = vld [vmem:[%s5 + $0x1b8] sm:$0xff]
        %v1031 = vld [vmem:[%s5 + $0x1c0] sm:$0xff]
        %v1032 = vld [vmem:[%s5 + $0x1c8] sm:$0xff]
        %v1033 = vld [vmem:[%s5 + $0x1d0] sm:$0xff]
        %v1034 = vld [vmem:[%s5 + $0x1d8] sm:$0xff]
        %v1035 = vld [vmem:[%s5 + $0x1e0] sm:$0xff]
        %v1036 = vld [vmem:[%s5 + $0x1e8] sm:$0xff]
        %v1037 = vld [vmem:[%s5 + $0x1f0] sm:$0xff]
        %v1038 = vld [vmem:[%s5 + $0x1f8] sm:$0xff]
        %v1103 = vunpack.c.l.b16 %v975
        %v1104 = vunpack.c.h.b16 %v975
        %v1105 = vunpack.c.l.b16 %v976
        %v1106 = vunpack.c.h.b16 %v976
        %v1107 = vunpack.c.l.b16 %v977
        %v1108 = vunpack.c.h.b16 %v977
        %v1109 = vunpack.c.l.b16 %v978
        %v1110 = vunpack.c.h.b16 %v978
        %v1111 = vunpack.c.l.b16 %v979
        %v1112 = vunpack.c.h.b16 %v979
        %v1113 = vunpack.c.l.b16 %v980
        %v1114 = vunpack.c.h.b16 %v980
        %v1115 = vunpack.c.l.b16 %v981
        %v1116 = vunpack.c.h.b16 %v981
        %v1117 = vunpack.c.l.b16 %v982
        %v1118 = vunpack.c.h.b16 %v982
        %v1119 = vunpack.c.l.b16 %v983
        %v1120 = vunpack.c.h.b16 %v983
        %v1121 = vunpack.c.l.b16 %v984
        %v1122 = vunpack.c.h.b16 %v984
        %v1123 = vunpack.c.l.b16 %v985
        %v1124 = vunpack.c.h.b16 %v985
        %v1125 = vunpack.c.l.b16 %v986
        %v1126 = vunpack.c.h.b16 %v986
        %v1127 = vunpack.c.l.b16 %v987
        %v1128 = vunpack.c.h.b16 %v987
        %v1129 = vunpack.c.l.b16 %v988
        %v1130 = vunpack.c.h.b16 %v988
        %v1131 = vunpack.c.l.b16 %v989
        %v1132 = vunpack.c.h.b16 %v989
        %v1133 = vunpack.c.l.b16 %v990
        %v1134 = vunpack.c.h.b16 %v990
        %v1135 = vunpack.c.l.b16 %v991
        %v1136 = vunpack.c.h.b16 %v991
        %v1137 = vunpack.c.l.b16 %v992
        %v1138 = vunpack.c.h.b16 %v992
        %v1139 = vunpack.c.l.b16 %v993
        %v1140 = vunpack.c.h.b16 %v993
        %v1141 = vunpack.c.l.b16 %v994
        %v1142 = vunpack.c.h.b16 %v994
        %v1143 = vunpack.c.l.b16 %v995
        %v1144 = vunpack.c.h.b16 %v995
        %v1145 = vunpack.c.l.b16 %v996
        %v1146 = vunpack.c.h.b16 %v996
        %v1147 = vunpack.c.l.b16 %v997
        %v1148 = vunpack.c.h.b16 %v997
        %v1149 = vunpack.c.l.b16 %v998
        %v1150 = vunpack.c.h.b16 %v998
        %v1151 = vunpack.c.l.b16 %v999
        %v1152 = vunpack.c.h.b16 %v999
        %v1153 = vunpack.c.l.b16 %v1000
        %v1154 = vunpack.c.h.b16 %v1000
        %v1155 = vunpack.c.l.b16 %v1001
        %v1156 = vunpack.c.h.b16 %v1001
        %v1157 = vunpack.c.l.b16 %v1002
        %v1158 = vunpack.c.h.b16 %v1002
        %v1159 = vunpack.c.l.b16 %v1003
        %v1160 = vunpack.c.h.b16 %v1003
        %v1161 = vunpack.c.l.b16 %v1004
        %v1162 = vunpack.c.h.b16 %v1004
        %v1163 = vunpack.c.l.b16 %v1005
        %v1164 = vunpack.c.h.b16 %v1005
        %v1165 = vunpack.c.l.b16 %v1006
        %v1166 = vunpack.c.h.b16 %v1006
        %v1167 = vunpack.c.l.b16 %v1007
        %v1168 = vunpack.c.h.b16 %v1007
        %v1169 = vunpack.c.l.b16 %v1008
        %v1170 = vunpack.c.h.b16 %v1008
        %v1171 = vunpack.c.l.b16 %v1009
        %v1172 = vunpack.c.h.b16 %v1009
        %v1173 = vunpack.c.l.b16 %v1010
        %v1174 = vunpack.c.h.b16 %v1010
        %v1175 = vunpack.c.l.b16 %v1011
        %v1176 = vunpack.c.h.b16 %v1011
        %v1177 = vunpack.c.l.b16 %v1012
        %v1178 = vunpack.c.h.b16 %v1012
        %v1179 = vunpack.c.l.b16 %v1013
        %v1180 = vunpack.c.h.b16 %v1013
        %v1181 = vunpack.c.l.b16 %v1014
        %v1182 = vunpack.c.h.b16 %v1014
        %v1183 = vunpack.c.l.b16 %v1015
        %v1184 = vunpack.c.h.b16 %v1015
        %v1185 = vunpack.c.l.b16 %v1016
        %v1186 = vunpack.c.h.b16 %v1016
        %v1187 = vunpack.c.l.b16 %v1017
        %v1188 = vunpack.c.h.b16 %v1017
        %v1189 = vunpack.c.l.b16 %v1018
        %v1190 = vunpack.c.h.b16 %v1018
        %v1191 = vunpack.c.l.b16 %v1019
        %v1192 = vunpack.c.h.b16 %v1019
        %v1193 = vunpack.c.l.b16 %v1020
        %v1194 = vunpack.c.h.b16 %v1020
        %v1195 = vunpack.c.l.b16 %v1021
        %v1196 = vunpack.c.h.b16 %v1021
        %v1197 = vunpack.c.l.b16 %v1022
        %v1198 = vunpack.c.h.b16 %v1022
        %v1199 = vunpack.c.l.b16 %v1023
        %v1200 = vunpack.c.h.b16 %v1023
        %v1201 = vunpack.c.l.b16 %v1024
        %v1202 = vunpack.c.h.b16 %v1024
        %v1203 = vunpack.c.l.b16 %v1025
        %v1204 = vunpack.c.h.b16 %v1025
        %v1205 = vunpack.c.l.b16 %v1026
        %v1206 = vunpack.c.h.b16 %v1026
        %v1207 = vunpack.c.l.b16 %v1027
        %v1208 = vunpack.c.h.b16 %v1027
        %v1209 = vunpack.c.l.b16 %v1028
        %v1210 = vunpack.c.h.b16 %v1028
        %v1211 = vunpack.c.l.b16 %v1029
        %v1212 = vunpack.c.h.b16 %v1029
        %v1213 = vunpack.c.l.b16 %v1030
        %v1214 = vunpack.c.h.b16 %v1030
        %v1215 = vunpack.c.l.b16 %v1031
        %v1216 = vunpack.c.h.b16 %v1031
        %v1217 = vunpack.c.l.b16 %v1032
        %v1218 = vunpack.c.h.b16 %v1032
        %v1219 = vunpack.c.l.b16 %v1033
        %v1220 = vunpack.c.h.b16 %v1033
        %v1221 = vunpack.c.l.b16 %v1034
        %v1222 = vunpack.c.h.b16 %v1034
        %v1223 = vunpack.c.l.b16 %v1035
        %v1224 = vunpack.c.h.b16 %v1035
        %v1225 = vunpack.c.l.b16 %v1036
        %v1226 = vunpack.c.h.b16 %v1036
        %v1227 = vunpack.c.l.b16 %v1037
        %v1228 = vunpack.c.h.b16 %v1037
        %v1229 = vunpack.c.l.b16 %v1038
        %v1230 = vunpack.c.h.b16 %v1038
        %v1231 = vpack.c.b16 %v1111, %v1103
        %v1232 = vpack.c.b16 %v1112, %v1104
        %v1233 = vpack.c.b16 %v1113, %v1105
        %v1234 = vpack.c.b16 %v1114, %v1106
        %v1235 = vpack.c.b16 %v1115, %v1107
        %v1236 = vpack.c.b16 %v1116, %v1108
        %v1237 = vpack.c.b16 %v1117, %v1109
        %v1238 = vpack.c.b16 %v1118, %v1110
        %v1239 = vpack.c.b16 %v1127, %v1119
        %v1240 = vpack.c.b16 %v1128, %v1120
        %v1241 = vpack.c.b16 %v1129, %v1121
        %v1242 = vpack.c.b16 %v1130, %v1122
        %v1243 = vpack.c.b16 %v1131, %v1123
        %v1244 = vpack.c.b16 %v1132, %v1124
        %v1245 = vpack.c.b16 %v1133, %v1125
        %v1246 = vpack.c.b16 %v1134, %v1126
        %v1247 = vpack.c.b16 %v1143, %v1135
        %v1248 = vpack.c.b16 %v1144, %v1136
        %v1249 = vpack.c.b16 %v1145, %v1137
        %v1250 = vpack.c.b16 %v1146, %v1138
        %v1251 = vpack.c.b16 %v1147, %v1139
        %v1252 = vpack.c.b16 %v1148, %v1140
        %v1253 = vpack.c.b16 %v1149, %v1141
        %v1254 = vpack.c.b16 %v1150, %v1142
        %v1255 = vpack.c.b16 %v1159, %v1151
        %v1256 = vpack.c.b16 %v1160, %v1152
        %v1257 = vpack.c.b16 %v1161, %v1153
        %v1258 = vpack.c.b16 %v1162, %v1154
        %v1259 = vpack.c.b16 %v1163, %v1155
        %v1260 = vpack.c.b16 %v1164, %v1156
        %v1261 = vpack.c.b16 %v1165, %v1157
        %v1262 = vpack.c.b16 %v1166, %v1158
        %v1263 = vpack.c.b16 %v1175, %v1167
        %v1264 = vpack.c.b16 %v1176, %v1168
        %v1265 = vpack.c.b16 %v1177, %v1169
        %v1266 = vpack.c.b16 %v1178, %v1170
        %v1267 = vpack.c.b16 %v1179, %v1171
        %v1268 = vpack.c.b16 %v1180, %v1172
        %v1269 = vpack.c.b16 %v1181, %v1173
        %v1270 = vpack.c.b16 %v1182, %v1174
        %v1271 = vpack.c.b16 %v1191, %v1183
        %v1272 = vpack.c.b16 %v1192, %v1184
        %v1273 = vpack.c.b16 %v1193, %v1185
        %v1274 = vpack.c.b16 %v1194, %v1186
        %v1275 = vpack.c.b16 %v1195, %v1187
        %v1276 = vpack.c.b16 %v1196, %v1188
        %v1277 = vpack.c.b16 %v1197, %v1189
        %v1278 = vpack.c.b16 %v1198, %v1190
        %v1279 = vpack.c.b16 %v1207, %v1199
        %v1280 = vpack.c.b16 %v1208, %v1200
        %v1281 = vpack.c.b16 %v1209, %v1201
        %v1282 = vpack.c.b16 %v1210, %v1202
        %v1283 = vpack.c.b16 %v1211, %v1203
        %v1284 = vpack.c.b16 %v1212, %v1204
        %v1285 = vpack.c.b16 %v1213, %v1205
        %v1286 = vpack.c.b16 %v1214, %v1206
        %v1287 = vpack.c.b16 %v1223, %v1215
        %v1288 = vpack.c.b16 %v1224, %v1216
        %v1289 = vpack.c.b16 %v1225, %v1217
        %v1290 = vpack.c.b16 %v1226, %v1218
        %v1291 = vpack.c.b16 %v1227, %v1219
        %v1292 = vpack.c.b16 %v1228, %v1220
        %v1293 = vpack.c.b16 %v1229, %v1221
        %v1294 = vpack.c.b16 %v1230, %v1222
        %1359 = vmatpush.bf16.msra.mxu0 %v1287
        %1360 = vmatpush.bf16.msra.mxu0 %v1279
        %1361 = vmatpush.bf16.msra.mxu0 %v1271
        %1362 = vmatpush.bf16.msra.mxu0 %v1263
        %1363 = vmatpush.bf16.msra.mxu0 %v1255
        %1364 = vmatpush.bf16.msra.mxu0 %v1247
        %1365 = vmatpush.bf16.msra.mxu0 %v1239
        %1366 = vmatpush.bf16.msra.mxu0 %v1231
        %1367 = vmatmul.bf16.gmra.mxu0 %v959
        %v1368 = vpop.f32.mrf.mxu0
        %v1369 = vadd.f32 0.0, %v1368
        %v1370 = vpop.f32.mrf.mxu0
        %v1371 = vadd.f32 0.0, %v1370
        %1372 = vmatmul.bf16.gmra.mxu0 %v960
        %v1373 = vpop.f32.mrf.mxu0
        %v1374 = vadd.f32 0.0, %v1373
        %v1375 = vpop.f32.mrf.mxu0
        %v1376 = vadd.f32 0.0, %v1375
        %1377 = vmatmul.bf16.gmra.mxu0 %v961
        %v1378 = vpop.f32.mrf.mxu0
        %v1379 = vadd.f32 0.0, %v1378
        %v1380 = vpop.f32.mrf.mxu0
        %v1381 = vadd.f32 0.0, %v1380
        %1382 = vmatmul.bf16.gmra.mxu0 %v962
        %v1383 = vpop.f32.mrf.mxu0
        %v1384 = vadd.f32 0.0, %v1383
        %v1385 = vpop.f32.mrf.mxu0
        %v1386 = vadd.f32 0.0, %v1385
        %1387 = vmatmul.bf16.gmra.mxu0 %v963
        %v1388 = vpop.f32.mrf.mxu0
        %v1389 = vadd.f32 0.0, %v1388
        %v1390 = vpop.f32.mrf.mxu0
        %v1391 = vadd.f32 0.0, %v1390
        %1392 = vmatmul.bf16.gmra.mxu0 %v964
        %v1393 = vpop.f32.mrf.mxu0
        %v1394 = vadd.f32 0.0, %v1393
        %v1395 = vpop.f32.mrf.mxu0
        %v1396 = vadd.f32 0.0, %v1395
        %1397 = vmatmul.bf16.gmra.mxu0 %v965
        %v1398 = vpop.f32.mrf.mxu0
        %v1399 = vadd.f32 0.0, %v1398
        %v1400 = vpop.f32.mrf.mxu0
        %v1401 = vadd.f32 0.0, %v1400
        %1402 = vmatmul.bf16.gmra.mxu0 %v966
        %v1403 = vpop.f32.mrf.mxu0
        %v1404 = vadd.f32 0.0, %v1403
        %v1405 = vpop.f32.mrf.mxu0
        %v1406 = vadd.f32 0.0, %v1405
        %1407 = vmatmul.bf16.gmra.mxu0 %v967
        %v1408 = vpop.f32.mrf.mxu0
        %v1409 = vadd.f32 0.0, %v1408
        %v1410 = vpop.f32.mrf.mxu0
        %v1411 = vadd.f32 0.0, %v1410
        %1412 = vmatmul.bf16.gmra.mxu0 %v968
        %v1413 = vpop.f32.mrf.mxu0
        %v1414 = vadd.f32 0.0, %v1413
        %v1415 = vpop.f32.mrf.mxu0
        %v1416 = vadd.f32 0.0, %v1415
        %1417 = vmatmul.bf16.gmra.mxu0 %v969
        %v1418 = vpop.f32.mrf.mxu0
        %v1419 = vadd.f32 0.0, %v1418
        %v1420 = vpop.f32.mrf.mxu0
        %v1421 = vadd.f32 0.0, %v1420
        %1422 = vmatmul.bf16.gmra.mxu0 %v970
        %v1423 = vpop.f32.mrf.mxu0
        %v1424 = vadd.f32 0.0, %v1423
        %v1425 = vpop.f32.mrf.mxu0
        %v1426 = vadd.f32 0.0, %v1425
        %1427 = vmatmul.bf16.gmra.mxu0 %v971
        %v1428 = vpop.f32.mrf.mxu0
        %v1429 = vadd.f32 0.0, %v1428
        %v1430 = vpop.f32.mrf.mxu0
        %v1431 = vadd.f32 0.0, %v1430
        %1432 = vmatmul.bf16.gmra.mxu0 %v972
        %v1433 = vpop.f32.mrf.mxu0
        %v1434 = vadd.f32 0.0, %v1433
        %v1435 = vpop.f32.mrf.mxu0
        %v1436 = vadd.f32 0.0, %v1435
        %1437 = vmatmul.bf16.gmra.mxu0 %v973
        %v1438 = vpop.f32.mrf.mxu0
        %v1439 = vadd.f32 0.0, %v1438
        %v1440 = vpop.f32.mrf.mxu0
        %v1441 = vadd.f32 0.0, %v1440
        %1442 = vmatmul.bf16.gmra.mxu0 %v974
        %v1443 = vpop.f32.mrf.mxu0
        %v1444 = vadd.f32 0.0, %v1443
        %v1445 = vpop.f32.mrf.mxu0
        %v1446 = vadd.f32 0.0, %v1445
        %1447 = vdwg.mxu0
        %1448 = vmatpush.bf16.msra.mxu0 %v1288
        %1449 = vmatpush.bf16.msra.mxu0 %v1280
        %1450 = vmatpush.bf16.msra.mxu0 %v1272
        %1451 = vmatpush.bf16.msra.mxu0 %v1264
        %1452 = vmatpush.bf16.msra.mxu0 %v1256
        %1453 = vmatpush.bf16.msra.mxu0 %v1248
        %1454 = vmatpush.bf16.msra.mxu0 %v1240
        %1455 = vmatpush.bf16.msra.mxu0 %v1232
        %1456 = vmatmul.bf16.gmra.mxu0 %v959
        %v1457 = vpop.f32.mrf.mxu0
        %v1458 = vadd.f32 0.0, %v1457
        %v1459 = vpop.f32.mrf.mxu0
        %v1460 = vadd.f32 0.0, %v1459
        %1461 = vmatmul.bf16.gmra.mxu0 %v960
        %v1462 = vpop.f32.mrf.mxu0
        %v1463 = vadd.f32 0.0, %v1462
        %v1464 = vpop.f32.mrf.mxu0
        %v1465 = vadd.f32 0.0, %v1464
        %1466 = vmatmul.bf16.gmra.mxu0 %v961
        %v1467 = vpop.f32.mrf.mxu0
        %v1468 = vadd.f32 0.0, %v1467
        %v1469 = vpop.f32.mrf.mxu0
        %v1470 = vadd.f32 0.0, %v1469
        %1471 = vmatmul.bf16.gmra.mxu0 %v962
        %v1472 = vpop.f32.mrf.mxu0
        %v1473 = vadd.f32 0.0, %v1472
        %v1474 = vpop.f32.mrf.mxu0
        %v1475 = vadd.f32 0.0, %v1474
        %1476 = vmatmul.bf16.gmra.mxu0 %v963
        %v1477 = vpop.f32.mrf.mxu0
        %v1478 = vadd.f32 0.0, %v1477
        %v1479 = vpop.f32.mrf.mxu0
        %v1480 = vadd.f32 0.0, %v1479
        %1481 = vmatmul.bf16.gmra.mxu0 %v964
        %v1482 = vpop.f32.mrf.mxu0
        %v1483 = vadd.f32 0.0, %v1482
        %v1484 = vpop.f32.mrf.mxu0
        %v1485 = vadd.f32 0.0, %v1484
        %1486 = vmatmul.bf16.gmra.mxu0 %v965
        %v1487 = vpop.f32.mrf.mxu0
        %v1488 = vadd.f32 0.0, %v1487
        %v1489 = vpop.f32.mrf.mxu0
        %v1490 = vadd.f32 0.0, %v1489
        %1491 = vmatmul.bf16.gmra.mxu0 %v966
        %v1492 = vpop.f32.mrf.mxu0
        %v1493 = vadd.f32 0.0, %v1492
        %v1494 = vpop.f32.mrf.mxu0
        %v1495 = vadd.f32 0.0, %v1494
        %1496 = vmatmul.bf16.gmra.mxu0 %v967
        %v1497 = vpop.f32.mrf.mxu0
        %v1498 = vadd.f32 0.0, %v1497
        %v1499 = vpop.f32.mrf.mxu0
        %v1500 = vadd.f32 0.0, %v1499
        %1501 = vmatmul.bf16.gmra.mxu0 %v968
        %v1502 = vpop.f32.mrf.mxu0
        %v1503 = vadd.f32 0.0, %v1502
        %v1504 = vpop.f32.mrf.mxu0
        %v1505 = vadd.f32 0.0, %v1504
        %1506 = vmatmul.bf16.gmra.mxu0 %v969
        %v1507 = vpop.f32.mrf.mxu0
        %v1508 = vadd.f32 0.0, %v1507
        %v1509 = vpop.f32.mrf.mxu0
        %v1510 = vadd.f32 0.0, %v1509
        %1511 = vmatmul.bf16.gmra.mxu0 %v970
        %v1512 = vpop.f32.mrf.mxu0
        %v1513 = vadd.f32 0.0, %v1512
        %v1514 = vpop.f32.mrf.mxu0
        %v1515 = vadd.f32 0.0, %v1514
        %1516 = vmatmul.bf16.gmra.mxu0 %v971
        %v1517 = vpop.f32.mrf.mxu0
        %v1518 = vadd.f32 0.0, %v1517
        %v1519 = vpop.f32.mrf.mxu0
        %v1520 = vadd.f32 0.0, %v1519
        %1521 = vmatmul.bf16.gmra.mxu0 %v972
        %v1522 = vpop.f32.mrf.mxu0
        %v1523 = vadd.f32 0.0, %v1522
        %v1524 = vpop.f32.mrf.mxu0
        %v1525 = vadd.f32 0.0, %v1524
        %1526 = vmatmul.bf16.gmra.mxu0 %v973
        %v1527 = vpop.f32.mrf.mxu0
        %v1528 = vadd.f32 0.0, %v1527
        %v1529 = vpop.f32.mrf.mxu0
        %v1530 = vadd.f32 0.0, %v1529
        %1531 = vmatmul.bf16.gmra.mxu0 %v974
        %v1532 = vpop.f32.mrf.mxu0
        %v1533 = vadd.f32 0.0, %v1532
        %v1534 = vpop.f32.mrf.mxu0
        %v1535 = vadd.f32 0.0, %v1534
        %1536 = vdwg.mxu0
        %1537 = vmatpush.bf16.msra.mxu0 %v1289
        %1538 = vmatpush.bf16.msra.mxu0 %v1281
        %1539 = vmatpush.bf16.msra.mxu0 %v1273
        %1540 = vmatpush.bf16.msra.mxu0 %v1265
        %1541 = vmatpush.bf16.msra.mxu0 %v1257
        %1542 = vmatpush.bf16.msra.mxu0 %v1249
        %1543 = vmatpush.bf16.msra.mxu0 %v1241
        %1544 = vmatpush.bf16.msra.mxu0 %v1233
        %1545 = vmatmul.bf16.gmra.mxu0 %v959
        %v1546 = vpop.f32.mrf.mxu0
        %v1547 = vadd.f32 0.0, %v1546
        %v1548 = vpop.f32.mrf.mxu0
        %v1549 = vadd.f32 0.0, %v1548
        %1550 = vmatmul.bf16.gmra.mxu0 %v960
        %v1551 = vpop.f32.mrf.mxu0
        %v1552 = vadd.f32 0.0, %v1551
        %v1553 = vpop.f32.mrf.mxu0
        %v1554 = vadd.f32 0.0, %v1553
        %1555 = vmatmul.bf16.gmra.mxu0 %v961
        %v1556 = vpop.f32.mrf.mxu0
        %v1557 = vadd.f32 0.0, %v1556
        %v1558 = vpop.f32.mrf.mxu0
        %v1559 = vadd.f32 0.0, %v1558
        %1560 = vmatmul.bf16.gmra.mxu0 %v962
        %v1561 = vpop.f32.mrf.mxu0
        %v1562 = vadd.f32 0.0, %v1561
        %v1563 = vpop.f32.mrf.mxu0
        %v1564 = vadd.f32 0.0, %v1563
        %1565 = vmatmul.bf16.gmra.mxu0 %v963
        %v1566 = vpop.f32.mrf.mxu0
        %v1567 = vadd.f32 0.0, %v1566
        %v1568 = vpop.f32.mrf.mxu0
        %v1569 = vadd.f32 0.0, %v1568
        %1570 = vmatmul.bf16.gmra.mxu0 %v964
        %v1571 = vpop.f32.mrf.mxu0
        %v1572 = vadd.f32 0.0, %v1571
        %v1573 = vpop.f32.mrf.mxu0
        %v1574 = vadd.f32 0.0, %v1573
        %1575 = vmatmul.bf16.gmra.mxu0 %v965
        %v1576 = vpop.f32.mrf.mxu0
        %v1577 = vadd.f32 0.0, %v1576
        %v1578 = vpop.f32.mrf.mxu0
        %v1579 = vadd.f32 0.0, %v1578
        %1580 = vmatmul.bf16.gmra.mxu0 %v966
        %v1581 = vpop.f32.mrf.mxu0
        %v1582 = vadd.f32 0.0, %v1581
        %v1583 = vpop.f32.mrf.mxu0
        %v1584 = vadd.f32 0.0, %v1583
        %1585 = vmatmul.bf16.gmra.mxu0 %v967
        %v1586 = vpop.f32.mrf.mxu0
        %v1587 = vadd.f32 0.0, %v1586
        %v1588 = vpop.f32.mrf.mxu0
        %v1589 = vadd.f32 0.0, %v1588
        %1590 = vmatmul.bf16.gmra.mxu0 %v968
        %v1591 = vpop.f32.mrf.mxu0
        %v1592 = vadd.f32 0.0, %v1591
        %v1593 = vpop.f32.mrf.mxu0
        %v1594 = vadd.f32 0.0, %v1593
        %1595 = vmatmul.bf16.gmra.mxu0 %v969
        %v1596 = vpop.f32.mrf.mxu0
        %v1597 = vadd.f32 0.0, %v1596
        %v1598 = vpop.f32.mrf.mxu0
        %v1599 = vadd.f32 0.0, %v1598
        %1600 = vmatmul.bf16.gmra.mxu0 %v970
        %v1601 = vpop.f32.mrf.mxu0
        %v1602 = vadd.f32 0.0, %v1601
        %v1603 = vpop.f32.mrf.mxu0
        %v1604 = vadd.f32 0.0, %v1603
        %1605 = vmatmul.bf16.gmra.mxu0 %v971
        %v1606 = vpop.f32.mrf.mxu0
        %v1607 = vadd.f32 0.0, %v1606
        %v1608 = vpop.f32.mrf.mxu0
        %v1609 = vadd.f32 0.0, %v1608
        %1610 = vmatmul.bf16.gmra.mxu0 %v972
        %v1611 = vpop.f32.mrf.mxu0
        %v1612 = vadd.f32 0.0, %v1611
        %v1613 = vpop.f32.mrf.mxu0
        %v1614 = vadd.f32 0.0, %v1613
        %1615 = vmatmul.bf16.gmra.mxu0 %v973
        %v1616 = vpop.f32.mrf.mxu0
        %v1617 = vadd.f32 0.0, %v1616
        %v1618 = vpop.f32.mrf.mxu0
        %v1619 = vadd.f32 0.0, %v1618
        %1620 = vmatmul.bf16.gmra.mxu0 %v974
        %v1621 = vpop.f32.mrf.mxu0
        %v1622 = vadd.f32 0.0, %v1621
        %v1623 = vpop.f32.mrf.mxu0
        %v1624 = vadd.f32 0.0, %v1623
        %1625 = vdwg.mxu0
        %1626 = vmatpush.bf16.msra.mxu0 %v1290
        %1627 = vmatpush.bf16.msra.mxu0 %v1282
        %1628 = vmatpush.bf16.msra.mxu0 %v1274
        %1629 = vmatpush.bf16.msra.mxu0 %v1266
        %1630 = vmatpush.bf16.msra.mxu0 %v1258
        %1631 = vmatpush.bf16.msra.mxu0 %v1250
        %1632 = vmatpush.bf16.msra.mxu0 %v1242
        %1633 = vmatpush.bf16.msra.mxu0 %v1234
        %1634 = vmatmul.bf16.gmra.mxu0 %v959
        %v1635 = vpop.f32.mrf.mxu0
        %v1636 = vadd.f32 0.0, %v1635
        %v1637 = vpop.f32.mrf.mxu0
        %v1638 = vadd.f32 0.0, %v1637
        %1639 = vmatmul.bf16.gmra.mxu0 %v960
        %v1640 = vpop.f32.mrf.mxu0
        %v1641 = vadd.f32 0.0, %v1640
        %v1642 = vpop.f32.mrf.mxu0
        %v1643 = vadd.f32 0.0, %v1642
        %1644 = vmatmul.bf16.gmra.mxu0 %v961
        %v1645 = vpop.f32.mrf.mxu0
        %v1646 = vadd.f32 0.0, %v1645
        %v1647 = vpop.f32.mrf.mxu0
        %v1648 = vadd.f32 0.0, %v1647
        %1649 = vmatmul.bf16.gmra.mxu0 %v962
        %v1650 = vpop.f32.mrf.mxu0
        %v1651 = vadd.f32 0.0, %v1650
        %v1652 = vpop.f32.mrf.mxu0
        %v1653 = vadd.f32 0.0, %v1652
        %1654 = vmatmul.bf16.gmra.mxu0 %v963
        %v1655 = vpop.f32.mrf.mxu0
        %v1656 = vadd.f32 0.0, %v1655
        %v1657 = vpop.f32.mrf.mxu0
        %v1658 = vadd.f32 0.0, %v1657
        %1659 = vmatmul.bf16.gmra.mxu0 %v964
        %v1660 = vpop.f32.mrf.mxu0
        %v1661 = vadd.f32 0.0, %v1660
        %v1662 = vpop.f32.mrf.mxu0
        %v1663 = vadd.f32 0.0, %v1662
        %1664 = vmatmul.bf16.gmra.mxu0 %v965
        %v1665 = vpop.f32.mrf.mxu0
        %v1666 = vadd.f32 0.0, %v1665
        %v1667 = vpop.f32.mrf.mxu0
        %v1668 = vadd.f32 0.0, %v1667
        %1669 = vmatmul.bf16.gmra.mxu0 %v966
        %v1670 = vpop.f32.mrf.mxu0
        %v1671 = vadd.f32 0.0, %v1670
        %v1672 = vpop.f32.mrf.mxu0
        %v1673 = vadd.f32 0.0, %v1672
        %1674 = vmatmul.bf16.gmra.mxu0 %v967
        %v1675 = vpop.f32.mrf.mxu0
        %v1676 = vadd.f32 0.0, %v1675
        %v1677 = vpop.f32.mrf.mxu0
        %v1678 = vadd.f32 0.0, %v1677
        %1679 = vmatmul.bf16.gmra.mxu0 %v968
        %v1680 = vpop.f32.mrf.mxu0
        %v1681 = vadd.f32 0.0, %v1680
        %v1682 = vpop.f32.mrf.mxu0
        %v1683 = vadd.f32 0.0, %v1682
        %1684 = vmatmul.bf16.gmra.mxu0 %v969
        %v1685 = vpop.f32.mrf.mxu0
        %v1686 = vadd.f32 0.0, %v1685
        %v1687 = vpop.f32.mrf.mxu0
        %v1688 = vadd.f32 0.0, %v1687
        %1689 = vmatmul.bf16.gmra.mxu0 %v970
        %v1690 = vpop.f32.mrf.mxu0
        %v1691 = vadd.f32 0.0, %v1690
        %v1692 = vpop.f32.mrf.mxu0
        %v1693 = vadd.f32 0.0, %v1692
        %1694 = vmatmul.bf16.gmra.mxu0 %v971
        %v1695 = vpop.f32.mrf.mxu0
        %v1696 = vadd.f32 0.0, %v1695
        %v1697 = vpop.f32.mrf.mxu0
        %v1698 = vadd.f32 0.0, %v1697
        %1699 = vmatmul.bf16.gmra.mxu0 %v972
        %v1700 = vpop.f32.mrf.mxu0
        %v1701 = vadd.f32 0.0, %v1700
        %v1702 = vpop.f32.mrf.mxu0
        %v1703 = vadd.f32 0.0, %v1702
        %1704 = vmatmul.bf16.gmra.mxu0 %v973
        %v1705 = vpop.f32.mrf.mxu0
        %v1706 = vadd.f32 0.0, %v1705
        %v1707 = vpop.f32.mrf.mxu0
        %v1708 = vadd.f32 0.0, %v1707
        %1709 = vmatmul.bf16.gmra.mxu0 %v974
        %v1710 = vpop.f32.mrf.mxu0
        %v1711 = vadd.f32 0.0, %v1710
        %v1712 = vpop.f32.mrf.mxu0
        %v1713 = vadd.f32 0.0, %v1712
        %1714 = vdwg.mxu0
        %1715 = vmatpush.bf16.msra.mxu0 %v1291
        %1716 = vmatpush.bf16.msra.mxu0 %v1283
        %1717 = vmatpush.bf16.msra.mxu0 %v1275
        %1718 = vmatpush.bf16.msra.mxu0 %v1267
        %1719 = vmatpush.bf16.msra.mxu0 %v1259
        %1720 = vmatpush.bf16.msra.mxu0 %v1251
        %1721 = vmatpush.bf16.msra.mxu0 %v1243
        %1722 = vmatpush.bf16.msra.mxu0 %v1235
        %1723 = vmatmul.bf16.gmra.mxu0 %v959
        %v1724 = vpop.f32.mrf.mxu0
        %v1725 = vadd.f32 0.0, %v1724
        %v1726 = vpop.f32.mrf.mxu0
        %v1727 = vadd.f32 0.0, %v1726
        %1728 = vmatmul.bf16.gmra.mxu0 %v960
        %v1729 = vpop.f32.mrf.mxu0
        %v1730 = vadd.f32 0.0, %v1729
        %v1731 = vpop.f32.mrf.mxu0
        %v1732 = vadd.f32 0.0, %v1731
        %1733 = vmatmul.bf16.gmra.mxu0 %v961
        %v1734 = vpop.f32.mrf.mxu0
        %v1735 = vadd.f32 0.0, %v1734
        %v1736 = vpop.f32.mrf.mxu0
        %v1737 = vadd.f32 0.0, %v1736
        %1738 = vmatmul.bf16.gmra.mxu0 %v962
        %v1739 = vpop.f32.mrf.mxu0
        %v1740 = vadd.f32 0.0, %v1739
        %v1741 = vpop.f32.mrf.mxu0
        %v1742 = vadd.f32 0.0, %v1741
        %1743 = vmatmul.bf16.gmra.mxu0 %v963
        %v1744 = vpop.f32.mrf.mxu0
        %v1745 = vadd.f32 0.0, %v1744
        %v1746 = vpop.f32.mrf.mxu0
        %v1747 = vadd.f32 0.0, %v1746
        %1748 = vmatmul.bf16.gmra.mxu0 %v964
        %v1749 = vpop.f32.mrf.mxu0
        %v1750 = vadd.f32 0.0, %v1749
        %v1751 = vpop.f32.mrf.mxu0
        %v1752 = vadd.f32 0.0, %v1751
        %1753 = vmatmul.bf16.gmra.mxu0 %v965
        %v1754 = vpop.f32.mrf.mxu0
        %v1755 = vadd.f32 0.0, %v1754
        %v1756 = vpop.f32.mrf.mxu0
        %v1757 = vadd.f32 0.0, %v1756
        %1758 = vmatmul.bf16.gmra.mxu0 %v966
        %v1759 = vpop.f32.mrf.mxu0
        %v1760 = vadd.f32 0.0, %v1759
        %v1761 = vpop.f32.mrf.mxu0
        %v1762 = vadd.f32 0.0, %v1761
        %1763 = vmatmul.bf16.gmra.mxu0 %v967
        %v1764 = vpop.f32.mrf.mxu0
        %v1765 = vadd.f32 0.0, %v1764
        %v1766 = vpop.f32.mrf.mxu0
        %v1767 = vadd.f32 0.0, %v1766
        %1768 = vmatmul.bf16.gmra.mxu0 %v968
        %v1769 = vpop.f32.mrf.mxu0
        %v1770 = vadd.f32 0.0, %v1769
        %v1771 = vpop.f32.mrf.mxu0
        %v1772 = vadd.f32 0.0, %v1771
        %1773 = vmatmul.bf16.gmra.mxu0 %v969
        %v1774 = vpop.f32.mrf.mxu0
        %v1775 = vadd.f32 0.0, %v1774
        %v1776 = vpop.f32.mrf.mxu0
        %v1777 = vadd.f32 0.0, %v1776
        %1778 = vmatmul.bf16.gmra.mxu0 %v970
        %v1779 = vpop.f32.mrf.mxu0
        %v1780 = vadd.f32 0.0, %v1779
        %v1781 = vpop.f32.mrf.mxu0
        %v1782 = vadd.f32 0.0, %v1781
        %1783 = vmatmul.bf16.gmra.mxu0 %v971
        %v1784 = vpop.f32.mrf.mxu0
        %v1785 = vadd.f32 0.0, %v1784
        %v1786 = vpop.f32.mrf.mxu0
        %v1787 = vadd.f32 0.0, %v1786
        %1788 = vmatmul.bf16.gmra.mxu0 %v972
        %v1789 = vpop.f32.mrf.mxu0
        %v1790 = vadd.f32 0.0, %v1789
        %v1791 = vpop.f32.mrf.mxu0
        %v1792 = vadd.f32 0.0, %v1791
        %1793 = vmatmul.bf16.gmra.mxu0 %v973
        %v1794 = vpop.f32.mrf.mxu0
        %v1795 = vadd.f32 0.0, %v1794
        %v1796 = vpop.f32.mrf.mxu0
        %v1797 = vadd.f32 0.0, %v1796
        %1798 = vmatmul.bf16.gmra.mxu0 %v974
        %v1799 = vpop.f32.mrf.mxu0
        %v1800 = vadd.f32 0.0, %v1799
        %v1801 = vpop.f32.mrf.mxu0
        %v1802 = vadd.f32 0.0, %v1801
        %1803 = vdwg.mxu0
        %1804 = vmatpush.bf16.msra.mxu0 %v1292
        %1805 = vmatpush.bf16.msra.mxu0 %v1284
        %1806 = vmatpush.bf16.msra.mxu0 %v1276
        %1807 = vmatpush.bf16.msra.mxu0 %v1268
        %1808 = vmatpush.bf16.msra.mxu0 %v1260
        %1809 = vmatpush.bf16.msra.mxu0 %v1252
        %1810 = vmatpush.bf16.msra.mxu0 %v1244
        %1811 = vmatpush.bf16.msra.mxu0 %v1236
        %1812 = vmatmul.bf16.gmra.mxu0 %v959
        %v1813 = vpop.f32.mrf.mxu0
        %v1814 = vadd.f32 0.0, %v1813
        %v1815 = vpop.f32.mrf.mxu0
        %v1816 = vadd.f32 0.0, %v1815
        %1817 = vmatmul.bf16.gmra.mxu0 %v960
        %v1818 = vpop.f32.mrf.mxu0
        %v1819 = vadd.f32 0.0, %v1818
        %v1820 = vpop.f32.mrf.mxu0
        %v1821 = vadd.f32 0.0, %v1820
        %1822 = vmatmul.bf16.gmra.mxu0 %v961
        %v1823 = vpop.f32.mrf.mxu0
        %v1824 = vadd.f32 0.0, %v1823
        %v1825 = vpop.f32.mrf.mxu0
        %v1826 = vadd.f32 0.0, %v1825
        %1827 = vmatmul.bf16.gmra.mxu0 %v962
        %v1828 = vpop.f32.mrf.mxu0
        %v1829 = vadd.f32 0.0, %v1828
        %v1830 = vpop.f32.mrf.mxu0
        %v1831 = vadd.f32 0.0, %v1830
        %1832 = vmatmul.bf16.gmra.mxu0 %v963
        %v1833 = vpop.f32.mrf.mxu0
        %v1834 = vadd.f32 0.0, %v1833
        %v1835 = vpop.f32.mrf.mxu0
        %v1836 = vadd.f32 0.0, %v1835
        %1837 = vmatmul.bf16.gmra.mxu0 %v964
        %v1838 = vpop.f32.mrf.mxu0
        %v1839 = vadd.f32 0.0, %v1838
        %v1840 = vpop.f32.mrf.mxu0
        %v1841 = vadd.f32 0.0, %v1840
        %1842 = vmatmul.bf16.gmra.mxu0 %v965
        %v1843 = vpop.f32.mrf.mxu0
        %v1844 = vadd.f32 0.0, %v1843
        %v1845 = vpop.f32.mrf.mxu0
        %v1846 = vadd.f32 0.0, %v1845
        %1847 = vmatmul.bf16.gmra.mxu0 %v966
        %v1848 = vpop.f32.mrf.mxu0
        %v1849 = vadd.f32 0.0, %v1848
        %v1850 = vpop.f32.mrf.mxu0
        %v1851 = vadd.f32 0.0, %v1850
        %1852 = vmatmul.bf16.gmra.mxu0 %v967
        %v1853 = vpop.f32.mrf.mxu0
        %v1854 = vadd.f32 0.0, %v1853
        %v1855 = vpop.f32.mrf.mxu0
        %v1856 = vadd.f32 0.0, %v1855
        %1857 = vmatmul.bf16.gmra.mxu0 %v968
        %v1858 = vpop.f32.mrf.mxu0
        %v1859 = vadd.f32 0.0, %v1858
        %v1860 = vpop.f32.mrf.mxu0
        %v1861 = vadd.f32 0.0, %v1860
        %1862 = vmatmul.bf16.gmra.mxu0 %v969
        %v1863 = vpop.f32.mrf.mxu0
        %v1864 = vadd.f32 0.0, %v1863
        %v1865 = vpop.f32.mrf.mxu0
        %v1866 = vadd.f32 0.0, %v1865
        %1867 = vmatmul.bf16.gmra.mxu0 %v970
        %v1868 = vpop.f32.mrf.mxu0
        %v1869 = vadd.f32 0.0, %v1868
        %v1870 = vpop.f32.mrf.mxu0
        %v1871 = vadd.f32 0.0, %v1870
        %1872 = vmatmul.bf16.gmra.mxu0 %v971
        %v1873 = vpop.f32.mrf.mxu0
        %v1874 = vadd.f32 0.0, %v1873
        %v1875 = vpop.f32.mrf.mxu0
        %v1876 = vadd.f32 0.0, %v1875
        %1877 = vmatmul.bf16.gmra.mxu0 %v972
        %v1878 = vpop.f32.mrf.mxu0
        %v1879 = vadd.f32 0.0, %v1878
        %v1880 = vpop.f32.mrf.mxu0
        %v1881 = vadd.f32 0.0, %v1880
        %1882 = vmatmul.bf16.gmra.mxu0 %v973
        %v1883 = vpop.f32.mrf.mxu0
        %v1884 = vadd.f32 0.0, %v1883
        %v1885 = vpop.f32.mrf.mxu0
        %v1886 = vadd.f32 0.0, %v1885
        %1887 = vmatmul.bf16.gmra.mxu0 %v974
        %v1888 = vpop.f32.mrf.mxu0
        %v1889 = vadd.f32 0.0, %v1888
        %v1890 = vpop.f32.mrf.mxu0
        %v1891 = vadd.f32 0.0, %v1890
        %1892 = vdwg.mxu0
        %1893 = vmatpush.bf16.msra.mxu0 %v1293
        %1894 = vmatpush.bf16.msra.mxu0 %v1285
        %1895 = vmatpush.bf16.msra.mxu0 %v1277
        %1896 = vmatpush.bf16.msra.mxu0 %v1269
        %1897 = vmatpush.bf16.msra.mxu0 %v1261
        %1898 = vmatpush.bf16.msra.mxu0 %v1253
        %1899 = vmatpush.bf16.msra.mxu0 %v1245
        %1900 = vmatpush.bf16.msra.mxu0 %v1237
        %1901 = vmatmul.bf16.gmra.mxu0 %v959
        %v1902 = vpop.f32.mrf.mxu0
        %v1903 = vadd.f32 0.0, %v1902
        %v1904 = vpop.f32.mrf.mxu0
        %v1905 = vadd.f32 0.0, %v1904
        %1906 = vmatmul.bf16.gmra.mxu0 %v960
        %v1907 = vpop.f32.mrf.mxu0
        %v1908 = vadd.f32 0.0, %v1907
        %v1909 = vpop.f32.mrf.mxu0
        %v1910 = vadd.f32 0.0, %v1909
        %1911 = vmatmul.bf16.gmra.mxu0 %v961
        %v1912 = vpop.f32.mrf.mxu0
        %v1913 = vadd.f32 0.0, %v1912
        %v1914 = vpop.f32.mrf.mxu0
        %v1915 = vadd.f32 0.0, %v1914
        %1916 = vmatmul.bf16.gmra.mxu0 %v962
        %v1917 = vpop.f32.mrf.mxu0
        %v1918 = vadd.f32 0.0, %v1917
        %v1919 = vpop.f32.mrf.mxu0
        %v1920 = vadd.f32 0.0, %v1919
        %1921 = vmatmul.bf16.gmra.mxu0 %v963
        %v1922 = vpop.f32.mrf.mxu0
        %v1923 = vadd.f32 0.0, %v1922
        %v1924 = vpop.f32.mrf.mxu0
        %v1925 = vadd.f32 0.0, %v1924
        %1926 = vmatmul.bf16.gmra.mxu0 %v964
        %v1927 = vpop.f32.mrf.mxu0
        %v1928 = vadd.f32 0.0, %v1927
        %v1929 = vpop.f32.mrf.mxu0
        %v1930 = vadd.f32 0.0, %v1929
        %1931 = vmatmul.bf16.gmra.mxu0 %v965
        %v1932 = vpop.f32.mrf.mxu0
        %v1933 = vadd.f32 0.0, %v1932
        %v1934 = vpop.f32.mrf.mxu0
        %v1935 = vadd.f32 0.0, %v1934
        %1936 = vmatmul.bf16.gmra.mxu0 %v966
        %v1937 = vpop.f32.mrf.mxu0
        %v1938 = vadd.f32 0.0, %v1937
        %v1939 = vpop.f32.mrf.mxu0
        %v1940 = vadd.f32 0.0, %v1939
        %1941 = vmatmul.bf16.gmra.mxu0 %v967
        %v1942 = vpop.f32.mrf.mxu0
        %v1943 = vadd.f32 0.0, %v1942
        %v1944 = vpop.f32.mrf.mxu0
        %v1945 = vadd.f32 0.0, %v1944
        %1946 = vmatmul.bf16.gmra.mxu0 %v968
        %v1947 = vpop.f32.mrf.mxu0
        %v1948 = vadd.f32 0.0, %v1947
        %v1949 = vpop.f32.mrf.mxu0
        %v1950 = vadd.f32 0.0, %v1949
        %1951 = vmatmul.bf16.gmra.mxu0 %v969
        %v1952 = vpop.f32.mrf.mxu0
        %v1953 = vadd.f32 0.0, %v1952
        %v1954 = vpop.f32.mrf.mxu0
        %v1955 = vadd.f32 0.0, %v1954
        %1956 = vmatmul.bf16.gmra.mxu0 %v970
        %v1957 = vpop.f32.mrf.mxu0
        %v1958 = vadd.f32 0.0, %v1957
        %v1959 = vpop.f32.mrf.mxu0
        %v1960 = vadd.f32 0.0, %v1959
        %1961 = vmatmul.bf16.gmra.mxu0 %v971
        %v1962 = vpop.f32.mrf.mxu0
        %v1963 = vadd.f32 0.0, %v1962
        %v1964 = vpop.f32.mrf.mxu0
        %v1965 = vadd.f32 0.0, %v1964
        %1966 = vmatmul.bf16.gmra.mxu0 %v972
        %v1967 = vpop.f32.mrf.mxu0
        %v1968 = vadd.f32 0.0, %v1967
        %v1969 = vpop.f32.mrf.mxu0
        %v1970 = vadd.f32 0.0, %v1969
        %1971 = vmatmul.bf16.gmra.mxu0 %v973
        %v1972 = vpop.f32.mrf.mxu0
        %v1973 = vadd.f32 0.0, %v1972
        %v1974 = vpop.f32.mrf.mxu0
        %v1975 = vadd.f32 0.0, %v1974
        %1976 = vmatmul.bf16.gmra.mxu0 %v974
        %v1977 = vpop.f32.mrf.mxu0
        %v1978 = vadd.f32 0.0, %v1977
        %v1979 = vpop.f32.mrf.mxu0
        %v1980 = vadd.f32 0.0, %v1979
        %1981 = vdwg.mxu0
        %1982 = vmatpush.bf16.msra.mxu0 %v1294
        %1983 = vmatpush.bf16.msra.mxu0 %v1286
        %1984 = vmatpush.bf16.msra.mxu0 %v1278
        %1985 = vmatpush.bf16.msra.mxu0 %v1270
        %1986 = vmatpush.bf16.msra.mxu0 %v1262
        %1987 = vmatpush.bf16.msra.mxu0 %v1254
        %1988 = vmatpush.bf16.msra.mxu0 %v1246
        %1989 = vmatpush.bf16.msra.mxu0 %v1238
        %1990 = vmatmul.bf16.gmra.mxu0 %v959
        %v1991 = vpop.f32.mrf.mxu0
        %v1992 = vadd.f32 0.0, %v1991
        %v1993 = vpop.f32.mrf.mxu0
        %v1994 = vadd.f32 0.0, %v1993
        %1995 = vmatmul.bf16.gmra.mxu0 %v960
        %v1996 = vpop.f32.mrf.mxu0
        %v1997 = vadd.f32 0.0, %v1996
        %v1998 = vpop.f32.mrf.mxu0
        %v1999 = vadd.f32 0.0, %v1998
        %2000 = vmatmul.bf16.gmra.mxu0 %v961
        %v2001 = vpop.f32.mrf.mxu0
        %v2002 = vadd.f32 0.0, %v2001
        %v2003 = vpop.f32.mrf.mxu0
        %v2004 = vadd.f32 0.0, %v2003
        %2005 = vmatmul.bf16.gmra.mxu0 %v962
        %v2006 = vpop.f32.mrf.mxu0
        %v2007 = vadd.f32 0.0, %v2006
        %v2008 = vpop.f32.mrf.mxu0
        %v2009 = vadd.f32 0.0, %v2008
        %2010 = vmatmul.bf16.gmra.mxu0 %v963
        %v2011 = vpop.f32.mrf.mxu0
        %v2012 = vadd.f32 0.0, %v2011
        %v2013 = vpop.f32.mrf.mxu0
        %v2014 = vadd.f32 0.0, %v2013
        %2015 = vmatmul.bf16.gmra.mxu0 %v964
        %v2016 = vpop.f32.mrf.mxu0
        %v2017 = vadd.f32 0.0, %v2016
        %v2018 = vpop.f32.mrf.mxu0
        %v2019 = vadd.f32 0.0, %v2018
        %2020 = vmatmul.bf16.gmra.mxu0 %v965
        %v2021 = vpop.f32.mrf.mxu0
        %v2022 = vadd.f32 0.0, %v2021
        %v2023 = vpop.f32.mrf.mxu0
        %v2024 = vadd.f32 0.0, %v2023
        %2025 = vmatmul.bf16.gmra.mxu0 %v966
        %v2026 = vpop.f32.mrf.mxu0
        %v2027 = vadd.f32 0.0, %v2026
        %v2028 = vpop.f32.mrf.mxu0
        %v2029 = vadd.f32 0.0, %v2028
        %2030 = vmatmul.bf16.gmra.mxu0 %v967
        %v2031 = vpop.f32.mrf.mxu0
        %v2032 = vadd.f32 0.0, %v2031
        %v2033 = vpop.f32.mrf.mxu0
        %v2034 = vadd.f32 0.0, %v2033
        %2035 = vmatmul.bf16.gmra.mxu0 %v968
        %v2036 = vpop.f32.mrf.mxu0
        %v2037 = vadd.f32 0.0, %v2036
        %v2038 = vpop.f32.mrf.mxu0
        %v2039 = vadd.f32 0.0, %v2038
        %2040 = vmatmul.bf16.gmra.mxu0 %v969
        %v2041 = vpop.f32.mrf.mxu0
        %v2042 = vadd.f32 0.0, %v2041
        %v2043 = vpop.f32.mrf.mxu0
        %v2044 = vadd.f32 0.0, %v2043
        %2045 = vmatmul.bf16.gmra.mxu0 %v970
        %v2046 = vpop.f32.mrf.mxu0
        %v2047 = vadd.f32 0.0, %v2046
        %v2048 = vpop.f32.mrf.mxu0
        %v2049 = vadd.f32 0.0, %v2048
        %2050 = vmatmul.bf16.gmra.mxu0 %v971
        %v2051 = vpop.f32.mrf.mxu0
        %v2052 = vadd.f32 0.0, %v2051
        %v2053 = vpop.f32.mrf.mxu0
        %v2054 = vadd.f32 0.0, %v2053
        %2055 = vmatmul.bf16.gmra.mxu0 %v972
        %v2056 = vpop.f32.mrf.mxu0
        %v2057 = vadd.f32 0.0, %v2056
        %v2058 = vpop.f32.mrf.mxu0
        %v2059 = vadd.f32 0.0, %v2058
        %2060 = vmatmul.bf16.gmra.mxu0 %v973
        %v2061 = vpop.f32.mrf.mxu0
        %v2062 = vadd.f32 0.0, %v2061
        %v2063 = vpop.f32.mrf.mxu0
        %v2064 = vadd.f32 0.0, %v2063
        %2065 = vmatmul.bf16.gmra.mxu0 %v974
        %v2066 = vpop.f32.mrf.mxu0
        %v2067 = vadd.f32 0.0, %v2066
        %v2068 = vpop.f32.mrf.mxu0
        %v2069 = vadd.f32 0.0, %v2068
        %2070 = vdwg.mxu0
        %v2071 = vmax.f32 %v1369, %v1371
        %v2072 = vmax.f32 %v2071, %v1374
        %v2073 = vmax.f32 %v2072, %v1376
        %v2074 = vmax.f32 %v2073, %v1379
        %v2075 = vmax.f32 %v2074, %v1381
        %v2076 = vmax.f32 %v2075, %v1384
        %v2077 = vmax.f32 %v2076, %v1386
        %v2078 = vmax.f32 %v2077, %v1389
        %v2079 = vmax.f32 %v2078, %v1391
        %v2080 = vmax.f32 %v2079, %v1394
        %v2081 = vmax.f32 %v2080, %v1396
        %v2082 = vmax.f32 %v2081, %v1399
        %v2083 = vmax.f32 %v2082, %v1401
        %v2084 = vmax.f32 %v2083, %v1404
        %v2085 = vmax.f32 %v2084, %v1406
        %v2086 = vmax.f32 %v2085, %v1409
        %v2087 = vmax.f32 %v2086, %v1411
        %v2088 = vmax.f32 %v2087, %v1414
        %v2089 = vmax.f32 %v2088, %v1416
        %v2090 = vmax.f32 %v2089, %v1419
        %v2091 = vmax.f32 %v2090, %v1421
        %v2092 = vmax.f32 %v2091, %v1424
        %v2093 = vmax.f32 %v2092, %v1426
        %v2094 = vmax.f32 %v2093, %v1429
        %v2095 = vmax.f32 %v2094, %v1431
        %v2096 = vmax.f32 %v2095, %v1434
        %v2097 = vmax.f32 %v2096, %v1436
        %v2098 = vmax.f32 %v2097, %v1439
        %v2099 = vmax.f32 %v2098, %v1441
        %v2100 = vmax.f32 %v2099, %v1444
        %v2101 = vmax.f32 %v2100, %v1446
        %v2102 = vrot.slane %v2101, 4
        %v2103 = vmax.f32 %v2101, %v2102
        %v2104 = vrot.slane %v2103, 2
        %v2105 = vmax.f32 %v2103, %v2104
        %v2106 = vrot.slane %v2105, 1
        %v2107 = vmax.f32 %v2105, %v2106
        %v2108 = vmax.f32 %v1458, %v1460
        %v2109 = vmax.f32 %v2108, %v1463
        %v2110 = vmax.f32 %v2109, %v1465
        %v2111 = vmax.f32 %v2110, %v1468
        %v2112 = vmax.f32 %v2111, %v1470
        %v2113 = vmax.f32 %v2112, %v1473
        %v2114 = vmax.f32 %v2113, %v1475
        %v2115 = vmax.f32 %v2114, %v1478
        %v2116 = vmax.f32 %v2115, %v1480
        %v2117 = vmax.f32 %v2116, %v1483
        %v2118 = vmax.f32 %v2117, %v1485
        %v2119 = vmax.f32 %v2118, %v1488
        %v2120 = vmax.f32 %v2119, %v1490
        %v2121 = vmax.f32 %v2120, %v1493
        %v2122 = vmax.f32 %v2121, %v1495
        %v2123 = vmax.f32 %v2122, %v1498
        %v2124 = vmax.f32 %v2123, %v1500
        %v2125 = vmax.f32 %v2124, %v1503
        %v2126 = vmax.f32 %v2125, %v1505
        %v2127 = vmax.f32 %v2126, %v1508
        %v2128 = vmax.f32 %v2127, %v1510
        %v2129 = vmax.f32 %v2128, %v1513
        %v2130 = vmax.f32 %v2129, %v1515
        %v2131 = vmax.f32 %v2130, %v1518
        %v2132 = vmax.f32 %v2131, %v1520
        %v2133 = vmax.f32 %v2132, %v1523
        %v2134 = vmax.f32 %v2133, %v1525
        %v2135 = vmax.f32 %v2134, %v1528
        %v2136 = vmax.f32 %v2135, %v1530
        %v2137 = vmax.f32 %v2136, %v1533
        %v2138 = vmax.f32 %v2137, %v1535
        %v2139 = vrot.slane %v2138, 4
        %v2140 = vmax.f32 %v2138, %v2139
        %v2141 = vrot.slane %v2140, 2
        %v2142 = vmax.f32 %v2140, %v2141
        %v2143 = vrot.slane %v2142, 1
        %v2144 = vmax.f32 %v2142, %v2143
        %v2145 = vmax.f32 %v1547, %v1549
        %v2146 = vmax.f32 %v2145, %v1552
        %v2147 = vmax.f32 %v2146, %v1554
        %v2148 = vmax.f32 %v2147, %v1557
        %v2149 = vmax.f32 %v2148, %v1559
        %v2150 = vmax.f32 %v2149, %v1562
        %v2151 = vmax.f32 %v2150, %v1564
        %v2152 = vmax.f32 %v2151, %v1567
        %v2153 = vmax.f32 %v2152, %v1569
        %v2154 = vmax.f32 %v2153, %v1572
        %v2155 = vmax.f32 %v2154, %v1574
        %v2156 = vmax.f32 %v2155, %v1577
        %v2157 = vmax.f32 %v2156, %v1579
        %v2158 = vmax.f32 %v2157, %v1582
        %v2159 = vmax.f32 %v2158, %v1584
        %v2160 = vmax.f32 %v2159, %v1587
        %v2161 = vmax.f32 %v2160, %v1589
        %v2162 = vmax.f32 %v2161, %v1592
        %v2163 = vmax.f32 %v2162, %v1594
        %v2164 = vmax.f32 %v2163, %v1597
        %v2165 = vmax.f32 %v2164, %v1599
        %v2166 = vmax.f32 %v2165, %v1602
        %v2167 = vmax.f32 %v2166, %v1604
        %v2168 = vmax.f32 %v2167, %v1607
        %v2169 = vmax.f32 %v2168, %v1609
        %v2170 = vmax.f32 %v2169, %v1612
        %v2171 = vmax.f32 %v2170, %v1614
        %v2172 = vmax.f32 %v2171, %v1617
        %v2173 = vmax.f32 %v2172, %v1619
        %v2174 = vmax.f32 %v2173, %v1622
        %v2175 = vmax.f32 %v2174, %v1624
        %v2176 = vrot.slane %v2175, 4
        %v2177 = vmax.f32 %v2175, %v2176
        %v2178 = vrot.slane %v2177, 2
        %v2179 = vmax.f32 %v2177, %v2178
        %v2180 = vrot.slane %v2179, 1
        %v2181 = vmax.f32 %v2179, %v2180
        %v2182 = vmax.f32 %v1636, %v1638
        %v2183 = vmax.f32 %v2182, %v1641
        %v2184 = vmax.f32 %v2183, %v1643
        %v2185 = vmax.f32 %v2184, %v1646
        %v2186 = vmax.f32 %v2185, %v1648
        %v2187 = vmax.f32 %v2186, %v1651
        %v2188 = vmax.f32 %v2187, %v1653
        %v2189 = vmax.f32 %v2188, %v1656
        %v2190 = vmax.f32 %v2189, %v1658
        %v2191 = vmax.f32 %v2190, %v1661
        %v2192 = vmax.f32 %v2191, %v1663
        %v2193 = vmax.f32 %v2192, %v1666
        %v2194 = vmax.f32 %v2193, %v1668
        %v2195 = vmax.f32 %v2194, %v1671
        %v2196 = vmax.f32 %v2195, %v1673
        %v2197 = vmax.f32 %v2196, %v1676
        %v2198 = vmax.f32 %v2197, %v1678
        %v2199 = vmax.f32 %v2198, %v1681
        %v2200 = vmax.f32 %v2199, %v1683
        %v2201 = vmax.f32 %v2200, %v1686
        %v2202 = vmax.f32 %v2201, %v1688
        %v2203 = vmax.f32 %v2202, %v1691
        %v2204 = vmax.f32 %v2203, %v1693
        %v2205 = vmax.f32 %v2204, %v1696
        %v2206 = vmax.f32 %v2205, %v1698
        %v2207 = vmax.f32 %v2206, %v1701
        %v2208 = vmax.f32 %v2207, %v1703
        %v2209 = vmax.f32 %v2208, %v1706
        %v2210 = vmax.f32 %v2209, %v1708
        %v2211 = vmax.f32 %v2210, %v1711
        %v2212 = vmax.f32 %v2211, %v1713
        %v2213 = vrot.slane %v2212, 4
        %v2214 = vmax.f32 %v2212, %v2213
        %v2215 = vrot.slane %v2214, 2
        %v2216 = vmax.f32 %v2214, %v2215
        %v2217 = vrot.slane %v2216, 1
        %v2218 = vmax.f32 %v2216, %v2217
        %v2219 = vmax.f32 %v1725, %v1727
        %v2220 = vmax.f32 %v2219, %v1730
        %v2221 = vmax.f32 %v2220, %v1732
        %v2222 = vmax.f32 %v2221, %v1735
        %v2223 = vmax.f32 %v2222, %v1737
        %v2224 = vmax.f32 %v2223, %v1740
        %v2225 = vmax.f32 %v2224, %v1742
        %v2226 = vmax.f32 %v2225, %v1745
        %v2227 = vmax.f32 %v2226, %v1747
        %v2228 = vmax.f32 %v2227, %v1750
        %v2229 = vmax.f32 %v2228, %v1752
        %v2230 = vmax.f32 %v2229, %v1755
        %v2231 = vmax.f32 %v2230, %v1757
        %v2232 = vmax.f32 %v2231, %v1760
        %v2233 = vmax.f32 %v2232, %v1762
        %v2234 = vmax.f32 %v2233, %v1765
        %v2235 = vmax.f32 %v2234, %v1767
        %v2236 = vmax.f32 %v2235, %v1770
        %v2237 = vmax.f32 %v2236, %v1772
        %v2238 = vmax.f32 %v2237, %v1775
        %v2239 = vmax.f32 %v2238, %v1777
        %v2240 = vmax.f32 %v2239, %v1780
        %v2241 = vmax.f32 %v2240, %v1782
        %v2242 = vmax.f32 %v2241, %v1785
        %v2243 = vmax.f32 %v2242, %v1787
        %v2244 = vmax.f32 %v2243, %v1790
        %v2245 = vmax.f32 %v2244, %v1792
        %v2246 = vmax.f32 %v2245, %v1795
        %v2247 = vmax.f32 %v2246, %v1797
        %v2248 = vmax.f32 %v2247, %v1800
        %v2249 = vmax.f32 %v2248, %v1802
        %v2250 = vrot.slane %v2249, 4
        %v2251 = vmax.f32 %v2249, %v2250
        %v2252 = vrot.slane %v2251, 2
        %v2253 = vmax.f32 %v2251, %v2252
        %v2254 = vrot.slane %v2253, 1
        %v2255 = vmax.f32 %v2253, %v2254
        %v2256 = vmax.f32 %v1814, %v1816
        %v2257 = vmax.f32 %v2256, %v1819
        %v2258 = vmax.f32 %v2257, %v1821
        %v2259 = vmax.f32 %v2258, %v1824
        %v2260 = vmax.f32 %v2259, %v1826
        %v2261 = vmax.f32 %v2260, %v1829
        %v2262 = vmax.f32 %v2261, %v1831
        %v2263 = vmax.f32 %v2262, %v1834
        %v2264 = vmax.f32 %v2263, %v1836
        %v2265 = vmax.f32 %v2264, %v1839
        %v2266 = vmax.f32 %v2265, %v1841
        %v2267 = vmax.f32 %v2266, %v1844
        %v2268 = vmax.f32 %v2267, %v1846
        %v2269 = vmax.f32 %v2268, %v1849
        %v2270 = vmax.f32 %v2269, %v1851
        %v2271 = vmax.f32 %v2270, %v1854
        %v2272 = vmax.f32 %v2271, %v1856
        %v2273 = vmax.f32 %v2272, %v1859
        %v2274 = vmax.f32 %v2273, %v1861
        %v2275 = vmax.f32 %v2274, %v1864
        %v2276 = vmax.f32 %v2275, %v1866
        %v2277 = vmax.f32 %v2276, %v1869
        %v2278 = vmax.f32 %v2277, %v1871
        %v2279 = vmax.f32 %v2278, %v1874
        %v2280 = vmax.f32 %v2279, %v1876
        %v2281 = vmax.f32 %v2280, %v1879
        %v2282 = vmax.f32 %v2281, %v1881
        %v2283 = vmax.f32 %v2282, %v1884
        %v2284 = vmax.f32 %v2283, %v1886
        %v2285 = vmax.f32 %v2284, %v1889
        %v2286 = vmax.f32 %v2285, %v1891
        %v2287 = vrot.slane %v2286, 4
        %v2288 = vmax.f32 %v2286, %v2287
        %v2289 = vrot.slane %v2288, 2
        %v2290 = vmax.f32 %v2288, %v2289
        %v2291 = vrot.slane %v2290, 1
        %v2292 = vmax.f32 %v2290, %v2291
        %v2293 = vmax.f32 %v1903, %v1905
        %v2294 = vmax.f32 %v2293, %v1908
        %v2295 = vmax.f32 %v2294, %v1910
        %v2296 = vmax.f32 %v2295, %v1913
        %v2297 = vmax.f32 %v2296, %v1915
        %v2298 = vmax.f32 %v2297, %v1918
        %v2299 = vmax.f32 %v2298, %v1920
        %v2300 = vmax.f32 %v2299, %v1923
        %v2301 = vmax.f32 %v2300, %v1925
        %v2302 = vmax.f32 %v2301, %v1928
        %v2303 = vmax.f32 %v2302, %v1930
        %v2304 = vmax.f32 %v2303, %v1933
        %v2305 = vmax.f32 %v2304, %v1935
        %v2306 = vmax.f32 %v2305, %v1938
        %v2307 = vmax.f32 %v2306, %v1940
        %v2308 = vmax.f32 %v2307, %v1943
        %v2309 = vmax.f32 %v2308, %v1945
        %v2310 = vmax.f32 %v2309, %v1948
        %v2311 = vmax.f32 %v2310, %v1950
        %v2312 = vmax.f32 %v2311, %v1953
        %v2313 = vmax.f32 %v2312, %v1955
        %v2314 = vmax.f32 %v2313, %v1958
        %v2315 = vmax.f32 %v2314, %v1960
        %v2316 = vmax.f32 %v2315, %v1963
        %v2317 = vmax.f32 %v2316, %v1965
        %v2318 = vmax.f32 %v2317, %v1968
        %v2319 = vmax.f32 %v2318, %v1970
        %v2320 = vmax.f32 %v2319, %v1973
        %v2321 = vmax.f32 %v2320, %v1975
        %v2322 = vmax.f32 %v2321, %v1978
        %v2323 = vmax.f32 %v2322, %v1980
        %v2324 = vrot.slane %v2323, 4
        %v2325 = vmax.f32 %v2323, %v2324
        %v2326 = vrot.slane %v2325, 2
        %v2327 = vmax.f32 %v2325, %v2326
        %v2328 = vrot.slane %v2327, 1
        %v2329 = vmax.f32 %v2327, %v2328
        %v2330 = vmax.f32 %v1992, %v1994
        %v2331 = vmax.f32 %v2330, %v1997
        %v2332 = vmax.f32 %v2331, %v1999
        %v2333 = vmax.f32 %v2332, %v2002
        %v2334 = vmax.f32 %v2333, %v2004
        %v2335 = vmax.f32 %v2334, %v2007
        %v2336 = vmax.f32 %v2335, %v2009
        %v2337 = vmax.f32 %v2336, %v2012
        %v2338 = vmax.f32 %v2337, %v2014
        %v2339 = vmax.f32 %v2338, %v2017
        %v2340 = vmax.f32 %v2339, %v2019
        %v2341 = vmax.f32 %v2340, %v2022
        %v2342 = vmax.f32 %v2341, %v2024
        %v2343 = vmax.f32 %v2342, %v2027
        %v2344 = vmax.f32 %v2343, %v2029
        %v2345 = vmax.f32 %v2344, %v2032
        %v2346 = vmax.f32 %v2345, %v2034
        %v2347 = vmax.f32 %v2346, %v2037
        %v2348 = vmax.f32 %v2347, %v2039
        %v2349 = vmax.f32 %v2348, %v2042
        %v2350 = vmax.f32 %v2349, %v2044
        %v2351 = vmax.f32 %v2350, %v2047
        %v2352 = vmax.f32 %v2351, %v2049
        %v2353 = vmax.f32 %v2352, %v2052
        %v2354 = vmax.f32 %v2353, %v2054
        %v2355 = vmax.f32 %v2354, %v2057
        %v2356 = vmax.f32 %v2355, %v2059
        %v2357 = vmax.f32 %v2356, %v2062
        %v2358 = vmax.f32 %v2357, %v2064
        %v2359 = vmax.f32 %v2358, %v2067
        %v2360 = vmax.f32 %v2359, %v2069
        %v2361 = vrot.slane %v2360, 4
        %v2362 = vmax.f32 %v2360, %v2361
        %v2363 = vrot.slane %v2362, 2
        %v2364 = vmax.f32 %v2362, %v2363
        %v2365 = vrot.slane %v2364, 1
        %v2366 = vmax.f32 %v2364, %v2365
        %p2367 = scmp.eq.s32.totalorder %s28, 0
        // Predicated region
        $region69: #{forward.4} parent=63 // pred_check
          %p2368 = pneg %p2367
        $region70: #{forward.4} parent=63 // pred_check_branch
          %2370 = sbr.rel (%p2368) target = $region72
        $region71: #{forward.4} parent=63 // pred_region
          %v2379 = vrot.slane %v2144, 7
          %v2380 = vrot.slane %v2181, 6
          %v2381 = vrot.slane %v2218, 5
          %v2382 = vrot.slane %v2255, 4
          %v2383 = vrot.slane %v2292, 3
          %v2384 = vrot.slane %v2329, 2
          %v2385 = vrot.slane %v2366, 1
          %vm2386 = vcmask 1040384
          %v2387 = vsel %vm2386, %v2107, %v2379
          %vm2388 = vcmask 1042434
          %v2389 = vsel %vm2388, %v2380, %v2381
          %vm2390 = vcmask 1041408
          %v2391 = vsel %vm2390, %v2387, %v2389
          %vm2392 = vcmask 1044484
          %v2393 = vsel %vm2392, %v2382, %v2383
          %vm2394 = vcmask 1046534
          %v2395 = vsel %vm2394, %v2384, %v2385
          %vm2396 = vcmask 1045508
          %v2397 = vsel %vm2396, %v2393, %v2395
          %v2398 = vsel %vm612, %v2391, %v2397
          %2400 = vst [vmem:[#allocation2] sm:$0xff] %v2398
        $region72: #{forward.4} parent=63 // pred_fallthru
          _
        %p2401 = scmp.gt.s32.totalorder %s28, 0
        // Predicated region
        $region73: #{forward.4} parent=63 // pred_check
          %p2402 = pneg %p2401
        $region74: #{forward.4} parent=63 // pred_check_branch
          %2404 = sbr.rel (%p2402) target = $region76
        $region75: #{forward.4} parent=63 // pred_region
          %v2405 = vld [vmem:[#allocation2] sm:$0xff]
          %v2414 = vrot.slane %v2144, 7
          %v2415 = vrot.slane %v2181, 6
          %v2416 = vrot.slane %v2218, 5
          %v2417 = vrot.slane %v2255, 4
          %v2418 = vrot.slane %v2292, 3
          %v2419 = vrot.slane %v2329, 2
          %v2420 = vrot.slane %v2366, 1
          %vm2421 = vcmask 1040384
          %v2422 = vsel %vm2421, %v2107, %v2414
          %vm2423 = vcmask 1042434
          %v2424 = vsel %vm2423, %v2415, %v2416
          %vm2425 = vcmask 1041408
          %v2426 = vsel %vm2425, %v2422, %v2424
          %vm2427 = vcmask 1044484
          %v2428 = vsel %vm2427, %v2417, %v2418
          %vm2429 = vcmask 1046534
          %v2430 = vsel %vm2429, %v2419, %v2420
          %vm2431 = vcmask 1045508
          %v2432 = vsel %vm2431, %v2428, %v2430
          %v2433 = vsel %vm612, %v2426, %v2432
          %v2435 = vmax.f32 %v2405, %v2433
          %2436 = vst [vmem:[#allocation2] sm:$0xff] %v2435
        $region76: #{forward.4} parent=63 // pred_fallthru
          _
        // Predicated region
        $region77: #{forward.4} parent=63 // pred_check
          %p2437 = pneg %p2367
        $region78: #{forward.4} parent=63 // pred_check_branch
          %2439 = sbr.rel (%p2437) target = $region80
        $region79: #{forward.4} parent=63 // pred_region
          %v2440 = vld [vmem:[#allocation2] sm:$0xff]
          %v2441 = vld [vmem:[%s6] sm:$0xff]
          %v2442 = vadd.f32 %v2440, %v2441
          %v2444 = vperm.slane %v2442, 0
          %v2445 = vperm.slane %v2442, 1
          %v2446 = vperm.slane %v2442, 2
          %v2447 = vperm.slane %v2442, 3
          %v2448 = vperm.slane %v2442, 4
          %v2449 = vperm.slane %v2442, 5
          %v2450 = vperm.slane %v2442, 6
          %v2451 = vperm.slane %v2442, 7
          %v2460 = vpack.c.bf16 %v2444, %v2444
          %v2461 = vpack.c.bf16 %v2445, %v2445
          %v2462 = vpack.c.bf16 %v2446, %v2446
          %v2463 = vpack.c.bf16 %v2447, %v2447
          %v2464 = vpack.c.bf16 %v2448, %v2448
          %v2465 = vpack.c.bf16 %v2449, %v2449
          %v2466 = vpack.c.bf16 %v2450, %v2450
          %v2467 = vpack.c.bf16 %v2451, %v2451
          %v2468 = vld [vmem:[#allocation3] sm:$0xff]
          %v2469 = vld [vmem:[#allocation3 + $0x8] sm:$0xff]
          %v2470 = vld [vmem:[#allocation3 + $0x10] sm:$0xff]
          %v2471 = vld [vmem:[#allocation3 + $0x18] sm:$0xff]
          %v2472 = vld [vmem:[#allocation3 + $0x20] sm:$0xff]
          %v2473 = vld [vmem:[#allocation3 + $0x28] sm:$0xff]
          %v2474 = vld [vmem:[#allocation3 + $0x30] sm:$0xff]
          %v2475 = vld [vmem:[#allocation3 + $0x38] sm:$0xff]
          %v2476 = vld [vmem:[#allocation3 + $0x40] sm:$0xff]
          %v2477 = vld [vmem:[#allocation3 + $0x48] sm:$0xff]
          %v2478 = vld [vmem:[#allocation3 + $0x50] sm:$0xff]
          %v2479 = vld [vmem:[#allocation3 + $0x58] sm:$0xff]
          %v2480 = vld [vmem:[#allocation3 + $0x60] sm:$0xff]
          %v2481 = vld [vmem:[#allocation3 + $0x68] sm:$0xff]
          %v2482 = vld [vmem:[#allocation3 + $0x70] sm:$0xff]
          %v2483 = vld [vmem:[#allocation3 + $0x78] sm:$0xff]
          %v2484 = vld [vmem:[#allocation3 + $0x80] sm:$0xff]
          %v2485 = vld [vmem:[#allocation3 + $0x88] sm:$0xff]
          %v2486 = vld [vmem:[#allocation3 + $0x90] sm:$0xff]
          %v2487 = vld [vmem:[#allocation3 + $0x98] sm:$0xff]
          %v2488 = vld [vmem:[#allocation3 + $0xa0] sm:$0xff]
          %v2489 = vld [vmem:[#allocation3 + $0xa8] sm:$0xff]
          %v2490 = vld [vmem:[#allocation3 + $0xb0] sm:$0xff]
          %v2491 = vld [vmem:[#allocation3 + $0xb8] sm:$0xff]
          %v2492 = vld [vmem:[#allocation3 + $0xc0] sm:$0xff]
          %v2493 = vld [vmem:[#allocation3 + $0xc8] sm:$0xff]
          %v2494 = vld [vmem:[#allocation3 + $0xd0] sm:$0xff]
          %v2495 = vld [vmem:[#allocation3 + $0xd8] sm:$0xff]
          %v2496 = vld [vmem:[#allocation3 + $0xe0] sm:$0xff]
          %v2497 = vld [vmem:[#allocation3 + $0xe8] sm:$0xff]
          %v2498 = vld [vmem:[#allocation3 + $0xf0] sm:$0xff]
          %v2499 = vld [vmem:[#allocation3 + $0xf8] sm:$0xff]
          %v2500 = vld [vmem:[#allocation3 + $0x100] sm:$0xff]
          %v2501 = vld [vmem:[#allocation3 + $0x108] sm:$0xff]
          %v2502 = vld [vmem:[#allocation3 + $0x110] sm:$0xff]
          %v2503 = vld [vmem:[#allocation3 + $0x118] sm:$0xff]
          %v2504 = vld [vmem:[#allocation3 + $0x120] sm:$0xff]
          %v2505 = vld [vmem:[#allocation3 + $0x128] sm:$0xff]
          %v2506 = vld [vmem:[#allocation3 + $0x130] sm:$0xff]
          %v2507 = vld [vmem:[#allocation3 + $0x138] sm:$0xff]
          %v2508 = vld [vmem:[#allocation3 + $0x140] sm:$0xff]
          %v2509 = vld [vmem:[#allocation3 + $0x148] sm:$0xff]
          %v2510 = vld [vmem:[#allocation3 + $0x150] sm:$0xff]
          %v2511 = vld [vmem:[#allocation3 + $0x158] sm:$0xff]
          %v2512 = vld [vmem:[#allocation3 + $0x160] sm:$0xff]
          %v2513 = vld [vmem:[#allocation3 + $0x168] sm:$0xff]
          %v2514 = vld [vmem:[#allocation3 + $0x170] sm:$0xff]
          %v2515 = vld [vmem:[#allocation3 + $0x178] sm:$0xff]
          %v2516 = vld [vmem:[#allocation3 + $0x180] sm:$0xff]
          %v2517 = vld [vmem:[#allocation3 + $0x188] sm:$0xff]
          %v2518 = vld [vmem:[#allocation3 + $0x190] sm:$0xff]
          %v2519 = vld [vmem:[#allocation3 + $0x198] sm:$0xff]
          %v2520 = vld [vmem:[#allocation3 + $0x1a0] sm:$0xff]
          %v2521 = vld [vmem:[#allocation3 + $0x1a8] sm:$0xff]
          %v2522 = vld [vmem:[#allocation3 + $0x1b0] sm:$0xff]
          %v2523 = vld [vmem:[#allocation3 + $0x1b8] sm:$0xff]
          %v2524 = vld [vmem:[#allocation3 + $0x1c0] sm:$0xff]
          %v2525 = vld [vmem:[#allocation3 + $0x1c8] sm:$0xff]
          %v2526 = vld [vmem:[#allocation3 + $0x1d0] sm:$0xff]
          %v2527 = vld [vmem:[#allocation3 + $0x1d8] sm:$0xff]
          %v2528 = vld [vmem:[#allocation3 + $0x1e0] sm:$0xff]
          %v2529 = vld [vmem:[#allocation3 + $0x1e8] sm:$0xff]
          %v2530 = vld [vmem:[#allocation3 + $0x1f0] sm:$0xff]
          %v2531 = vld [vmem:[#allocation3 + $0x1f8] sm:$0xff]
          %v2532 = vld [vmem:[#allocation3 + $0x200] sm:$0xff]
          %v2533 = vld [vmem:[#allocation3 + $0x208] sm:$0xff]
          %v2534 = vld [vmem:[#allocation3 + $0x210] sm:$0xff]
          %v2535 = vld [vmem:[#allocation3 + $0x218] sm:$0xff]
          %v2536 = vld [vmem:[#allocation3 + $0x220] sm:$0xff]
          %v2537 = vld [vmem:[#allocation3 + $0x228] sm:$0xff]
          %v2538 = vld [vmem:[#allocation3 + $0x230] sm:$0xff]
          %v2539 = vld [vmem:[#allocation3 + $0x238] sm:$0xff]
          %v2540 = vld [vmem:[#allocation3 + $0x240] sm:$0xff]
          %v2541 = vld [vmem:[#allocation3 + $0x248] sm:$0xff]
          %v2542 = vld [vmem:[#allocation3 + $0x250] sm:$0xff]
          %v2543 = vld [vmem:[#allocation3 + $0x258] sm:$0xff]
          %v2544 = vld [vmem:[#allocation3 + $0x260] sm:$0xff]
          %v2545 = vld [vmem:[#allocation3 + $0x268] sm:$0xff]
          %v2546 = vld [vmem:[#allocation3 + $0x270] sm:$0xff]
          %v2547 = vld [vmem:[#allocation3 + $0x278] sm:$0xff]
          %v2548 = vld [vmem:[#allocation3 + $0x280] sm:$0xff]
          %v2549 = vld [vmem:[#allocation3 + $0x288] sm:$0xff]
          %v2550 = vld [vmem:[#allocation3 + $0x290] sm:$0xff]
          %v2551 = vld [vmem:[#allocation3 + $0x298] sm:$0xff]
          %v2552 = vld [vmem:[#allocation3 + $0x2a0] sm:$0xff]
          %v2553 = vld [vmem:[#allocation3 + $0x2a8] sm:$0xff]
          %v2554 = vld [vmem:[#allocation3 + $0x2b0] sm:$0xff]
          %v2555 = vld [vmem:[#allocation3 + $0x2b8] sm:$0xff]
          %v2556 = vld [vmem:[#allocation3 + $0x2c0] sm:$0xff]
          %v2557 = vld [vmem:[#allocation3 + $0x2c8] sm:$0xff]
          %v2558 = vld [vmem:[#allocation3 + $0x2d0] sm:$0xff]
          %v2559 = vld [vmem:[#allocation3 + $0x2d8] sm:$0xff]
          %v2560 = vld [vmem:[#allocation3 + $0x2e0] sm:$0xff]
          %v2561 = vld [vmem:[#allocation3 + $0x2e8] sm:$0xff]
          %v2562 = vld [vmem:[#allocation3 + $0x2f0] sm:$0xff]
          %v2563 = vld [vmem:[#allocation3 + $0x2f8] sm:$0xff]
          %v2564 = vld [vmem:[#allocation3 + $0x300] sm:$0xff]
          %v2565 = vld [vmem:[#allocation3 + $0x308] sm:$0xff]
          %v2566 = vld [vmem:[#allocation3 + $0x310] sm:$0xff]
          %v2567 = vld [vmem:[#allocation3 + $0x318] sm:$0xff]
          %v2568 = vld [vmem:[#allocation3 + $0x320] sm:$0xff]
          %v2569 = vld [vmem:[#allocation3 + $0x328] sm:$0xff]
          %v2570 = vld [vmem:[#allocation3 + $0x330] sm:$0xff]
          %v2571 = vld [vmem:[#allocation3 + $0x338] sm:$0xff]
          %v2572 = vld [vmem:[#allocation3 + $0x340] sm:$0xff]
          %v2573 = vld [vmem:[#allocation3 + $0x348] sm:$0xff]
          %v2574 = vld [vmem:[#allocation3 + $0x350] sm:$0xff]
          %v2575 = vld [vmem:[#allocation3 + $0x358] sm:$0xff]
          %v2576 = vld [vmem:[#allocation3 + $0x360] sm:$0xff]
          %v2577 = vld [vmem:[#allocation3 + $0x368] sm:$0xff]
          %v2578 = vld [vmem:[#allocation3 + $0x370] sm:$0xff]
          %v2579 = vld [vmem:[#allocation3 + $0x378] sm:$0xff]
          %v2580 = vld [vmem:[#allocation3 + $0x380] sm:$0xff]
          %v2581 = vld [vmem:[#allocation3 + $0x388] sm:$0xff]
          %v2582 = vld [vmem:[#allocation3 + $0x390] sm:$0xff]
          %v2583 = vld [vmem:[#allocation3 + $0x398] sm:$0xff]
          %v2584 = vld [vmem:[#allocation3 + $0x3a0] sm:$0xff]
          %v2585 = vld [vmem:[#allocation3 + $0x3a8] sm:$0xff]
          %v2586 = vld [vmem:[#allocation3 + $0x3b0] sm:$0xff]
          %v2587 = vld [vmem:[#allocation3 + $0x3b8] sm:$0xff]
          %v2588 = vld [vmem:[#allocation3 + $0x3c0] sm:$0xff]
          %v2589 = vld [vmem:[#allocation3 + $0x3c8] sm:$0xff]
          %v2590 = vld [vmem:[#allocation3 + $0x3d0] sm:$0xff]
          %v2591 = vld [vmem:[#allocation3 + $0x3d8] sm:$0xff]
          %v2592 = vld [vmem:[#allocation3 + $0x3e0] sm:$0xff]
          %v2593 = vld [vmem:[#allocation3 + $0x3e8] sm:$0xff]
          %v2594 = vld [vmem:[#allocation3 + $0x3f0] sm:$0xff]
          %v2595 = vld [vmem:[#allocation3 + $0x3f8] sm:$0xff]
          %v2596 = vld [vmem:[#allocation3 + $0x400] sm:$0xff]
          %v2597 = vld [vmem:[#allocation3 + $0x408] sm:$0xff]
          %v2598 = vld [vmem:[#allocation3 + $0x410] sm:$0xff]
          %v2599 = vld [vmem:[#allocation3 + $0x418] sm:$0xff]
          %v2600 = vld [vmem:[#allocation3 + $0x420] sm:$0xff]
          %v2601 = vld [vmem:[#allocation3 + $0x428] sm:$0xff]
          %v2602 = vld [vmem:[#allocation3 + $0x430] sm:$0xff]
          %v2603 = vld [vmem:[#allocation3 + $0x438] sm:$0xff]
          %v2604 = vld [vmem:[#allocation3 + $0x440] sm:$0xff]
          %v2605 = vld [vmem:[#allocation3 + $0x448] sm:$0xff]
          %v2606 = vld [vmem:[#allocation3 + $0x450] sm:$0xff]
          %v2607 = vld [vmem:[#allocation3 + $0x458] sm:$0xff]
          %v2608 = vld [vmem:[#allocation3 + $0x460] sm:$0xff]
          %v2609 = vld [vmem:[#allocation3 + $0x468] sm:$0xff]
          %v2610 = vld [vmem:[#allocation3 + $0x470] sm:$0xff]
          %v2611 = vld [vmem:[#allocation3 + $0x478] sm:$0xff]
          %v2612 = vld [vmem:[#allocation3 + $0x480] sm:$0xff]
          %v2613 = vld [vmem:[#allocation3 + $0x488] sm:$0xff]
          %v2614 = vld [vmem:[#allocation3 + $0x490] sm:$0xff]
          %v2615 = vld [vmem:[#allocation3 + $0x498] sm:$0xff]
          %v2616 = vld [vmem:[#allocation3 + $0x4a0] sm:$0xff]
          %v2617 = vld [vmem:[#allocation3 + $0x4a8] sm:$0xff]
          %v2618 = vld [vmem:[#allocation3 + $0x4b0] sm:$0xff]
          %v2619 = vld [vmem:[#allocation3 + $0x4b8] sm:$0xff]
          %v2620 = vld [vmem:[#allocation3 + $0x4c0] sm:$0xff]
          %v2621 = vld [vmem:[#allocation3 + $0x4c8] sm:$0xff]
          %v2622 = vld [vmem:[#allocation3 + $0x4d0] sm:$0xff]
          %v2623 = vld [vmem:[#allocation3 + $0x4d8] sm:$0xff]
          %v2624 = vld [vmem:[#allocation3 + $0x4e0] sm:$0xff]
          %v2625 = vld [vmem:[#allocation3 + $0x4e8] sm:$0xff]
          %v2626 = vld [vmem:[#allocation3 + $0x4f0] sm:$0xff]
          %v2627 = vld [vmem:[#allocation3 + $0x4f8] sm:$0xff]
          %v2628 = vld [vmem:[#allocation3 + $0x500] sm:$0xff]
          %v2629 = vld [vmem:[#allocation3 + $0x508] sm:$0xff]
          %v2630 = vld [vmem:[#allocation3 + $0x510] sm:$0xff]
          %v2631 = vld [vmem:[#allocation3 + $0x518] sm:$0xff]
          %v2632 = vld [vmem:[#allocation3 + $0x520] sm:$0xff]
          %v2633 = vld [vmem:[#allocation3 + $0x528] sm:$0xff]
          %v2634 = vld [vmem:[#allocation3 + $0x530] sm:$0xff]
          %v2635 = vld [vmem:[#allocation3 + $0x538] sm:$0xff]
          %v2636 = vld [vmem:[#allocation3 + $0x540] sm:$0xff]
          %v2637 = vld [vmem:[#allocation3 + $0x548] sm:$0xff]
          %v2638 = vld [vmem:[#allocation3 + $0x550] sm:$0xff]
          %v2639 = vld [vmem:[#allocation3 + $0x558] sm:$0xff]
          %v2640 = vld [vmem:[#allocation3 + $0x560] sm:$0xff]
          %v2641 = vld [vmem:[#allocation3 + $0x568] sm:$0xff]
          %v2642 = vld [vmem:[#allocation3 + $0x570] sm:$0xff]
          %v2643 = vld [vmem:[#allocation3 + $0x578] sm:$0xff]
          %v2644 = vld [vmem:[#allocation3 + $0x580] sm:$0xff]
          %v2645 = vld [vmem:[#allocation3 + $0x588] sm:$0xff]
          %v2646 = vld [vmem:[#allocation3 + $0x590] sm:$0xff]
          %v2647 = vld [vmem:[#allocation3 + $0x598] sm:$0xff]
          %v2648 = vld [vmem:[#allocation3 + $0x5a0] sm:$0xff]
          %v2649 = vld [vmem:[#allocation3 + $0x5a8] sm:$0xff]
          %v2650 = vld [vmem:[#allocation3 + $0x5b0] sm:$0xff]
          %v2651 = vld [vmem:[#allocation3 + $0x5b8] sm:$0xff]
          %v2652 = vld [vmem:[#allocation3 + $0x5c0] sm:$0xff]
          %v2653 = vld [vmem:[#allocation3 + $0x5c8] sm:$0xff]
          %v2654 = vld [vmem:[#allocation3 + $0x5d0] sm:$0xff]
          %v2655 = vld [vmem:[#allocation3 + $0x5d8] sm:$0xff]
          %v2656 = vld [vmem:[#allocation3 + $0x5e0] sm:$0xff]
          %v2657 = vld [vmem:[#allocation3 + $0x5e8] sm:$0xff]
          %v2658 = vld [vmem:[#allocation3 + $0x5f0] sm:$0xff]
          %v2659 = vld [vmem:[#allocation3 + $0x5f8] sm:$0xff]
          %v2660 = vld [vmem:[#allocation3 + $0x600] sm:$0xff]
          %v2661 = vld [vmem:[#allocation3 + $0x608] sm:$0xff]
          %v2662 = vld [vmem:[#allocation3 + $0x610] sm:$0xff]
          %v2663 = vld [vmem:[#allocation3 + $0x618] sm:$0xff]
          %v2664 = vld [vmem:[#allocation3 + $0x620] sm:$0xff]
          %v2665 = vld [vmem:[#allocation3 + $0x628] sm:$0xff]
          %v2666 = vld [vmem:[#allocation3 + $0x630] sm:$0xff]
          %v2667 = vld [vmem:[#allocation3 + $0x638] sm:$0xff]
          %v2668 = vld [vmem:[#allocation3 + $0x640] sm:$0xff]
          %v2669 = vld [vmem:[#allocation3 + $0x648] sm:$0xff]
          %v2670 = vld [vmem:[#allocation3 + $0x650] sm:$0xff]
          %v2671 = vld [vmem:[#allocation3 + $0x658] sm:$0xff]
          %v2672 = vld [vmem:[#allocation3 + $0x660] sm:$0xff]
          %v2673 = vld [vmem:[#allocation3 + $0x668] sm:$0xff]
          %v2674 = vld [vmem:[#allocation3 + $0x670] sm:$0xff]
          %v2675 = vld [vmem:[#allocation3 + $0x678] sm:$0xff]
          %v2676 = vld [vmem:[#allocation3 + $0x680] sm:$0xff]
          %v2677 = vld [vmem:[#allocation3 + $0x688] sm:$0xff]
          %v2678 = vld [vmem:[#allocation3 + $0x690] sm:$0xff]
          %v2679 = vld [vmem:[#allocation3 + $0x698] sm:$0xff]
          %v2680 = vld [vmem:[#allocation3 + $0x6a0] sm:$0xff]
          %v2681 = vld [vmem:[#allocation3 + $0x6a8] sm:$0xff]
          %v2682 = vld [vmem:[#allocation3 + $0x6b0] sm:$0xff]
          %v2683 = vld [vmem:[#allocation3 + $0x6b8] sm:$0xff]
          %v2684 = vld [vmem:[#allocation3 + $0x6c0] sm:$0xff]
          %v2685 = vld [vmem:[#allocation3 + $0x6c8] sm:$0xff]
          %v2686 = vld [vmem:[#allocation3 + $0x6d0] sm:$0xff]
          %v2687 = vld [vmem:[#allocation3 + $0x6d8] sm:$0xff]
          %v2688 = vld [vmem:[#allocation3 + $0x6e0] sm:$0xff]
          %v2689 = vld [vmem:[#allocation3 + $0x6e8] sm:$0xff]
          %v2690 = vld [vmem:[#allocation3 + $0x6f0] sm:$0xff]
          %v2691 = vld [vmem:[#allocation3 + $0x6f8] sm:$0xff]
          %v2692 = vld [vmem:[#allocation3 + $0x700] sm:$0xff]
          %v2693 = vld [vmem:[#allocation3 + $0x708] sm:$0xff]
          %v2694 = vld [vmem:[#allocation3 + $0x710] sm:$0xff]
          %v2695 = vld [vmem:[#allocation3 + $0x718] sm:$0xff]
          %v2696 = vld [vmem:[#allocation3 + $0x720] sm:$0xff]
          %v2697 = vld [vmem:[#allocation3 + $0x728] sm:$0xff]
          %v2698 = vld [vmem:[#allocation3 + $0x730] sm:$0xff]
          %v2699 = vld [vmem:[#allocation3 + $0x738] sm:$0xff]
          %v2700 = vld [vmem:[#allocation3 + $0x740] sm:$0xff]
          %v2701 = vld [vmem:[#allocation3 + $0x748] sm:$0xff]
          %v2702 = vld [vmem:[#allocation3 + $0x750] sm:$0xff]
          %v2703 = vld [vmem:[#allocation3 + $0x758] sm:$0xff]
          %v2704 = vld [vmem:[#allocation3 + $0x760] sm:$0xff]
          %v2705 = vld [vmem:[#allocation3 + $0x768] sm:$0xff]
          %v2706 = vld [vmem:[#allocation3 + $0x770] sm:$0xff]
          %v2707 = vld [vmem:[#allocation3 + $0x778] sm:$0xff]
          %v2708 = vld [vmem:[#allocation3 + $0x780] sm:$0xff]
          %v2709 = vld [vmem:[#allocation3 + $0x788] sm:$0xff]
          %v2710 = vld [vmem:[#allocation3 + $0x790] sm:$0xff]
          %v2711 = vld [vmem:[#allocation3 + $0x798] sm:$0xff]
          %v2712 = vld [vmem:[#allocation3 + $0x7a0] sm:$0xff]
          %v2713 = vld [vmem:[#allocation3 + $0x7a8] sm:$0xff]
          %v2714 = vld [vmem:[#allocation3 + $0x7b0] sm:$0xff]
          %v2715 = vld [vmem:[#allocation3 + $0x7b8] sm:$0xff]
          %v2716 = vld [vmem:[#allocation3 + $0x7c0] sm:$0xff]
          %v2717 = vld [vmem:[#allocation3 + $0x7c8] sm:$0xff]
          %v2718 = vld [vmem:[#allocation3 + $0x7d0] sm:$0xff]
          %v2719 = vld [vmem:[#allocation3 + $0x7d8] sm:$0xff]
          %v2720 = vld [vmem:[#allocation3 + $0x7e0] sm:$0xff]
          %v2721 = vld [vmem:[#allocation3 + $0x7e8] sm:$0xff]
          %v2722 = vld [vmem:[#allocation3 + $0x7f0] sm:$0xff]
          %v2723 = vld [vmem:[#allocation3 + $0x7f8] sm:$0xff]
          %v2724 = vld [vmem:[%s8] sm:$0xf]
          %v2981 = vunpack.c.l.b16 %v2468
          %v2982 = vunpack.c.h.b16 %v2468
          %v2983 = vunpack.c.l.b16 %v2469
          %v2984 = vunpack.c.h.b16 %v2469
          %v2985 = vunpack.c.l.b16 %v2470
          %v2986 = vunpack.c.h.b16 %v2470
          %v2987 = vunpack.c.l.b16 %v2471
          %v2988 = vunpack.c.h.b16 %v2471
          %v2989 = vunpack.c.l.b16 %v2472
          %v2990 = vunpack.c.h.b16 %v2472
          %v2991 = vunpack.c.l.b16 %v2473
          %v2992 = vunpack.c.h.b16 %v2473
          %v2993 = vunpack.c.l.b16 %v2474
          %v2994 = vunpack.c.h.b16 %v2474
          %v2995 = vunpack.c.l.b16 %v2475
          %v2996 = vunpack.c.h.b16 %v2475
          %v2997 = vunpack.c.l.b16 %v2476
          %v2998 = vunpack.c.h.b16 %v2476
          %v2999 = vunpack.c.l.b16 %v2477
          %v3000 = vunpack.c.h.b16 %v2477
          %v3001 = vunpack.c.l.b16 %v2478
          %v3002 = vunpack.c.h.b16 %v2478
          %v3003 = vunpack.c.l.b16 %v2479
          %v3004 = vunpack.c.h.b16 %v2479
          %v3005 = vunpack.c.l.b16 %v2480
          %v3006 = vunpack.c.h.b16 %v2480
          %v3007 = vunpack.c.l.b16 %v2481
          %v3008 = vunpack.c.h.b16 %v2481
          %v3009 = vunpack.c.l.b16 %v2482
          %v3010 = vunpack.c.h.b16 %v2482
          %v3011 = vunpack.c.l.b16 %v2483
          %v3012 = vunpack.c.h.b16 %v2483
          %v3013 = vunpack.c.l.b16 %v2484
          %v3014 = vunpack.c.h.b16 %v2484
          %v3015 = vunpack.c.l.b16 %v2485
          %v3016 = vunpack.c.h.b16 %v2485
          %v3017 = vunpack.c.l.b16 %v2486
          %v3018 = vunpack.c.h.b16 %v2486
          %v3019 = vunpack.c.l.b16 %v2487
          %v3020 = vunpack.c.h.b16 %v2487
          %v3021 = vunpack.c.l.b16 %v2488
          %v3022 = vunpack.c.h.b16 %v2488
          %v3023 = vunpack.c.l.b16 %v2489
          %v3024 = vunpack.c.h.b16 %v2489
          %v3025 = vunpack.c.l.b16 %v2490
          %v3026 = vunpack.c.h.b16 %v2490
          %v3027 = vunpack.c.l.b16 %v2491
          %v3028 = vunpack.c.h.b16 %v2491
          %v3029 = vunpack.c.l.b16 %v2492
          %v3030 = vunpack.c.h.b16 %v2492
          %v3031 = vunpack.c.l.b16 %v2493
          %v3032 = vunpack.c.h.b16 %v2493
          %v3033 = vunpack.c.l.b16 %v2494
          %v3034 = vunpack.c.h.b16 %v2494
          %v3035 = vunpack.c.l.b16 %v2495
          %v3036 = vunpack.c.h.b16 %v2495
          %v3037 = vunpack.c.l.b16 %v2496
          %v3038 = vunpack.c.h.b16 %v2496
          %v3039 = vunpack.c.l.b16 %v2497
          %v3040 = vunpack.c.h.b16 %v2497
          %v3041 = vunpack.c.l.b16 %v2498
          %v3042 = vunpack.c.h.b16 %v2498
          %v3043 = vunpack.c.l.b16 %v2499
          %v3044 = vunpack.c.h.b16 %v2499
          %v3045 = vunpack.c.l.b16 %v2500
          %v3046 = vunpack.c.h.b16 %v2500
          %v3047 = vunpack.c.l.b16 %v2501
          %v3048 = vunpack.c.h.b16 %v2501
          %v3049 = vunpack.c.l.b16 %v2502
          %v3050 = vunpack.c.h.b16 %v2502
          %v3051 = vunpack.c.l.b16 %v2503
          %v3052 = vunpack.c.h.b16 %v2503
          %v3053 = vunpack.c.l.b16 %v2504
          %v3054 = vunpack.c.h.b16 %v2504
          %v3055 = vunpack.c.l.b16 %v2505
          %v3056 = vunpack.c.h.b16 %v2505
          %v3057 = vunpack.c.l.b16 %v2506
          %v3058 = vunpack.c.h.b16 %v2506
          %v3059 = vunpack.c.l.b16 %v2507
          %v3060 = vunpack.c.h.b16 %v2507
          %v3061 = vunpack.c.l.b16 %v2508
          %v3062 = vunpack.c.h.b16 %v2508
          %v3063 = vunpack.c.l.b16 %v2509
          %v3064 = vunpack.c.h.b16 %v2509
          %v3065 = vunpack.c.l.b16 %v2510
          %v3066 = vunpack.c.h.b16 %v2510
          %v3067 = vunpack.c.l.b16 %v2511
          %v3068 = vunpack.c.h.b16 %v2511
          %v3069 = vunpack.c.l.b16 %v2512
          %v3070 = vunpack.c.h.b16 %v2512
          %v3071 = vunpack.c.l.b16 %v2513
          %v3072 = vunpack.c.h.b16 %v2513
          %v3073 = vunpack.c.l.b16 %v2514
          %v3074 = vunpack.c.h.b16 %v2514
          %v3075 = vunpack.c.l.b16 %v2515
          %v3076 = vunpack.c.h.b16 %v2515
          %v3077 = vunpack.c.l.b16 %v2516
          %v3078 = vunpack.c.h.b16 %v2516
          %v3079 = vunpack.c.l.b16 %v2517
          %v3080 = vunpack.c.h.b16 %v2517
          %v3081 = vunpack.c.l.b16 %v2518
          %v3082 = vunpack.c.h.b16 %v2518
          %v3083 = vunpack.c.l.b16 %v2519
          %v3084 = vunpack.c.h.b16 %v2519
          %v3085 = vunpack.c.l.b16 %v2520
          %v3086 = vunpack.c.h.b16 %v2520
          %v3087 = vunpack.c.l.b16 %v2521
          %v3088 = vunpack.c.h.b16 %v2521
          %v3089 = vunpack.c.l.b16 %v2522
          %v3090 = vunpack.c.h.b16 %v2522
          %v3091 = vunpack.c.l.b16 %v2523
          %v3092 = vunpack.c.h.b16 %v2523
          %v3093 = vunpack.c.l.b16 %v2524
          %v3094 = vunpack.c.h.b16 %v2524
          %v3095 = vunpack.c.l.b16 %v2525
          %v3096 = vunpack.c.h.b16 %v2525
          %v3097 = vunpack.c.l.b16 %v2526
          %v3098 = vunpack.c.h.b16 %v2526
          %v3099 = vunpack.c.l.b16 %v2527
          %v3100 = vunpack.c.h.b16 %v2527
          %v3101 = vunpack.c.l.b16 %v2528
          %v3102 = vunpack.c.h.b16 %v2528
          %v3103 = vunpack.c.l.b16 %v2529
          %v3104 = vunpack.c.h.b16 %v2529
          %v3105 = vunpack.c.l.b16 %v2530
          %v3106 = vunpack.c.h.b16 %v2530
          %v3107 = vunpack.c.l.b16 %v2531
          %v3108 = vunpack.c.h.b16 %v2531
          %v3109 = vunpack.c.l.b16 %v2532
          %v3110 = vunpack.c.h.b16 %v2532
          %v3111 = vunpack.c.l.b16 %v2533
          %v3112 = vunpack.c.h.b16 %v2533
          %v3113 = vunpack.c.l.b16 %v2534
          %v3114 = vunpack.c.h.b16 %v2534
          %v3115 = vunpack.c.l.b16 %v2535
          %v3116 = vunpack.c.h.b16 %v2535
          %v3117 = vunpack.c.l.b16 %v2536
          %v3118 = vunpack.c.h.b16 %v2536
          %v3119 = vunpack.c.l.b16 %v2537
          %v3120 = vunpack.c.h.b16 %v2537
          %v3121 = vunpack.c.l.b16 %v2538
          %v3122 = vunpack.c.h.b16 %v2538
          %v3123 = vunpack.c.l.b16 %v2539
          %v3124 = vunpack.c.h.b16 %v2539
          %v3125 = vunpack.c.l.b16 %v2540
          %v3126 = vunpack.c.h.b16 %v2540
          %v3127 = vunpack.c.l.b16 %v2541
          %v3128 = vunpack.c.h.b16 %v2541
          %v3129 = vunpack.c.l.b16 %v2542
          %v3130 = vunpack.c.h.b16 %v2542
          %v3131 = vunpack.c.l.b16 %v2543
          %v3132 = vunpack.c.h.b16 %v2543
          %v3133 = vunpack.c.l.b16 %v2544
          %v3134 = vunpack.c.h.b16 %v2544
          %v3135 = vunpack.c.l.b16 %v2545
          %v3136 = vunpack.c.h.b16 %v2545
          %v3137 = vunpack.c.l.b16 %v2546
          %v3138 = vunpack.c.h.b16 %v2546
          %v3139 = vunpack.c.l.b16 %v2547
          %v3140 = vunpack.c.h.b16 %v2547
          %v3141 = vunpack.c.l.b16 %v2548
          %v3142 = vunpack.c.h.b16 %v2548
          %v3143 = vunpack.c.l.b16 %v2549
          %v3144 = vunpack.c.h.b16 %v2549
          %v3145 = vunpack.c.l.b16 %v2550
          %v3146 = vunpack.c.h.b16 %v2550
          %v3147 = vunpack.c.l.b16 %v2551
          %v3148 = vunpack.c.h.b16 %v2551
          %v3149 = vunpack.c.l.b16 %v2552
          %v3150 = vunpack.c.h.b16 %v2552
          %v3151 = vunpack.c.l.b16 %v2553
          %v3152 = vunpack.c.h.b16 %v2553
          %v3153 = vunpack.c.l.b16 %v2554
          %v3154 = vunpack.c.h.b16 %v2554
          %v3155 = vunpack.c.l.b16 %v2555
          %v3156 = vunpack.c.h.b16 %v2555
          %v3157 = vunpack.c.l.b16 %v2556
          %v3158 = vunpack.c.h.b16 %v2556
          %v3159 = vunpack.c.l.b16 %v2557
          %v3160 = vunpack.c.h.b16 %v2557
          %v3161 = vunpack.c.l.b16 %v2558
          %v3162 = vunpack.c.h.b16 %v2558
          %v3163 = vunpack.c.l.b16 %v2559
          %v3164 = vunpack.c.h.b16 %v2559
          %v3165 = vunpack.c.l.b16 %v2560
          %v3166 = vunpack.c.h.b16 %v2560
          %v3167 = vunpack.c.l.b16 %v2561
          %v3168 = vunpack.c.h.b16 %v2561
          %v3169 = vunpack.c.l.b16 %v2562
          %v3170 = vunpack.c.h.b16 %v2562
          %v3171 = vunpack.c.l.b16 %v2563
          %v3172 = vunpack.c.h.b16 %v2563
          %v3173 = vunpack.c.l.b16 %v2564
          %v3174 = vunpack.c.h.b16 %v2564
          %v3175 = vunpack.c.l.b16 %v2565
          %v3176 = vunpack.c.h.b16 %v2565
          %v3177 = vunpack.c.l.b16 %v2566
          %v3178 = vunpack.c.h.b16 %v2566
          %v3179 = vunpack.c.l.b16 %v2567
          %v3180 = vunpack.c.h.b16 %v2567
          %v3181 = vunpack.c.l.b16 %v2568
          %v3182 = vunpack.c.h.b16 %v2568
          %v3183 = vunpack.c.l.b16 %v2569
          %v3184 = vunpack.c.h.b16 %v2569
          %v3185 = vunpack.c.l.b16 %v2570
          %v3186 = vunpack.c.h.b16 %v2570
          %v3187 = vunpack.c.l.b16 %v2571
          %v3188 = vunpack.c.h.b16 %v2571
          %v3189 = vunpack.c.l.b16 %v2572
          %v3190 = vunpack.c.h.b16 %v2572
          %v3191 = vunpack.c.l.b16 %v2573
          %v3192 = vunpack.c.h.b16 %v2573
          %v3193 = vunpack.c.l.b16 %v2574
          %v3194 = vunpack.c.h.b16 %v2574
          %v3195 = vunpack.c.l.b16 %v2575
          %v3196 = vunpack.c.h.b16 %v2575
          %v3197 = vunpack.c.l.b16 %v2576
          %v3198 = vunpack.c.h.b16 %v2576
          %v3199 = vunpack.c.l.b16 %v2577
          %v3200 = vunpack.c.h.b16 %v2577
          %v3201 = vunpack.c.l.b16 %v2578
          %v3202 = vunpack.c.h.b16 %v2578
          %v3203 = vunpack.c.l.b16 %v2579
          %v3204 = vunpack.c.h.b16 %v2579
          %v3205 = vunpack.c.l.b16 %v2580
          %v3206 = vunpack.c.h.b16 %v2580
          %v3207 = vunpack.c.l.b16 %v2581
          %v3208 = vunpack.c.h.b16 %v2581
          %v3209 = vunpack.c.l.b16 %v2582
          %v3210 = vunpack.c.h.b16 %v2582
          %v3211 = vunpack.c.l.b16 %v2583
          %v3212 = vunpack.c.h.b16 %v2583
          %v3213 = vunpack.c.l.b16 %v2584
          %v3214 = vunpack.c.h.b16 %v2584
          %v3215 = vunpack.c.l.b16 %v2585
          %v3216 = vunpack.c.h.b16 %v2585
          %v3217 = vunpack.c.l.b16 %v2586
          %v3218 = vunpack.c.h.b16 %v2586
          %v3219 = vunpack.c.l.b16 %v2587
          %v3220 = vunpack.c.h.b16 %v2587
          %v3221 = vunpack.c.l.b16 %v2588
          %v3222 = vunpack.c.h.b16 %v2588
          %v3223 = vunpack.c.l.b16 %v2589
          %v3224 = vunpack.c.h.b16 %v2589
          %v3225 = vunpack.c.l.b16 %v2590
          %v3226 = vunpack.c.h.b16 %v2590
          %v3227 = vunpack.c.l.b16 %v2591
          %v3228 = vunpack.c.h.b16 %v2591
          %v3229 = vunpack.c.l.b16 %v2592
          %v3230 = vunpack.c.h.b16 %v2592
          %v3231 = vunpack.c.l.b16 %v2593
          %v3232 = vunpack.c.h.b16 %v2593
          %v3233 = vunpack.c.l.b16 %v2594
          %v3234 = vunpack.c.h.b16 %v2594
          %v3235 = vunpack.c.l.b16 %v2595
          %v3236 = vunpack.c.h.b16 %v2595
          %v3237 = vunpack.c.l.b16 %v2596
          %v3238 = vunpack.c.h.b16 %v2596
          %v3239 = vunpack.c.l.b16 %v2597
          %v3240 = vunpack.c.h.b16 %v2597
          %v3241 = vunpack.c.l.b16 %v2598
          %v3242 = vunpack.c.h.b16 %v2598
          %v3243 = vunpack.c.l.b16 %v2599
          %v3244 = vunpack.c.h.b16 %v2599
          %v3245 = vunpack.c.l.b16 %v2600
          %v3246 = vunpack.c.h.b16 %v2600
          %v3247 = vunpack.c.l.b16 %v2601
          %v3248 = vunpack.c.h.b16 %v2601
          %v3249 = vunpack.c.l.b16 %v2602
          %v3250 = vunpack.c.h.b16 %v2602
          %v3251 = vunpack.c.l.b16 %v2603
          %v3252 = vunpack.c.h.b16 %v2603
          %v3253 = vunpack.c.l.b16 %v2604
          %v3254 = vunpack.c.h.b16 %v2604
          %v3255 = vunpack.c.l.b16 %v2605
          %v3256 = vunpack.c.h.b16 %v2605
          %v3257 = vunpack.c.l.b16 %v2606
          %v3258 = vunpack.c.h.b16 %v2606
          %v3259 = vunpack.c.l.b16 %v2607
          %v3260 = vunpack.c.h.b16 %v2607
          %v3261 = vunpack.c.l.b16 %v2608
          %v3262 = vunpack.c.h.b16 %v2608
          %v3263 = vunpack.c.l.b16 %v2609
          %v3264 = vunpack.c.h.b16 %v2609
          %v3265 = vunpack.c.l.b16 %v2610
          %v3266 = vunpack.c.h.b16 %v2610
          %v3267 = vunpack.c.l.b16 %v2611
          %v3268 = vunpack.c.h.b16 %v2611
          %v3269 = vunpack.c.l.b16 %v2612
          %v3270 = vunpack.c.h.b16 %v2612
          %v3271 = vunpack.c.l.b16 %v2613
          %v3272 = vunpack.c.h.b16 %v2613
          %v3273 = vunpack.c.l.b16 %v2614
          %v3274 = vunpack.c.h.b16 %v2614
          %v3275 = vunpack.c.l.b16 %v2615
          %v3276 = vunpack.c.h.b16 %v2615
          %v3277 = vunpack.c.l.b16 %v2616
          %v3278 = vunpack.c.h.b16 %v2616
          %v3279 = vunpack.c.l.b16 %v2617
          %v3280 = vunpack.c.h.b16 %v2617
          %v3281 = vunpack.c.l.b16 %v2618
          %v3282 = vunpack.c.h.b16 %v2618
          %v3283 = vunpack.c.l.b16 %v2619
          %v3284 = vunpack.c.h.b16 %v2619
          %v3285 = vunpack.c.l.b16 %v2620
          %v3286 = vunpack.c.h.b16 %v2620
          %v3287 = vunpack.c.l.b16 %v2621
          %v3288 = vunpack.c.h.b16 %v2621
          %v3289 = vunpack.c.l.b16 %v2622
          %v3290 = vunpack.c.h.b16 %v2622
          %v3291 = vunpack.c.l.b16 %v2623
          %v3292 = vunpack.c.h.b16 %v2623
          %v3293 = vunpack.c.l.b16 %v2624
          %v3294 = vunpack.c.h.b16 %v2624
          %v3295 = vunpack.c.l.b16 %v2625
          %v3296 = vunpack.c.h.b16 %v2625
          %v3297 = vunpack.c.l.b16 %v2626
          %v3298 = vunpack.c.h.b16 %v2626
          %v3299 = vunpack.c.l.b16 %v2627
          %v3300 = vunpack.c.h.b16 %v2627
          %v3301 = vunpack.c.l.b16 %v2628
          %v3302 = vunpack.c.h.b16 %v2628
          %v3303 = vunpack.c.l.b16 %v2629
          %v3304 = vunpack.c.h.b16 %v2629
          %v3305 = vunpack.c.l.b16 %v2630
          %v3306 = vunpack.c.h.b16 %v2630
          %v3307 = vunpack.c.l.b16 %v2631
          %v3308 = vunpack.c.h.b16 %v2631
          %v3309 = vunpack.c.l.b16 %v2632
          %v3310 = vunpack.c.h.b16 %v2632
          %v3311 = vunpack.c.l.b16 %v2633
          %v3312 = vunpack.c.h.b16 %v2633
          %v3313 = vunpack.c.l.b16 %v2634
          %v3314 = vunpack.c.h.b16 %v2634
          %v3315 = vunpack.c.l.b16 %v2635
          %v3316 = vunpack.c.h.b16 %v2635
          %v3317 = vunpack.c.l.b16 %v2636
          %v3318 = vunpack.c.h.b16 %v2636
          %v3319 = vunpack.c.l.b16 %v2637
          %v3320 = vunpack.c.h.b16 %v2637
          %v3321 = vunpack.c.l.b16 %v2638
          %v3322 = vunpack.c.h.b16 %v2638
          %v3323 = vunpack.c.l.b16 %v2639
          %v3324 = vunpack.c.h.b16 %v2639
          %v3325 = vunpack.c.l.b16 %v2640
          %v3326 = vunpack.c.h.b16 %v2640
          %v3327 = vunpack.c.l.b16 %v2641
          %v3328 = vunpack.c.h.b16 %v2641
          %v3329 = vunpack.c.l.b16 %v2642
          %v3330 = vunpack.c.h.b16 %v2642
          %v3331 = vunpack.c.l.b16 %v2643
          %v3332 = vunpack.c.h.b16 %v2643
          %v3333 = vunpack.c.l.b16 %v2644
          %v3334 = vunpack.c.h.b16 %v2644
          %v3335 = vunpack.c.l.b16 %v2645
          %v3336 = vunpack.c.h.b16 %v2645
          %v3337 = vunpack.c.l.b16 %v2646
          %v3338 = vunpack.c.h.b16 %v2646
          %v3339 = vunpack.c.l.b16 %v2647
          %v3340 = vunpack.c.h.b16 %v2647
          %v3341 = vunpack.c.l.b16 %v2648
          %v3342 = vunpack.c.h.b16 %v2648
          %v3343 = vunpack.c.l.b16 %v2649
          %v3344 = vunpack.c.h.b16 %v2649
          %v3345 = vunpack.c.l.b16 %v2650
          %v3346 = vunpack.c.h.b16 %v2650
          %v3347 = vunpack.c.l.b16 %v2651
          %v3348 = vunpack.c.h.b16 %v2651
          %v3349 = vunpack.c.l.b16 %v2652
          %v3350 = vunpack.c.h.b16 %v2652
          %v3351 = vunpack.c.l.b16 %v2653
          %v3352 = vunpack.c.h.b16 %v2653
          %v3353 = vunpack.c.l.b16 %v2654
          %v3354 = vunpack.c.h.b16 %v2654
          %v3355 = vunpack.c.l.b16 %v2655
          %v3356 = vunpack.c.h.b16 %v2655
          %v3357 = vunpack.c.l.b16 %v2656
          %v3358 = vunpack.c.h.b16 %v2656
          %v3359 = vunpack.c.l.b16 %v2657
          %v3360 = vunpack.c.h.b16 %v2657
          %v3361 = vunpack.c.l.b16 %v2658
          %v3362 = vunpack.c.h.b16 %v2658
          %v3363 = vunpack.c.l.b16 %v2659
          %v3364 = vunpack.c.h.b16 %v2659
          %v3365 = vunpack.c.l.b16 %v2660
          %v3366 = vunpack.c.h.b16 %v2660
          %v3367 = vunpack.c.l.b16 %v2661
          %v3368 = vunpack.c.h.b16 %v2661
          %v3369 = vunpack.c.l.b16 %v2662
          %v3370 = vunpack.c.h.b16 %v2662
          %v3371 = vunpack.c.l.b16 %v2663
          %v3372 = vunpack.c.h.b16 %v2663
          %v3373 = vunpack.c.l.b16 %v2664
          %v3374 = vunpack.c.h.b16 %v2664
          %v3375 = vunpack.c.l.b16 %v2665
          %v3376 = vunpack.c.h.b16 %v2665
          %v3377 = vunpack.c.l.b16 %v2666
          %v3378 = vunpack.c.h.b16 %v2666
          %v3379 = vunpack.c.l.b16 %v2667
          %v3380 = vunpack.c.h.b16 %v2667
          %v3381 = vunpack.c.l.b16 %v2668
          %v3382 = vunpack.c.h.b16 %v2668
          %v3383 = vunpack.c.l.b16 %v2669
          %v3384 = vunpack.c.h.b16 %v2669
          %v3385 = vunpack.c.l.b16 %v2670
          %v3386 = vunpack.c.h.b16 %v2670
          %v3387 = vunpack.c.l.b16 %v2671
          %v3388 = vunpack.c.h.b16 %v2671
          %v3389 = vunpack.c.l.b16 %v2672
          %v3390 = vunpack.c.h.b16 %v2672
          %v3391 = vunpack.c.l.b16 %v2673
          %v3392 = vunpack.c.h.b16 %v2673
          %v3393 = vunpack.c.l.b16 %v2674
          %v3394 = vunpack.c.h.b16 %v2674
          %v3395 = vunpack.c.l.b16 %v2675
          %v3396 = vunpack.c.h.b16 %v2675
          %v3397 = vunpack.c.l.b16 %v2676
          %v3398 = vunpack.c.h.b16 %v2676
          %v3399 = vunpack.c.l.b16 %v2677
          %v3400 = vunpack.c.h.b16 %v2677
          %v3401 = vunpack.c.l.b16 %v2678
          %v3402 = vunpack.c.h.b16 %v2678
          %v3403 = vunpack.c.l.b16 %v2679
          %v3404 = vunpack.c.h.b16 %v2679
          %v3405 = vunpack.c.l.b16 %v2680
          %v3406 = vunpack.c.h.b16 %v2680
          %v3407 = vunpack.c.l.b16 %v2681
          %v3408 = vunpack.c.h.b16 %v2681
          %v3409 = vunpack.c.l.b16 %v2682
          %v3410 = vunpack.c.h.b16 %v2682
          %v3411 = vunpack.c.l.b16 %v2683
          %v3412 = vunpack.c.h.b16 %v2683
          %v3413 = vunpack.c.l.b16 %v2684
          %v3414 = vunpack.c.h.b16 %v2684
          %v3415 = vunpack.c.l.b16 %v2685
          %v3416 = vunpack.c.h.b16 %v2685
          %v3417 = vunpack.c.l.b16 %v2686
          %v3418 = vunpack.c.h.b16 %v2686
          %v3419 = vunpack.c.l.b16 %v2687
          %v3420 = vunpack.c.h.b16 %v2687
          %v3421 = vunpack.c.l.b16 %v2688
          %v3422 = vunpack.c.h.b16 %v2688
          %v3423 = vunpack.c.l.b16 %v2689
          %v3424 = vunpack.c.h.b16 %v2689
          %v3425 = vunpack.c.l.b16 %v2690
          %v3426 = vunpack.c.h.b16 %v2690
          %v3427 = vunpack.c.l.b16 %v2691
          %v3428 = vunpack.c.h.b16 %v2691
          %v3429 = vunpack.c.l.b16 %v2692
          %v3430 = vunpack.c.h.b16 %v2692
          %v3431 = vunpack.c.l.b16 %v2693
          %v3432 = vunpack.c.h.b16 %v2693
          %v3433 = vunpack.c.l.b16 %v2694
          %v3434 = vunpack.c.h.b16 %v2694
          %v3435 = vunpack.c.l.b16 %v2695
          %v3436 = vunpack.c.h.b16 %v2695
          %v3437 = vunpack.c.l.b16 %v2696
          %v3438 = vunpack.c.h.b16 %v2696
          %v3439 = vunpack.c.l.b16 %v2697
          %v3440 = vunpack.c.h.b16 %v2697
          %v3441 = vunpack.c.l.b16 %v2698
          %v3442 = vunpack.c.h.b16 %v2698
          %v3443 = vunpack.c.l.b16 %v2699
          %v3444 = vunpack.c.h.b16 %v2699
          %v3445 = vunpack.c.l.b16 %v2700
          %v3446 = vunpack.c.h.b16 %v2700
          %v3447 = vunpack.c.l.b16 %v2701
          %v3448 = vunpack.c.h.b16 %v2701
          %v3449 = vunpack.c.l.b16 %v2702
          %v3450 = vunpack.c.h.b16 %v2702
          %v3451 = vunpack.c.l.b16 %v2703
          %v3452 = vunpack.c.h.b16 %v2703
          %v3453 = vunpack.c.l.b16 %v2704
          %v3454 = vunpack.c.h.b16 %v2704
          %v3455 = vunpack.c.l.b16 %v2705
          %v3456 = vunpack.c.h.b16 %v2705
          %v3457 = vunpack.c.l.b16 %v2706
          %v3458 = vunpack.c.h.b16 %v2706
          %v3459 = vunpack.c.l.b16 %v2707
          %v3460 = vunpack.c.h.b16 %v2707
          %v3461 = vunpack.c.l.b16 %v2708
          %v3462 = vunpack.c.h.b16 %v2708
          %v3463 = vunpack.c.l.b16 %v2709
          %v3464 = vunpack.c.h.b16 %v2709
          %v3465 = vunpack.c.l.b16 %v2710
          %v3466 = vunpack.c.h.b16 %v2710
          %v3467 = vunpack.c.l.b16 %v2711
          %v3468 = vunpack.c.h.b16 %v2711
          %v3469 = vunpack.c.l.b16 %v2712
          %v3470 = vunpack.c.h.b16 %v2712
          %v3471 = vunpack.c.l.b16 %v2713
          %v3472 = vunpack.c.h.b16 %v2713
          %v3473 = vunpack.c.l.b16 %v2714
          %v3474 = vunpack.c.h.b16 %v2714
          %v3475 = vunpack.c.l.b16 %v2715
          %v3476 = vunpack.c.h.b16 %v2715
          %v3477 = vunpack.c.l.b16 %v2716
          %v3478 = vunpack.c.h.b16 %v2716
          %v3479 = vunpack.c.l.b16 %v2717
          %v3480 = vunpack.c.h.b16 %v2717
          %v3481 = vunpack.c.l.b16 %v2718
          %v3482 = vunpack.c.h.b16 %v2718
          %v3483 = vunpack.c.l.b16 %v2719
          %v3484 = vunpack.c.h.b16 %v2719
          %v3485 = vunpack.c.l.b16 %v2720
          %v3486 = vunpack.c.h.b16 %v2720
          %v3487 = vunpack.c.l.b16 %v2721
          %v3488 = vunpack.c.h.b16 %v2721
          %v3489 = vunpack.c.l.b16 %v2722
          %v3490 = vunpack.c.h.b16 %v2722
          %v3491 = vunpack.c.l.b16 %v2723
          %v3492 = vunpack.c.h.b16 %v2723
          %v3493 = vpack.c.b16 %v2985, %v2981
          %v3494 = vpack.c.b16 %v2986, %v2982
          %v3495 = vpack.c.b16 %v2987, %v2983
          %v3496 = vpack.c.b16 %v2988, %v2984
          %v3497 = vpack.c.b16 %v2993, %v2989
          %v3498 = vpack.c.b16 %v2994, %v2990
          %v3499 = vpack.c.b16 %v2995, %v2991
          %v3500 = vpack.c.b16 %v2996, %v2992
          %v3501 = vpack.c.b16 %v3001, %v2997
          %v3502 = vpack.c.b16 %v3002, %v2998
          %v3503 = vpack.c.b16 %v3003, %v2999
          %v3504 = vpack.c.b16 %v3004, %v3000
          %v3505 = vpack.c.b16 %v3009, %v3005
          %v3506 = vpack.c.b16 %v3010, %v3006
          %v3507 = vpack.c.b16 %v3011, %v3007
          %v3508 = vpack.c.b16 %v3012, %v3008
          %v3509 = vpack.c.b16 %v3017, %v3013
          %v3510 = vpack.c.b16 %v3018, %v3014
          %v3511 = vpack.c.b16 %v3019, %v3015
          %v3512 = vpack.c.b16 %v3020, %v3016
          %v3513 = vpack.c.b16 %v3025, %v3021
          %v3514 = vpack.c.b16 %v3026, %v3022
          %v3515 = vpack.c.b16 %v3027, %v3023
          %v3516 = vpack.c.b16 %v3028, %v3024
          %v3517 = vpack.c.b16 %v3033, %v3029
          %v3518 = vpack.c.b16 %v3034, %v3030
          %v3519 = vpack.c.b16 %v3035, %v3031
          %v3520 = vpack.c.b16 %v3036, %v3032
          %v3521 = vpack.c.b16 %v3041, %v3037
          %v3522 = vpack.c.b16 %v3042, %v3038
          %v3523 = vpack.c.b16 %v3043, %v3039
          %v3524 = vpack.c.b16 %v3044, %v3040
          %v3525 = vpack.c.b16 %v3049, %v3045
          %v3526 = vpack.c.b16 %v3050, %v3046
          %v3527 = vpack.c.b16 %v3051, %v3047
          %v3528 = vpack.c.b16 %v3052, %v3048
          %v3529 = vpack.c.b16 %v3057, %v3053
          %v3530 = vpack.c.b16 %v3058, %v3054
          %v3531 = vpack.c.b16 %v3059, %v3055
          %v3532 = vpack.c.b16 %v3060, %v3056
          %v3533 = vpack.c.b16 %v3065, %v3061
          %v3534 = vpack.c.b16 %v3066, %v3062
          %v3535 = vpack.c.b16 %v3067, %v3063
          %v3536 = vpack.c.b16 %v3068, %v3064
          %v3537 = vpack.c.b16 %v3073, %v3069
          %v3538 = vpack.c.b16 %v3074, %v3070
          %v3539 = vpack.c.b16 %v3075, %v3071
          %v3540 = vpack.c.b16 %v3076, %v3072
          %v3541 = vpack.c.b16 %v3081, %v3077
          %v3542 = vpack.c.b16 %v3082, %v3078
          %v3543 = vpack.c.b16 %v3083, %v3079
          %v3544 = vpack.c.b16 %v3084, %v3080
          %v3545 = vpack.c.b16 %v3089, %v3085
          %v3546 = vpack.c.b16 %v3090, %v3086
          %v3547 = vpack.c.b16 %v3091, %v3087
          %v3548 = vpack.c.b16 %v3092, %v3088
          %v3549 = vpack.c.b16 %v3097, %v3093
          %v3550 = vpack.c.b16 %v3098, %v3094
          %v3551 = vpack.c.b16 %v3099, %v3095
          %v3552 = vpack.c.b16 %v3100, %v3096
          %v3553 = vpack.c.b16 %v3105, %v3101
          %v3554 = vpack.c.b16 %v3106, %v3102
          %v3555 = vpack.c.b16 %v3107, %v3103
          %v3556 = vpack.c.b16 %v3108, %v3104
          %v3557 = vpack.c.b16 %v3113, %v3109
          %v3558 = vpack.c.b16 %v3114, %v3110
          %v3559 = vpack.c.b16 %v3115, %v3111
          %v3560 = vpack.c.b16 %v3116, %v3112
          %v3561 = vpack.c.b16 %v3121, %v3117
          %v3562 = vpack.c.b16 %v3122, %v3118
          %v3563 = vpack.c.b16 %v3123, %v3119
          %v3564 = vpack.c.b16 %v3124, %v3120
          %v3565 = vpack.c.b16 %v3129, %v3125
          %v3566 = vpack.c.b16 %v3130, %v3126
          %v3567 = vpack.c.b16 %v3131, %v3127
          %v3568 = vpack.c.b16 %v3132, %v3128
          %v3569 = vpack.c.b16 %v3137, %v3133
          %v3570 = vpack.c.b16 %v3138, %v3134
          %v3571 = vpack.c.b16 %v3139, %v3135
          %v3572 = vpack.c.b16 %v3140, %v3136
          %v3573 = vpack.c.b16 %v3145, %v3141
          %v3574 = vpack.c.b16 %v3146, %v3142
          %v3575 = vpack.c.b16 %v3147, %v3143
          %v3576 = vpack.c.b16 %v3148, %v3144
          %v3577 = vpack.c.b16 %v3153, %v3149
          %v3578 = vpack.c.b16 %v3154, %v3150
          %v3579 = vpack.c.b16 %v3155, %v3151
          %v3580 = vpack.c.b16 %v3156, %v3152
          %v3581 = vpack.c.b16 %v3161, %v3157
          %v3582 = vpack.c.b16 %v3162, %v3158
          %v3583 = vpack.c.b16 %v3163, %v3159
          %v3584 = vpack.c.b16 %v3164, %v3160
          %v3585 = vpack.c.b16 %v3169, %v3165
          %v3586 = vpack.c.b16 %v3170, %v3166
          %v3587 = vpack.c.b16 %v3171, %v3167
          %v3588 = vpack.c.b16 %v3172, %v3168
          %v3589 = vpack.c.b16 %v3177, %v3173
          %v3590 = vpack.c.b16 %v3178, %v3174
          %v3591 = vpack.c.b16 %v3179, %v3175
          %v3592 = vpack.c.b16 %v3180, %v3176
          %v3593 = vpack.c.b16 %v3185, %v3181
          %v3594 = vpack.c.b16 %v3186, %v3182
          %v3595 = vpack.c.b16 %v3187, %v3183
          %v3596 = vpack.c.b16 %v3188, %v3184
          %v3597 = vpack.c.b16 %v3193, %v3189
          %v3598 = vpack.c.b16 %v3194, %v3190
          %v3599 = vpack.c.b16 %v3195, %v3191
          %v3600 = vpack.c.b16 %v3196, %v3192
          %v3601 = vpack.c.b16 %v3201, %v3197
          %v3602 = vpack.c.b16 %v3202, %v3198
          %v3603 = vpack.c.b16 %v3203, %v3199
          %v3604 = vpack.c.b16 %v3204, %v3200
          %v3605 = vpack.c.b16 %v3209, %v3205
          %v3606 = vpack.c.b16 %v3210, %v3206
          %v3607 = vpack.c.b16 %v3211, %v3207
          %v3608 = vpack.c.b16 %v3212, %v3208
          %v3609 = vpack.c.b16 %v3217, %v3213
          %v3610 = vpack.c.b16 %v3218, %v3214
          %v3611 = vpack.c.b16 %v3219, %v3215
          %v3612 = vpack.c.b16 %v3220, %v3216
          %v3613 = vpack.c.b16 %v3225, %v3221
          %v3614 = vpack.c.b16 %v3226, %v3222
          %v3615 = vpack.c.b16 %v3227, %v3223
          %v3616 = vpack.c.b16 %v3228, %v3224
          %v3617 = vpack.c.b16 %v3233, %v3229
          %v3618 = vpack.c.b16 %v3234, %v3230
          %v3619 = vpack.c.b16 %v3235, %v3231
          %v3620 = vpack.c.b16 %v3236, %v3232
          %v3621 = vpack.c.b16 %v3241, %v3237
          %v3622 = vpack.c.b16 %v3242, %v3238
          %v3623 = vpack.c.b16 %v3243, %v3239
          %v3624 = vpack.c.b16 %v3244, %v3240
          %v3625 = vpack.c.b16 %v3249, %v3245
          %v3626 = vpack.c.b16 %v3250, %v3246
          %v3627 = vpack.c.b16 %v3251, %v3247
          %v3628 = vpack.c.b16 %v3252, %v3248
          %v3629 = vpack.c.b16 %v3257, %v3253
          %v3630 = vpack.c.b16 %v3258, %v3254
          %v3631 = vpack.c.b16 %v3259, %v3255
          %v3632 = vpack.c.b16 %v3260, %v3256
          %v3633 = vpack.c.b16 %v3265, %v3261
          %v3634 = vpack.c.b16 %v3266, %v3262
          %v3635 = vpack.c.b16 %v3267, %v3263
          %v3636 = vpack.c.b16 %v3268, %v3264
          %v3637 = vpack.c.b16 %v3273, %v3269
          %v3638 = vpack.c.b16 %v3274, %v3270
          %v3639 = vpack.c.b16 %v3275, %v3271
          %v3640 = vpack.c.b16 %v3276, %v3272
          %v3641 = vpack.c.b16 %v3281, %v3277
          %v3642 = vpack.c.b16 %v3282, %v3278
          %v3643 = vpack.c.b16 %v3283, %v3279
          %v3644 = vpack.c.b16 %v3284, %v3280
          %v3645 = vpack.c.b16 %v3289, %v3285
          %v3646 = vpack.c.b16 %v3290, %v3286
          %v3647 = vpack.c.b16 %v3291, %v3287
          %v3648 = vpack.c.b16 %v3292, %v3288
          %v3649 = vpack.c.b16 %v3297, %v3293
          %v3650 = vpack.c.b16 %v3298, %v3294
          %v3651 = vpack.c.b16 %v3299, %v3295
          %v3652 = vpack.c.b16 %v3300, %v3296
          %v3653 = vpack.c.b16 %v3305, %v3301
          %v3654 = vpack.c.b16 %v3306, %v3302
          %v3655 = vpack.c.b16 %v3307, %v3303
          %v3656 = vpack.c.b16 %v3308, %v3304
          %v3657 = vpack.c.b16 %v3313, %v3309
          %v3658 = vpack.c.b16 %v3314, %v3310
          %v3659 = vpack.c.b16 %v3315, %v3311
          %v3660 = vpack.c.b16 %v3316, %v3312
          %v3661 = vpack.c.b16 %v3321, %v3317
          %v3662 = vpack.c.b16 %v3322, %v3318
          %v3663 = vpack.c.b16 %v3323, %v3319
          %v3664 = vpack.c.b16 %v3324, %v3320
          %v3665 = vpack.c.b16 %v3329, %v3325
          %v3666 = vpack.c.b16 %v3330, %v3326
          %v3667 = vpack.c.b16 %v3331, %v3327
          %v3668 = vpack.c.b16 %v3332, %v3328
          %v3669 = vpack.c.b16 %v3337, %v3333
          %v3670 = vpack.c.b16 %v3338, %v3334
          %v3671 = vpack.c.b16 %v3339, %v3335
          %v3672 = vpack.c.b16 %v3340, %v3336
          %v3673 = vpack.c.b16 %v3345, %v3341
          %v3674 = vpack.c.b16 %v3346, %v3342
          %v3675 = vpack.c.b16 %v3347, %v3343
          %v3676 = vpack.c.b16 %v3348, %v3344
          %v3677 = vpack.c.b16 %v3353, %v3349
          %v3678 = vpack.c.b16 %v3354, %v3350
          %v3679 = vpack.c.b16 %v3355, %v3351
          %v3680 = vpack.c.b16 %v3356, %v3352
          %v3681 = vpack.c.b16 %v3361, %v3357
          %v3682 = vpack.c.b16 %v3362, %v3358
          %v3683 = vpack.c.b16 %v3363, %v3359
          %v3684 = vpack.c.b16 %v3364, %v3360
          %v3685 = vpack.c.b16 %v3369, %v3365
          %v3686 = vpack.c.b16 %v3370, %v3366
          %v3687 = vpack.c.b16 %v3371, %v3367
          %v3688 = vpack.c.b16 %v3372, %v3368
          %v3689 = vpack.c.b16 %v3377, %v3373
          %v3690 = vpack.c.b16 %v3378, %v3374
          %v3691 = vpack.c.b16 %v3379, %v3375
          %v3692 = vpack.c.b16 %v3380, %v3376
          %v3693 = vpack.c.b16 %v3385, %v3381
          %v3694 = vpack.c.b16 %v3386, %v3382
          %v3695 = vpack.c.b16 %v3387, %v3383
          %v3696 = vpack.c.b16 %v3388, %v3384
          %v3697 = vpack.c.b16 %v3393, %v3389
          %v3698 = vpack.c.b16 %v3394, %v3390
          %v3699 = vpack.c.b16 %v3395, %v3391
          %v3700 = vpack.c.b16 %v3396, %v3392
          %v3701 = vpack.c.b16 %v3401, %v3397
          %v3702 = vpack.c.b16 %v3402, %v3398
          %v3703 = vpack.c.b16 %v3403, %v3399
          %v3704 = vpack.c.b16 %v3404, %v3400
          %v3705 = vpack.c.b16 %v3409, %v3405
          %v3706 = vpack.c.b16 %v3410, %v3406
          %v3707 = vpack.c.b16 %v3411, %v3407
          %v3708 = vpack.c.b16 %v3412, %v3408
          %v3709 = vpack.c.b16 %v3417, %v3413
          %v3710 = vpack.c.b16 %v3418, %v3414
          %v3711 = vpack.c.b16 %v3419, %v3415
          %v3712 = vpack.c.b16 %v3420, %v3416
          %v3713 = vpack.c.b16 %v3425, %v3421
          %v3714 = vpack.c.b16 %v3426, %v3422
          %v3715 = vpack.c.b16 %v3427, %v3423
          %v3716 = vpack.c.b16 %v3428, %v3424
          %v3717 = vpack.c.b16 %v3433, %v3429
          %v3718 = vpack.c.b16 %v3434, %v3430
          %v3719 = vpack.c.b16 %v3435, %v3431
          %v3720 = vpack.c.b16 %v3436, %v3432
          %v3721 = vpack.c.b16 %v3441, %v3437
          %v3722 = vpack.c.b16 %v3442, %v3438
          %v3723 = vpack.c.b16 %v3443, %v3439
          %v3724 = vpack.c.b16 %v3444, %v3440
          %v3725 = vpack.c.b16 %v3449, %v3445
          %v3726 = vpack.c.b16 %v3450, %v3446
          %v3727 = vpack.c.b16 %v3451, %v3447
          %v3728 = vpack.c.b16 %v3452, %v3448
          %v3729 = vpack.c.b16 %v3457, %v3453
          %v3730 = vpack.c.b16 %v3458, %v3454
          %v3731 = vpack.c.b16 %v3459, %v3455
          %v3732 = vpack.c.b16 %v3460, %v3456
          %v3733 = vpack.c.b16 %v3465, %v3461
          %v3734 = vpack.c.b16 %v3466, %v3462
          %v3735 = vpack.c.b16 %v3467, %v3463
          %v3736 = vpack.c.b16 %v3468, %v3464
          %v3737 = vpack.c.b16 %v3473, %v3469
          %v3738 = vpack.c.b16 %v3474, %v3470
          %v3739 = vpack.c.b16 %v3475, %v3471
          %v3740 = vpack.c.b16 %v3476, %v3472
          %v3741 = vpack.c.b16 %v3481, %v3477
          %v3742 = vpack.c.b16 %v3482, %v3478
          %v3743 = vpack.c.b16 %v3483, %v3479
          %v3744 = vpack.c.b16 %v3484, %v3480
          %v3745 = vpack.c.b16 %v3489, %v3485
          %v3746 = vpack.c.b16 %v3490, %v3486
          %v3747 = vpack.c.b16 %v3491, %v3487
          %v3748 = vpack.c.b16 %v3492, %v3488
          %v4006 = vperm.slane %v2724, 0
          %v4007 = vperm.slane %v2724, 1
          %v4008 = vperm.slane %v2724, 2
          %v4009 = vperm.slane %v2724, 3
          %4014 = vmatpush.bf16.msra.mxu0 %v3521
          %4015 = vmatpush.bf16.msra.mxu0 %v3517
          %4016 = vmatpush.bf16.msra.mxu0 %v3513
          %4017 = vmatpush.bf16.msra.mxu0 %v3509
          %4018 = vmatpush.bf16.msra.mxu0 %v3505
          %4019 = vmatpush.bf16.msra.mxu0 %v3501
          %4020 = vmatpush.bf16.msra.mxu0 %v3497
          %4021 = vmatpush.bf16.msra.mxu0 %v3493
          %4022 = vmatmul.bf16.gmra.mxu0 %v2460
          %v4023 = vpop.f32.mrf.mxu0
          %v4024 = vadd.f32 %v4006, %v4023
          %v4025 = vpop.f32.mrf.mxu0
          %4026 = vdwg.mxu0
          %4027 = vmatpush.bf16.msra.mxu0 %v3553
          %4028 = vmatpush.bf16.msra.mxu0 %v3549
          %4029 = vmatpush.bf16.msra.mxu0 %v3545
          %4030 = vmatpush.bf16.msra.mxu0 %v3541
          %4031 = vmatpush.bf16.msra.mxu0 %v3537
          %4032 = vmatpush.bf16.msra.mxu0 %v3533
          %4033 = vmatpush.bf16.msra.mxu0 %v3529
          %4034 = vmatpush.bf16.msra.mxu0 %v3525
          %4035 = vmatmul.bf16.gmra.mxu0 %v2461
          %v4036 = vpop.f32.mrf.mxu0
          %v4037 = vadd.f32 %v4024, %v4036
          %v4038 = vpop.f32.mrf.mxu0
          %4039 = vdwg.mxu0
          %4040 = vmatpush.bf16.msra.mxu0 %v3585
          %4041 = vmatpush.bf16.msra.mxu0 %v3581
          %4042 = vmatpush.bf16.msra.mxu0 %v3577
          %4043 = vmatpush.bf16.msra.mxu0 %v3573
          %4044 = vmatpush.bf16.msra.mxu0 %v3569
          %4045 = vmatpush.bf16.msra.mxu0 %v3565
          %4046 = vmatpush.bf16.msra.mxu0 %v3561
          %4047 = vmatpush.bf16.msra.mxu0 %v3557
          %4048 = vmatmul.bf16.gmra.mxu0 %v2462
          %v4049 = vpop.f32.mrf.mxu0
          %v4050 = vadd.f32 %v4037, %v4049
          %v4051 = vpop.f32.mrf.mxu0
          %4052 = vdwg.mxu0
          %4053 = vmatpush.bf16.msra.mxu0 %v3617
          %4054 = vmatpush.bf16.msra.mxu0 %v3613
          %4055 = vmatpush.bf16.msra.mxu0 %v3609
          %4056 = vmatpush.bf16.msra.mxu0 %v3605
          %4057 = vmatpush.bf16.msra.mxu0 %v3601
          %4058 = vmatpush.bf16.msra.mxu0 %v3597
          %4059 = vmatpush.bf16.msra.mxu0 %v3593
          %4060 = vmatpush.bf16.msra.mxu0 %v3589
          %4061 = vmatmul.bf16.gmra.mxu0 %v2463
          %v4062 = vpop.f32.mrf.mxu0
          %v4063 = vadd.f32 %v4050, %v4062
          %v4064 = vpop.f32.mrf.mxu0
          %4065 = vdwg.mxu0
          %4066 = vmatpush.bf16.msra.mxu0 %v3649
          %4067 = vmatpush.bf16.msra.mxu0 %v3645
          %4068 = vmatpush.bf16.msra.mxu0 %v3641
          %4069 = vmatpush.bf16.msra.mxu0 %v3637
          %4070 = vmatpush.bf16.msra.mxu0 %v3633
          %4071 = vmatpush.bf16.msra.mxu0 %v3629
          %4072 = vmatpush.bf16.msra.mxu0 %v3625
          %4073 = vmatpush.bf16.msra.mxu0 %v3621
          %4074 = vmatmul.bf16.gmra.mxu0 %v2464
          %v4075 = vpop.f32.mrf.mxu0
          %v4076 = vadd.f32 %v4063, %v4075
          %v4077 = vpop.f32.mrf.mxu0
          %4078 = vdwg.mxu0
          %4079 = vmatpush.bf16.msra.mxu0 %v3681
          %4080 = vmatpush.bf16.msra.mxu0 %v3677
          %4081 = vmatpush.bf16.msra.mxu0 %v3673
          %4082 = vmatpush.bf16.msra.mxu0 %v3669
          %4083 = vmatpush.bf16.msra.mxu0 %v3665
          %4084 = vmatpush.bf16.msra.mxu0 %v3661
          %4085 = vmatpush.bf16.msra.mxu0 %v3657
          %4086 = vmatpush.bf16.msra.mxu0 %v3653
          %4087 = vmatmul.bf16.gmra.mxu0 %v2465
          %v4088 = vpop.f32.mrf.mxu0
          %v4089 = vadd.f32 %v4076, %v4088
          %v4090 = vpop.f32.mrf.mxu0
          %4091 = vdwg.mxu0
          %4092 = vmatpush.bf16.msra.mxu0 %v3713
          %4093 = vmatpush.bf16.msra.mxu0 %v3709
          %4094 = vmatpush.bf16.msra.mxu0 %v3705
          %4095 = vmatpush.bf16.msra.mxu0 %v3701
          %4096 = vmatpush.bf16.msra.mxu0 %v3697
          %4097 = vmatpush.bf16.msra.mxu0 %v3693
          %4098 = vmatpush.bf16.msra.mxu0 %v3689
          %4099 = vmatpush.bf16.msra.mxu0 %v3685
          %4100 = vmatmul.bf16.gmra.mxu0 %v2466
          %v4101 = vpop.f32.mrf.mxu0
          %v4102 = vadd.f32 %v4089, %v4101
          %v4103 = vpop.f32.mrf.mxu0
          %4104 = vdwg.mxu0
          %4105 = vmatpush.bf16.msra.mxu0 %v3745
          %4106 = vmatpush.bf16.msra.mxu0 %v3741
          %4107 = vmatpush.bf16.msra.mxu0 %v3737
          %4108 = vmatpush.bf16.msra.mxu0 %v3733
          %4109 = vmatpush.bf16.msra.mxu0 %v3729
          %4110 = vmatpush.bf16.msra.mxu0 %v3725
          %4111 = vmatpush.bf16.msra.mxu0 %v3721
          %4112 = vmatpush.bf16.msra.mxu0 %v3717
          %4113 = vmatmul.bf16.gmra.mxu0 %v2467
          %v4114 = vpop.f32.mrf.mxu0
          %v4115 = vadd.f32 %v4102, %v4114
          %v4116 = vpop.f32.mrf.mxu0
          %4117 = vdwg.mxu0
          %4118 = vmatpush.bf16.msra.mxu0 %v3522
          %4119 = vmatpush.bf16.msra.mxu0 %v3518
          %4120 = vmatpush.bf16.msra.mxu0 %v3514
          %4121 = vmatpush.bf16.msra.mxu0 %v3510
          %4122 = vmatpush.bf16.msra.mxu0 %v3506
          %4123 = vmatpush.bf16.msra.mxu0 %v3502
          %4124 = vmatpush.bf16.msra.mxu0 %v3498
          %4125 = vmatpush.bf16.msra.mxu0 %v3494
          %4126 = vmatmul.bf16.gmra.mxu0 %v2460
          %v4127 = vpop.f32.mrf.mxu0
          %v4128 = vadd.f32 %v4007, %v4127
          %v4129 = vpop.f32.mrf.mxu0
          %4130 = vdwg.mxu0
          %4131 = vmatpush.bf16.msra.mxu0 %v3554
          %4132 = vmatpush.bf16.msra.mxu0 %v3550
          %4133 = vmatpush.bf16.msra.mxu0 %v3546
          %4134 = vmatpush.bf16.msra.mxu0 %v3542
          %4135 = vmatpush.bf16.msra.mxu0 %v3538
          %4136 = vmatpush.bf16.msra.mxu0 %v3534
          %4137 = vmatpush.bf16.msra.mxu0 %v3530
          %4138 = vmatpush.bf16.msra.mxu0 %v3526
          %4139 = vmatmul.bf16.gmra.mxu0 %v2461
          %v4140 = vpop.f32.mrf.mxu0
          %v4141 = vadd.f32 %v4128, %v4140
          %v4142 = vpop.f32.mrf.mxu0
          %4143 = vdwg.mxu0
          %4144 = vmatpush.bf16.msra.mxu0 %v3586
          %4145 = vmatpush.bf16.msra.mxu0 %v3582
          %4146 = vmatpush.bf16.msra.mxu0 %v3578
          %4147 = vmatpush.bf16.msra.mxu0 %v3574
          %4148 = vmatpush.bf16.msra.mxu0 %v3570
          %4149 = vmatpush.bf16.msra.mxu0 %v3566
          %4150 = vmatpush.bf16.msra.mxu0 %v3562
          %4151 = vmatpush.bf16.msra.mxu0 %v3558
          %4152 = vmatmul.bf16.gmra.mxu0 %v2462
          %v4153 = vpop.f32.mrf.mxu0
          %v4154 = vadd.f32 %v4141, %v4153
          %v4155 = vpop.f32.mrf.mxu0
          %4156 = vdwg.mxu0
          %4157 = vmatpush.bf16.msra.mxu0 %v3618
          %4158 = vmatpush.bf16.msra.mxu0 %v3614
          %4159 = vmatpush.bf16.msra.mxu0 %v3610
          %4160 = vmatpush.bf16.msra.mxu0 %v3606
          %4161 = vmatpush.bf16.msra.mxu0 %v3602
          %4162 = vmatpush.bf16.msra.mxu0 %v3598
          %4163 = vmatpush.bf16.msra.mxu0 %v3594
          %4164 = vmatpush.bf16.msra.mxu0 %v3590
          %4165 = vmatmul.bf16.gmra.mxu0 %v2463
          %v4166 = vpop.f32.mrf.mxu0
          %v4167 = vadd.f32 %v4154, %v4166
          %v4168 = vpop.f32.mrf.mxu0
          %4169 = vdwg.mxu0
          %4170 = vmatpush.bf16.msra.mxu0 %v3650
          %4171 = vmatpush.bf16.msra.mxu0 %v3646
          %4172 = vmatpush.bf16.msra.mxu0 %v3642
          %4173 = vmatpush.bf16.msra.mxu0 %v3638
          %4174 = vmatpush.bf16.msra.mxu0 %v3634
          %4175 = vmatpush.bf16.msra.mxu0 %v3630
          %4176 = vmatpush.bf16.msra.mxu0 %v3626
          %4177 = vmatpush.bf16.msra.mxu0 %v3622
          %4178 = vmatmul.bf16.gmra.mxu0 %v2464
          %v4179 = vpop.f32.mrf.mxu0
          %v4180 = vadd.f32 %v4167, %v4179
          %v4181 = vpop.f32.mrf.mxu0
          %4182 = vdwg.mxu0
          %4183 = vmatpush.bf16.msra.mxu0 %v3682
          %4184 = vmatpush.bf16.msra.mxu0 %v3678
          %4185 = vmatpush.bf16.msra.mxu0 %v3674
          %4186 = vmatpush.bf16.msra.mxu0 %v3670
          %4187 = vmatpush.bf16.msra.mxu0 %v3666
          %4188 = vmatpush.bf16.msra.mxu0 %v3662
          %4189 = vmatpush.bf16.msra.mxu0 %v3658
          %4190 = vmatpush.bf16.msra.mxu0 %v3654
          %4191 = vmatmul.bf16.gmra.mxu0 %v2465
          %v4192 = vpop.f32.mrf.mxu0
          %v4193 = vadd.f32 %v4180, %v4192
          %v4194 = vpop.f32.mrf.mxu0
          %4195 = vdwg.mxu0
          %4196 = vmatpush.bf16.msra.mxu0 %v3714
          %4197 = vmatpush.bf16.msra.mxu0 %v3710
          %4198 = vmatpush.bf16.msra.mxu0 %v3706
          %4199 = vmatpush.bf16.msra.mxu0 %v3702
          %4200 = vmatpush.bf16.msra.mxu0 %v3698
          %4201 = vmatpush.bf16.msra.mxu0 %v3694
          %4202 = vmatpush.bf16.msra.mxu0 %v3690
          %4203 = vmatpush.bf16.msra.mxu0 %v3686
          %4204 = vmatmul.bf16.gmra.mxu0 %v2466
          %v4205 = vpop.f32.mrf.mxu0
          %v4206 = vadd.f32 %v4193, %v4205
          %v4207 = vpop.f32.mrf.mxu0
          %4208 = vdwg.mxu0
          %4209 = vmatpush.bf16.msra.mxu0 %v3746
          %4210 = vmatpush.bf16.msra.mxu0 %v3742
          %4211 = vmatpush.bf16.msra.mxu0 %v3738
          %4212 = vmatpush.bf16.msra.mxu0 %v3734
          %4213 = vmatpush.bf16.msra.mxu0 %v3730
          %4214 = vmatpush.bf16.msra.mxu0 %v3726
          %4215 = vmatpush.bf16.msra.mxu0 %v3722
          %4216 = vmatpush.bf16.msra.mxu0 %v3718
          %4217 = vmatmul.bf16.gmra.mxu0 %v2467
          %v4218 = vpop.f32.mrf.mxu0
          %v4219 = vadd.f32 %v4206, %v4218
          %v4220 = vpop.f32.mrf.mxu0
          %4221 = vdwg.mxu0
          %4222 = vmatpush.bf16.msra.mxu0 %v3523
          %4223 = vmatpush.bf16.msra.mxu0 %v3519
          %4224 = vmatpush.bf16.msra.mxu0 %v3515
          %4225 = vmatpush.bf16.msra.mxu0 %v3511
          %4226 = vmatpush.bf16.msra.mxu0 %v3507
          %4227 = vmatpush.bf16.msra.mxu0 %v3503
          %4228 = vmatpush.bf16.msra.mxu0 %v3499
          %4229 = vmatpush.bf16.msra.mxu0 %v3495
          %4230 = vmatmul.bf16.gmra.mxu0 %v2460
          %v4231 = vpop.f32.mrf.mxu0
          %v4232 = vadd.f32 %v4008, %v4231
          %v4233 = vpop.f32.mrf.mxu0
          %4234 = vdwg.mxu0
          %4235 = vmatpush.bf16.msra.mxu0 %v3555
          %4236 = vmatpush.bf16.msra.mxu0 %v3551
          %4237 = vmatpush.bf16.msra.mxu0 %v3547
          %4238 = vmatpush.bf16.msra.mxu0 %v3543
          %4239 = vmatpush.bf16.msra.mxu0 %v3539
          %4240 = vmatpush.bf16.msra.mxu0 %v3535
          %4241 = vmatpush.bf16.msra.mxu0 %v3531
          %4242 = vmatpush.bf16.msra.mxu0 %v3527
          %4243 = vmatmul.bf16.gmra.mxu0 %v2461
          %v4244 = vpop.f32.mrf.mxu0
          %v4245 = vadd.f32 %v4232, %v4244
          %v4246 = vpop.f32.mrf.mxu0
          %4247 = vdwg.mxu0
          %4248 = vmatpush.bf16.msra.mxu0 %v3587
          %4249 = vmatpush.bf16.msra.mxu0 %v3583
          %4250 = vmatpush.bf16.msra.mxu0 %v3579
          %4251 = vmatpush.bf16.msra.mxu0 %v3575
          %4252 = vmatpush.bf16.msra.mxu0 %v3571
          %4253 = vmatpush.bf16.msra.mxu0 %v3567
          %4254 = vmatpush.bf16.msra.mxu0 %v3563
          %4255 = vmatpush.bf16.msra.mxu0 %v3559
          %4256 = vmatmul.bf16.gmra.mxu0 %v2462
          %v4257 = vpop.f32.mrf.mxu0
          %v4258 = vadd.f32 %v4245, %v4257
          %v4259 = vpop.f32.mrf.mxu0
          %4260 = vdwg.mxu0
          %4261 = vmatpush.bf16.msra.mxu0 %v3619
          %4262 = vmatpush.bf16.msra.mxu0 %v3615
          %4263 = vmatpush.bf16.msra.mxu0 %v3611
          %4264 = vmatpush.bf16.msra.mxu0 %v3607
          %4265 = vmatpush.bf16.msra.mxu0 %v3603
          %4266 = vmatpush.bf16.msra.mxu0 %v3599
          %4267 = vmatpush.bf16.msra.mxu0 %v3595
          %4268 = vmatpush.bf16.msra.mxu0 %v3591
          %4269 = vmatmul.bf16.gmra.mxu0 %v2463
          %v4270 = vpop.f32.mrf.mxu0
          %v4271 = vadd.f32 %v4258, %v4270
          %v4272 = vpop.f32.mrf.mxu0
          %4273 = vdwg.mxu0
          %4274 = vmatpush.bf16.msra.mxu0 %v3651
          %4275 = vmatpush.bf16.msra.mxu0 %v3647
          %4276 = vmatpush.bf16.msra.mxu0 %v3643
          %4277 = vmatpush.bf16.msra.mxu0 %v3639
          %4278 = vmatpush.bf16.msra.mxu0 %v3635
          %4279 = vmatpush.bf16.msra.mxu0 %v3631
          %4280 = vmatpush.bf16.msra.mxu0 %v3627
          %4281 = vmatpush.bf16.msra.mxu0 %v3623
          %4282 = vmatmul.bf16.gmra.mxu0 %v2464
          %v4283 = vpop.f32.mrf.mxu0
          %v4284 = vadd.f32 %v4271, %v4283
          %v4285 = vpop.f32.mrf.mxu0
          %4286 = vdwg.mxu0
          %4287 = vmatpush.bf16.msra.mxu0 %v3683
          %4288 = vmatpush.bf16.msra.mxu0 %v3679
          %4289 = vmatpush.bf16.msra.mxu0 %v3675
          %4290 = vmatpush.bf16.msra.mxu0 %v3671
          %4291 = vmatpush.bf16.msra.mxu0 %v3667
          %4292 = vmatpush.bf16.msra.mxu0 %v3663
          %4293 = vmatpush.bf16.msra.mxu0 %v3659
          %4294 = vmatpush.bf16.msra.mxu0 %v3655
          %4295 = vmatmul.bf16.gmra.mxu0 %v2465
          %v4296 = vpop.f32.mrf.mxu0
          %v4297 = vadd.f32 %v4284, %v4296
          %v4298 = vpop.f32.mrf.mxu0
          %4299 = vdwg.mxu0
          %4300 = vmatpush.bf16.msra.mxu0 %v3715
          %4301 = vmatpush.bf16.msra.mxu0 %v3711
          %4302 = vmatpush.bf16.msra.mxu0 %v3707
          %4303 = vmatpush.bf16.msra.mxu0 %v3703
          %4304 = vmatpush.bf16.msra.mxu0 %v3699
          %4305 = vmatpush.bf16.msra.mxu0 %v3695
          %4306 = vmatpush.bf16.msra.mxu0 %v3691
          %4307 = vmatpush.bf16.msra.mxu0 %v3687
          %4308 = vmatmul.bf16.gmra.mxu0 %v2466
          %v4309 = vpop.f32.mrf.mxu0
          %v4310 = vadd.f32 %v4297, %v4309
          %v4311 = vpop.f32.mrf.mxu0
          %4312 = vdwg.mxu0
          %4313 = vmatpush.bf16.msra.mxu0 %v3747
          %4314 = vmatpush.bf16.msra.mxu0 %v3743
          %4315 = vmatpush.bf16.msra.mxu0 %v3739
          %4316 = vmatpush.bf16.msra.mxu0 %v3735
          %4317 = vmatpush.bf16.msra.mxu0 %v3731
          %4318 = vmatpush.bf16.msra.mxu0 %v3727
          %4319 = vmatpush.bf16.msra.mxu0 %v3723
          %4320 = vmatpush.bf16.msra.mxu0 %v3719
          %4321 = vmatmul.bf16.gmra.mxu0 %v2467
          %v4322 = vpop.f32.mrf.mxu0
          %v4323 = vadd.f32 %v4310, %v4322
          %v4324 = vpop.f32.mrf.mxu0
          %4325 = vdwg.mxu0
          %4326 = vmatpush.bf16.msra.mxu0 %v3524
          %4327 = vmatpush.bf16.msra.mxu0 %v3520
          %4328 = vmatpush.bf16.msra.mxu0 %v3516
          %4329 = vmatpush.bf16.msra.mxu0 %v3512
          %4330 = vmatpush.bf16.msra.mxu0 %v3508
          %4331 = vmatpush.bf16.msra.mxu0 %v3504
          %4332 = vmatpush.bf16.msra.mxu0 %v3500
          %4333 = vmatpush.bf16.msra.mxu0 %v3496
          %4334 = vmatmul.bf16.gmra.mxu0 %v2460
          %v4335 = vpop.f32.mrf.mxu0
          %v4336 = vadd.f32 %v4009, %v4335
          %v4337 = vpop.f32.mrf.mxu0
          %4338 = vdwg.mxu0
          %4339 = vmatpush.bf16.msra.mxu0 %v3556
          %4340 = vmatpush.bf16.msra.mxu0 %v3552
          %4341 = vmatpush.bf16.msra.mxu0 %v3548
          %4342 = vmatpush.bf16.msra.mxu0 %v3544
          %4343 = vmatpush.bf16.msra.mxu0 %v3540
          %4344 = vmatpush.bf16.msra.mxu0 %v3536
          %4345 = vmatpush.bf16.msra.mxu0 %v3532
          %4346 = vmatpush.bf16.msra.mxu0 %v3528
          %4347 = vmatmul.bf16.gmra.mxu0 %v2461
          %v4348 = vpop.f32.mrf.mxu0
          %v4349 = vadd.f32 %v4336, %v4348
          %v4350 = vpop.f32.mrf.mxu0
          %4351 = vdwg.mxu0
          %4352 = vmatpush.bf16.msra.mxu0 %v3588
          %4353 = vmatpush.bf16.msra.mxu0 %v3584
          %4354 = vmatpush.bf16.msra.mxu0 %v3580
          %4355 = vmatpush.bf16.msra.mxu0 %v3576
          %4356 = vmatpush.bf16.msra.mxu0 %v3572
          %4357 = vmatpush.bf16.msra.mxu0 %v3568
          %4358 = vmatpush.bf16.msra.mxu0 %v3564
          %4359 = vmatpush.bf16.msra.mxu0 %v3560
          %4360 = vmatmul.bf16.gmra.mxu0 %v2462
          %v4361 = vpop.f32.mrf.mxu0
          %v4362 = vadd.f32 %v4349, %v4361
          %v4363 = vpop.f32.mrf.mxu0
          %4364 = vdwg.mxu0
          %4365 = vmatpush.bf16.msra.mxu0 %v3620
          %4366 = vmatpush.bf16.msra.mxu0 %v3616
          %4367 = vmatpush.bf16.msra.mxu0 %v3612
          %4368 = vmatpush.bf16.msra.mxu0 %v3608
          %4369 = vmatpush.bf16.msra.mxu0 %v3604
          %4370 = vmatpush.bf16.msra.mxu0 %v3600
          %4371 = vmatpush.bf16.msra.mxu0 %v3596
          %4372 = vmatpush.bf16.msra.mxu0 %v3592
          %4373 = vmatmul.bf16.gmra.mxu0 %v2463
          %v4374 = vpop.f32.mrf.mxu0
          %v4375 = vadd.f32 %v4362, %v4374
          %v4376 = vpop.f32.mrf.mxu0
          %4377 = vdwg.mxu0
          %4378 = vmatpush.bf16.msra.mxu0 %v3652
          %4379 = vmatpush.bf16.msra.mxu0 %v3648
          %4380 = vmatpush.bf16.msra.mxu0 %v3644
          %4381 = vmatpush.bf16.msra.mxu0 %v3640
          %4382 = vmatpush.bf16.msra.mxu0 %v3636
          %4383 = vmatpush.bf16.msra.mxu0 %v3632
          %4384 = vmatpush.bf16.msra.mxu0 %v3628
          %4385 = vmatpush.bf16.msra.mxu0 %v3624
          %4386 = vmatmul.bf16.gmra.mxu0 %v2464
          %v4387 = vpop.f32.mrf.mxu0
          %v4388 = vadd.f32 %v4375, %v4387
          %v4389 = vpop.f32.mrf.mxu0
          %4390 = vdwg.mxu0
          %4391 = vmatpush.bf16.msra.mxu0 %v3684
          %4392 = vmatpush.bf16.msra.mxu0 %v3680
          %4393 = vmatpush.bf16.msra.mxu0 %v3676
          %4394 = vmatpush.bf16.msra.mxu0 %v3672
          %4395 = vmatpush.bf16.msra.mxu0 %v3668
          %4396 = vmatpush.bf16.msra.mxu0 %v3664
          %4397 = vmatpush.bf16.msra.mxu0 %v3660
          %4398 = vmatpush.bf16.msra.mxu0 %v3656
          %4399 = vmatmul.bf16.gmra.mxu0 %v2465
          %v4400 = vpop.f32.mrf.mxu0
          %v4401 = vadd.f32 %v4388, %v4400
          %v4402 = vpop.f32.mrf.mxu0
          %4403 = vdwg.mxu0
          %4404 = vmatpush.bf16.msra.mxu0 %v3716
          %4405 = vmatpush.bf16.msra.mxu0 %v3712
          %4406 = vmatpush.bf16.msra.mxu0 %v3708
          %4407 = vmatpush.bf16.msra.mxu0 %v3704
          %4408 = vmatpush.bf16.msra.mxu0 %v3700
          %4409 = vmatpush.bf16.msra.mxu0 %v3696
          %4410 = vmatpush.bf16.msra.mxu0 %v3692
          %4411 = vmatpush.bf16.msra.mxu0 %v3688
          %4412 = vmatmul.bf16.gmra.mxu0 %v2466
          %v4413 = vpop.f32.mrf.mxu0
          %v4414 = vadd.f32 %v4401, %v4413
          %v4415 = vpop.f32.mrf.mxu0
          %4416 = vdwg.mxu0
          %4417 = vmatpush.bf16.msra.mxu0 %v3748
          %4418 = vmatpush.bf16.msra.mxu0 %v3744
          %4419 = vmatpush.bf16.msra.mxu0 %v3740
          %4420 = vmatpush.bf16.msra.mxu0 %v3736
          %4421 = vmatpush.bf16.msra.mxu0 %v3732
          %4422 = vmatpush.bf16.msra.mxu0 %v3728
          %4423 = vmatpush.bf16.msra.mxu0 %v3724
          %4424 = vmatpush.bf16.msra.mxu0 %v3720
          %4425 = vmatmul.bf16.gmra.mxu0 %v2467
          %v4426 = vpop.f32.mrf.mxu0
          %v4427 = vadd.f32 %v4414, %v4426
          %v4428 = vpop.f32.mrf.mxu0
          %4429 = vdwg.mxu0
          %v4430 = vmax.f32 %v4115, 0.0
          %v4431 = vmax.f32 %v4219, 0.0
          %v4432 = vmax.f32 %v4323, 0.0
          %v4433 = vmax.f32 %v4427, 0.0
          %v4434 = vpack.c.bf16 %v4430, %v4430
          %v4435 = vpack.c.bf16 %v4431, %v4431
          %v4436 = vpack.c.bf16 %v4432, %v4432
          %v4437 = vpack.c.bf16 %v4433, %v4433
          %v4438 = vld [vmem:[%s9] sm:$0xf]
          %v4439 = vld [vmem:[%s9 + $0x4] sm:$0xf]
          %v4440 = vld [vmem:[%s9 + $0x8] sm:$0xf]
          %v4441 = vld [vmem:[%s9 + $0xc] sm:$0xf]
          %v4442 = vld [vmem:[%s9 + $0x10] sm:$0xf]
          %v4443 = vld [vmem:[%s9 + $0x14] sm:$0xf]
          %v4444 = vld [vmem:[%s9 + $0x18] sm:$0xf]
          %v4445 = vld [vmem:[%s9 + $0x1c] sm:$0xf]
          %v4446 = vld [vmem:[%s9 + $0x20] sm:$0xf]
          %v4447 = vld [vmem:[%s9 + $0x24] sm:$0xf]
          %v4448 = vld [vmem:[%s9 + $0x28] sm:$0xf]
          %v4449 = vld [vmem:[%s9 + $0x2c] sm:$0xf]
          %v4450 = vld [vmem:[%s9 + $0x30] sm:$0xf]
          %v4451 = vld [vmem:[%s9 + $0x34] sm:$0xf]
          %v4452 = vld [vmem:[%s9 + $0x38] sm:$0xf]
          %v4453 = vld [vmem:[%s9 + $0x3c] sm:$0xf]
          %v4454 = vld [vmem:[%s9 + $0x40] sm:$0xf]
          %v4455 = vld [vmem:[%s9 + $0x44] sm:$0xf]
          %v4456 = vld [vmem:[%s9 + $0x48] sm:$0xf]
          %v4457 = vld [vmem:[%s9 + $0x4c] sm:$0xf]
          %v4458 = vld [vmem:[%s9 + $0x50] sm:$0xf]
          %v4459 = vld [vmem:[%s9 + $0x54] sm:$0xf]
          %v4460 = vld [vmem:[%s9 + $0x58] sm:$0xf]
          %v4461 = vld [vmem:[%s9 + $0x5c] sm:$0xf]
          %v4462 = vld [vmem:[%s9 + $0x60] sm:$0xf]
          %v4463 = vld [vmem:[%s9 + $0x64] sm:$0xf]
          %v4464 = vld [vmem:[%s9 + $0x68] sm:$0xf]
          %v4465 = vld [vmem:[%s9 + $0x6c] sm:$0xf]
          %v4466 = vld [vmem:[%s9 + $0x70] sm:$0xf]
          %v4467 = vld [vmem:[%s9 + $0x74] sm:$0xf]
          %v4468 = vld [vmem:[%s9 + $0x78] sm:$0xf]
          %v4469 = vld [vmem:[%s9 + $0x7c] sm:$0xf]
          %v4470 = vld [vmem:[%s9 + $0x80] sm:$0xf]
          %v4471 = vld [vmem:[%s9 + $0x84] sm:$0xf]
          %v4472 = vld [vmem:[%s9 + $0x88] sm:$0xf]
          %v4473 = vld [vmem:[%s9 + $0x8c] sm:$0xf]
          %v4474 = vld [vmem:[%s9 + $0x90] sm:$0xf]
          %v4475 = vld [vmem:[%s9 + $0x94] sm:$0xf]
          %v4476 = vld [vmem:[%s9 + $0x98] sm:$0xf]
          %v4477 = vld [vmem:[%s9 + $0x9c] sm:$0xf]
          %v4478 = vld [vmem:[%s9 + $0xa0] sm:$0xf]
          %v4479 = vld [vmem:[%s9 + $0xa4] sm:$0xf]
          %v4480 = vld [vmem:[%s9 + $0xa8] sm:$0xf]
          %v4481 = vld [vmem:[%s9 + $0xac] sm:$0xf]
          %v4482 = vld [vmem:[%s9 + $0xb0] sm:$0xf]
          %v4483 = vld [vmem:[%s9 + $0xb4] sm:$0xf]
          %v4484 = vld [vmem:[%s9 + $0xb8] sm:$0xf]
          %v4485 = vld [vmem:[%s9 + $0xbc] sm:$0xf]
          %v4486 = vld [vmem:[%s9 + $0xc0] sm:$0xf]
          %v4487 = vld [vmem:[%s9 + $0xc4] sm:$0xf]
          %v4488 = vld [vmem:[%s9 + $0xc8] sm:$0xf]
          %v4489 = vld [vmem:[%s9 + $0xcc] sm:$0xf]
          %v4490 = vld [vmem:[%s9 + $0xd0] sm:$0xf]
          %v4491 = vld [vmem:[%s9 + $0xd4] sm:$0xf]
          %v4492 = vld [vmem:[%s9 + $0xd8] sm:$0xf]
          %v4493 = vld [vmem:[%s9 + $0xdc] sm:$0xf]
          %v4494 = vld [vmem:[%s9 + $0xe0] sm:$0xf]
          %v4495 = vld [vmem:[%s9 + $0xe4] sm:$0xf]
          %v4496 = vld [vmem:[%s9 + $0xe8] sm:$0xf]
          %v4497 = vld [vmem:[%s9 + $0xec] sm:$0xf]
          %v4498 = vld [vmem:[%s9 + $0xf0] sm:$0xf]
          %v4499 = vld [vmem:[%s9 + $0xf4] sm:$0xf]
          %v4500 = vld [vmem:[%s9 + $0xf8] sm:$0xf]
          %v4501 = vld [vmem:[%s9 + $0xfc] sm:$0xf]
          %v4502 = vld [vmem:[%s10] sm:$0x1]
          %v4567 = vunpack.c.l.b16 %v4438
          %v4568 = vunpack.c.l.b16 %v4439
          %v4569 = vunpack.c.l.b16 %v4440
          %v4570 = vunpack.c.l.b16 %v4441
          %v4571 = vunpack.c.l.b16 %v4442
          %v4572 = vunpack.c.l.b16 %v4443
          %v4573 = vunpack.c.l.b16 %v4444
          %v4574 = vunpack.c.l.b16 %v4445
          %v4575 = vunpack.c.l.b16 %v4446
          %v4576 = vunpack.c.l.b16 %v4447
          %v4577 = vunpack.c.l.b16 %v4448
          %v4578 = vunpack.c.l.b16 %v4449
          %v4579 = vunpack.c.l.b16 %v4450
          %v4580 = vunpack.c.l.b16 %v4451
          %v4581 = vunpack.c.l.b16 %v4452
          %v4582 = vunpack.c.l.b16 %v4453
          %v4583 = vunpack.c.l.b16 %v4454
          %v4584 = vunpack.c.l.b16 %v4455
          %v4585 = vunpack.c.l.b16 %v4456
          %v4586 = vunpack.c.l.b16 %v4457
          %v4587 = vunpack.c.l.b16 %v4458
          %v4588 = vunpack.c.l.b16 %v4459
          %v4589 = vunpack.c.l.b16 %v4460
          %v4590 = vunpack.c.l.b16 %v4461
          %v4591 = vunpack.c.l.b16 %v4462
          %v4592 = vunpack.c.l.b16 %v4463
          %v4593 = vunpack.c.l.b16 %v4464
          %v4594 = vunpack.c.l.b16 %v4465
          %v4595 = vunpack.c.l.b16 %v4466
          %v4596 = vunpack.c.l.b16 %v4467
          %v4597 = vunpack.c.l.b16 %v4468
          %v4598 = vunpack.c.l.b16 %v4469
          %v4599 = vunpack.c.l.b16 %v4470
          %v4600 = vunpack.c.l.b16 %v4471
          %v4601 = vunpack.c.l.b16 %v4472
          %v4602 = vunpack.c.l.b16 %v4473
          %v4603 = vunpack.c.l.b16 %v4474
          %v4604 = vunpack.c.l.b16 %v4475
          %v4605 = vunpack.c.l.b16 %v4476
          %v4606 = vunpack.c.l.b16 %v4477
          %v4607 = vunpack.c.l.b16 %v4478
          %v4608 = vunpack.c.l.b16 %v4479
          %v4609 = vunpack.c.l.b16 %v4480
          %v4610 = vunpack.c.l.b16 %v4481
          %v4611 = vunpack.c.l.b16 %v4482
          %v4612 = vunpack.c.l.b16 %v4483
          %v4613 = vunpack.c.l.b16 %v4484
          %v4614 = vunpack.c.l.b16 %v4485
          %v4615 = vunpack.c.l.b16 %v4486
          %v4616 = vunpack.c.l.b16 %v4487
          %v4617 = vunpack.c.l.b16 %v4488
          %v4618 = vunpack.c.l.b16 %v4489
          %v4619 = vunpack.c.l.b16 %v4490
          %v4620 = vunpack.c.l.b16 %v4491
          %v4621 = vunpack.c.l.b16 %v4492
          %v4622 = vunpack.c.l.b16 %v4493
          %v4623 = vunpack.c.l.b16 %v4494
          %v4624 = vunpack.c.l.b16 %v4495
          %v4625 = vunpack.c.l.b16 %v4496
          %v4626 = vunpack.c.l.b16 %v4497
          %v4627 = vunpack.c.l.b16 %v4498
          %v4628 = vunpack.c.l.b16 %v4499
          %v4629 = vunpack.c.l.b16 %v4500
          %v4630 = vunpack.c.l.b16 %v4501
          %v4631 = vpack.c.b16 %v4568, %v4567
          %v4632 = vpack.c.b16 %v4570, %v4569
          %v4633 = vpack.c.b16 %v4572, %v4571
          %v4634 = vpack.c.b16 %v4574, %v4573
          %v4635 = vpack.c.b16 %v4576, %v4575
          %v4636 = vpack.c.b16 %v4578, %v4577
          %v4637 = vpack.c.b16 %v4580, %v4579
          %v4638 = vpack.c.b16 %v4582, %v4581
          %v4639 = vpack.c.b16 %v4584, %v4583
          %v4640 = vpack.c.b16 %v4586, %v4585
          %v4641 = vpack.c.b16 %v4588, %v4587
          %v4642 = vpack.c.b16 %v4590, %v4589
          %v4643 = vpack.c.b16 %v4592, %v4591
          %v4644 = vpack.c.b16 %v4594, %v4593
          %v4645 = vpack.c.b16 %v4596, %v4595
          %v4646 = vpack.c.b16 %v4598, %v4597
          %v4647 = vpack.c.b16 %v4600, %v4599
          %v4648 = vpack.c.b16 %v4602, %v4601
          %v4649 = vpack.c.b16 %v4604, %v4603
          %v4650 = vpack.c.b16 %v4606, %v4605
          %v4651 = vpack.c.b16 %v4608, %v4607
          %v4652 = vpack.c.b16 %v4610, %v4609
          %v4653 = vpack.c.b16 %v4612, %v4611
          %v4654 = vpack.c.b16 %v4614, %v4613
          %v4655 = vpack.c.b16 %v4616, %v4615
          %v4656 = vpack.c.b16 %v4618, %v4617
          %v4657 = vpack.c.b16 %v4620, %v4619
          %v4658 = vpack.c.b16 %v4622, %v4621
          %v4659 = vpack.c.b16 %v4624, %v4623
          %v4660 = vpack.c.b16 %v4626, %v4625
          %v4661 = vpack.c.b16 %v4628, %v4627
          %v4662 = vpack.c.b16 %v4630, %v4629
          %4695 = vmatpush.bf16.msra.mxu0 %v4638
          %4696 = vmatpush.bf16.msra.mxu0 %v4637
          %4697 = vmatpush.bf16.msra.mxu0 %v4636
          %4698 = vmatpush.bf16.msra.mxu0 %v4635
          %4699 = vmatpush.bf16.msra.mxu0 %v4634
          %4700 = vmatpush.bf16.msra.mxu0 %v4633
          %4701 = vmatpush.bf16.msra.mxu0 %v4632
          %4702 = vmatpush.bf16.msra.mxu0 %v4631
          %4703 = vmatmul.bf16.gmra.mxu0 %v4434
          %v4704 = vpop.f32.mrf.mxu0
          %v4705 = vadd.f32 %v4502, %v4704
          %v4706 = vpop.f32.mrf.mxu0
          %4707 = vdwg.mxu0
          %4708 = vmatpush.bf16.msra.mxu0 %v4646
          %4709 = vmatpush.bf16.msra.mxu0 %v4645
          %4710 = vmatpush.bf16.msra.mxu0 %v4644
          %4711 = vmatpush.bf16.msra.mxu0 %v4643
          %4712 = vmatpush.bf16.msra.mxu0 %v4642
          %4713 = vmatpush.bf16.msra.mxu0 %v4641
          %4714 = vmatpush.bf16.msra.mxu0 %v4640
          %4715 = vmatpush.bf16.msra.mxu0 %v4639
          %4716 = vmatmul.bf16.gmra.mxu0 %v4435
          %v4717 = vpop.f32.mrf.mxu0
          %v4718 = vadd.f32 %v4705, %v4717
          %v4719 = vpop.f32.mrf.mxu0
          %4720 = vdwg.mxu0
          %4721 = vmatpush.bf16.msra.mxu0 %v4654
          %4722 = vmatpush.bf16.msra.mxu0 %v4653
          %4723 = vmatpush.bf16.msra.mxu0 %v4652
          %4724 = vmatpush.bf16.msra.mxu0 %v4651
          %4725 = vmatpush.bf16.msra.mxu0 %v4650
          %4726 = vmatpush.bf16.msra.mxu0 %v4649
          %4727 = vmatpush.bf16.msra.mxu0 %v4648
          %4728 = vmatpush.bf16.msra.mxu0 %v4647
          %4729 = vmatmul.bf16.gmra.mxu0 %v4436
          %v4730 = vpop.f32.mrf.mxu0
          %v4731 = vadd.f32 %v4718, %v4730
          %v4732 = vpop.f32.mrf.mxu0
          %4733 = vdwg.mxu0
          %4734 = vmatpush.bf16.msra.mxu0 %v4662
          %4735 = vmatpush.bf16.msra.mxu0 %v4661
          %4736 = vmatpush.bf16.msra.mxu0 %v4660
          %4737 = vmatpush.bf16.msra.mxu0 %v4659
          %4738 = vmatpush.bf16.msra.mxu0 %v4658
          %4739 = vmatpush.bf16.msra.mxu0 %v4657
          %4740 = vmatpush.bf16.msra.mxu0 %v4656
          %4741 = vmatpush.bf16.msra.mxu0 %v4655
          %4742 = vmatmul.bf16.gmra.mxu0 %v4437
          %v4743 = vpop.f32.mrf.mxu0
          %v4744 = vadd.f32 %v4731, %v4743
          %v4745 = vpop.f32.mrf.mxu0
          %4746 = vdwg.mxu0
          %v4747 = vmul.f32 %v4744, %v4744
          %vm4748 = vcmask 1040384
          %v4749 = vsel %vm4748, %v4747, 0.0
          %4750 = vadd.xlane.f32.xlu0 %v4749
          %v4751 = vpop.xlane.xlu0 %4750
          %v4752 = vrsqrt.pop %v4751
          %v4753 = vmul.f32 %v4752, %v4751
          %v4754 = vmul.f32 %v4753, %v4752
          %v4755 = vmul.f32 0.5, %v4754
          %v4756 = vsub.f32 1.5, %v4755
          %v4757 = vmul.f32 %v4752, %v4756
          %v4758 = vmul.f32 %v4751, %v4757
          %vm4759 = vcmp.eq.f32.partialorder %v4751, inf
          %v4760 = vsel %vm4759, %v4751, %v4758
          %vm4761 = vcmp.eq.f32.partialorder %v4751, 0.0
          %v4762 = vand.u32 %v4751, 2147483648
          %v4763 = vsel %vm4761, %v4762, %v4760
          %v4764 = vmax.f32 %v4763, 1e-12
          %v4765 = vrcp.pop %v4764
          %v4766 = vmul.f32 %v4764, %v4765
          %v4767 = vsub.f32 1.0, %v4766
          %v4768 = vmul.f32 %v4765, %v4767
          %v4769 = vadd.f32 %v4765, %v4768
          %vm4770 = vweird.f32 %v4764
          %vm4771 = vweird.f32 %v4765
          %vm4772 = vmor %vm4770, %vm4771
          %v4773 = vsel %vm4772, %v4765, %v4769
          %v4774 = vand.u32 2147483647, %v4764
          %vm4775 = vcmp.eq.f32.partialorder %v4774, 8.507059e+37
          %v4776 = vand.u32 %v4764, 2147483648
          %v4777 = vor.u32 1.1754944e-38, %v4776
          %v4778 = vsel %vm4775, %v4777, %v4773
          %v4779 = vmul.f32 %v4744, %v4778
          %4780 = vst [vmem:[%s444] sm:$0x1] %v4779
        $region80: #{forward.4} parent=63 // pred_fallthru
          _
        %p4781 = scmp.lt.s32.totalorder %s27, 3
        %s4782 = scalar_select %p4781, %s27, 3
        %s4783 = scalar_lea.vmem %s11, %s4782
        // Predicated region
        $region81: #{forward.4} parent=63 // pred_check
          %p4784 = pneg %p296
        $region82: #{forward.4} parent=63 // pred_check_branch
          %4786 = sbr.rel (%p4784) target = $region84
        $region83: #{forward.4} parent=63 // pred_region
          _
        $region84: #{forward.4} parent=63 // pred_fallthru
          _
      $region64: #{forward.4} parent=5 // pred_fallthru
        _
      %p4787 = scmp.le.s32.totalorder 2, %s18
      // Predicated region
      $region85: #{forward.4} parent=5 // pred_check
        %p4788 = pneg %p4787
      $region86: #{forward.4} parent=5 // pred_check_branch
        %4790 = sbr.rel (%p4788) target = $region88
      $region87: #{forward.4} parent=5 // pred_region
        %s4791 = ssub.s32 %s18, 2
        // Predicated region
        $region89: #{forward.4} parent=87 // pred_check
          %p4792 = pneg %p302
        $region90: #{forward.4} parent=87 // pred_check_branch
          %4794 = sbr.rel (%p4792) target = $region92
        $region91: #{forward.4} parent=87 // pred_region
          %p4795 = scmp.lt.s32.totalorder %s29, 3
          %s4796 = scalar_select %p4795, %s29, 3
          %s4797 = scalar_lea.vmem %s11, %s4796
        $region92: #{forward.4} parent=87 // pred_fallthru
          _
      $region88: #{forward.4} parent=5 // pred_fallthru
        _
    $region6: #{forward.4} parent=1 // loop_footer
      %s22 = sadd.s32 1, %s18
    $region7: #{forward.4} parent=1 // loop_footer_branch
      %17 = sbr.rel target = $region3
    $region8: #{forward.4} parent=1 // loop_exit
      _
    %4798 = vsyncpa [#allocation4], 1
    %s4799 = scalar_lea.sflag [#allocation4], 1
    %4800 = vsyncpa %s4799, 1

// kernel: forward.3
$region0: #{forward.3}
  #allocation0 [shape = 'u32[]', space=smem, size = 0x4, offset = 0x4, fixed_abs, tag = 'smem constant byte address 0x4 - core index']
  #allocation1 [shape = 'u32[72,128]{1,0:T(1,128)}', space=vmem, size = 0x9000, scoped, tag = 'internal scratch']
  #allocation2 [shape = 'f32[1,1024]{1,0:T(1,128)}', space=vmem, size = 0x1000, scoped, tag = 'scratch operand']
  %s0 = inlined_call_operand.vmem [shape: bf16[4,256,8], index: 0, kind: input, shape index: {}]
  %s1 = inlined_call_operand.vmem [shape: bf16[1,8,64], index: 1, kind: input, shape index: {}]
  %s2 = inlined_call_operand.vmem [shape: f32[1,64], index: 2, kind: input, shape index: {}]
  %s3 = inlined_call_operand.vmem [shape: bf16[64,128], index: 3, kind: input, shape index: {}]
  %s4 = inlined_call_operand.hbm [shape: f32[1,128], index: 4, kind: input, shape index: {}]
  %s5 = inlined_call_operand.vmem [shape: bf16[128,1024], index: 5, kind: input, shape index: {}]
  %s6 = inlined_call_operand.vmem [shape: f32[1,1024], index: 6, kind: input, shape index: {}]
  %s7 = inlined_call_operand.hbm [shape: bf16[1024,512], index: 7, kind: input, shape index: {}]
  %s8 = inlined_call_operand.hbm [shape: f32[1,512], index: 8, kind: input, shape index: {}]
  %s9 = inlined_call_operand.vmem [shape: bf16[512,256], index: 9, kind: input, shape index: {}]
  %s10 = inlined_call_operand.vmem [shape: f32[1,256], index: 10, kind: input, shape index: {}]
  %s11 = inlined_call_operand.vmem [shape: f32[256,9], index: 11, kind: input, shape index: {}]
  %s12 = inlined_call_operand.hbm [shape: f32[1,9], index: 12, kind: input, shape index: {}]
  %s13 = inlined_call_operand.vmem [shape: f32[4,1,9], index: 13, kind: output, shape index: {}]
  %s14 = sld [smem:[#allocation0]]
  $region113: #{forward.3} parent=0
    _
  %s16 = ssub.s32 1, %s14
  %s17 = scalar_select 0, %s16, %s14
  $region1: #{forward.3} parent=0
    #allocation3 [shape = 'u8[512]{0}', space=vmem, size = 0x400, scoped, tag = 'input window, operand 4, single buffered']
    #allocation4 [shape = 's32[2]{0}', space=sflag, size = 0x8, scoped, tag = 'scoped memory for forward.3']
    #allocation5 [shape = 'u8[1048576]{0}', space=vmem, size = 0x100000, scoped, tag = 'input window, operand 7, single buffered']
    #allocation6 [shape = 's32[1]{0}', space=sflag, size = 0x4, scoped, tag = 'scoped memory for forward.3']
    #allocation7 [shape = 'u8[2048]{0}', space=vmem, size = 0x800, scoped, tag = 'input window, operand 8, single buffered']
    #allocation8 [shape = 'u8[512]{0}', space=vmem, size = 0x400, scoped, tag = 'input window, operand 12, single buffered']
    #allocation9 [shape = 's32[1]{0}', space=sflag, size = 0x4, scoped, tag = 'scoped memory for forward.3']
    %18 = vsyncpa [#allocation4], 0
    %19 = vsyncpa [#allocation6], 0
    %20 = vsyncpa [#allocation9], 0
    loop: start=0, step=1, limit=6
    $region2: #{forward.3} parent=1 // loop_pre_header
      _
    $region3: #{forward.3} parent=1 // loop_header
      %s22 = sphi 0, %s26
      %p23 = scmp.ge.s32.totalorder %s22, 6
      %s29 = sphi 0, %s41
      %s30 = sphi 0, %s37
      %s31 = sphi 0, %s29
      %s32 = sphi 0, %s30
      %s33 = sphi 0, %s31
      %s34 = sphi 0, %s32
      %s46 = sphi 0, %s48
      %s49 = sphi 0, %s46
      %s50 = sphi 0, %s49
      %s66 = sphi 0, %s50
      %s70 = sphi 0, %s70
      %s72 = sphi 0, %s70
      %s73 = sphi 0, %s72
      %s87 = sphi 0, %s73
      %s91 = sphi 0, %s91
      %s93 = sphi 0, %s91
      %s94 = sphi 0, %s93
      %s108 = sphi 0, %s94
      %s112 = sphi 0, %s112
      %s114 = sphi 0, %s112
      %s115 = sphi 0, %s114
      %s129 = sphi 0, %s115
      %s133 = sphi 0, %s133
      %s135 = sphi 0, %s133
      %s136 = sphi 0, %s135
      %s150 = sphi 0, %s136
      %s154 = sphi 0, %s154
      %s156 = sphi 0, %s154
      %s157 = sphi 0, %s156
      %s171 = sphi 0, %s157
      %s175 = sphi 0, %s175
      %s177 = sphi 0, %s175
      %s178 = sphi 0, %s177
      %s192 = sphi 0, %s178
      %s196 = sphi 0, %s196
      %s198 = sphi 0, %s196
      %s199 = sphi 0, %s198
      %s213 = sphi 0, %s199
      %s217 = sphi 0, %s217
      %s219 = sphi 0, %s217
      %s220 = sphi 0, %s219
      %s234 = sphi 0, %s220
      %s238 = sphi 0, %s238
      %s240 = sphi 0, %s238
      %s241 = sphi 0, %s240
      %s255 = sphi 0, %s241
      %s259 = sphi 0, %s259
      %s261 = sphi 0, %s259
      %s262 = sphi 0, %s261
      %s276 = sphi 0, %s262
      %s280 = sphi 0, %s280
      %s282 = sphi 0, %s280
      %s283 = sphi 0, %s282
      %s297 = sphi 0, %s283
      %s301 = sphi 0, %s301
      %s303 = sphi 0, %s301
      %s304 = sphi 0, %s303
      %s318 = sphi 0, %s304
      %s324 = sphi 0, %s326
      %s327 = sphi 0, %s324
      %s328 = sphi 0, %s327
      %s344 = sphi 0, %s328
    $region4: #{forward.3} parent=1 // loop_header_branch
      %25 = sbr.rel (%p23) target = $region8
    $region5: #{forward.3} parent=1 // loop_body
      %s27 = ssub.s32 %s22, 1
      %s28 = ssub.s32 %s22, 2
      %s35 = sadd.s32 1, %s30
      %p36 = scmp.ge.s32.totalorder %s35, 1
      %s37 = scalar_select %p36, 0, %s35
      %s38 = sadd.s32 1, %s29
      %s39 = scalar_select %p36, %s38, %s29
      %p40 = scmp.ge.s32.totalorder %s39, 4
      %s41 = scalar_select %p40, 0, %s39
      %s42 = ssub.s32 %s29, %s41
      %s43 = ssub.s32 %s30, %s37
      %s44 = sor.u32 %s42, %s43
      %p45 = scmp.eq.s32.totalorder %s44, 0
      %s47 = sadd.s32 %s46, 1
      %s48 = scalar_select %p45, %s46, %s47
      %p51 = pneg %p45
      %p52 = scmp.eq.s32.totalorder %s22, 3
      %p53 = por %p51, %p52
      %p54 = scmp.ne.s32.totalorder %s46, %s49
      %p55 = scmp.eq.s32.totalorder %s22, 0
      %p56 = por %p54, %p55
      %p57 = scmp.ne.s32.totalorder %s46, %s49
      %p58 = scmp.eq.s32.totalorder %s27, 3
      %p59 = por %p57, %p58
      %p60 = scmp.ne.s32.totalorder %s49, %s50
      %p61 = scmp.eq.s32.totalorder %s27, 0
      %p62 = por %p60, %p61
      %p63 = scmp.ne.s32.totalorder %s49, %s50
      %p64 = scmp.eq.s32.totalorder %s28, 3
      %p65 = por %p63, %p64
      %p67 = scmp.ne.s32.totalorder %s50, %s66
      %p68 = scmp.eq.s32.totalorder %s28, 0
      %p69 = por %p67, %p68
      %s71 = sadd.s32 %s70, 1
      %p74 = scmp.eq.s32.totalorder %s22, 3
      %p75 = scmp.ne.s32.totalorder %s70, %s72
      %p76 = scmp.eq.s32.totalorder %s22, 0
      %p77 = por %p75, %p76
      %p78 = scmp.ne.s32.totalorder %s70, %s72
      %p79 = scmp.eq.s32.totalorder %s27, 3
      %p80 = por %p78, %p79
      %p81 = scmp.ne.s32.totalorder %s72, %s73
      %p82 = scmp.eq.s32.totalorder %s27, 0
      %p83 = por %p81, %p82
      %p84 = scmp.ne.s32.totalorder %s72, %s73
      %p85 = scmp.eq.s32.totalorder %s28, 3
      %p86 = por %p84, %p85
      %p88 = scmp.ne.s32.totalorder %s73, %s87
      %p89 = scmp.eq.s32.totalorder %s28, 0
      %p90 = por %p88, %p89
      %s92 = sadd.s32 %s91, 1
      %p95 = scmp.eq.s32.totalorder %s22, 3
      %p96 = scmp.ne.s32.totalorder %s91, %s93
      %p97 = scmp.eq.s32.totalorder %s22, 0
      %p98 = por %p96, %p97
      %p99 = scmp.ne.s32.totalorder %s91, %s93
      %p100 = scmp.eq.s32.totalorder %s27, 3
      %p101 = por %p99, %p100
      %p102 = scmp.ne.s32.totalorder %s93, %s94
      %p103 = scmp.eq.s32.totalorder %s27, 0
      %p104 = por %p102, %p103
      %p105 = scmp.ne.s32.totalorder %s93, %s94
      %p106 = scmp.eq.s32.totalorder %s28, 3
      %p107 = por %p105, %p106
      %p109 = scmp.ne.s32.totalorder %s94, %s108
      %p110 = scmp.eq.s32.totalorder %s28, 0
      %p111 = por %p109, %p110
      %s113 = sadd.s32 %s112, 1
      %p116 = scmp.eq.s32.totalorder %s22, 3
      %p117 = scmp.ne.s32.totalorder %s112, %s114
      %p118 = scmp.eq.s32.totalorder %s22, 0
      %p119 = por %p117, %p118
      %p120 = scmp.ne.s32.totalorder %s112, %s114
      %p121 = scmp.eq.s32.totalorder %s27, 3
      %p122 = por %p120, %p121
      %p123 = scmp.ne.s32.totalorder %s114, %s115
      %p124 = scmp.eq.s32.totalorder %s27, 0
      %p125 = por %p123, %p124
      %p126 = scmp.ne.s32.totalorder %s114, %s115
      %p127 = scmp.eq.s32.totalorder %s28, 3
      %p128 = por %p126, %p127
      %p130 = scmp.ne.s32.totalorder %s115, %s129
      %p131 = scmp.eq.s32.totalorder %s28, 0
      %p132 = por %p130, %p131
      %s134 = sadd.s32 %s133, 1
      %p137 = scmp.eq.s32.totalorder %s22, 3
      %p138 = scmp.ne.s32.totalorder %s133, %s135
      %p139 = scmp.eq.s32.totalorder %s22, 0
      %p140 = por %p138, %p139
      %p141 = scmp.ne.s32.totalorder %s133, %s135
      %p142 = scmp.eq.s32.totalorder %s27, 3
      %p143 = por %p141, %p142
      %p144 = scmp.ne.s32.totalorder %s135, %s136
      %p145 = scmp.eq.s32.totalorder %s27, 0
      %p146 = por %p144, %p145
      %p147 = scmp.ne.s32.totalorder %s135, %s136
      %p148 = scmp.eq.s32.totalorder %s28, 3
      %p149 = por %p147, %p148
      %p151 = scmp.ne.s32.totalorder %s136, %s150
      %p152 = scmp.eq.s32.totalorder %s28, 0
      %p153 = por %p151, %p152
      %s155 = sadd.s32 %s154, 1
      %p158 = scmp.eq.s32.totalorder %s22, 3
      %p159 = scmp.ne.s32.totalorder %s154, %s156
      %p160 = scmp.eq.s32.totalorder %s22, 0
      %p161 = por %p159, %p160
      %p162 = scmp.ne.s32.totalorder %s154, %s156
      %p163 = scmp.eq.s32.totalorder %s27, 3
      %p164 = por %p162, %p163
      %p165 = scmp.ne.s32.totalorder %s156, %s157
      %p166 = scmp.eq.s32.totalorder %s27, 0
      %p167 = por %p165, %p166
      %p168 = scmp.ne.s32.totalorder %s156, %s157
      %p169 = scmp.eq.s32.totalorder %s28, 3
      %p170 = por %p168, %p169
      %p172 = scmp.ne.s32.totalorder %s157, %s171
      %p173 = scmp.eq.s32.totalorder %s28, 0
      %p174 = por %p172, %p173
      %s176 = sadd.s32 %s175, 1
      %p179 = scmp.eq.s32.totalorder %s22, 3
      %p180 = scmp.ne.s32.totalorder %s175, %s177
      %p181 = scmp.eq.s32.totalorder %s22, 0
      %p182 = por %p180, %p181
      %p183 = scmp.ne.s32.totalorder %s175, %s177
      %p184 = scmp.eq.s32.totalorder %s27, 3
      %p185 = por %p183, %p184
      %p186 = scmp.ne.s32.totalorder %s177, %s178
      %p187 = scmp.eq.s32.totalorder %s27, 0
      %p188 = por %p186, %p187
      %p189 = scmp.ne.s32.totalorder %s177, %s178
      %p190 = scmp.eq.s32.totalorder %s28, 3
      %p191 = por %p189, %p190
      %p193 = scmp.ne.s32.totalorder %s178, %s192
      %p194 = scmp.eq.s32.totalorder %s28, 0
      %p195 = por %p193, %p194
      %s197 = sadd.s32 %s196, 1
      %p200 = scmp.eq.s32.totalorder %s22, 3
      %p201 = scmp.ne.s32.totalorder %s196, %s198
      %p202 = scmp.eq.s32.totalorder %s22, 0
      %p203 = por %p201, %p202
      %p204 = scmp.ne.s32.totalorder %s196, %s198
      %p205 = scmp.eq.s32.totalorder %s27, 3
      %p206 = por %p204, %p205
      %p207 = scmp.ne.s32.totalorder %s198, %s199
      %p208 = scmp.eq.s32.totalorder %s27, 0
      %p209 = por %p207, %p208
      %p210 = scmp.ne.s32.totalorder %s198, %s199
      %p211 = scmp.eq.s32.totalorder %s28, 3
      %p212 = por %p210, %p211
      %p214 = scmp.ne.s32.totalorder %s199, %s213
      %p215 = scmp.eq.s32.totalorder %s28, 0
      %p216 = por %p214, %p215
      %s218 = sadd.s32 %s217, 1
      %p221 = scmp.eq.s32.totalorder %s22, 3
      %p222 = scmp.ne.s32.totalorder %s217, %s219
      %p223 = scmp.eq.s32.totalorder %s22, 0
      %p224 = por %p222, %p223
      %p225 = scmp.ne.s32.totalorder %s217, %s219
      %p226 = scmp.eq.s32.totalorder %s27, 3
      %p227 = por %p225, %p226
      %p228 = scmp.ne.s32.totalorder %s219, %s220
      %p229 = scmp.eq.s32.totalorder %s27, 0
      %p230 = por %p228, %p229
      %p231 = scmp.ne.s32.totalorder %s219, %s220
      %p232 = scmp.eq.s32.totalorder %s28, 3
      %p233 = por %p231, %p232
      %p235 = scmp.ne.s32.totalorder %s220, %s234
      %p236 = scmp.eq.s32.totalorder %s28, 0
      %p237 = por %p235, %p236
      %s239 = sadd.s32 %s238, 1
      %p242 = scmp.eq.s32.totalorder %s22, 3
      %p243 = scmp.ne.s32.totalorder %s238, %s240
      %p244 = scmp.eq.s32.totalorder %s22, 0
      %p245 = por %p243, %p244
      %p246 = scmp.ne.s32.totalorder %s238, %s240
      %p247 = scmp.eq.s32.totalorder %s27, 3
      %p248 = por %p246, %p247
      %p249 = scmp.ne.s32.totalorder %s240, %s241
      %p250 = scmp.eq.s32.totalorder %s27, 0
      %p251 = por %p249, %p250
      %p252 = scmp.ne.s32.totalorder %s240, %s241
      %p253 = scmp.eq.s32.totalorder %s28, 3
      %p254 = por %p252, %p253
      %p256 = scmp.ne.s32.totalorder %s241, %s255
      %p257 = scmp.eq.s32.totalorder %s28, 0
      %p258 = por %p256, %p257
      %s260 = sadd.s32 %s259, 1
      %p263 = scmp.eq.s32.totalorder %s22, 3
      %p264 = scmp.ne.s32.totalorder %s259, %s261
      %p265 = scmp.eq.s32.totalorder %s22, 0
      %p266 = por %p264, %p265
      %p267 = scmp.ne.s32.totalorder %s259, %s261
      %p268 = scmp.eq.s32.totalorder %s27, 3
      %p269 = por %p267, %p268
      %p270 = scmp.ne.s32.totalorder %s261, %s262
      %p271 = scmp.eq.s32.totalorder %s27, 0
      %p272 = por %p270, %p271
      %p273 = scmp.ne.s32.totalorder %s261, %s262
      %p274 = scmp.eq.s32.totalorder %s28, 3
      %p275 = por %p273, %p274
      %p277 = scmp.ne.s32.totalorder %s262, %s276
      %p278 = scmp.eq.s32.totalorder %s28, 0
      %p279 = por %p277, %p278
      %s281 = sadd.s32 %s280, 1
      %p284 = scmp.eq.s32.totalorder %s22, 3
      %p285 = scmp.ne.s32.totalorder %s280, %s282
      %p286 = scmp.eq.s32.totalorder %s22, 0
      %p287 = por %p285, %p286
      %p288 = scmp.ne.s32.totalorder %s280, %s282
      %p289 = scmp.eq.s32.totalorder %s27, 3
      %p290 = por %p288, %p289
      %p291 = scmp.ne.s32.totalorder %s282, %s283
      %p292 = scmp.eq.s32.totalorder %s27, 0
      %p293 = por %p291, %p292
      %p294 = scmp.ne.s32.totalorder %s282, %s283
      %p295 = scmp.eq.s32.totalorder %s28, 3
      %p296 = por %p294, %p295
      %p298 = scmp.ne.s32.totalorder %s283, %s297
      %p299 = scmp.eq.s32.totalorder %s28, 0
      %p300 = por %p298, %p299
      %s302 = sadd.s32 %s301, 1
      %p305 = scmp.eq.s32.totalorder %s22, 3
      %p306 = scmp.ne.s32.totalorder %s301, %s303
      %p307 = scmp.eq.s32.totalorder %s22, 0
      %p308 = por %p306, %p307
      %p309 = scmp.ne.s32.totalorder %s301, %s303
      %p310 = scmp.eq.s32.totalorder %s27, 3
      %p311 = por %p309, %p310
      %p312 = scmp.ne.s32.totalorder %s303, %s304
      %p313 = scmp.eq.s32.totalorder %s27, 0
      %p314 = por %p312, %p313
      %p315 = scmp.ne.s32.totalorder %s303, %s304
      %p316 = scmp.eq.s32.totalorder %s28, 3
      %p317 = por %p315, %p316
      %p319 = scmp.ne.s32.totalorder %s304, %s318
      %p320 = scmp.eq.s32.totalorder %s28, 0
      %p321 = por %p319, %p320
      %s322 = ssub.s32 %s29, %s41
      %p323 = scmp.eq.s32.totalorder %s322, 0
      %s325 = sadd.s32 %s324, 1
      %s326 = scalar_select %p323, %s324, %s325
      %p329 = pneg %p323
      %p330 = scmp.eq.s32.totalorder %s22, 3
      %p331 = por %p329, %p330
      %p332 = scmp.ne.s32.totalorder %s324, %s327
      %p333 = scmp.eq.s32.totalorder %s22, 0
      %p334 = por %p332, %p333
      %p335 = scmp.ne.s32.totalorder %s324, %s327
      %p336 = scmp.eq.s32.totalorder %s27, 3
      %p337 = por %p335, %p336
      %p338 = scmp.ne.s32.totalorder %s327, %s328
      %p339 = scmp.eq.s32.totalorder %s27, 0
      %p340 = por %p338, %p339
      %p341 = scmp.ne.s32.totalorder %s327, %s328
      %p342 = scmp.eq.s32.totalorder %s28, 3
      %p343 = por %p341, %p342
      %p345 = scmp.ne.s32.totalorder %s328, %s344
      %p346 = scmp.eq.s32.totalorder %s28, 0
      %p347 = por %p345, %p346
      %p348 = scmp.le.s32.totalorder 1, %s22
      %p349 = scmp.lt.s32.totalorder %s22, 5
      %p350 = pnand %p348, %p349
      %p351 = pneg %p350
      // Predicated region
      $region9: #{forward.3} parent=5 // pred_check
        _
      $region10: #{forward.3} parent=5 // pred_check_branch
        %353 = sbr.rel (%p350) target = $region12
      $region11: #{forward.3} parent=5 // pred_region
        %s354 = ssub.s32 %s22, 1
        // Predicated region
        $region13: #{forward.3} parent=11 // pred_check
          %p355 = pneg %p83
        $region14: #{forward.3} parent=11 // pred_check_branch
          %357 = sbr.rel (%p355) target = $region16
        $region15: #{forward.3} parent=11 // pred_region
          _
        $region16: #{forward.3} parent=11 // pred_fallthru
          _
        // Predicated region
        $region17: #{forward.3} parent=11 // pred_check
          %p358 = pneg %p104
        $region18: #{forward.3} parent=11 // pred_check_branch
          %360 = sbr.rel (%p358) target = $region20
        $region19: #{forward.3} parent=11 // pred_region
          _
        $region20: #{forward.3} parent=11 // pred_fallthru
          _
        // Predicated region
        $region21: #{forward.3} parent=11 // pred_check
          %p361 = pneg %p125
        $region22: #{forward.3} parent=11 // pred_check_branch
          %363 = sbr.rel (%p361) target = $region24
        $region23: #{forward.3} parent=11 // pred_region
          _
        $region24: #{forward.3} parent=11 // pred_fallthru
          _
        // Predicated region
        $region25: #{forward.3} parent=11 // pred_check
          %p364 = pneg %p146
        $region26: #{forward.3} parent=11 // pred_check_branch
          %366 = sbr.rel (%p364) target = $region28
        $region27: #{forward.3} parent=11 // pred_region
          %368 = vsyncadd [#allocation4], 0
          %s370 = sshll.u32 %s4, 4
          %s371 = int_to_ptr.hbm [resolvable:$true] %s370
          %s372 = sshll.u32 [#allocation3], 4
          %s373 = int_to_ptr.vmem [resolvable:$true] %s372
          %375 = dma.hbm_to_vmem [thread:$0]  %s371, 16, %s373, [#allocation4]
        $region28: #{forward.3} parent=11 // pred_fallthru
          _
        // Predicated region
        $region29: #{forward.3} parent=11 // pred_check
          %p376 = pneg %p167
        $region30: #{forward.3} parent=11 // pred_check_branch
          %378 = sbr.rel (%p376) target = $region32
        $region31: #{forward.3} parent=11 // pred_region
          _
        $region32: #{forward.3} parent=11 // pred_fallthru
          _
        // Predicated region
        $region33: #{forward.3} parent=11 // pred_check
          %p379 = pneg %p188
        $region34: #{forward.3} parent=11 // pred_check_branch
          %381 = sbr.rel (%p379) target = $region36
        $region35: #{forward.3} parent=11 // pred_region
          _
        $region36: #{forward.3} parent=11 // pred_fallthru
          _
        // Predicated region
        $region37: #{forward.3} parent=11 // pred_check
          %p382 = pneg %p209
        $region38: #{forward.3} parent=11 // pred_check_branch
          %384 = sbr.rel (%p382) target = $region40
        $region39: #{forward.3} parent=11 // pred_region
          %386 = vsyncadd [#allocation6], 0
          %s387 = sshll.u32 %s7, 4
          %s388 = int_to_ptr.hbm [resolvable:$true] %s387
          %s389 = sshll.u32 [#allocation5], 4
          %s390 = int_to_ptr.vmem [resolvable:$true] %s389
          %395 = dma.hbm_to_vmem [thread:$0]  %s388, 32768, %s390, [#allocation6], 256, 256, 16
        $region40: #{forward.3} parent=11 // pred_fallthru
          _
        // Predicated region
        $region41: #{forward.3} parent=11 // pred_check
          %p396 = pneg %p230
        $region42: #{forward.3} parent=11 // pred_check_branch
          %398 = sbr.rel (%p396) target = $region44
        $region43: #{forward.3} parent=11 // pred_region
          %400 = vsyncadd [#allocation6], 0
          %s402 = sshll.u32 %s8, 4
          %s403 = int_to_ptr.hbm [resolvable:$true] %s402
          %s404 = sshll.u32 [#allocation7], 4
          %s405 = int_to_ptr.vmem [resolvable:$true] %s404
          %407 = dma.hbm_to_vmem [thread:$0]  %s403, 64, %s405, [#allocation6]
        $region44: #{forward.3} parent=11 // pred_fallthru
          _
        // Predicated region
        $region45: #{forward.3} parent=11 // pred_check
          %p408 = pneg %p251
        $region46: #{forward.3} parent=11 // pred_check_branch
          %410 = sbr.rel (%p408) target = $region48
        $region47: #{forward.3} parent=11 // pred_region
          _
        $region48: #{forward.3} parent=11 // pred_fallthru
          _
        // Predicated region
        $region49: #{forward.3} parent=11 // pred_check
          %p411 = pneg %p272
        $region50: #{forward.3} parent=11 // pred_check_branch
          %413 = sbr.rel (%p411) target = $region52
        $region51: #{forward.3} parent=11 // pred_region
          _
        $region52: #{forward.3} parent=11 // pred_fallthru
          _
        // Predicated region
        $region53: #{forward.3} parent=11 // pred_check
          %p414 = pneg %p293
        $region54: #{forward.3} parent=11 // pred_check_branch
          %416 = sbr.rel (%p414) target = $region56
        $region55: #{forward.3} parent=11 // pred_region
          _
        $region56: #{forward.3} parent=11 // pred_fallthru
          _
        // Predicated region
        $region57: #{forward.3} parent=11 // pred_check
          %p417 = pneg %p314
        $region58: #{forward.3} parent=11 // pred_check_branch
          %419 = sbr.rel (%p417) target = $region60
        $region59: #{forward.3} parent=11 // pred_region
          %421 = vsyncadd [#allocation9], 0
          %s423 = sshll.u32 %s12, 4
          %s424 = int_to_ptr.hbm [resolvable:$true] %s423
          %s425 = sshll.u32 [#allocation8], 4
          %s426 = int_to_ptr.vmem [resolvable:$true] %s425
          %428 = dma.hbm_to_vmem [thread:$0]  %s424, 16, %s426, [#allocation9]
        $region60: #{forward.3} parent=11 // pred_fallthru
          _
      $region12: #{forward.3} parent=5 // pred_fallthru
        _
      %p429 = scmp.lt.s32.totalorder %s22, 4
      // Predicated region
      $region61: #{forward.3} parent=5 // pred_check
        %p430 = pneg %p429
      $region62: #{forward.3} parent=5 // pred_check_branch
        %432 = sbr.rel (%p430) target = $region64
      $region63: #{forward.3} parent=5 // pred_region
        // Predicated region
        $region65: #{forward.3} parent=63 // pred_check
          %p433 = pneg %p56
        $region66: #{forward.3} parent=63 // pred_check_branch
          %435 = sbr.rel (%p433) target = $region68
        $region67: #{forward.3} parent=63 // pred_region
          %s436 = smul.u32 32, %s30
          %p437 = scmp.lt.s32.totalorder %s29, 3
          %s438 = scalar_select %p437, %s29, 3
          %p439 = scmp.lt.s32.totalorder %s436, 31
          %s440 = scalar_select %p439, %s436, 31
          %s441 = smul.addr %s438, 32
          %s442 = sadd.s32 %s440, %s441
          %s443 = smul.addr %s442, 4
          %s444 = scalar_lea.vmem %s0, %s443
          %s445 = smul.u32 32, %s30
        $region68: #{forward.3} parent=63 // pred_fallthru
          _
      $region64: #{forward.3} parent=5 // pred_fallthru
        _
      %p446 = scmp.le.s32.totalorder 1, %s22
      %p447 = scmp.lt.s32.totalorder %s22, 5
      %p448 = pnand %p446, %p447
      %p449 = pneg %p448
      // Predicated region
      $region69: #{forward.3} parent=5 // pred_check
        _
      $region70: #{forward.3} parent=5 // pred_check_branch
        %451 = sbr.rel (%p448) target = $region72
      $region71: #{forward.3} parent=5 // pred_region
        %s452 = ssub.s32 %s22, 1
        // Predicated region
        $region73: #{forward.3} parent=71 // pred_check
          %p453 = pneg %p146
        $region74: #{forward.3} parent=71 // pred_check_branch
          %455 = sbr.rel (%p453) target = $region76
        $region75: #{forward.3} parent=71 // pred_region
          %457 = dma.done [#allocation4], 16
        $region76: #{forward.3} parent=71 // pred_fallthru
          _
        // Predicated region
        $region77: #{forward.3} parent=71 // pred_check
          %p458 = pneg %p209
        $region78: #{forward.3} parent=71 // pred_check_branch
          %460 = sbr.rel (%p458) target = $region80
        $region79: #{forward.3} parent=71 // pred_region
          %462 = dma.done [#allocation6], 32768
        $region80: #{forward.3} parent=71 // pred_fallthru
          _
        // Predicated region
        $region81: #{forward.3} parent=71 // pred_check
          %p463 = pneg %p230
        $region82: #{forward.3} parent=71 // pred_check_branch
          %465 = sbr.rel (%p463) target = $region84
        $region83: #{forward.3} parent=71 // pred_region
          %467 = dma.done [#allocation6], 64
        $region84: #{forward.3} parent=71 // pred_fallthru
          _
        // Predicated region
        $region85: #{forward.3} parent=71 // pred_check
          %p468 = pneg %p314
        $region86: #{forward.3} parent=71 // pred_check_branch
          %470 = sbr.rel (%p468) target = $region88
        $region87: #{forward.3} parent=71 // pred_region
          %472 = dma.done [#allocation9], 16
        $region88: #{forward.3} parent=71 // pred_fallthru
          _
        %s473 = smul.u32 32, %s32
        %p474 = scmp.lt.s32.totalorder %s31, 3
        %s475 = scalar_select %p474, %s31, 3
        %p476 = scmp.lt.s32.totalorder %s473, 31
        %s477 = scalar_select %p476, %s473, 31
        %s478 = smul.addr %s475, 32
        %s479 = sadd.s32 %s477, %s478
        %s480 = smul.addr %s479, 4
        %s481 = scalar_lea.vmem %s0, %s480
        %p482 = pneg %p62
        %p483 = pneg %p59
        %p484 = pneg %p83
        %p485 = pneg %p80
        %p486 = pneg %p104
        %p487 = pneg %p101
        %p488 = pneg %p125
        %p489 = pneg %p122
        %p490 = pneg %p146
        %p491 = pneg %p143
        %p492 = pneg %p167
        %p493 = pneg %p164
        %p494 = pneg %p188
        %p495 = pneg %p185
        %p496 = pneg %p209
        %p497 = pneg %p206
        %p498 = pneg %p230
        %p499 = pneg %p227
        %p500 = pneg %p251
        %p501 = pneg %p248
        %p502 = pneg %p272
        %p503 = pneg %p269
        %p504 = pneg %p293
        %p505 = pneg %p290
        %p506 = pneg %p314
        %p507 = pneg %p311
        %p508 = pneg %p340
        %p509 = pneg %p337
        %p510 = scmp.lt.s32.totalorder %s31, 3
        %s511 = scalar_select %p510, %s31, 3
        %s512 = scalar_lea.vmem %s13, %s511
        %s513 = smul.u32 32, %s32
        %p514 = scmp.lt.s32.totalorder %s31, 3
        %s515 = scalar_select %p514, %s31, 3
        %p516 = scmp.lt.s32.totalorder %s513, 31
        %s517 = scalar_select %p516, %s513, 31
        %s518 = smul.addr %s515, 32
        %s519 = sadd.s32 %s517, %s518
        %s520 = smul.addr %s519, 4
        %s521 = scalar_lea.vmem %s0, %s520
        %s522 = smul.u32 32, %s32
        %p523 = scmp.lt.s32.totalorder %s31, 3
        %s524 = scalar_select %p523, %s31, 3
        %s525 = scalar_lea.vmem %s13, %s524
        %v527 = vld [vmem:[%s521] sm:$0xf]
        %v528 = vld [vmem:[%s521 + $0x4] sm:$0xf]
        %v529 = vld [vmem:[%s521 + $0x8] sm:$0xf]
        %v530 = vld [vmem:[%s521 + $0xc] sm:$0xf]
        %v531 = vld [vmem:[%s521 + $0x10] sm:$0xf]
        %v532 = vld [vmem:[%s521 + $0x14] sm:$0xf]
        %v533 = vld [vmem:[%s521 + $0x18] sm:$0xf]
        %v534 = vld [vmem:[%s521 + $0x1c] sm:$0xf]
        %v535 = vld [vmem:[%s521 + $0x20] sm:$0xf]
        %v536 = vld [vmem:[%s521 + $0x24] sm:$0xf]
        %v537 = vld [vmem:[%s521 + $0x28] sm:$0xf]
        %v538 = vld [vmem:[%s521 + $0x2c] sm:$0xf]
        %v539 = vld [vmem:[%s521 + $0x30] sm:$0xf]
        %v540 = vld [vmem:[%s521 + $0x34] sm:$0xf]
        %v541 = vld [vmem:[%s521 + $0x38] sm:$0xf]
        %v542 = vld [vmem:[%s521 + $0x3c] sm:$0xf]
        %v543 = vld [vmem:[%s521 + $0x40] sm:$0xf]
        %v544 = vld [vmem:[%s521 + $0x44] sm:$0xf]
        %v545 = vld [vmem:[%s521 + $0x48] sm:$0xf]
        %v546 = vld [vmem:[%s521 + $0x4c] sm:$0xf]
        %v547 = vld [vmem:[%s521 + $0x50] sm:$0xf]
        %v548 = vld [vmem:[%s521 + $0x54] sm:$0xf]
        %v549 = vld [vmem:[%s521 + $0x58] sm:$0xf]
        %v550 = vld [vmem:[%s521 + $0x5c] sm:$0xf]
        %v551 = vld [vmem:[%s521 + $0x60] sm:$0xf]
        %v552 = vld [vmem:[%s521 + $0x64] sm:$0xf]
        %v553 = vld [vmem:[%s521 + $0x68] sm:$0xf]
        %v554 = vld [vmem:[%s521 + $0x6c] sm:$0xf]
        %v555 = vld [vmem:[%s521 + $0x70] sm:$0xf]
        %v556 = vld [vmem:[%s521 + $0x74] sm:$0xf]
        %v557 = vld [vmem:[%s521 + $0x78] sm:$0xf]
        %v558 = vld [vmem:[%s521 + $0x7c] sm:$0xf]
        %v559 = vld [vmem:[%s1] sm:$0xf]
        %v560 = vld [vmem:[%s2] sm:$0x1]
        %v562 = vperm.slane %v560, 0
        %v596 = vunpack.c.l.b16 %v527
        %v597 = vunpack.c.l.b16 %v528
        %v598 = vunpack.c.l.b16 %v529
        %v599 = vunpack.c.l.b16 %v530
        %v600 = vunpack.c.l.b16 %v531
        %v601 = vunpack.c.l.b16 %v532
        %v602 = vunpack.c.l.b16 %v533
        %v603 = vunpack.c.l.b16 %v534
        %v604 = vunpack.c.l.b16 %v535
        %v605 = vunpack.c.l.b16 %v536
        %v606 = vunpack.c.l.b16 %v537
        %v607 = vunpack.c.l.b16 %v538
        %v608 = vunpack.c.l.b16 %v539
        %v609 = vunpack.c.l.b16 %v540
        %v610 = vunpack.c.l.b16 %v541
        %v611 = vunpack.c.l.b16 %v542
        %v612 = vunpack.c.l.b16 %v543
        %v613 = vunpack.c.l.b16 %v544
        %v614 = vunpack.c.l.b16 %v545
        %v615 = vunpack.c.l.b16 %v546
        %v616 = vunpack.c.l.b16 %v547
        %v617 = vunpack.c.l.b16 %v548
        %v618 = vunpack.c.l.b16 %v549
        %v619 = vunpack.c.l.b16 %v550
        %v620 = vunpack.c.l.b16 %v551
        %v621 = vunpack.c.l.b16 %v552
        %v622 = vunpack.c.l.b16 %v553
        %v623 = vunpack.c.l.b16 %v554
        %v624 = vunpack.c.l.b16 %v555
        %v625 = vunpack.c.l.b16 %v556
        %v626 = vunpack.c.l.b16 %v557
        %v627 = vunpack.c.l.b16 %v558
        %v628 = vpack.c.b16 %v597, %v596
        %v629 = vpack.c.b16 %v599, %v598
        %v630 = vpack.c.b16 %v601, %v600
        %v631 = vpack.c.b16 %v603, %v602
        %v632 = vpack.c.b16 %v605, %v604
        %v633 = vpack.c.b16 %v607, %v606
        %v634 = vpack.c.b16 %v609, %v608
        %v635 = vpack.c.b16 %v611, %v610
        %v636 = vpack.c.b16 %v613, %v612
        %v637 = vpack.c.b16 %v615, %v614
        %v638 = vpack.c.b16 %v617, %v616
        %v639 = vpack.c.b16 %v619, %v618
        %v640 = vpack.c.b16 %v621, %v620
        %v641 = vpack.c.b16 %v623, %v622
        %v642 = vpack.c.b16 %v625, %v624
        %v643 = vpack.c.b16 %v627, %v626
        %vm644 = vcmask 64512
        %v646 = vsel %vm644, %v628, 0
        %v649 = vsel %vm644, %v629, 0
        %v652 = vsel %vm644, %v630, 0
        %v655 = vsel %vm644, %v631, 0
        %v658 = vsel %vm644, %v632, 0
        %v661 = vsel %vm644, %v633, 0
        %v664 = vsel %vm644, %v634, 0
        %v667 = vsel %vm644, %v635, 0
        %v670 = vsel %vm644, %v636, 0
        %v673 = vsel %vm644, %v637, 0
        %v676 = vsel %vm644, %v638, 0
        %v679 = vsel %vm644, %v639, 0
        %v682 = vsel %vm644, %v640, 0
        %v685 = vsel %vm644, %v641, 0
        %v688 = vsel %vm644, %v642, 0
        %v691 = vsel %vm644, %v643, 0
        %vm693 = vcmask 1043456
        %v695 = vsel %vm693, %v559, 0
        %697 = vmatpush.bf16.msra.mxu0 0
        %698 = vmatpush.bf16.msra.mxu0 0
        %699 = vmatpush.bf16.msra.mxu0 0
        %700 = vmatpush.bf16.msra.mxu0 0
        %701 = vmatpush.bf16.msra.mxu0 0
        %702 = vmatpush.bf16.msra.mxu0 0
        %703 = vmatpush.bf16.msra.mxu0 0
        %704 = vmatpush.bf16.msra.mxu0 %v695
        %705 = vmatmul.bf16.gmra.mxu0 %v646
        %v706 = vpop.f32.mrf.mxu0
        %v707 = vadd.f32 %v562, %v706
        %v708 = vpop.f32.mrf.mxu0
        %v709 = vadd.f32 %v562, %v708
        %710 = vmatmul.bf16.gmra.mxu0 %v649
        %v711 = vpop.f32.mrf.mxu0
        %v712 = vadd.f32 %v562, %v711
        %v713 = vpop.f32.mrf.mxu0
        %v714 = vadd.f32 %v562, %v713
        %715 = vmatmul.bf16.gmra.mxu0 %v652
        %v716 = vpop.f32.mrf.mxu0
        %v717 = vadd.f32 %v562, %v716
        %v718 = vpop.f32.mrf.mxu0
        %v719 = vadd.f32 %v562, %v718
        %720 = vmatmul.bf16.gmra.mxu0 %v655
        %v721 = vpop.f32.mrf.mxu0
        %v722 = vadd.f32 %v562, %v721
        %v723 = vpop.f32.mrf.mxu0
        %v724 = vadd.f32 %v562, %v723
        %725 = vmatmul.bf16.gmra.mxu0 %v658
        %v726 = vpop.f32.mrf.mxu0
        %v727 = vadd.f32 %v562, %v726
        %v728 = vpop.f32.mrf.mxu0
        %v729 = vadd.f32 %v562, %v728
        %730 = vmatmul.bf16.gmra.mxu0 %v661
        %v731 = vpop.f32.mrf.mxu0
        %v732 = vadd.f32 %v562, %v731
        %v733 = vpop.f32.mrf.mxu0
        %v734 = vadd.f32 %v562, %v733
        %735 = vmatmul.bf16.gmra.mxu0 %v664
        %v736 = vpop.f32.mrf.mxu0
        %v737 = vadd.f32 %v562, %v736
        %v738 = vpop.f32.mrf.mxu0
        %v739 = vadd.f32 %v562, %v738
        %740 = vmatmul.bf16.gmra.mxu0 %v667
        %v741 = vpop.f32.mrf.mxu0
        %v742 = vadd.f32 %v562, %v741
        %v743 = vpop.f32.mrf.mxu0
        %v744 = vadd.f32 %v562, %v743
        %745 = vmatmul.bf16.gmra.mxu0 %v670
        %v746 = vpop.f32.mrf.mxu0
        %v747 = vadd.f32 %v562, %v746
        %v748 = vpop.f32.mrf.mxu0
        %v749 = vadd.f32 %v562, %v748
        %750 = vmatmul.bf16.gmra.mxu0 %v673
        %v751 = vpop.f32.mrf.mxu0
        %v752 = vadd.f32 %v562, %v751
        %v753 = vpop.f32.mrf.mxu0
        %v754 = vadd.f32 %v562, %v753
        %755 = vmatmul.bf16.gmra.mxu0 %v676
        %v756 = vpop.f32.mrf.mxu0
        %v757 = vadd.f32 %v562, %v756
        %v758 = vpop.f32.mrf.mxu0
        %v759 = vadd.f32 %v562, %v758
        %760 = vmatmul.bf16.gmra.mxu0 %v679
        %v761 = vpop.f32.mrf.mxu0
        %v762 = vadd.f32 %v562, %v761
        %v763 = vpop.f32.mrf.mxu0
        %v764 = vadd.f32 %v562, %v763
        %765 = vmatmul.bf16.gmra.mxu0 %v682
        %v766 = vpop.f32.mrf.mxu0
        %v767 = vadd.f32 %v562, %v766
        %v768 = vpop.f32.mrf.mxu0
        %v769 = vadd.f32 %v562, %v768
        %770 = vmatmul.bf16.gmra.mxu0 %v685
        %v771 = vpop.f32.mrf.mxu0
        %v772 = vadd.f32 %v562, %v771
        %v773 = vpop.f32.mrf.mxu0
        %v774 = vadd.f32 %v562, %v773
        %775 = vmatmul.bf16.gmra.mxu0 %v688
        %v776 = vpop.f32.mrf.mxu0
        %v777 = vadd.f32 %v562, %v776
        %v778 = vpop.f32.mrf.mxu0
        %v779 = vadd.f32 %v562, %v778
        %780 = vmatmul.bf16.gmra.mxu0 %v691
        %v781 = vpop.f32.mrf.mxu0
        %v782 = vadd.f32 %v562, %v781
        %v783 = vpop.f32.mrf.mxu0
        %v784 = vadd.f32 %v562, %v783
        %785 = vdwg.mxu0
        %v786 = vmax.f32 %v707, 0.0
        %v787 = vmax.f32 %v709, 0.0
        %v788 = vmax.f32 %v712, 0.0
        %v789 = vmax.f32 %v714, 0.0
        %v790 = vmax.f32 %v717, 0.0
        %v791 = vmax.f32 %v719, 0.0
        %v792 = vmax.f32 %v722, 0.0
        %v793 = vmax.f32 %v724, 0.0
        %v794 = vmax.f32 %v727, 0.0
        %v795 = vmax.f32 %v729, 0.0
        %v796 = vmax.f32 %v732, 0.0
        %v797 = vmax.f32 %v734, 0.0
        %v798 = vmax.f32 %v737, 0.0
        %v799 = vmax.f32 %v739, 0.0
        %v800 = vmax.f32 %v742, 0.0
        %v801 = vmax.f32 %v744, 0.0
        %v802 = vmax.f32 %v747, 0.0
        %v803 = vmax.f32 %v749, 0.0
        %v804 = vmax.f32 %v752, 0.0
        %v805 = vmax.f32 %v754, 0.0
        %v806 = vmax.f32 %v757, 0.0
        %v807 = vmax.f32 %v759, 0.0
        %v808 = vmax.f32 %v762, 0.0
        %v809 = vmax.f32 %v764, 0.0
        %v810 = vmax.f32 %v767, 0.0
        %v811 = vmax.f32 %v769, 0.0
        %v812 = vmax.f32 %v772, 0.0
        %v813 = vmax.f32 %v774, 0.0
        %v814 = vmax.f32 %v777, 0.0
        %v815 = vmax.f32 %v779, 0.0
        %v816 = vmax.f32 %v782, 0.0
        %v817 = vmax.f32 %v784, 0.0
        %v818 = vpack.c.bf16 %v787, %v786
        %v819 = vpack.c.bf16 %v789, %v788
        %v820 = vpack.c.bf16 %v791, %v790
        %v821 = vpack.c.bf16 %v793, %v792
        %v822 = vpack.c.bf16 %v795, %v794
        %v823 = vpack.c.bf16 %v797, %v796
        %v824 = vpack.c.bf16 %v799, %v798
        %v825 = vpack.c.bf16 %v801, %v800
        %v826 = vpack.c.bf16 %v803, %v802
        %v827 = vpack.c.bf16 %v805, %v804
        %v828 = vpack.c.bf16 %v807, %v806
        %v829 = vpack.c.bf16 %v809, %v808
        %v830 = vpack.c.bf16 %v811, %v810
        %v831 = vpack.c.bf16 %v813, %v812
        %v832 = vpack.c.bf16 %v815, %v814
        %v833 = vpack.c.bf16 %v817, %v816
        %v834 = vld [vmem:[%s3] sm:$0xf]
        %v835 = vld [vmem:[%s3 + $0x4] sm:$0xf]
        %v836 = vld [vmem:[%s3 + $0x8] sm:$0xf]
        %v837 = vld [vmem:[%s3 + $0xc] sm:$0xf]
        %v838 = vld [vmem:[%s3 + $0x10] sm:$0xf]
        %v839 = vld [vmem:[%s3 + $0x14] sm:$0xf]
        %v840 = vld [vmem:[%s3 + $0x18] sm:$0xf]
        %v841 = vld [vmem:[%s3 + $0x1c] sm:$0xf]
        %v842 = vld [vmem:[#allocation3] sm:$0x1]
        %v844 = vperm.slane %v842, 0
        %v854 = vunpack.c.l.b16 %v834
        %v855 = vunpack.c.l.b16 %v835
        %v856 = vunpack.c.l.b16 %v836
        %v857 = vunpack.c.l.b16 %v837
        %v858 = vunpack.c.l.b16 %v838
        %v859 = vunpack.c.l.b16 %v839
        %v860 = vunpack.c.l.b16 %v840
        %v861 = vunpack.c.l.b16 %v841
        %v862 = vpack.c.b16 %v855, %v854
        %v863 = vpack.c.b16 %v857, %v856
        %v864 = vpack.c.b16 %v859, %v858
        %v865 = vpack.c.b16 %v861, %v860
        %vm870 = vcmask 523264
        %v872 = vsel %vm870, %v818, 0
        %v875 = vsel %vm870, %v819, 0
        %v878 = vsel %vm870, %v820, 0
        %v881 = vsel %vm870, %v821, 0
        %v884 = vsel %vm870, %v822, 0
        %v887 = vsel %vm870, %v823, 0
        %v890 = vsel %vm870, %v824, 0
        %v893 = vsel %vm870, %v825, 0
        %v896 = vsel %vm870, %v826, 0
        %v899 = vsel %vm870, %v827, 0
        %v902 = vsel %vm870, %v828, 0
        %v905 = vsel %vm870, %v829, 0
        %v908 = vsel %vm870, %v830, 0
        %v911 = vsel %vm870, %v831, 0
        %v914 = vsel %vm870, %v832, 0
        %v917 = vsel %vm870, %v833, 0
        %919 = vmatpush.bf16.msra.mxu0 0
        %920 = vmatpush.bf16.msra.mxu0 0
        %921 = vmatpush.bf16.msra.mxu0 0
        %922 = vmatpush.bf16.msra.mxu0 0
        %923 = vmatpush.bf16.msra.mxu0 %v865
        %924 = vmatpush.bf16.msra.mxu0 %v864
        %925 = vmatpush.bf16.msra.mxu0 %v863
        %926 = vmatpush.bf16.msra.mxu0 %v862
        %927 = vmatmul.bf16.gmra.mxu0 %v872
        %v928 = vpop.f32.mrf.mxu0
        %v929 = vadd.f32 %v844, %v928
        %v930 = vpop.f32.mrf.mxu0
        %v931 = vadd.f32 %v844, %v930
        %932 = vmatmul.bf16.gmra.mxu0 %v875
        %v933 = vpop.f32.mrf.mxu0
        %v934 = vadd.f32 %v844, %v933
        %v935 = vpop.f32.mrf.mxu0
        %v936 = vadd.f32 %v844, %v935
        %937 = vmatmul.bf16.gmra.mxu0 %v878
        %v938 = vpop.f32.mrf.mxu0
        %v939 = vadd.f32 %v844, %v938
        %v940 = vpop.f32.mrf.mxu0
        %v941 = vadd.f32 %v844, %v940
        %942 = vmatmul.bf16.gmra.mxu0 %v881
        %v943 = vpop.f32.mrf.mxu0
        %v944 = vadd.f32 %v844, %v943
        %v945 = vpop.f32.mrf.mxu0
        %v946 = vadd.f32 %v844, %v945
        %947 = vmatmul.bf16.gmra.mxu0 %v884
        %v948 = vpop.f32.mrf.mxu0
        %v949 = vadd.f32 %v844, %v948
        %v950 = vpop.f32.mrf.mxu0
        %v951 = vadd.f32 %v844, %v950
        %952 = vmatmul.bf16.gmra.mxu0 %v887
        %v953 = vpop.f32.mrf.mxu0
        %v954 = vadd.f32 %v844, %v953
        %v955 = vpop.f32.mrf.mxu0
        %v956 = vadd.f32 %v844, %v955
        %957 = vmatmul.bf16.gmra.mxu0 %v890
        %v958 = vpop.f32.mrf.mxu0
        %v959 = vadd.f32 %v844, %v958
        %v960 = vpop.f32.mrf.mxu0
        %v961 = vadd.f32 %v844, %v960
        %962 = vmatmul.bf16.gmra.mxu0 %v893
        %v963 = vpop.f32.mrf.mxu0
        %v964 = vadd.f32 %v844, %v963
        %v965 = vpop.f32.mrf.mxu0
        %v966 = vadd.f32 %v844, %v965
        %967 = vmatmul.bf16.gmra.mxu0 %v896
        %v968 = vpop.f32.mrf.mxu0
        %v969 = vadd.f32 %v844, %v968
        %v970 = vpop.f32.mrf.mxu0
        %v971 = vadd.f32 %v844, %v970
        %972 = vmatmul.bf16.gmra.mxu0 %v899
        %v973 = vpop.f32.mrf.mxu0
        %v974 = vadd.f32 %v844, %v973
        %v975 = vpop.f32.mrf.mxu0
        %v976 = vadd.f32 %v844, %v975
        %977 = vmatmul.bf16.gmra.mxu0 %v902
        %v978 = vpop.f32.mrf.mxu0
        %v979 = vadd.f32 %v844, %v978
        %v980 = vpop.f32.mrf.mxu0
        %v981 = vadd.f32 %v844, %v980
        %982 = vmatmul.bf16.gmra.mxu0 %v905
        %v983 = vpop.f32.mrf.mxu0
        %v984 = vadd.f32 %v844, %v983
        %v985 = vpop.f32.mrf.mxu0
        %v986 = vadd.f32 %v844, %v985
        %987 = vmatmul.bf16.gmra.mxu0 %v908
        %v988 = vpop.f32.mrf.mxu0
        %v989 = vadd.f32 %v844, %v988
        %v990 = vpop.f32.mrf.mxu0
        %v991 = vadd.f32 %v844, %v990
        %992 = vmatmul.bf16.gmra.mxu0 %v911
        %v993 = vpop.f32.mrf.mxu0
        %v994 = vadd.f32 %v844, %v993
        %v995 = vpop.f32.mrf.mxu0
        %v996 = vadd.f32 %v844, %v995
        %997 = vmatmul.bf16.gmra.mxu0 %v914
        %v998 = vpop.f32.mrf.mxu0
        %v999 = vadd.f32 %v844, %v998
        %v1000 = vpop.f32.mrf.mxu0
        %v1001 = vadd.f32 %v844, %v1000
        %1002 = vmatmul.bf16.gmra.mxu0 %v917
        %v1003 = vpop.f32.mrf.mxu0
        %v1004 = vadd.f32 %v844, %v1003
        %v1005 = vpop.f32.mrf.mxu0
        %v1006 = vadd.f32 %v844, %v1005
        %1007 = vdwg.mxu0
        %v1008 = vmax.f32 %v929, 0.0
        %v1009 = vmax.f32 %v931, 0.0
        %v1010 = vmax.f32 %v934, 0.0
        %v1011 = vmax.f32 %v936, 0.0
        %v1012 = vmax.f32 %v939, 0.0
        %v1013 = vmax.f32 %v941, 0.0
        %v1014 = vmax.f32 %v944, 0.0
        %v1015 = vmax.f32 %v946, 0.0
        %v1016 = vmax.f32 %v949, 0.0
        %v1017 = vmax.f32 %v951, 0.0
        %v1018 = vmax.f32 %v954, 0.0
        %v1019 = vmax.f32 %v956, 0.0
        %v1020 = vmax.f32 %v959, 0.0
        %v1021 = vmax.f32 %v961, 0.0
        %v1022 = vmax.f32 %v964, 0.0
        %v1023 = vmax.f32 %v966, 0.0
        %v1024 = vmax.f32 %v969, 0.0
        %v1025 = vmax.f32 %v971, 0.0
        %v1026 = vmax.f32 %v974, 0.0
        %v1027 = vmax.f32 %v976, 0.0
        %v1028 = vmax.f32 %v979, 0.0
        %v1029 = vmax.f32 %v981, 0.0
        %v1030 = vmax.f32 %v984, 0.0
        %v1031 = vmax.f32 %v986, 0.0
        %v1032 = vmax.f32 %v989, 0.0
        %v1033 = vmax.f32 %v991, 0.0
        %v1034 = vmax.f32 %v994, 0.0
        %v1035 = vmax.f32 %v996, 0.0
        %v1036 = vmax.f32 %v999, 0.0
        %v1037 = vmax.f32 %v1001, 0.0
        %v1038 = vmax.f32 %v1004, 0.0
        %v1039 = vmax.f32 %v1006, 0.0
        %v1040 = vpack.c.bf16 %v1009, %v1008
        %v1041 = vpack.c.bf16 %v1011, %v1010
        %v1042 = vpack.c.bf16 %v1013, %v1012
        %v1043 = vpack.c.bf16 %v1015, %v1014
        %v1044 = vpack.c.bf16 %v1017, %v1016
        %v1045 = vpack.c.bf16 %v1019, %v1018
        %v1046 = vpack.c.bf16 %v1021, %v1020
        %v1047 = vpack.c.bf16 %v1023, %v1022
        %v1048 = vpack.c.bf16 %v1025, %v1024
        %v1049 = vpack.c.bf16 %v1027, %v1026
        %v1050 = vpack.c.bf16 %v1029, %v1028
        %v1051 = vpack.c.bf16 %v1031, %v1030
        %v1052 = vpack.c.bf16 %v1033, %v1032
        %v1053 = vpack.c.bf16 %v1035, %v1034
        %v1054 = vpack.c.bf16 %v1037, %v1036
        %v1055 = vpack.c.bf16 %v1039, %v1038
        %v1056 = vld [vmem:[%s5] sm:$0xff]
        %v1057 = vld [vmem:[%s5 + $0x8] sm:$0xff]
        %v1058 = vld [vmem:[%s5 + $0x10] sm:$0xff]
        %v1059 = vld [vmem:[%s5 + $0x18] sm:$0xff]
        %v1060 = vld [vmem:[%s5 + $0x20] sm:$0xff]
        %v1061 = vld [vmem:[%s5 + $0x28] sm:$0xff]
        %v1062 = vld [vmem:[%s5 + $0x30] sm:$0xff]
        %v1063 = vld [vmem:[%s5 + $0x38] sm:$0xff]
        %v1064 = vld [vmem:[%s5 + $0x40] sm:$0xff]
        %v1065 = vld [vmem:[%s5 + $0x48] sm:$0xff]
        %v1066 = vld [vmem:[%s5 + $0x50] sm:$0xff]
        %v1067 = vld [vmem:[%s5 + $0x58] sm:$0xff]
        %v1068 = vld [vmem:[%s5 + $0x60] sm:$0xff]
        %v1069 = vld [vmem:[%s5 + $0x68] sm:$0xff]
        %v1070 = vld [vmem:[%s5 + $0x70] sm:$0xff]
        %v1071 = vld [vmem:[%s5 + $0x78] sm:$0xff]
        %v1072 = vld [vmem:[%s5 + $0x80] sm:$0xff]
        %v1073 = vld [vmem:[%s5 + $0x88] sm:$0xff]
        %v1074 = vld [vmem:[%s5 + $0x90] sm:$0xff]
        %v1075 = vld [vmem:[%s5 + $0x98] sm:$0xff]
        %v1076 = vld [vmem:[%s5 + $0xa0] sm:$0xff]
        %v1077 = vld [vmem:[%s5 + $0xa8] sm:$0xff]
        %v1078 = vld [vmem:[%s5 + $0xb0] sm:$0xff]
        %v1079 = vld [vmem:[%s5 + $0xb8] sm:$0xff]
        %v1080 = vld [vmem:[%s5 + $0xc0] sm:$0xff]
        %v1081 = vld [vmem:[%s5 + $0xc8] sm:$0xff]
        %v1082 = vld [vmem:[%s5 + $0xd0] sm:$0xff]
        %v1083 = vld [vmem:[%s5 + $0xd8] sm:$0xff]
        %v1084 = vld [vmem:[%s5 + $0xe0] sm:$0xff]
        %v1085 = vld [vmem:[%s5 + $0xe8] sm:$0xff]
        %v1086 = vld [vmem:[%s5 + $0xf0] sm:$0xff]
        %v1087 = vld [vmem:[%s5 + $0xf8] sm:$0xff]
        %v1088 = vld [vmem:[%s5 + $0x100] sm:$0xff]
        %v1089 = vld [vmem:[%s5 + $0x108] sm:$0xff]
        %v1090 = vld [vmem:[%s5 + $0x110] sm:$0xff]
        %v1091 = vld [vmem:[%s5 + $0x118] sm:$0xff]
        %v1092 = vld [vmem:[%s5 + $0x120] sm:$0xff]
        %v1093 = vld [vmem:[%s5 + $0x128] sm:$0xff]
        %v1094 = vld [vmem:[%s5 + $0x130] sm:$0xff]
        %v1095 = vld [vmem:[%s5 + $0x138] sm:$0xff]
        %v1096 = vld [vmem:[%s5 + $0x140] sm:$0xff]
        %v1097 = vld [vmem:[%s5 + $0x148] sm:$0xff]
        %v1098 = vld [vmem:[%s5 + $0x150] sm:$0xff]
        %v1099 = vld [vmem:[%s5 + $0x158] sm:$0xff]
        %v1100 = vld [vmem:[%s5 + $0x160] sm:$0xff]
        %v1101 = vld [vmem:[%s5 + $0x168] sm:$0xff]
        %v1102 = vld [vmem:[%s5 + $0x170] sm:$0xff]
        %v1103 = vld [vmem:[%s5 + $0x178] sm:$0xff]
        %v1104 = vld [vmem:[%s5 + $0x180] sm:$0xff]
        %v1105 = vld [vmem:[%s5 + $0x188] sm:$0xff]
        %v1106 = vld [vmem:[%s5 + $0x190] sm:$0xff]
        %v1107 = vld [vmem:[%s5 + $0x198] sm:$0xff]
        %v1108 = vld [vmem:[%s5 + $0x1a0] sm:$0xff]
        %v1109 = vld [vmem:[%s5 + $0x1a8] sm:$0xff]
        %v1110 = vld [vmem:[%s5 + $0x1b0] sm:$0xff]
        %v1111 = vld [vmem:[%s5 + $0x1b8] sm:$0xff]
        %v1112 = vld [vmem:[%s5 + $0x1c0] sm:$0xff]
        %v1113 = vld [vmem:[%s5 + $0x1c8] sm:$0xff]
        %v1114 = vld [vmem:[%s5 + $0x1d0] sm:$0xff]
        %v1115 = vld [vmem:[%s5 + $0x1d8] sm:$0xff]
        %v1116 = vld [vmem:[%s5 + $0x1e0] sm:$0xff]
        %v1117 = vld [vmem:[%s5 + $0x1e8] sm:$0xff]
        %v1118 = vld [vmem:[%s5 + $0x1f0] sm:$0xff]
        %v1119 = vld [vmem:[%s5 + $0x1f8] sm:$0xff]
        %v1184 = vunpack.c.l.b16 %v1056
        %v1185 = vunpack.c.h.b16 %v1056
        %v1186 = vunpack.c.l.b16 %v1057
        %v1187 = vunpack.c.h.b16 %v1057
        %v1188 = vunpack.c.l.b16 %v1058
        %v1189 = vunpack.c.h.b16 %v1058
        %v1190 = vunpack.c.l.b16 %v1059
        %v1191 = vunpack.c.h.b16 %v1059
        %v1192 = vunpack.c.l.b16 %v1060
        %v1193 = vunpack.c.h.b16 %v1060
        %v1194 = vunpack.c.l.b16 %v1061
        %v1195 = vunpack.c.h.b16 %v1061
        %v1196 = vunpack.c.l.b16 %v1062
        %v1197 = vunpack.c.h.b16 %v1062
        %v1198 = vunpack.c.l.b16 %v1063
        %v1199 = vunpack.c.h.b16 %v1063
        %v1200 = vunpack.c.l.b16 %v1064
        %v1201 = vunpack.c.h.b16 %v1064
        %v1202 = vunpack.c.l.b16 %v1065
        %v1203 = vunpack.c.h.b16 %v1065
        %v1204 = vunpack.c.l.b16 %v1066
        %v1205 = vunpack.c.h.b16 %v1066
        %v1206 = vunpack.c.l.b16 %v1067
        %v1207 = vunpack.c.h.b16 %v1067
        %v1208 = vunpack.c.l.b16 %v1068
        %v1209 = vunpack.c.h.b16 %v1068
        %v1210 = vunpack.c.l.b16 %v1069
        %v1211 = vunpack.c.h.b16 %v1069
        %v1212 = vunpack.c.l.b16 %v1070
        %v1213 = vunpack.c.h.b16 %v1070
        %v1214 = vunpack.c.l.b16 %v1071
        %v1215 = vunpack.c.h.b16 %v1071
        %v1216 = vunpack.c.l.b16 %v1072
        %v1217 = vunpack.c.h.b16 %v1072
        %v1218 = vunpack.c.l.b16 %v1073
        %v1219 = vunpack.c.h.b16 %v1073
        %v1220 = vunpack.c.l.b16 %v1074
        %v1221 = vunpack.c.h.b16 %v1074
        %v1222 = vunpack.c.l.b16 %v1075
        %v1223 = vunpack.c.h.b16 %v1075
        %v1224 = vunpack.c.l.b16 %v1076
        %v1225 = vunpack.c.h.b16 %v1076
        %v1226 = vunpack.c.l.b16 %v1077
        %v1227 = vunpack.c.h.b16 %v1077
        %v1228 = vunpack.c.l.b16 %v1078
        %v1229 = vunpack.c.h.b16 %v1078
        %v1230 = vunpack.c.l.b16 %v1079
        %v1231 = vunpack.c.h.b16 %v1079
        %v1232 = vunpack.c.l.b16 %v1080
        %v1233 = vunpack.c.h.b16 %v1080
        %v1234 = vunpack.c.l.b16 %v1081
        %v1235 = vunpack.c.h.b16 %v1081
        %v1236 = vunpack.c.l.b16 %v1082
        %v1237 = vunpack.c.h.b16 %v1082
        %v1238 = vunpack.c.l.b16 %v1083
        %v1239 = vunpack.c.h.b16 %v1083
        %v1240 = vunpack.c.l.b16 %v1084
        %v1241 = vunpack.c.h.b16 %v1084
        %v1242 = vunpack.c.l.b16 %v1085
        %v1243 = vunpack.c.h.b16 %v1085
        %v1244 = vunpack.c.l.b16 %v1086
        %v1245 = vunpack.c.h.b16 %v1086
        %v1246 = vunpack.c.l.b16 %v1087
        %v1247 = vunpack.c.h.b16 %v1087
        %v1248 = vunpack.c.l.b16 %v1088
        %v1249 = vunpack.c.h.b16 %v1088
        %v1250 = vunpack.c.l.b16 %v1089
        %v1251 = vunpack.c.h.b16 %v1089
        %v1252 = vunpack.c.l.b16 %v1090
        %v1253 = vunpack.c.h.b16 %v1090
        %v1254 = vunpack.c.l.b16 %v1091
        %v1255 = vunpack.c.h.b16 %v1091
        %v1256 = vunpack.c.l.b16 %v1092
        %v1257 = vunpack.c.h.b16 %v1092
        %v1258 = vunpack.c.l.b16 %v1093
        %v1259 = vunpack.c.h.b16 %v1093
        %v1260 = vunpack.c.l.b16 %v1094
        %v1261 = vunpack.c.h.b16 %v1094
        %v1262 = vunpack.c.l.b16 %v1095
        %v1263 = vunpack.c.h.b16 %v1095
        %v1264 = vunpack.c.l.b16 %v1096
        %v1265 = vunpack.c.h.b16 %v1096
        %v1266 = vunpack.c.l.b16 %v1097
        %v1267 = vunpack.c.h.b16 %v1097
        %v1268 = vunpack.c.l.b16 %v1098
        %v1269 = vunpack.c.h.b16 %v1098
        %v1270 = vunpack.c.l.b16 %v1099
        %v1271 = vunpack.c.h.b16 %v1099
        %v1272 = vunpack.c.l.b16 %v1100
        %v1273 = vunpack.c.h.b16 %v1100
        %v1274 = vunpack.c.l.b16 %v1101
        %v1275 = vunpack.c.h.b16 %v1101
        %v1276 = vunpack.c.l.b16 %v1102
        %v1277 = vunpack.c.h.b16 %v1102
        %v1278 = vunpack.c.l.b16 %v1103
        %v1279 = vunpack.c.h.b16 %v1103
        %v1280 = vunpack.c.l.b16 %v1104
        %v1281 = vunpack.c.h.b16 %v1104
        %v1282 = vunpack.c.l.b16 %v1105
        %v1283 = vunpack.c.h.b16 %v1105
        %v1284 = vunpack.c.l.b16 %v1106
        %v1285 = vunpack.c.h.b16 %v1106
        %v1286 = vunpack.c.l.b16 %v1107
        %v1287 = vunpack.c.h.b16 %v1107
        %v1288 = vunpack.c.l.b16 %v1108
        %v1289 = vunpack.c.h.b16 %v1108
        %v1290 = vunpack.c.l.b16 %v1109
        %v1291 = vunpack.c.h.b16 %v1109
        %v1292 = vunpack.c.l.b16 %v1110
        %v1293 = vunpack.c.h.b16 %v1110
        %v1294 = vunpack.c.l.b16 %v1111
        %v1295 = vunpack.c.h.b16 %v1111
        %v1296 = vunpack.c.l.b16 %v1112
        %v1297 = vunpack.c.h.b16 %v1112
        %v1298 = vunpack.c.l.b16 %v1113
        %v1299 = vunpack.c.h.b16 %v1113
        %v1300 = vunpack.c.l.b16 %v1114
        %v1301 = vunpack.c.h.b16 %v1114
        %v1302 = vunpack.c.l.b16 %v1115
        %v1303 = vunpack.c.h.b16 %v1115
        %v1304 = vunpack.c.l.b16 %v1116
        %v1305 = vunpack.c.h.b16 %v1116
        %v1306 = vunpack.c.l.b16 %v1117
        %v1307 = vunpack.c.h.b16 %v1117
        %v1308 = vunpack.c.l.b16 %v1118
        %v1309 = vunpack.c.h.b16 %v1118
        %v1310 = vunpack.c.l.b16 %v1119
        %v1311 = vunpack.c.h.b16 %v1119
        %v1312 = vpack.c.b16 %v1192, %v1184
        %v1313 = vpack.c.b16 %v1193, %v1185
        %v1314 = vpack.c.b16 %v1194, %v1186
        %v1315 = vpack.c.b16 %v1195, %v1187
        %v1316 = vpack.c.b16 %v1196, %v1188
        %v1317 = vpack.c.b16 %v1197, %v1189
        %v1318 = vpack.c.b16 %v1198, %v1190
        %v1319 = vpack.c.b16 %v1199, %v1191
        %v1320 = vpack.c.b16 %v1208, %v1200
        %v1321 = vpack.c.b16 %v1209, %v1201
        %v1322 = vpack.c.b16 %v1210, %v1202
        %v1323 = vpack.c.b16 %v1211, %v1203
        %v1324 = vpack.c.b16 %v1212, %v1204
        %v1325 = vpack.c.b16 %v1213, %v1205
        %v1326 = vpack.c.b16 %v1214, %v1206
        %v1327 = vpack.c.b16 %v1215, %v1207
        %v1328 = vpack.c.b16 %v1224, %v1216
        %v1329 = vpack.c.b16 %v1225, %v1217
        %v1330 = vpack.c.b16 %v1226, %v1218
        %v1331 = vpack.c.b16 %v1227, %v1219
        %v1332 = vpack.c.b16 %v1228, %v1220
        %v1333 = vpack.c.b16 %v1229, %v1221
        %v1334 = vpack.c.b16 %v1230, %v1222
        %v1335 = vpack.c.b16 %v1231, %v1223
        %v1336 = vpack.c.b16 %v1240, %v1232
        %v1337 = vpack.c.b16 %v1241, %v1233
        %v1338 = vpack.c.b16 %v1242, %v1234
        %v1339 = vpack.c.b16 %v1243, %v1235
        %v1340 = vpack.c.b16 %v1244, %v1236
        %v1341 = vpack.c.b16 %v1245, %v1237
        %v1342 = vpack.c.b16 %v1246, %v1238
        %v1343 = vpack.c.b16 %v1247, %v1239
        %v1344 = vpack.c.b16 %v1256, %v1248
        %v1345 = vpack.c.b16 %v1257, %v1249
        %v1346 = vpack.c.b16 %v1258, %v1250
        %v1347 = vpack.c.b16 %v1259, %v1251
        %v1348 = vpack.c.b16 %v1260, %v1252
        %v1349 = vpack.c.b16 %v1261, %v1253
        %v1350 = vpack.c.b16 %v1262, %v1254
        %v1351 = vpack.c.b16 %v1263, %v1255
        %v1352 = vpack.c.b16 %v1272, %v1264
        %v1353 = vpack.c.b16 %v1273, %v1265
        %v1354 = vpack.c.b16 %v1274, %v1266
        %v1355 = vpack.c.b16 %v1275, %v1267
        %v1356 = vpack.c.b16 %v1276, %v1268
        %v1357 = vpack.c.b16 %v1277, %v1269
        %v1358 = vpack.c.b16 %v1278, %v1270
        %v1359 = vpack.c.b16 %v1279, %v1271
        %v1360 = vpack.c.b16 %v1288, %v1280
        %v1361 = vpack.c.b16 %v1289, %v1281
        %v1362 = vpack.c.b16 %v1290, %v1282
        %v1363 = vpack.c.b16 %v1291, %v1283
        %v1364 = vpack.c.b16 %v1292, %v1284
        %v1365 = vpack.c.b16 %v1293, %v1285
        %v1366 = vpack.c.b16 %v1294, %v1286
        %v1367 = vpack.c.b16 %v1295, %v1287
        %v1368 = vpack.c.b16 %v1304, %v1296
        %v1369 = vpack.c.b16 %v1305, %v1297
        %v1370 = vpack.c.b16 %v1306, %v1298
        %v1371 = vpack.c.b16 %v1307, %v1299
        %v1372 = vpack.c.b16 %v1308, %v1300
        %v1373 = vpack.c.b16 %v1309, %v1301
        %v1374 = vpack.c.b16 %v1310, %v1302
        %v1375 = vpack.c.b16 %v1311, %v1303
        %1440 = vmatpush.bf16.msra.mxu0 %v1368
        %1441 = vmatpush.bf16.msra.mxu0 %v1360
        %1442 = vmatpush.bf16.msra.mxu0 %v1352
        %1443 = vmatpush.bf16.msra.mxu0 %v1344
        %1444 = vmatpush.bf16.msra.mxu0 %v1336
        %1445 = vmatpush.bf16.msra.mxu0 %v1328
        %1446 = vmatpush.bf16.msra.mxu0 %v1320
        %1447 = vmatpush.bf16.msra.mxu0 %v1312
        %1448 = vmatmul.bf16.gmra.mxu0 %v1040
        %v1449 = vpop.f32.mrf.mxu0
        %v1450 = vadd.f32 0.0, %v1449
        %v1451 = vpop.f32.mrf.mxu0
        %v1452 = vadd.f32 0.0, %v1451
        %1453 = vmatmul.bf16.gmra.mxu0 %v1041
        %v1454 = vpop.f32.mrf.mxu0
        %v1455 = vadd.f32 0.0, %v1454
        %v1456 = vpop.f32.mrf.mxu0
        %v1457 = vadd.f32 0.0, %v1456
        %1458 = vmatmul.bf16.gmra.mxu0 %v1042
        %v1459 = vpop.f32.mrf.mxu0
        %v1460 = vadd.f32 0.0, %v1459
        %v1461 = vpop.f32.mrf.mxu0
        %v1462 = vadd.f32 0.0, %v1461
        %1463 = vmatmul.bf16.gmra.mxu0 %v1043
        %v1464 = vpop.f32.mrf.mxu0
        %v1465 = vadd.f32 0.0, %v1464
        %v1466 = vpop.f32.mrf.mxu0
        %v1467 = vadd.f32 0.0, %v1466
        %1468 = vmatmul.bf16.gmra.mxu0 %v1044
        %v1469 = vpop.f32.mrf.mxu0
        %v1470 = vadd.f32 0.0, %v1469
        %v1471 = vpop.f32.mrf.mxu0
        %v1472 = vadd.f32 0.0, %v1471
        %1473 = vmatmul.bf16.gmra.mxu0 %v1045
        %v1474 = vpop.f32.mrf.mxu0
        %v1475 = vadd.f32 0.0, %v1474
        %v1476 = vpop.f32.mrf.mxu0
        %v1477 = vadd.f32 0.0, %v1476
        %1478 = vmatmul.bf16.gmra.mxu0 %v1046
        %v1479 = vpop.f32.mrf.mxu0
        %v1480 = vadd.f32 0.0, %v1479
        %v1481 = vpop.f32.mrf.mxu0
        %v1482 = vadd.f32 0.0, %v1481
        %1483 = vmatmul.bf16.gmra.mxu0 %v1047
        %v1484 = vpop.f32.mrf.mxu0
        %v1485 = vadd.f32 0.0, %v1484
        %v1486 = vpop.f32.mrf.mxu0
        %v1487 = vadd.f32 0.0, %v1486
        %1488 = vmatmul.bf16.gmra.mxu0 %v1048
        %v1489 = vpop.f32.mrf.mxu0
        %v1490 = vadd.f32 0.0, %v1489
        %v1491 = vpop.f32.mrf.mxu0
        %v1492 = vadd.f32 0.0, %v1491
        %1493 = vmatmul.bf16.gmra.mxu0 %v1049
        %v1494 = vpop.f32.mrf.mxu0
        %v1495 = vadd.f32 0.0, %v1494
        %v1496 = vpop.f32.mrf.mxu0
        %v1497 = vadd.f32 0.0, %v1496
        %1498 = vmatmul.bf16.gmra.mxu0 %v1050
        %v1499 = vpop.f32.mrf.mxu0
        %v1500 = vadd.f32 0.0, %v1499
        %v1501 = vpop.f32.mrf.mxu0
        %v1502 = vadd.f32 0.0, %v1501
        %1503 = vmatmul.bf16.gmra.mxu0 %v1051
        %v1504 = vpop.f32.mrf.mxu0
        %v1505 = vadd.f32 0.0, %v1504
        %v1506 = vpop.f32.mrf.mxu0
        %v1507 = vadd.f32 0.0, %v1506
        %1508 = vmatmul.bf16.gmra.mxu0 %v1052
        %v1509 = vpop.f32.mrf.mxu0
        %v1510 = vadd.f32 0.0, %v1509
        %v1511 = vpop.f32.mrf.mxu0
        %v1512 = vadd.f32 0.0, %v1511
        %1513 = vmatmul.bf16.gmra.mxu0 %v1053
        %v1514 = vpop.f32.mrf.mxu0
        %v1515 = vadd.f32 0.0, %v1514
        %v1516 = vpop.f32.mrf.mxu0
        %v1517 = vadd.f32 0.0, %v1516
        %1518 = vmatmul.bf16.gmra.mxu0 %v1054
        %v1519 = vpop.f32.mrf.mxu0
        %v1520 = vadd.f32 0.0, %v1519
        %v1521 = vpop.f32.mrf.mxu0
        %v1522 = vadd.f32 0.0, %v1521
        %1523 = vmatmul.bf16.gmra.mxu0 %v1055
        %v1524 = vpop.f32.mrf.mxu0
        %v1525 = vadd.f32 0.0, %v1524
        %v1526 = vpop.f32.mrf.mxu0
        %v1527 = vadd.f32 0.0, %v1526
        %1528 = vdwg.mxu0
        %1529 = vmatpush.bf16.msra.mxu0 %v1369
        %1530 = vmatpush.bf16.msra.mxu0 %v1361
        %1531 = vmatpush.bf16.msra.mxu0 %v1353
        %1532 = vmatpush.bf16.msra.mxu0 %v1345
        %1533 = vmatpush.bf16.msra.mxu0 %v1337
        %1534 = vmatpush.bf16.msra.mxu0 %v1329
        %1535 = vmatpush.bf16.msra.mxu0 %v1321
        %1536 = vmatpush.bf16.msra.mxu0 %v1313
        %1537 = vmatmul.bf16.gmra.mxu0 %v1040
        %v1538 = vpop.f32.mrf.mxu0
        %v1539 = vadd.f32 0.0, %v1538
        %v1540 = vpop.f32.mrf.mxu0
        %v1541 = vadd.f32 0.0, %v1540
        %1542 = vmatmul.bf16.gmra.mxu0 %v1041
        %v1543 = vpop.f32.mrf.mxu0
        %v1544 = vadd.f32 0.0, %v1543
        %v1545 = vpop.f32.mrf.mxu0
        %v1546 = vadd.f32 0.0, %v1545
        %1547 = vmatmul.bf16.gmra.mxu0 %v1042
        %v1548 = vpop.f32.mrf.mxu0
        %v1549 = vadd.f32 0.0, %v1548
        %v1550 = vpop.f32.mrf.mxu0
        %v1551 = vadd.f32 0.0, %v1550
        %1552 = vmatmul.bf16.gmra.mxu0 %v1043
        %v1553 = vpop.f32.mrf.mxu0
        %v1554 = vadd.f32 0.0, %v1553
        %v1555 = vpop.f32.mrf.mxu0
        %v1556 = vadd.f32 0.0, %v1555
        %1557 = vmatmul.bf16.gmra.mxu0 %v1044
        %v1558 = vpop.f32.mrf.mxu0
        %v1559 = vadd.f32 0.0, %v1558
        %v1560 = vpop.f32.mrf.mxu0
        %v1561 = vadd.f32 0.0, %v1560
        %1562 = vmatmul.bf16.gmra.mxu0 %v1045
        %v1563 = vpop.f32.mrf.mxu0
        %v1564 = vadd.f32 0.0, %v1563
        %v1565 = vpop.f32.mrf.mxu0
        %v1566 = vadd.f32 0.0, %v1565
        %1567 = vmatmul.bf16.gmra.mxu0 %v1046
        %v1568 = vpop.f32.mrf.mxu0
        %v1569 = vadd.f32 0.0, %v1568
        %v1570 = vpop.f32.mrf.mxu0
        %v1571 = vadd.f32 0.0, %v1570
        %1572 = vmatmul.bf16.gmra.mxu0 %v1047
        %v1573 = vpop.f32.mrf.mxu0
        %v1574 = vadd.f32 0.0, %v1573
        %v1575 = vpop.f32.mrf.mxu0
        %v1576 = vadd.f32 0.0, %v1575
        %1577 = vmatmul.bf16.gmra.mxu0 %v1048
        %v1578 = vpop.f32.mrf.mxu0
        %v1579 = vadd.f32 0.0, %v1578
        %v1580 = vpop.f32.mrf.mxu0
        %v1581 = vadd.f32 0.0, %v1580
        %1582 = vmatmul.bf16.gmra.mxu0 %v1049
        %v1583 = vpop.f32.mrf.mxu0
        %v1584 = vadd.f32 0.0, %v1583
        %v1585 = vpop.f32.mrf.mxu0
        %v1586 = vadd.f32 0.0, %v1585
        %1587 = vmatmul.bf16.gmra.mxu0 %v1050
        %v1588 = vpop.f32.mrf.mxu0
        %v1589 = vadd.f32 0.0, %v1588
        %v1590 = vpop.f32.mrf.mxu0
        %v1591 = vadd.f32 0.0, %v1590
        %1592 = vmatmul.bf16.gmra.mxu0 %v1051
        %v1593 = vpop.f32.mrf.mxu0
        %v1594 = vadd.f32 0.0, %v1593
        %v1595 = vpop.f32.mrf.mxu0
        %v1596 = vadd.f32 0.0, %v1595
        %1597 = vmatmul.bf16.gmra.mxu0 %v1052
        %v1598 = vpop.f32.mrf.mxu0
        %v1599 = vadd.f32 0.0, %v1598
        %v1600 = vpop.f32.mrf.mxu0
        %v1601 = vadd.f32 0.0, %v1600
        %1602 = vmatmul.bf16.gmra.mxu0 %v1053
        %v1603 = vpop.f32.mrf.mxu0
        %v1604 = vadd.f32 0.0, %v1603
        %v1605 = vpop.f32.mrf.mxu0
        %v1606 = vadd.f32 0.0, %v1605
        %1607 = vmatmul.bf16.gmra.mxu0 %v1054
        %v1608 = vpop.f32.mrf.mxu0
        %v1609 = vadd.f32 0.0, %v1608
        %v1610 = vpop.f32.mrf.mxu0
        %v1611 = vadd.f32 0.0, %v1610
        %1612 = vmatmul.bf16.gmra.mxu0 %v1055
        %v1613 = vpop.f32.mrf.mxu0
        %v1614 = vadd.f32 0.0, %v1613
        %v1615 = vpop.f32.mrf.mxu0
        %v1616 = vadd.f32 0.0, %v1615
        %1617 = vdwg.mxu0
        %1618 = vmatpush.bf16.msra.mxu0 %v1370
        %1619 = vmatpush.bf16.msra.mxu0 %v1362
        %1620 = vmatpush.bf16.msra.mxu0 %v1354
        %1621 = vmatpush.bf16.msra.mxu0 %v1346
        %1622 = vmatpush.bf16.msra.mxu0 %v1338
        %1623 = vmatpush.bf16.msra.mxu0 %v1330
        %1624 = vmatpush.bf16.msra.mxu0 %v1322
        %1625 = vmatpush.bf16.msra.mxu0 %v1314
        %1626 = vmatmul.bf16.gmra.mxu0 %v1040
        %v1627 = vpop.f32.mrf.mxu0
        %v1628 = vadd.f32 0.0, %v1627
        %v1629 = vpop.f32.mrf.mxu0
        %v1630 = vadd.f32 0.0, %v1629
        %1631 = vmatmul.bf16.gmra.mxu0 %v1041
        %v1632 = vpop.f32.mrf.mxu0
        %v1633 = vadd.f32 0.0, %v1632
        %v1634 = vpop.f32.mrf.mxu0
        %v1635 = vadd.f32 0.0, %v1634
        %1636 = vmatmul.bf16.gmra.mxu0 %v1042
        %v1637 = vpop.f32.mrf.mxu0
        %v1638 = vadd.f32 0.0, %v1637
        %v1639 = vpop.f32.mrf.mxu0
        %v1640 = vadd.f32 0.0, %v1639
        %1641 = vmatmul.bf16.gmra.mxu0 %v1043
        %v1642 = vpop.f32.mrf.mxu0
        %v1643 = vadd.f32 0.0, %v1642
        %v1644 = vpop.f32.mrf.mxu0
        %v1645 = vadd.f32 0.0, %v1644
        %1646 = vmatmul.bf16.gmra.mxu0 %v1044
        %v1647 = vpop.f32.mrf.mxu0
        %v1648 = vadd.f32 0.0, %v1647
        %v1649 = vpop.f32.mrf.mxu0
        %v1650 = vadd.f32 0.0, %v1649
        %1651 = vmatmul.bf16.gmra.mxu0 %v1045
        %v1652 = vpop.f32.mrf.mxu0
        %v1653 = vadd.f32 0.0, %v1652
        %v1654 = vpop.f32.mrf.mxu0
        %v1655 = vadd.f32 0.0, %v1654
        %1656 = vmatmul.bf16.gmra.mxu0 %v1046
        %v1657 = vpop.f32.mrf.mxu0
        %v1658 = vadd.f32 0.0, %v1657
        %v1659 = vpop.f32.mrf.mxu0
        %v1660 = vadd.f32 0.0, %v1659
        %1661 = vmatmul.bf16.gmra.mxu0 %v1047
        %v1662 = vpop.f32.mrf.mxu0
        %v1663 = vadd.f32 0.0, %v1662
        %v1664 = vpop.f32.mrf.mxu0
        %v1665 = vadd.f32 0.0, %v1664
        %1666 = vmatmul.bf16.gmra.mxu0 %v1048
        %v1667 = vpop.f32.mrf.mxu0
        %v1668 = vadd.f32 0.0, %v1667
        %v1669 = vpop.f32.mrf.mxu0
        %v1670 = vadd.f32 0.0, %v1669
        %1671 = vmatmul.bf16.gmra.mxu0 %v1049
        %v1672 = vpop.f32.mrf.mxu0
        %v1673 = vadd.f32 0.0, %v1672
        %v1674 = vpop.f32.mrf.mxu0
        %v1675 = vadd.f32 0.0, %v1674
        %1676 = vmatmul.bf16.gmra.mxu0 %v1050
        %v1677 = vpop.f32.mrf.mxu0
        %v1678 = vadd.f32 0.0, %v1677
        %v1679 = vpop.f32.mrf.mxu0
        %v1680 = vadd.f32 0.0, %v1679
        %1681 = vmatmul.bf16.gmra.mxu0 %v1051
        %v1682 = vpop.f32.mrf.mxu0
        %v1683 = vadd.f32 0.0, %v1682
        %v1684 = vpop.f32.mrf.mxu0
        %v1685 = vadd.f32 0.0, %v1684
        %1686 = vmatmul.bf16.gmra.mxu0 %v1052
        %v1687 = vpop.f32.mrf.mxu0
        %v1688 = vadd.f32 0.0, %v1687
        %v1689 = vpop.f32.mrf.mxu0
        %v1690 = vadd.f32 0.0, %v1689
        %1691 = vmatmul.bf16.gmra.mxu0 %v1053
        %v1692 = vpop.f32.mrf.mxu0
        %v1693 = vadd.f32 0.0, %v1692
        %v1694 = vpop.f32.mrf.mxu0
        %v1695 = vadd.f32 0.0, %v1694
        %1696 = vmatmul.bf16.gmra.mxu0 %v1054
        %v1697 = vpop.f32.mrf.mxu0
        %v1698 = vadd.f32 0.0, %v1697
        %v1699 = vpop.f32.mrf.mxu0
        %v1700 = vadd.f32 0.0, %v1699
        %1701 = vmatmul.bf16.gmra.mxu0 %v1055
        %v1702 = vpop.f32.mrf.mxu0
        %v1703 = vadd.f32 0.0, %v1702
        %v1704 = vpop.f32.mrf.mxu0
        %v1705 = vadd.f32 0.0, %v1704
        %1706 = vdwg.mxu0
        %1707 = vmatpush.bf16.msra.mxu0 %v1371
        %1708 = vmatpush.bf16.msra.mxu0 %v1363
        %1709 = vmatpush.bf16.msra.mxu0 %v1355
        %1710 = vmatpush.bf16.msra.mxu0 %v1347
        %1711 = vmatpush.bf16.msra.mxu0 %v1339
        %1712 = vmatpush.bf16.msra.mxu0 %v1331
        %1713 = vmatpush.bf16.msra.mxu0 %v1323
        %1714 = vmatpush.bf16.msra.mxu0 %v1315
        %1715 = vmatmul.bf16.gmra.mxu0 %v1040
        %v1716 = vpop.f32.mrf.mxu0
        %v1717 = vadd.f32 0.0, %v1716
        %v1718 = vpop.f32.mrf.mxu0
        %v1719 = vadd.f32 0.0, %v1718
        %1720 = vmatmul.bf16.gmra.mxu0 %v1041
        %v1721 = vpop.f32.mrf.mxu0
        %v1722 = vadd.f32 0.0, %v1721
        %v1723 = vpop.f32.mrf.mxu0
        %v1724 = vadd.f32 0.0, %v1723
        %1725 = vmatmul.bf16.gmra.mxu0 %v1042
        %v1726 = vpop.f32.mrf.mxu0
        %v1727 = vadd.f32 0.0, %v1726
        %v1728 = vpop.f32.mrf.mxu0
        %v1729 = vadd.f32 0.0, %v1728
        %1730 = vmatmul.bf16.gmra.mxu0 %v1043
        %v1731 = vpop.f32.mrf.mxu0
        %v1732 = vadd.f32 0.0, %v1731
        %v1733 = vpop.f32.mrf.mxu0
        %v1734 = vadd.f32 0.0, %v1733
        %1735 = vmatmul.bf16.gmra.mxu0 %v1044
        %v1736 = vpop.f32.mrf.mxu0
        %v1737 = vadd.f32 0.0, %v1736
        %v1738 = vpop.f32.mrf.mxu0
        %v1739 = vadd.f32 0.0, %v1738
        %1740 = vmatmul.bf16.gmra.mxu0 %v1045
        %v1741 = vpop.f32.mrf.mxu0
        %v1742 = vadd.f32 0.0, %v1741
        %v1743 = vpop.f32.mrf.mxu0
        %v1744 = vadd.f32 0.0, %v1743
        %1745 = vmatmul.bf16.gmra.mxu0 %v1046
        %v1746 = vpop.f32.mrf.mxu0
        %v1747 = vadd.f32 0.0, %v1746
        %v1748 = vpop.f32.mrf.mxu0
        %v1749 = vadd.f32 0.0, %v1748
        %1750 = vmatmul.bf16.gmra.mxu0 %v1047
        %v1751 = vpop.f32.mrf.mxu0
        %v1752 = vadd.f32 0.0, %v1751
        %v1753 = vpop.f32.mrf.mxu0
        %v1754 = vadd.f32 0.0, %v1753
        %1755 = vmatmul.bf16.gmra.mxu0 %v1048
        %v1756 = vpop.f32.mrf.mxu0
        %v1757 = vadd.f32 0.0, %v1756
        %v1758 = vpop.f32.mrf.mxu0
        %v1759 = vadd.f32 0.0, %v1758
        %1760 = vmatmul.bf16.gmra.mxu0 %v1049
        %v1761 = vpop.f32.mrf.mxu0
        %v1762 = vadd.f32 0.0, %v1761
        %v1763 = vpop.f32.mrf.mxu0
        %v1764 = vadd.f32 0.0, %v1763
        %1765 = vmatmul.bf16.gmra.mxu0 %v1050
        %v1766 = vpop.f32.mrf.mxu0
        %v1767 = vadd.f32 0.0, %v1766
        %v1768 = vpop.f32.mrf.mxu0
        %v1769 = vadd.f32 0.0, %v1768
        %1770 = vmatmul.bf16.gmra.mxu0 %v1051
        %v1771 = vpop.f32.mrf.mxu0
        %v1772 = vadd.f32 0.0, %v1771
        %v1773 = vpop.f32.mrf.mxu0
        %v1774 = vadd.f32 0.0, %v1773
        %1775 = vmatmul.bf16.gmra.mxu0 %v1052
        %v1776 = vpop.f32.mrf.mxu0
        %v1777 = vadd.f32 0.0, %v1776
        %v1778 = vpop.f32.mrf.mxu0
        %v1779 = vadd.f32 0.0, %v1778
        %1780 = vmatmul.bf16.gmra.mxu0 %v1053
        %v1781 = vpop.f32.mrf.mxu0
        %v1782 = vadd.f32 0.0, %v1781
        %v1783 = vpop.f32.mrf.mxu0
        %v1784 = vadd.f32 0.0, %v1783
        %1785 = vmatmul.bf16.gmra.mxu0 %v1054
        %v1786 = vpop.f32.mrf.mxu0
        %v1787 = vadd.f32 0.0, %v1786
        %v1788 = vpop.f32.mrf.mxu0
        %v1789 = vadd.f32 0.0, %v1788
        %1790 = vmatmul.bf16.gmra.mxu0 %v1055
        %v1791 = vpop.f32.mrf.mxu0
        %v1792 = vadd.f32 0.0, %v1791
        %v1793 = vpop.f32.mrf.mxu0
        %v1794 = vadd.f32 0.0, %v1793
        %1795 = vdwg.mxu0
        %1796 = vmatpush.bf16.msra.mxu0 %v1372
        %1797 = vmatpush.bf16.msra.mxu0 %v1364
        %1798 = vmatpush.bf16.msra.mxu0 %v1356
        %1799 = vmatpush.bf16.msra.mxu0 %v1348
        %1800 = vmatpush.bf16.msra.mxu0 %v1340
        %1801 = vmatpush.bf16.msra.mxu0 %v1332
        %1802 = vmatpush.bf16.msra.mxu0 %v1324
        %1803 = vmatpush.bf16.msra.mxu0 %v1316
        %1804 = vmatmul.bf16.gmra.mxu0 %v1040
        %v1805 = vpop.f32.mrf.mxu0
        %v1806 = vadd.f32 0.0, %v1805
        %v1807 = vpop.f32.mrf.mxu0
        %v1808 = vadd.f32 0.0, %v1807
        %1809 = vmatmul.bf16.gmra.mxu0 %v1041
        %v1810 = vpop.f32.mrf.mxu0
        %v1811 = vadd.f32 0.0, %v1810
        %v1812 = vpop.f32.mrf.mxu0
        %v1813 = vadd.f32 0.0, %v1812
        %1814 = vmatmul.bf16.gmra.mxu0 %v1042
        %v1815 = vpop.f32.mrf.mxu0
        %v1816 = vadd.f32 0.0, %v1815
        %v1817 = vpop.f32.mrf.mxu0
        %v1818 = vadd.f32 0.0, %v1817
        %1819 = vmatmul.bf16.gmra.mxu0 %v1043
        %v1820 = vpop.f32.mrf.mxu0
        %v1821 = vadd.f32 0.0, %v1820
        %v1822 = vpop.f32.mrf.mxu0
        %v1823 = vadd.f32 0.0, %v1822
        %1824 = vmatmul.bf16.gmra.mxu0 %v1044
        %v1825 = vpop.f32.mrf.mxu0
        %v1826 = vadd.f32 0.0, %v1825
        %v1827 = vpop.f32.mrf.mxu0
        %v1828 = vadd.f32 0.0, %v1827
        %1829 = vmatmul.bf16.gmra.mxu0 %v1045
        %v1830 = vpop.f32.mrf.mxu0
        %v1831 = vadd.f32 0.0, %v1830
        %v1832 = vpop.f32.mrf.mxu0
        %v1833 = vadd.f32 0.0, %v1832
        %1834 = vmatmul.bf16.gmra.mxu0 %v1046
        %v1835 = vpop.f32.mrf.mxu0
        %v1836 = vadd.f32 0.0, %v1835
        %v1837 = vpop.f32.mrf.mxu0
        %v1838 = vadd.f32 0.0, %v1837
        %1839 = vmatmul.bf16.gmra.mxu0 %v1047
        %v1840 = vpop.f32.mrf.mxu0
        %v1841 = vadd.f32 0.0, %v1840
        %v1842 = vpop.f32.mrf.mxu0
        %v1843 = vadd.f32 0.0, %v1842
        %1844 = vmatmul.bf16.gmra.mxu0 %v1048
        %v1845 = vpop.f32.mrf.mxu0
        %v1846 = vadd.f32 0.0, %v1845
        %v1847 = vpop.f32.mrf.mxu0
        %v1848 = vadd.f32 0.0, %v1847
        %1849 = vmatmul.bf16.gmra.mxu0 %v1049
        %v1850 = vpop.f32.mrf.mxu0
        %v1851 = vadd.f32 0.0, %v1850
        %v1852 = vpop.f32.mrf.mxu0
        %v1853 = vadd.f32 0.0, %v1852
        %1854 = vmatmul.bf16.gmra.mxu0 %v1050
        %v1855 = vpop.f32.mrf.mxu0
        %v1856 = vadd.f32 0.0, %v1855
        %v1857 = vpop.f32.mrf.mxu0
        %v1858 = vadd.f32 0.0, %v1857
        %1859 = vmatmul.bf16.gmra.mxu0 %v1051
        %v1860 = vpop.f32.mrf.mxu0
        %v1861 = vadd.f32 0.0, %v1860
        %v1862 = vpop.f32.mrf.mxu0
        %v1863 = vadd.f32 0.0, %v1862
        %1864 = vmatmul.bf16.gmra.mxu0 %v1052
        %v1865 = vpop.f32.mrf.mxu0
        %v1866 = vadd.f32 0.0, %v1865
        %v1867 = vpop.f32.mrf.mxu0
        %v1868 = vadd.f32 0.0, %v1867
        %1869 = vmatmul.bf16.gmra.mxu0 %v1053
        %v1870 = vpop.f32.mrf.mxu0
        %v1871 = vadd.f32 0.0, %v1870
        %v1872 = vpop.f32.mrf.mxu0
        %v1873 = vadd.f32 0.0, %v1872
        %1874 = vmatmul.bf16.gmra.mxu0 %v1054
        %v1875 = vpop.f32.mrf.mxu0
        %v1876 = vadd.f32 0.0, %v1875
        %v1877 = vpop.f32.mrf.mxu0
        %v1878 = vadd.f32 0.0, %v1877
        %1879 = vmatmul.bf16.gmra.mxu0 %v1055
        %v1880 = vpop.f32.mrf.mxu0
        %v1881 = vadd.f32 0.0, %v1880
        %v1882 = vpop.f32.mrf.mxu0
        %v1883 = vadd.f32 0.0, %v1882
        %1884 = vdwg.mxu0
        %1885 = vmatpush.bf16.msra.mxu0 %v1373
        %1886 = vmatpush.bf16.msra.mxu0 %v1365
        %1887 = vmatpush.bf16.msra.mxu0 %v1357
        %1888 = vmatpush.bf16.msra.mxu0 %v1349
        %1889 = vmatpush.bf16.msra.mxu0 %v1341
        %1890 = vmatpush.bf16.msra.mxu0 %v1333
        %1891 = vmatpush.bf16.msra.mxu0 %v1325
        %1892 = vmatpush.bf16.msra.mxu0 %v1317
        %1893 = vmatmul.bf16.gmra.mxu0 %v1040
        %v1894 = vpop.f32.mrf.mxu0
        %v1895 = vadd.f32 0.0, %v1894
        %v1896 = vpop.f32.mrf.mxu0
        %v1897 = vadd.f32 0.0, %v1896
        %1898 = vmatmul.bf16.gmra.mxu0 %v1041
        %v1899 = vpop.f32.mrf.mxu0
        %v1900 = vadd.f32 0.0, %v1899
        %v1901 = vpop.f32.mrf.mxu0
        %v1902 = vadd.f32 0.0, %v1901
        %1903 = vmatmul.bf16.gmra.mxu0 %v1042
        %v1904 = vpop.f32.mrf.mxu0
        %v1905 = vadd.f32 0.0, %v1904
        %v1906 = vpop.f32.mrf.mxu0
        %v1907 = vadd.f32 0.0, %v1906
        %1908 = vmatmul.bf16.gmra.mxu0 %v1043
        %v1909 = vpop.f32.mrf.mxu0
        %v1910 = vadd.f32 0.0, %v1909
        %v1911 = vpop.f32.mrf.mxu0
        %v1912 = vadd.f32 0.0, %v1911
        %1913 = vmatmul.bf16.gmra.mxu0 %v1044
        %v1914 = vpop.f32.mrf.mxu0
        %v1915 = vadd.f32 0.0, %v1914
        %v1916 = vpop.f32.mrf.mxu0
        %v1917 = vadd.f32 0.0, %v1916
        %1918 = vmatmul.bf16.gmra.mxu0 %v1045
        %v1919 = vpop.f32.mrf.mxu0
        %v1920 = vadd.f32 0.0, %v1919
        %v1921 = vpop.f32.mrf.mxu0
        %v1922 = vadd.f32 0.0, %v1921
        %1923 = vmatmul.bf16.gmra.mxu0 %v1046
        %v1924 = vpop.f32.mrf.mxu0
        %v1925 = vadd.f32 0.0, %v1924
        %v1926 = vpop.f32.mrf.mxu0
        %v1927 = vadd.f32 0.0, %v1926
        %1928 = vmatmul.bf16.gmra.mxu0 %v1047
        %v1929 = vpop.f32.mrf.mxu0
        %v1930 = vadd.f32 0.0, %v1929
        %v1931 = vpop.f32.mrf.mxu0
        %v1932 = vadd.f32 0.0, %v1931
        %1933 = vmatmul.bf16.gmra.mxu0 %v1048
        %v1934 = vpop.f32.mrf.mxu0
        %v1935 = vadd.f32 0.0, %v1934
        %v1936 = vpop.f32.mrf.mxu0
        %v1937 = vadd.f32 0.0, %v1936
        %1938 = vmatmul.bf16.gmra.mxu0 %v1049
        %v1939 = vpop.f32.mrf.mxu0
        %v1940 = vadd.f32 0.0, %v1939
        %v1941 = vpop.f32.mrf.mxu0
        %v1942 = vadd.f32 0.0, %v1941
        %1943 = vmatmul.bf16.gmra.mxu0 %v1050
        %v1944 = vpop.f32.mrf.mxu0
        %v1945 = vadd.f32 0.0, %v1944
        %v1946 = vpop.f32.mrf.mxu0
        %v1947 = vadd.f32 0.0, %v1946
        %1948 = vmatmul.bf16.gmra.mxu0 %v1051
        %v1949 = vpop.f32.mrf.mxu0
        %v1950 = vadd.f32 0.0, %v1949
        %v1951 = vpop.f32.mrf.mxu0
        %v1952 = vadd.f32 0.0, %v1951
        %1953 = vmatmul.bf16.gmra.mxu0 %v1052
        %v1954 = vpop.f32.mrf.mxu0
        %v1955 = vadd.f32 0.0, %v1954
        %v1956 = vpop.f32.mrf.mxu0
        %v1957 = vadd.f32 0.0, %v1956
        %1958 = vmatmul.bf16.gmra.mxu0 %v1053
        %v1959 = vpop.f32.mrf.mxu0
        %v1960 = vadd.f32 0.0, %v1959
        %v1961 = vpop.f32.mrf.mxu0
        %v1962 = vadd.f32 0.0, %v1961
        %1963 = vmatmul.bf16.gmra.mxu0 %v1054
        %v1964 = vpop.f32.mrf.mxu0
        %v1965 = vadd.f32 0.0, %v1964
        %v1966 = vpop.f32.mrf.mxu0
        %v1967 = vadd.f32 0.0, %v1966
        %1968 = vmatmul.bf16.gmra.mxu0 %v1055
        %v1969 = vpop.f32.mrf.mxu0
        %v1970 = vadd.f32 0.0, %v1969
        %v1971 = vpop.f32.mrf.mxu0
        %v1972 = vadd.f32 0.0, %v1971
        %1973 = vdwg.mxu0
        %1974 = vmatpush.bf16.msra.mxu0 %v1374
        %1975 = vmatpush.bf16.msra.mxu0 %v1366
        %1976 = vmatpush.bf16.msra.mxu0 %v1358
        %1977 = vmatpush.bf16.msra.mxu0 %v1350
        %1978 = vmatpush.bf16.msra.mxu0 %v1342
        %1979 = vmatpush.bf16.msra.mxu0 %v1334
        %1980 = vmatpush.bf16.msra.mxu0 %v1326
        %1981 = vmatpush.bf16.msra.mxu0 %v1318
        %1982 = vmatmul.bf16.gmra.mxu0 %v1040
        %v1983 = vpop.f32.mrf.mxu0
        %v1984 = vadd.f32 0.0, %v1983
        %v1985 = vpop.f32.mrf.mxu0
        %v1986 = vadd.f32 0.0, %v1985
        %1987 = vmatmul.bf16.gmra.mxu0 %v1041
        %v1988 = vpop.f32.mrf.mxu0
        %v1989 = vadd.f32 0.0, %v1988
        %v1990 = vpop.f32.mrf.mxu0
        %v1991 = vadd.f32 0.0, %v1990
        %1992 = vmatmul.bf16.gmra.mxu0 %v1042
        %v1993 = vpop.f32.mrf.mxu0
        %v1994 = vadd.f32 0.0, %v1993
        %v1995 = vpop.f32.mrf.mxu0
        %v1996 = vadd.f32 0.0, %v1995
        %1997 = vmatmul.bf16.gmra.mxu0 %v1043
        %v1998 = vpop.f32.mrf.mxu0
        %v1999 = vadd.f32 0.0, %v1998
        %v2000 = vpop.f32.mrf.mxu0
        %v2001 = vadd.f32 0.0, %v2000
        %2002 = vmatmul.bf16.gmra.mxu0 %v1044
        %v2003 = vpop.f32.mrf.mxu0
        %v2004 = vadd.f32 0.0, %v2003
        %v2005 = vpop.f32.mrf.mxu0
        %v2006 = vadd.f32 0.0, %v2005
        %2007 = vmatmul.bf16.gmra.mxu0 %v1045
        %v2008 = vpop.f32.mrf.mxu0
        %v2009 = vadd.f32 0.0, %v2008
        %v2010 = vpop.f32.mrf.mxu0
        %v2011 = vadd.f32 0.0, %v2010
        %2012 = vmatmul.bf16.gmra.mxu0 %v1046
        %v2013 = vpop.f32.mrf.mxu0
        %v2014 = vadd.f32 0.0, %v2013
        %v2015 = vpop.f32.mrf.mxu0
        %v2016 = vadd.f32 0.0, %v2015
        %2017 = vmatmul.bf16.gmra.mxu0 %v1047
        %v2018 = vpop.f32.mrf.mxu0
        %v2019 = vadd.f32 0.0, %v2018
        %v2020 = vpop.f32.mrf.mxu0
        %v2021 = vadd.f32 0.0, %v2020
        %2022 = vmatmul.bf16.gmra.mxu0 %v1048
        %v2023 = vpop.f32.mrf.mxu0
        %v2024 = vadd.f32 0.0, %v2023
        %v2025 = vpop.f32.mrf.mxu0
        %v2026 = vadd.f32 0.0, %v2025
        %2027 = vmatmul.bf16.gmra.mxu0 %v1049
        %v2028 = vpop.f32.mrf.mxu0
        %v2029 = vadd.f32 0.0, %v2028
        %v2030 = vpop.f32.mrf.mxu0
        %v2031 = vadd.f32 0.0, %v2030
        %2032 = vmatmul.bf16.gmra.mxu0 %v1050
        %v2033 = vpop.f32.mrf.mxu0
        %v2034 = vadd.f32 0.0, %v2033
        %v2035 = vpop.f32.mrf.mxu0
        %v2036 = vadd.f32 0.0, %v2035
        %2037 = vmatmul.bf16.gmra.mxu0 %v1051
        %v2038 = vpop.f32.mrf.mxu0
        %v2039 = vadd.f32 0.0, %v2038
        %v2040 = vpop.f32.mrf.mxu0
        %v2041 = vadd.f32 0.0, %v2040
        %2042 = vmatmul.bf16.gmra.mxu0 %v1052
        %v2043 = vpop.f32.mrf.mxu0
        %v2044 = vadd.f32 0.0, %v2043
        %v2045 = vpop.f32.mrf.mxu0
        %v2046 = vadd.f32 0.0, %v2045
        %2047 = vmatmul.bf16.gmra.mxu0 %v1053
        %v2048 = vpop.f32.mrf.mxu0
        %v2049 = vadd.f32 0.0, %v2048
        %v2050 = vpop.f32.mrf.mxu0
        %v2051 = vadd.f32 0.0, %v2050
        %2052 = vmatmul.bf16.gmra.mxu0 %v1054
        %v2053 = vpop.f32.mrf.mxu0
        %v2054 = vadd.f32 0.0, %v2053
        %v2055 = vpop.f32.mrf.mxu0
        %v2056 = vadd.f32 0.0, %v2055
        %2057 = vmatmul.bf16.gmra.mxu0 %v1055
        %v2058 = vpop.f32.mrf.mxu0
        %v2059 = vadd.f32 0.0, %v2058
        %v2060 = vpop.f32.mrf.mxu0
        %v2061 = vadd.f32 0.0, %v2060
        %2062 = vdwg.mxu0
        %2063 = vmatpush.bf16.msra.mxu0 %v1375
        %2064 = vmatpush.bf16.msra.mxu0 %v1367
        %2065 = vmatpush.bf16.msra.mxu0 %v1359
        %2066 = vmatpush.bf16.msra.mxu0 %v1351
        %2067 = vmatpush.bf16.msra.mxu0 %v1343
        %2068 = vmatpush.bf16.msra.mxu0 %v1335
        %2069 = vmatpush.bf16.msra.mxu0 %v1327
        %2070 = vmatpush.bf16.msra.mxu0 %v1319
        %2071 = vmatmul.bf16.gmra.mxu0 %v1040
        %v2072 = vpop.f32.mrf.mxu0
        %v2073 = vadd.f32 0.0, %v2072
        %v2074 = vpop.f32.mrf.mxu0
        %v2075 = vadd.f32 0.0, %v2074
        %2076 = vmatmul.bf16.gmra.mxu0 %v1041
        %v2077 = vpop.f32.mrf.mxu0
        %v2078 = vadd.f32 0.0, %v2077
        %v2079 = vpop.f32.mrf.mxu0
        %v2080 = vadd.f32 0.0, %v2079
        %2081 = vmatmul.bf16.gmra.mxu0 %v1042
        %v2082 = vpop.f32.mrf.mxu0
        %v2083 = vadd.f32 0.0, %v2082
        %v2084 = vpop.f32.mrf.mxu0
        %v2085 = vadd.f32 0.0, %v2084
        %2086 = vmatmul.bf16.gmra.mxu0 %v1043
        %v2087 = vpop.f32.mrf.mxu0
        %v2088 = vadd.f32 0.0, %v2087
        %v2089 = vpop.f32.mrf.mxu0
        %v2090 = vadd.f32 0.0, %v2089
        %2091 = vmatmul.bf16.gmra.mxu0 %v1044
        %v2092 = vpop.f32.mrf.mxu0
        %v2093 = vadd.f32 0.0, %v2092
        %v2094 = vpop.f32.mrf.mxu0
        %v2095 = vadd.f32 0.0, %v2094
        %2096 = vmatmul.bf16.gmra.mxu0 %v1045
        %v2097 = vpop.f32.mrf.mxu0
        %v2098 = vadd.f32 0.0, %v2097
        %v2099 = vpop.f32.mrf.mxu0
        %v2100 = vadd.f32 0.0, %v2099
        %2101 = vmatmul.bf16.gmra.mxu0 %v1046
        %v2102 = vpop.f32.mrf.mxu0
        %v2103 = vadd.f32 0.0, %v2102
        %v2104 = vpop.f32.mrf.mxu0
        %v2105 = vadd.f32 0.0, %v2104
        %2106 = vmatmul.bf16.gmra.mxu0 %v1047
        %v2107 = vpop.f32.mrf.mxu0
        %v2108 = vadd.f32 0.0, %v2107
        %v2109 = vpop.f32.mrf.mxu0
        %v2110 = vadd.f32 0.0, %v2109
        %2111 = vmatmul.bf16.gmra.mxu0 %v1048
        %v2112 = vpop.f32.mrf.mxu0
        %v2113 = vadd.f32 0.0, %v2112
        %v2114 = vpop.f32.mrf.mxu0
        %v2115 = vadd.f32 0.0, %v2114
        %2116 = vmatmul.bf16.gmra.mxu0 %v1049
        %v2117 = vpop.f32.mrf.mxu0
        %v2118 = vadd.f32 0.0, %v2117
        %v2119 = vpop.f32.mrf.mxu0
        %v2120 = vadd.f32 0.0, %v2119
        %2121 = vmatmul.bf16.gmra.mxu0 %v1050
        %v2122 = vpop.f32.mrf.mxu0
        %v2123 = vadd.f32 0.0, %v2122
        %v2124 = vpop.f32.mrf.mxu0
        %v2125 = vadd.f32 0.0, %v2124
        %2126 = vmatmul.bf16.gmra.mxu0 %v1051
        %v2127 = vpop.f32.mrf.mxu0
        %v2128 = vadd.f32 0.0, %v2127
        %v2129 = vpop.f32.mrf.mxu0
        %v2130 = vadd.f32 0.0, %v2129
        %2131 = vmatmul.bf16.gmra.mxu0 %v1052
        %v2132 = vpop.f32.mrf.mxu0
        %v2133 = vadd.f32 0.0, %v2132
        %v2134 = vpop.f32.mrf.mxu0
        %v2135 = vadd.f32 0.0, %v2134
        %2136 = vmatmul.bf16.gmra.mxu0 %v1053
        %v2137 = vpop.f32.mrf.mxu0
        %v2138 = vadd.f32 0.0, %v2137
        %v2139 = vpop.f32.mrf.mxu0
        %v2140 = vadd.f32 0.0, %v2139
        %2141 = vmatmul.bf16.gmra.mxu0 %v1054
        %v2142 = vpop.f32.mrf.mxu0
        %v2143 = vadd.f32 0.0, %v2142
        %v2144 = vpop.f32.mrf.mxu0
        %v2145 = vadd.f32 0.0, %v2144
        %2146 = vmatmul.bf16.gmra.mxu0 %v1055
        %v2147 = vpop.f32.mrf.mxu0
        %v2148 = vadd.f32 0.0, %v2147
        %v2149 = vpop.f32.mrf.mxu0
        %v2150 = vadd.f32 0.0, %v2149
        %2151 = vdwg.mxu0
        %v2152 = vmax.f32 %v1450, %v1452
        %v2153 = vmax.f32 %v2152, %v1455
        %v2154 = vmax.f32 %v2153, %v1457
        %v2155 = vmax.f32 %v2154, %v1460
        %v2156 = vmax.f32 %v2155, %v1462
        %v2157 = vmax.f32 %v2156, %v1465
        %v2158 = vmax.f32 %v2157, %v1467
        %v2159 = vmax.f32 %v2158, %v1470
        %v2160 = vmax.f32 %v2159, %v1472
        %v2161 = vmax.f32 %v2160, %v1475
        %v2162 = vmax.f32 %v2161, %v1477
        %v2163 = vmax.f32 %v2162, %v1480
        %v2164 = vmax.f32 %v2163, %v1482
        %v2165 = vmax.f32 %v2164, %v1485
        %v2166 = vmax.f32 %v2165, %v1487
        %v2167 = vmax.f32 %v2166, %v1490
        %v2168 = vmax.f32 %v2167, %v1492
        %v2169 = vmax.f32 %v2168, %v1495
        %v2170 = vmax.f32 %v2169, %v1497
        %v2171 = vmax.f32 %v2170, %v1500
        %v2172 = vmax.f32 %v2171, %v1502
        %v2173 = vmax.f32 %v2172, %v1505
        %v2174 = vmax.f32 %v2173, %v1507
        %v2175 = vmax.f32 %v2174, %v1510
        %v2176 = vmax.f32 %v2175, %v1512
        %v2177 = vmax.f32 %v2176, %v1515
        %v2178 = vmax.f32 %v2177, %v1517
        %v2179 = vmax.f32 %v2178, %v1520
        %v2180 = vmax.f32 %v2179, %v1522
        %v2181 = vmax.f32 %v2180, %v1525
        %v2182 = vmax.f32 %v2181, %v1527
        %v2183 = vrot.slane %v2182, 4
        %v2184 = vmax.f32 %v2182, %v2183
        %v2185 = vrot.slane %v2184, 2
        %v2186 = vmax.f32 %v2184, %v2185
        %v2187 = vrot.slane %v2186, 1
        %v2188 = vmax.f32 %v2186, %v2187
        %v2189 = vmax.f32 %v1539, %v1541
        %v2190 = vmax.f32 %v2189, %v1544
        %v2191 = vmax.f32 %v2190, %v1546
        %v2192 = vmax.f32 %v2191, %v1549
        %v2193 = vmax.f32 %v2192, %v1551
        %v2194 = vmax.f32 %v2193, %v1554
        %v2195 = vmax.f32 %v2194, %v1556
        %v2196 = vmax.f32 %v2195, %v1559
        %v2197 = vmax.f32 %v2196, %v1561
        %v2198 = vmax.f32 %v2197, %v1564
        %v2199 = vmax.f32 %v2198, %v1566
        %v2200 = vmax.f32 %v2199, %v1569
        %v2201 = vmax.f32 %v2200, %v1571
        %v2202 = vmax.f32 %v2201, %v1574
        %v2203 = vmax.f32 %v2202, %v1576
        %v2204 = vmax.f32 %v2203, %v1579
        %v2205 = vmax.f32 %v2204, %v1581
        %v2206 = vmax.f32 %v2205, %v1584
        %v2207 = vmax.f32 %v2206, %v1586
        %v2208 = vmax.f32 %v2207, %v1589
        %v2209 = vmax.f32 %v2208, %v1591
        %v2210 = vmax.f32 %v2209, %v1594
        %v2211 = vmax.f32 %v2210, %v1596
        %v2212 = vmax.f32 %v2211, %v1599
        %v2213 = vmax.f32 %v2212, %v1601
        %v2214 = vmax.f32 %v2213, %v1604
        %v2215 = vmax.f32 %v2214, %v1606
        %v2216 = vmax.f32 %v2215, %v1609
        %v2217 = vmax.f32 %v2216, %v1611
        %v2218 = vmax.f32 %v2217, %v1614
        %v2219 = vmax.f32 %v2218, %v1616
        %v2220 = vrot.slane %v2219, 4
        %v2221 = vmax.f32 %v2219, %v2220
        %v2222 = vrot.slane %v2221, 2
        %v2223 = vmax.f32 %v2221, %v2222
        %v2224 = vrot.slane %v2223, 1
        %v2225 = vmax.f32 %v2223, %v2224
        %v2226 = vmax.f32 %v1628, %v1630
        %v2227 = vmax.f32 %v2226, %v1633
        %v2228 = vmax.f32 %v2227, %v1635
        %v2229 = vmax.f32 %v2228, %v1638
        %v2230 = vmax.f32 %v2229, %v1640
        %v2231 = vmax.f32 %v2230, %v1643
        %v2232 = vmax.f32 %v2231, %v1645
        %v2233 = vmax.f32 %v2232, %v1648
        %v2234 = vmax.f32 %v2233, %v1650
        %v2235 = vmax.f32 %v2234, %v1653
        %v2236 = vmax.f32 %v2235, %v1655
        %v2237 = vmax.f32 %v2236, %v1658
        %v2238 = vmax.f32 %v2237, %v1660
        %v2239 = vmax.f32 %v2238, %v1663
        %v2240 = vmax.f32 %v2239, %v1665
        %v2241 = vmax.f32 %v2240, %v1668
        %v2242 = vmax.f32 %v2241, %v1670
        %v2243 = vmax.f32 %v2242, %v1673
        %v2244 = vmax.f32 %v2243, %v1675
        %v2245 = vmax.f32 %v2244, %v1678
        %v2246 = vmax.f32 %v2245, %v1680
        %v2247 = vmax.f32 %v2246, %v1683
        %v2248 = vmax.f32 %v2247, %v1685
        %v2249 = vmax.f32 %v2248, %v1688
        %v2250 = vmax.f32 %v2249, %v1690
        %v2251 = vmax.f32 %v2250, %v1693
        %v2252 = vmax.f32 %v2251, %v1695
        %v2253 = vmax.f32 %v2252, %v1698
        %v2254 = vmax.f32 %v2253, %v1700
        %v2255 = vmax.f32 %v2254, %v1703
        %v2256 = vmax.f32 %v2255, %v1705
        %v2257 = vrot.slane %v2256, 4
        %v2258 = vmax.f32 %v2256, %v2257
        %v2259 = vrot.slane %v2258, 2
        %v2260 = vmax.f32 %v2258, %v2259
        %v2261 = vrot.slane %v2260, 1
        %v2262 = vmax.f32 %v2260, %v2261
        %v2263 = vmax.f32 %v1717, %v1719
        %v2264 = vmax.f32 %v2263, %v1722
        %v2265 = vmax.f32 %v2264, %v1724
        %v2266 = vmax.f32 %v2265, %v1727
        %v2267 = vmax.f32 %v2266, %v1729
        %v2268 = vmax.f32 %v2267, %v1732
        %v2269 = vmax.f32 %v2268, %v1734
        %v2270 = vmax.f32 %v2269, %v1737
        %v2271 = vmax.f32 %v2270, %v1739
        %v2272 = vmax.f32 %v2271, %v1742
        %v2273 = vmax.f32 %v2272, %v1744
        %v2274 = vmax.f32 %v2273, %v1747
        %v2275 = vmax.f32 %v2274, %v1749
        %v2276 = vmax.f32 %v2275, %v1752
        %v2277 = vmax.f32 %v2276, %v1754
        %v2278 = vmax.f32 %v2277, %v1757
        %v2279 = vmax.f32 %v2278, %v1759
        %v2280 = vmax.f32 %v2279, %v1762
        %v2281 = vmax.f32 %v2280, %v1764
        %v2282 = vmax.f32 %v2281, %v1767
        %v2283 = vmax.f32 %v2282, %v1769
        %v2284 = vmax.f32 %v2283, %v1772
        %v2285 = vmax.f32 %v2284, %v1774
        %v2286 = vmax.f32 %v2285, %v1777
        %v2287 = vmax.f32 %v2286, %v1779
        %v2288 = vmax.f32 %v2287, %v1782
        %v2289 = vmax.f32 %v2288, %v1784
        %v2290 = vmax.f32 %v2289, %v1787
        %v2291 = vmax.f32 %v2290, %v1789
        %v2292 = vmax.f32 %v2291, %v1792
        %v2293 = vmax.f32 %v2292, %v1794
        %v2294 = vrot.slane %v2293, 4
        %v2295 = vmax.f32 %v2293, %v2294
        %v2296 = vrot.slane %v2295, 2
        %v2297 = vmax.f32 %v2295, %v2296
        %v2298 = vrot.slane %v2297, 1
        %v2299 = vmax.f32 %v2297, %v2298
        %v2300 = vmax.f32 %v1806, %v1808
        %v2301 = vmax.f32 %v2300, %v1811
        %v2302 = vmax.f32 %v2301, %v1813
        %v2303 = vmax.f32 %v2302, %v1816
        %v2304 = vmax.f32 %v2303, %v1818
        %v2305 = vmax.f32 %v2304, %v1821
        %v2306 = vmax.f32 %v2305, %v1823
        %v2307 = vmax.f32 %v2306, %v1826
        %v2308 = vmax.f32 %v2307, %v1828
        %v2309 = vmax.f32 %v2308, %v1831
        %v2310 = vmax.f32 %v2309, %v1833
        %v2311 = vmax.f32 %v2310, %v1836
        %v2312 = vmax.f32 %v2311, %v1838
        %v2313 = vmax.f32 %v2312, %v1841
        %v2314 = vmax.f32 %v2313, %v1843
        %v2315 = vmax.f32 %v2314, %v1846
        %v2316 = vmax.f32 %v2315, %v1848
        %v2317 = vmax.f32 %v2316, %v1851
        %v2318 = vmax.f32 %v2317, %v1853
        %v2319 = vmax.f32 %v2318, %v1856
        %v2320 = vmax.f32 %v2319, %v1858
        %v2321 = vmax.f32 %v2320, %v1861
        %v2322 = vmax.f32 %v2321, %v1863
        %v2323 = vmax.f32 %v2322, %v1866
        %v2324 = vmax.f32 %v2323, %v1868
        %v2325 = vmax.f32 %v2324, %v1871
        %v2326 = vmax.f32 %v2325, %v1873
        %v2327 = vmax.f32 %v2326, %v1876
        %v2328 = vmax.f32 %v2327, %v1878
        %v2329 = vmax.f32 %v2328, %v1881
        %v2330 = vmax.f32 %v2329, %v1883
        %v2331 = vrot.slane %v2330, 4
        %v2332 = vmax.f32 %v2330, %v2331
        %v2333 = vrot.slane %v2332, 2
        %v2334 = vmax.f32 %v2332, %v2333
        %v2335 = vrot.slane %v2334, 1
        %v2336 = vmax.f32 %v2334, %v2335
        %v2337 = vmax.f32 %v1895, %v1897
        %v2338 = vmax.f32 %v2337, %v1900
        %v2339 = vmax.f32 %v2338, %v1902
        %v2340 = vmax.f32 %v2339, %v1905
        %v2341 = vmax.f32 %v2340, %v1907
        %v2342 = vmax.f32 %v2341, %v1910
        %v2343 = vmax.f32 %v2342, %v1912
        %v2344 = vmax.f32 %v2343, %v1915
        %v2345 = vmax.f32 %v2344, %v1917
        %v2346 = vmax.f32 %v2345, %v1920
        %v2347 = vmax.f32 %v2346, %v1922
        %v2348 = vmax.f32 %v2347, %v1925
        %v2349 = vmax.f32 %v2348, %v1927
        %v2350 = vmax.f32 %v2349, %v1930
        %v2351 = vmax.f32 %v2350, %v1932
        %v2352 = vmax.f32 %v2351, %v1935
        %v2353 = vmax.f32 %v2352, %v1937
        %v2354 = vmax.f32 %v2353, %v1940
        %v2355 = vmax.f32 %v2354, %v1942
        %v2356 = vmax.f32 %v2355, %v1945
        %v2357 = vmax.f32 %v2356, %v1947
        %v2358 = vmax.f32 %v2357, %v1950
        %v2359 = vmax.f32 %v2358, %v1952
        %v2360 = vmax.f32 %v2359, %v1955
        %v2361 = vmax.f32 %v2360, %v1957
        %v2362 = vmax.f32 %v2361, %v1960
        %v2363 = vmax.f32 %v2362, %v1962
        %v2364 = vmax.f32 %v2363, %v1965
        %v2365 = vmax.f32 %v2364, %v1967
        %v2366 = vmax.f32 %v2365, %v1970
        %v2367 = vmax.f32 %v2366, %v1972
        %v2368 = vrot.slane %v2367, 4
        %v2369 = vmax.f32 %v2367, %v2368
        %v2370 = vrot.slane %v2369, 2
        %v2371 = vmax.f32 %v2369, %v2370
        %v2372 = vrot.slane %v2371, 1
        %v2373 = vmax.f32 %v2371, %v2372
        %v2374 = vmax.f32 %v1984, %v1986
        %v2375 = vmax.f32 %v2374, %v1989
        %v2376 = vmax.f32 %v2375, %v1991
        %v2377 = vmax.f32 %v2376, %v1994
        %v2378 = vmax.f32 %v2377, %v1996
        %v2379 = vmax.f32 %v2378, %v1999
        %v2380 = vmax.f32 %v2379, %v2001
        %v2381 = vmax.f32 %v2380, %v2004
        %v2382 = vmax.f32 %v2381, %v2006
        %v2383 = vmax.f32 %v2382, %v2009
        %v2384 = vmax.f32 %v2383, %v2011
        %v2385 = vmax.f32 %v2384, %v2014
        %v2386 = vmax.f32 %v2385, %v2016
        %v2387 = vmax.f32 %v2386, %v2019
        %v2388 = vmax.f32 %v2387, %v2021
        %v2389 = vmax.f32 %v2388, %v2024
        %v2390 = vmax.f32 %v2389, %v2026
        %v2391 = vmax.f32 %v2390, %v2029
        %v2392 = vmax.f32 %v2391, %v2031
        %v2393 = vmax.f32 %v2392, %v2034
        %v2394 = vmax.f32 %v2393, %v2036
        %v2395 = vmax.f32 %v2394, %v2039
        %v2396 = vmax.f32 %v2395, %v2041
        %v2397 = vmax.f32 %v2396, %v2044
        %v2398 = vmax.f32 %v2397, %v2046
        %v2399 = vmax.f32 %v2398, %v2049
        %v2400 = vmax.f32 %v2399, %v2051
        %v2401 = vmax.f32 %v2400, %v2054
        %v2402 = vmax.f32 %v2401, %v2056
        %v2403 = vmax.f32 %v2402, %v2059
        %v2404 = vmax.f32 %v2403, %v2061
        %v2405 = vrot.slane %v2404, 4
        %v2406 = vmax.f32 %v2404, %v2405
        %v2407 = vrot.slane %v2406, 2
        %v2408 = vmax.f32 %v2406, %v2407
        %v2409 = vrot.slane %v2408, 1
        %v2410 = vmax.f32 %v2408, %v2409
        %v2411 = vmax.f32 %v2073, %v2075
        %v2412 = vmax.f32 %v2411, %v2078
        %v2413 = vmax.f32 %v2412, %v2080
        %v2414 = vmax.f32 %v2413, %v2083
        %v2415 = vmax.f32 %v2414, %v2085
        %v2416 = vmax.f32 %v2415, %v2088
        %v2417 = vmax.f32 %v2416, %v2090
        %v2418 = vmax.f32 %v2417, %v2093
        %v2419 = vmax.f32 %v2418, %v2095
        %v2420 = vmax.f32 %v2419, %v2098
        %v2421 = vmax.f32 %v2420, %v2100
        %v2422 = vmax.f32 %v2421, %v2103
        %v2423 = vmax.f32 %v2422, %v2105
        %v2424 = vmax.f32 %v2423, %v2108
        %v2425 = vmax.f32 %v2424, %v2110
        %v2426 = vmax.f32 %v2425, %v2113
        %v2427 = vmax.f32 %v2426, %v2115
        %v2428 = vmax.f32 %v2427, %v2118
        %v2429 = vmax.f32 %v2428, %v2120
        %v2430 = vmax.f32 %v2429, %v2123
        %v2431 = vmax.f32 %v2430, %v2125
        %v2432 = vmax.f32 %v2431, %v2128
        %v2433 = vmax.f32 %v2432, %v2130
        %v2434 = vmax.f32 %v2433, %v2133
        %v2435 = vmax.f32 %v2434, %v2135
        %v2436 = vmax.f32 %v2435, %v2138
        %v2437 = vmax.f32 %v2436, %v2140
        %v2438 = vmax.f32 %v2437, %v2143
        %v2439 = vmax.f32 %v2438, %v2145
        %v2440 = vmax.f32 %v2439, %v2148
        %v2441 = vmax.f32 %v2440, %v2150
        %v2442 = vrot.slane %v2441, 4
        %v2443 = vmax.f32 %v2441, %v2442
        %v2444 = vrot.slane %v2443, 2
        %v2445 = vmax.f32 %v2443, %v2444
        %v2446 = vrot.slane %v2445, 1
        %v2447 = vmax.f32 %v2445, %v2446
        %p2448 = scmp.eq.s32.totalorder %s32, 0
        // Predicated region
        $region89: #{forward.3} parent=71 // pred_check
          %p2449 = pneg %p2448
        $region90: #{forward.3} parent=71 // pred_check_branch
          %2451 = sbr.rel (%p2449) target = $region92
        $region91: #{forward.3} parent=71 // pred_region
          %v2460 = vrot.slane %v2225, 7
          %v2461 = vrot.slane %v2262, 6
          %v2462 = vrot.slane %v2299, 5
          %v2463 = vrot.slane %v2336, 4
          %v2464 = vrot.slane %v2373, 3
          %v2465 = vrot.slane %v2410, 2
          %v2466 = vrot.slane %v2447, 1
          %vm2467 = vcmask 1040384
          %v2468 = vsel %vm2467, %v2188, %v2460
          %vm2469 = vcmask 1042434
          %v2470 = vsel %vm2469, %v2461, %v2462
          %vm2471 = vcmask 1041408
          %v2472 = vsel %vm2471, %v2468, %v2470
          %vm2473 = vcmask 1044484
          %v2474 = vsel %vm2473, %v2463, %v2464
          %vm2475 = vcmask 1046534
          %v2476 = vsel %vm2475, %v2465, %v2466
          %vm2477 = vcmask 1045508
          %v2478 = vsel %vm2477, %v2474, %v2476
          %v2479 = vsel %vm693, %v2472, %v2478
          %2481 = vst [vmem:[#allocation2] sm:$0xff] %v2479
        $region92: #{forward.3} parent=71 // pred_fallthru
          _
        %p2482 = scmp.gt.s32.totalorder %s32, 0
        // Predicated region
        $region93: #{forward.3} parent=71 // pred_check
          %p2483 = pneg %p2482
        $region94: #{forward.3} parent=71 // pred_check_branch
          %2485 = sbr.rel (%p2483) target = $region96
        $region95: #{forward.3} parent=71 // pred_region
          %v2486 = vld [vmem:[#allocation2] sm:$0xff]
          %v2495 = vrot.slane %v2225, 7
          %v2496 = vrot.slane %v2262, 6
          %v2497 = vrot.slane %v2299, 5
          %v2498 = vrot.slane %v2336, 4
          %v2499 = vrot.slane %v2373, 3
          %v2500 = vrot.slane %v2410, 2
          %v2501 = vrot.slane %v2447, 1
          %vm2502 = vcmask 1040384
          %v2503 = vsel %vm2502, %v2188, %v2495
          %vm2504 = vcmask 1042434
          %v2505 = vsel %vm2504, %v2496, %v2497
          %vm2506 = vcmask 1041408
          %v2507 = vsel %vm2506, %v2503, %v2505
          %vm2508 = vcmask 1044484
          %v2509 = vsel %vm2508, %v2498, %v2499
          %vm2510 = vcmask 1046534
          %v2511 = vsel %vm2510, %v2500, %v2501
          %vm2512 = vcmask 1045508
          %v2513 = vsel %vm2512, %v2509, %v2511
          %v2514 = vsel %vm693, %v2507, %v2513
          %v2516 = vmax.f32 %v2486, %v2514
          %2517 = vst [vmem:[#allocation2] sm:$0xff] %v2516
        $region96: #{forward.3} parent=71 // pred_fallthru
          _
        // Predicated region
        $region97: #{forward.3} parent=71 // pred_check
          %p2518 = pneg %p2448
        $region98: #{forward.3} parent=71 // pred_check_branch
          %2520 = sbr.rel (%p2518) target = $region100
        $region99: #{forward.3} parent=71 // pred_region
          %v2521 = vld [vmem:[#allocation2] sm:$0xff]
          %v2522 = vld [vmem:[%s6] sm:$0xff]
          %v2523 = vadd.f32 %v2521, %v2522
          %v2524 = vmax.f32 %v2523, 0.0
          %v2526 = vperm.slane %v2524, 0
          %v2527 = vperm.slane %v2524, 1
          %v2528 = vperm.slane %v2524, 2
          %v2529 = vperm.slane %v2524, 3
          %v2530 = vperm.slane %v2524, 4
          %v2531 = vperm.slane %v2524, 5
          %v2532 = vperm.slane %v2524, 6
          %v2533 = vperm.slane %v2524, 7
          %v2542 = vpack.c.bf16 %v2526, %v2526
          %v2543 = vpack.c.bf16 %v2527, %v2527
          %v2544 = vpack.c.bf16 %v2528, %v2528
          %v2545 = vpack.c.bf16 %v2529, %v2529
          %v2546 = vpack.c.bf16 %v2530, %v2530
          %v2547 = vpack.c.bf16 %v2531, %v2531
          %v2548 = vpack.c.bf16 %v2532, %v2532
          %v2549 = vpack.c.bf16 %v2533, %v2533
          %v2550 = vld [vmem:[#allocation5] sm:$0xff]
          %v2551 = vld [vmem:[#allocation5 + $0x8] sm:$0xff]
          %v2552 = vld [vmem:[#allocation5 + $0x10] sm:$0xff]
          %v2553 = vld [vmem:[#allocation5 + $0x18] sm:$0xff]
          %v2554 = vld [vmem:[#allocation5 + $0x20] sm:$0xff]
          %v2555 = vld [vmem:[#allocation5 + $0x28] sm:$0xff]
          %v2556 = vld [vmem:[#allocation5 + $0x30] sm:$0xff]
          %v2557 = vld [vmem:[#allocation5 + $0x38] sm:$0xff]
          %v2558 = vld [vmem:[#allocation5 + $0x40] sm:$0xff]
          %v2559 = vld [vmem:[#allocation5 + $0x48] sm:$0xff]
          %v2560 = vld [vmem:[#allocation5 + $0x50] sm:$0xff]
          %v2561 = vld [vmem:[#allocation5 + $0x58] sm:$0xff]
          %v2562 = vld [vmem:[#allocation5 + $0x60] sm:$0xff]
          %v2563 = vld [vmem:[#allocation5 + $0x68] sm:$0xff]
          %v2564 = vld [vmem:[#allocation5 + $0x70] sm:$0xff]
          %v2565 = vld [vmem:[#allocation5 + $0x78] sm:$0xff]
          %v2566 = vld [vmem:[#allocation5 + $0x80] sm:$0xff]
          %v2567 = vld [vmem:[#allocation5 + $0x88] sm:$0xff]
          %v2568 = vld [vmem:[#allocation5 + $0x90] sm:$0xff]
          %v2569 = vld [vmem:[#allocation5 + $0x98] sm:$0xff]
          %v2570 = vld [vmem:[#allocation5 + $0xa0] sm:$0xff]
          %v2571 = vld [vmem:[#allocation5 + $0xa8] sm:$0xff]
          %v2572 = vld [vmem:[#allocation5 + $0xb0] sm:$0xff]
          %v2573 = vld [vmem:[#allocation5 + $0xb8] sm:$0xff]
          %v2574 = vld [vmem:[#allocation5 + $0xc0] sm:$0xff]
          %v2575 = vld [vmem:[#allocation5 + $0xc8] sm:$0xff]
          %v2576 = vld [vmem:[#allocation5 + $0xd0] sm:$0xff]
          %v2577 = vld [vmem:[#allocation5 + $0xd8] sm:$0xff]
          %v2578 = vld [vmem:[#allocation5 + $0xe0] sm:$0xff]
          %v2579 = vld [vmem:[#allocation5 + $0xe8] sm:$0xff]
          %v2580 = vld [vmem:[#allocation5 + $0xf0] sm:$0xff]
          %v2581 = vld [vmem:[#allocation5 + $0xf8] sm:$0xff]
          %v2582 = vld [vmem:[#allocation5 + $0x100] sm:$0xff]
          %v2583 = vld [vmem:[#allocation5 + $0x108] sm:$0xff]
          %v2584 = vld [vmem:[#allocation5 + $0x110] sm:$0xff]
          %v2585 = vld [vmem:[#allocation5 + $0x118] sm:$0xff]
          %v2586 = vld [vmem:[#allocation5 + $0x120] sm:$0xff]
          %v2587 = vld [vmem:[#allocation5 + $0x128] sm:$0xff]
          %v2588 = vld [vmem:[#allocation5 + $0x130] sm:$0xff]
          %v2589 = vld [vmem:[#allocation5 + $0x138] sm:$0xff]
          %v2590 = vld [vmem:[#allocation5 + $0x140] sm:$0xff]
          %v2591 = vld [vmem:[#allocation5 + $0x148] sm:$0xff]
          %v2592 = vld [vmem:[#allocation5 + $0x150] sm:$0xff]
          %v2593 = vld [vmem:[#allocation5 + $0x158] sm:$0xff]
          %v2594 = vld [vmem:[#allocation5 + $0x160] sm:$0xff]
          %v2595 = vld [vmem:[#allocation5 + $0x168] sm:$0xff]
          %v2596 = vld [vmem:[#allocation5 + $0x170] sm:$0xff]
          %v2597 = vld [vmem:[#allocation5 + $0x178] sm:$0xff]
          %v2598 = vld [vmem:[#allocation5 + $0x180] sm:$0xff]
          %v2599 = vld [vmem:[#allocation5 + $0x188] sm:$0xff]
          %v2600 = vld [vmem:[#allocation5 + $0x190] sm:$0xff]
          %v2601 = vld [vmem:[#allocation5 + $0x198] sm:$0xff]
          %v2602 = vld [vmem:[#allocation5 + $0x1a0] sm:$0xff]
          %v2603 = vld [vmem:[#allocation5 + $0x1a8] sm:$0xff]
          %v2604 = vld [vmem:[#allocation5 + $0x1b0] sm:$0xff]
          %v2605 = vld [vmem:[#allocation5 + $0x1b8] sm:$0xff]
          %v2606 = vld [vmem:[#allocation5 + $0x1c0] sm:$0xff]
          %v2607 = vld [vmem:[#allocation5 + $0x1c8] sm:$0xff]
          %v2608 = vld [vmem:[#allocation5 + $0x1d0] sm:$0xff]
          %v2609 = vld [vmem:[#allocation5 + $0x1d8] sm:$0xff]
          %v2610 = vld [vmem:[#allocation5 + $0x1e0] sm:$0xff]
          %v2611 = vld [vmem:[#allocation5 + $0x1e8] sm:$0xff]
          %v2612 = vld [vmem:[#allocation5 + $0x1f0] sm:$0xff]
          %v2613 = vld [vmem:[#allocation5 + $0x1f8] sm:$0xff]
          %v2614 = vld [vmem:[#allocation5 + $0x200] sm:$0xff]
          %v2615 = vld [vmem:[#allocation5 + $0x208] sm:$0xff]
          %v2616 = vld [vmem:[#allocation5 + $0x210] sm:$0xff]
          %v2617 = vld [vmem:[#allocation5 + $0x218] sm:$0xff]
          %v2618 = vld [vmem:[#allocation5 + $0x220] sm:$0xff]
          %v2619 = vld [vmem:[#allocation5 + $0x228] sm:$0xff]
          %v2620 = vld [vmem:[#allocation5 + $0x230] sm:$0xff]
          %v2621 = vld [vmem:[#allocation5 + $0x238] sm:$0xff]
          %v2622 = vld [vmem:[#allocation5 + $0x240] sm:$0xff]
          %v2623 = vld [vmem:[#allocation5 + $0x248] sm:$0xff]
          %v2624 = vld [vmem:[#allocation5 + $0x250] sm:$0xff]
          %v2625 = vld [vmem:[#allocation5 + $0x258] sm:$0xff]
          %v2626 = vld [vmem:[#allocation5 + $0x260] sm:$0xff]
          %v2627 = vld [vmem:[#allocation5 + $0x268] sm:$0xff]
          %v2628 = vld [vmem:[#allocation5 + $0x270] sm:$0xff]
          %v2629 = vld [vmem:[#allocation5 + $0x278] sm:$0xff]
          %v2630 = vld [vmem:[#allocation5 + $0x280] sm:$0xff]
          %v2631 = vld [vmem:[#allocation5 + $0x288] sm:$0xff]
          %v2632 = vld [vmem:[#allocation5 + $0x290] sm:$0xff]
          %v2633 = vld [vmem:[#allocation5 + $0x298] sm:$0xff]
          %v2634 = vld [vmem:[#allocation5 + $0x2a0] sm:$0xff]
          %v2635 = vld [vmem:[#allocation5 + $0x2a8] sm:$0xff]
          %v2636 = vld [vmem:[#allocation5 + $0x2b0] sm:$0xff]
          %v2637 = vld [vmem:[#allocation5 + $0x2b8] sm:$0xff]
          %v2638 = vld [vmem:[#allocation5 + $0x2c0] sm:$0xff]
          %v2639 = vld [vmem:[#allocation5 + $0x2c8] sm:$0xff]
          %v2640 = vld [vmem:[#allocation5 + $0x2d0] sm:$0xff]
          %v2641 = vld [vmem:[#allocation5 + $0x2d8] sm:$0xff]
          %v2642 = vld [vmem:[#allocation5 + $0x2e0] sm:$0xff]
          %v2643 = vld [vmem:[#allocation5 + $0x2e8] sm:$0xff]
          %v2644 = vld [vmem:[#allocation5 + $0x2f0] sm:$0xff]
          %v2645 = vld [vmem:[#allocation5 + $0x2f8] sm:$0xff]
          %v2646 = vld [vmem:[#allocation5 + $0x300] sm:$0xff]
          %v2647 = vld [vmem:[#allocation5 + $0x308] sm:$0xff]
          %v2648 = vld [vmem:[#allocation5 + $0x310] sm:$0xff]
          %v2649 = vld [vmem:[#allocation5 + $0x318] sm:$0xff]
          %v2650 = vld [vmem:[#allocation5 + $0x320] sm:$0xff]
          %v2651 = vld [vmem:[#allocation5 + $0x328] sm:$0xff]
          %v2652 = vld [vmem:[#allocation5 + $0x330] sm:$0xff]
          %v2653 = vld [vmem:[#allocation5 + $0x338] sm:$0xff]
          %v2654 = vld [vmem:[#allocation5 + $0x340] sm:$0xff]
          %v2655 = vld [vmem:[#allocation5 + $0x348] sm:$0xff]
          %v2656 = vld [vmem:[#allocation5 + $0x350] sm:$0xff]
          %v2657 = vld [vmem:[#allocation5 + $0x358] sm:$0xff]
          %v2658 = vld [vmem:[#allocation5 + $0x360] sm:$0xff]
          %v2659 = vld [vmem:[#allocation5 + $0x368] sm:$0xff]
          %v2660 = vld [vmem:[#allocation5 + $0x370] sm:$0xff]
          %v2661 = vld [vmem:[#allocation5 + $0x378] sm:$0xff]
          %v2662 = vld [vmem:[#allocation5 + $0x380] sm:$0xff]
          %v2663 = vld [vmem:[#allocation5 + $0x388] sm:$0xff]
          %v2664 = vld [vmem:[#allocation5 + $0x390] sm:$0xff]
          %v2665 = vld [vmem:[#allocation5 + $0x398] sm:$0xff]
          %v2666 = vld [vmem:[#allocation5 + $0x3a0] sm:$0xff]
          %v2667 = vld [vmem:[#allocation5 + $0x3a8] sm:$0xff]
          %v2668 = vld [vmem:[#allocation5 + $0x3b0] sm:$0xff]
          %v2669 = vld [vmem:[#allocation5 + $0x3b8] sm:$0xff]
          %v2670 = vld [vmem:[#allocation5 + $0x3c0] sm:$0xff]
          %v2671 = vld [vmem:[#allocation5 + $0x3c8] sm:$0xff]
          %v2672 = vld [vmem:[#allocation5 + $0x3d0] sm:$0xff]
          %v2673 = vld [vmem:[#allocation5 + $0x3d8] sm:$0xff]
          %v2674 = vld [vmem:[#allocation5 + $0x3e0] sm:$0xff]
          %v2675 = vld [vmem:[#allocation5 + $0x3e8] sm:$0xff]
          %v2676 = vld [vmem:[#allocation5 + $0x3f0] sm:$0xff]
          %v2677 = vld [vmem:[#allocation5 + $0x3f8] sm:$0xff]
          %v2678 = vld [vmem:[#allocation5 + $0x400] sm:$0xff]
          %v2679 = vld [vmem:[#allocation5 + $0x408] sm:$0xff]
          %v2680 = vld [vmem:[#allocation5 + $0x410] sm:$0xff]
          %v2681 = vld [vmem:[#allocation5 + $0x418] sm:$0xff]
          %v2682 = vld [vmem:[#allocation5 + $0x420] sm:$0xff]
          %v2683 = vld [vmem:[#allocation5 + $0x428] sm:$0xff]
          %v2684 = vld [vmem:[#allocation5 + $0x430] sm:$0xff]
          %v2685 = vld [vmem:[#allocation5 + $0x438] sm:$0xff]
          %v2686 = vld [vmem:[#allocation5 + $0x440] sm:$0xff]
          %v2687 = vld [vmem:[#allocation5 + $0x448] sm:$0xff]
          %v2688 = vld [vmem:[#allocation5 + $0x450] sm:$0xff]
          %v2689 = vld [vmem:[#allocation5 + $0x458] sm:$0xff]
          %v2690 = vld [vmem:[#allocation5 + $0x460] sm:$0xff]
          %v2691 = vld [vmem:[#allocation5 + $0x468] sm:$0xff]
          %v2692 = vld [vmem:[#allocation5 + $0x470] sm:$0xff]
          %v2693 = vld [vmem:[#allocation5 + $0x478] sm:$0xff]
          %v2694 = vld [vmem:[#allocation5 + $0x480] sm:$0xff]
          %v2695 = vld [vmem:[#allocation5 + $0x488] sm:$0xff]
          %v2696 = vld [vmem:[#allocation5 + $0x490] sm:$0xff]
          %v2697 = vld [vmem:[#allocation5 + $0x498] sm:$0xff]
          %v2698 = vld [vmem:[#allocation5 + $0x4a0] sm:$0xff]
          %v2699 = vld [vmem:[#allocation5 + $0x4a8] sm:$0xff]
          %v2700 = vld [vmem:[#allocation5 + $0x4b0] sm:$0xff]
          %v2701 = vld [vmem:[#allocation5 + $0x4b8] sm:$0xff]
          %v2702 = vld [vmem:[#allocation5 + $0x4c0] sm:$0xff]
          %v2703 = vld [vmem:[#allocation5 + $0x4c8] sm:$0xff]
          %v2704 = vld [vmem:[#allocation5 + $0x4d0] sm:$0xff]
          %v2705 = vld [vmem:[#allocation5 + $0x4d8] sm:$0xff]
          %v2706 = vld [vmem:[#allocation5 + $0x4e0] sm:$0xff]
          %v2707 = vld [vmem:[#allocation5 + $0x4e8] sm:$0xff]
          %v2708 = vld [vmem:[#allocation5 + $0x4f0] sm:$0xff]
          %v2709 = vld [vmem:[#allocation5 + $0x4f8] sm:$0xff]
          %v2710 = vld [vmem:[#allocation5 + $0x500] sm:$0xff]
          %v2711 = vld [vmem:[#allocation5 + $0x508] sm:$0xff]
          %v2712 = vld [vmem:[#allocation5 + $0x510] sm:$0xff]
          %v2713 = vld [vmem:[#allocation5 + $0x518] sm:$0xff]
          %v2714 = vld [vmem:[#allocation5 + $0x520] sm:$0xff]
          %v2715 = vld [vmem:[#allocation5 + $0x528] sm:$0xff]
          %v2716 = vld [vmem:[#allocation5 + $0x530] sm:$0xff]
          %v2717 = vld [vmem:[#allocation5 + $0x538] sm:$0xff]
          %v2718 = vld [vmem:[#allocation5 + $0x540] sm:$0xff]
          %v2719 = vld [vmem:[#allocation5 + $0x548] sm:$0xff]
          %v2720 = vld [vmem:[#allocation5 + $0x550] sm:$0xff]
          %v2721 = vld [vmem:[#allocation5 + $0x558] sm:$0xff]
          %v2722 = vld [vmem:[#allocation5 + $0x560] sm:$0xff]
          %v2723 = vld [vmem:[#allocation5 + $0x568] sm:$0xff]
          %v2724 = vld [vmem:[#allocation5 + $0x570] sm:$0xff]
          %v2725 = vld [vmem:[#allocation5 + $0x578] sm:$0xff]
          %v2726 = vld [vmem:[#allocation5 + $0x580] sm:$0xff]
          %v2727 = vld [vmem:[#allocation5 + $0x588] sm:$0xff]
          %v2728 = vld [vmem:[#allocation5 + $0x590] sm:$0xff]
          %v2729 = vld [vmem:[#allocation5 + $0x598] sm:$0xff]
          %v2730 = vld [vmem:[#allocation5 + $0x5a0] sm:$0xff]
          %v2731 = vld [vmem:[#allocation5 + $0x5a8] sm:$0xff]
          %v2732 = vld [vmem:[#allocation5 + $0x5b0] sm:$0xff]
          %v2733 = vld [vmem:[#allocation5 + $0x5b8] sm:$0xff]
          %v2734 = vld [vmem:[#allocation5 + $0x5c0] sm:$0xff]
          %v2735 = vld [vmem:[#allocation5 + $0x5c8] sm:$0xff]
          %v2736 = vld [vmem:[#allocation5 + $0x5d0] sm:$0xff]
          %v2737 = vld [vmem:[#allocation5 + $0x5d8] sm:$0xff]
          %v2738 = vld [vmem:[#allocation5 + $0x5e0] sm:$0xff]
          %v2739 = vld [vmem:[#allocation5 + $0x5e8] sm:$0xff]
          %v2740 = vld [vmem:[#allocation5 + $0x5f0] sm:$0xff]
          %v2741 = vld [vmem:[#allocation5 + $0x5f8] sm:$0xff]
          %v2742 = vld [vmem:[#allocation5 + $0x600] sm:$0xff]
          %v2743 = vld [vmem:[#allocation5 + $0x608] sm:$0xff]
          %v2744 = vld [vmem:[#allocation5 + $0x610] sm:$0xff]
          %v2745 = vld [vmem:[#allocation5 + $0x618] sm:$0xff]
          %v2746 = vld [vmem:[#allocation5 + $0x620] sm:$0xff]
          %v2747 = vld [vmem:[#allocation5 + $0x628] sm:$0xff]
          %v2748 = vld [vmem:[#allocation5 + $0x630] sm:$0xff]
          %v2749 = vld [vmem:[#allocation5 + $0x638] sm:$0xff]
          %v2750 = vld [vmem:[#allocation5 + $0x640] sm:$0xff]
          %v2751 = vld [vmem:[#allocation5 + $0x648] sm:$0xff]
          %v2752 = vld [vmem:[#allocation5 + $0x650] sm:$0xff]
          %v2753 = vld [vmem:[#allocation5 + $0x658] sm:$0xff]
          %v2754 = vld [vmem:[#allocation5 + $0x660] sm:$0xff]
          %v2755 = vld [vmem:[#allocation5 + $0x668] sm:$0xff]
          %v2756 = vld [vmem:[#allocation5 + $0x670] sm:$0xff]
          %v2757 = vld [vmem:[#allocation5 + $0x678] sm:$0xff]
          %v2758 = vld [vmem:[#allocation5 + $0x680] sm:$0xff]
          %v2759 = vld [vmem:[#allocation5 + $0x688] sm:$0xff]
          %v2760 = vld [vmem:[#allocation5 + $0x690] sm:$0xff]
          %v2761 = vld [vmem:[#allocation5 + $0x698] sm:$0xff]
          %v2762 = vld [vmem:[#allocation5 + $0x6a0] sm:$0xff]
          %v2763 = vld [vmem:[#allocation5 + $0x6a8] sm:$0xff]
          %v2764 = vld [vmem:[#allocation5 + $0x6b0] sm:$0xff]
          %v2765 = vld [vmem:[#allocation5 + $0x6b8] sm:$0xff]
          %v2766 = vld [vmem:[#allocation5 + $0x6c0] sm:$0xff]
          %v2767 = vld [vmem:[#allocation5 + $0x6c8] sm:$0xff]
          %v2768 = vld [vmem:[#allocation5 + $0x6d0] sm:$0xff]
          %v2769 = vld [vmem:[#allocation5 + $0x6d8] sm:$0xff]
          %v2770 = vld [vmem:[#allocation5 + $0x6e0] sm:$0xff]
          %v2771 = vld [vmem:[#allocation5 + $0x6e8] sm:$0xff]
          %v2772 = vld [vmem:[#allocation5 + $0x6f0] sm:$0xff]
          %v2773 = vld [vmem:[#allocation5 + $0x6f8] sm:$0xff]
          %v2774 = vld [vmem:[#allocation5 + $0x700] sm:$0xff]
          %v2775 = vld [vmem:[#allocation5 + $0x708] sm:$0xff]
          %v2776 = vld [vmem:[#allocation5 + $0x710] sm:$0xff]
          %v2777 = vld [vmem:[#allocation5 + $0x718] sm:$0xff]
          %v2778 = vld [vmem:[#allocation5 + $0x720] sm:$0xff]
          %v2779 = vld [vmem:[#allocation5 + $0x728] sm:$0xff]
          %v2780 = vld [vmem:[#allocation5 + $0x730] sm:$0xff]
          %v2781 = vld [vmem:[#allocation5 + $0x738] sm:$0xff]
          %v2782 = vld [vmem:[#allocation5 + $0x740] sm:$0xff]
          %v2783 = vld [vmem:[#allocation5 + $0x748] sm:$0xff]
          %v2784 = vld [vmem:[#allocation5 + $0x750] sm:$0xff]
          %v2785 = vld [vmem:[#allocation5 + $0x758] sm:$0xff]
          %v2786 = vld [vmem:[#allocation5 + $0x760] sm:$0xff]
          %v2787 = vld [vmem:[#allocation5 + $0x768] sm:$0xff]
          %v2788 = vld [vmem:[#allocation5 + $0x770] sm:$0xff]
          %v2789 = vld [vmem:[#allocation5 + $0x778] sm:$0xff]
          %v2790 = vld [vmem:[#allocation5 + $0x780] sm:$0xff]
          %v2791 = vld [vmem:[#allocation5 + $0x788] sm:$0xff]
          %v2792 = vld [vmem:[#allocation5 + $0x790] sm:$0xff]
          %v2793 = vld [vmem:[#allocation5 + $0x798] sm:$0xff]
          %v2794 = vld [vmem:[#allocation5 + $0x7a0] sm:$0xff]
          %v2795 = vld [vmem:[#allocation5 + $0x7a8] sm:$0xff]
          %v2796 = vld [vmem:[#allocation5 + $0x7b0] sm:$0xff]
          %v2797 = vld [vmem:[#allocation5 + $0x7b8] sm:$0xff]
          %v2798 = vld [vmem:[#allocation5 + $0x7c0] sm:$0xff]
          %v2799 = vld [vmem:[#allocation5 + $0x7c8] sm:$0xff]
          %v2800 = vld [vmem:[#allocation5 + $0x7d0] sm:$0xff]
          %v2801 = vld [vmem:[#allocation5 + $0x7d8] sm:$0xff]
          %v2802 = vld [vmem:[#allocation5 + $0x7e0] sm:$0xff]
          %v2803 = vld [vmem:[#allocation5 + $0x7e8] sm:$0xff]
          %v2804 = vld [vmem:[#allocation5 + $0x7f0] sm:$0xff]
          %v2805 = vld [vmem:[#allocation5 + $0x7f8] sm:$0xff]
          %v2806 = vld [vmem:[#allocation7] sm:$0xf]
          %v3063 = vunpack.c.l.b16 %v2550
          %v3064 = vunpack.c.h.b16 %v2550
          %v3065 = vunpack.c.l.b16 %v2551
          %v3066 = vunpack.c.h.b16 %v2551
          %v3067 = vunpack.c.l.b16 %v2552
          %v3068 = vunpack.c.h.b16 %v2552
          %v3069 = vunpack.c.l.b16 %v2553
          %v3070 = vunpack.c.h.b16 %v2553
          %v3071 = vunpack.c.l.b16 %v2554
          %v3072 = vunpack.c.h.b16 %v2554
          %v3073 = vunpack.c.l.b16 %v2555
          %v3074 = vunpack.c.h.b16 %v2555
          %v3075 = vunpack.c.l.b16 %v2556
          %v3076 = vunpack.c.h.b16 %v2556
          %v3077 = vunpack.c.l.b16 %v2557
          %v3078 = vunpack.c.h.b16 %v2557
          %v3079 = vunpack.c.l.b16 %v2558
          %v3080 = vunpack.c.h.b16 %v2558
          %v3081 = vunpack.c.l.b16 %v2559
          %v3082 = vunpack.c.h.b16 %v2559
          %v3083 = vunpack.c.l.b16 %v2560
          %v3084 = vunpack.c.h.b16 %v2560
          %v3085 = vunpack.c.l.b16 %v2561
          %v3086 = vunpack.c.h.b16 %v2561
          %v3087 = vunpack.c.l.b16 %v2562
          %v3088 = vunpack.c.h.b16 %v2562
          %v3089 = vunpack.c.l.b16 %v2563
          %v3090 = vunpack.c.h.b16 %v2563
          %v3091 = vunpack.c.l.b16 %v2564
          %v3092 = vunpack.c.h.b16 %v2564
          %v3093 = vunpack.c.l.b16 %v2565
          %v3094 = vunpack.c.h.b16 %v2565
          %v3095 = vunpack.c.l.b16 %v2566
          %v3096 = vunpack.c.h.b16 %v2566
          %v3097 = vunpack.c.l.b16 %v2567
          %v3098 = vunpack.c.h.b16 %v2567
          %v3099 = vunpack.c.l.b16 %v2568
          %v3100 = vunpack.c.h.b16 %v2568
          %v3101 = vunpack.c.l.b16 %v2569
          %v3102 = vunpack.c.h.b16 %v2569
          %v3103 = vunpack.c.l.b16 %v2570
          %v3104 = vunpack.c.h.b16 %v2570
          %v3105 = vunpack.c.l.b16 %v2571
          %v3106 = vunpack.c.h.b16 %v2571
          %v3107 = vunpack.c.l.b16 %v2572
          %v3108 = vunpack.c.h.b16 %v2572
          %v3109 = vunpack.c.l.b16 %v2573
          %v3110 = vunpack.c.h.b16 %v2573
          %v3111 = vunpack.c.l.b16 %v2574
          %v3112 = vunpack.c.h.b16 %v2574
          %v3113 = vunpack.c.l.b16 %v2575
          %v3114 = vunpack.c.h.b16 %v2575
          %v3115 = vunpack.c.l.b16 %v2576
          %v3116 = vunpack.c.h.b16 %v2576
          %v3117 = vunpack.c.l.b16 %v2577
          %v3118 = vunpack.c.h.b16 %v2577
          %v3119 = vunpack.c.l.b16 %v2578
          %v3120 = vunpack.c.h.b16 %v2578
          %v3121 = vunpack.c.l.b16 %v2579
          %v3122 = vunpack.c.h.b16 %v2579
          %v3123 = vunpack.c.l.b16 %v2580
          %v3124 = vunpack.c.h.b16 %v2580
          %v3125 = vunpack.c.l.b16 %v2581
          %v3126 = vunpack.c.h.b16 %v2581
          %v3127 = vunpack.c.l.b16 %v2582
          %v3128 = vunpack.c.h.b16 %v2582
          %v3129 = vunpack.c.l.b16 %v2583
          %v3130 = vunpack.c.h.b16 %v2583
          %v3131 = vunpack.c.l.b16 %v2584
          %v3132 = vunpack.c.h.b16 %v2584
          %v3133 = vunpack.c.l.b16 %v2585
          %v3134 = vunpack.c.h.b16 %v2585
          %v3135 = vunpack.c.l.b16 %v2586
          %v3136 = vunpack.c.h.b16 %v2586
          %v3137 = vunpack.c.l.b16 %v2587
          %v3138 = vunpack.c.h.b16 %v2587
          %v3139 = vunpack.c.l.b16 %v2588
          %v3140 = vunpack.c.h.b16 %v2588
          %v3141 = vunpack.c.l.b16 %v2589
          %v3142 = vunpack.c.h.b16 %v2589
          %v3143 = vunpack.c.l.b16 %v2590
          %v3144 = vunpack.c.h.b16 %v2590
          %v3145 = vunpack.c.l.b16 %v2591
          %v3146 = vunpack.c.h.b16 %v2591
          %v3147 = vunpack.c.l.b16 %v2592
          %v3148 = vunpack.c.h.b16 %v2592
          %v3149 = vunpack.c.l.b16 %v2593
          %v3150 = vunpack.c.h.b16 %v2593
          %v3151 = vunpack.c.l.b16 %v2594
          %v3152 = vunpack.c.h.b16 %v2594
          %v3153 = vunpack.c.l.b16 %v2595
          %v3154 = vunpack.c.h.b16 %v2595
          %v3155 = vunpack.c.l.b16 %v2596
          %v3156 = vunpack.c.h.b16 %v2596
          %v3157 = vunpack.c.l.b16 %v2597
          %v3158 = vunpack.c.h.b16 %v2597
          %v3159 = vunpack.c.l.b16 %v2598
          %v3160 = vunpack.c.h.b16 %v2598
          %v3161 = vunpack.c.l.b16 %v2599
          %v3162 = vunpack.c.h.b16 %v2599
          %v3163 = vunpack.c.l.b16 %v2600
          %v3164 = vunpack.c.h.b16 %v2600
          %v3165 = vunpack.c.l.b16 %v2601
          %v3166 = vunpack.c.h.b16 %v2601
          %v3167 = vunpack.c.l.b16 %v2602
          %v3168 = vunpack.c.h.b16 %v2602
          %v3169 = vunpack.c.l.b16 %v2603
          %v3170 = vunpack.c.h.b16 %v2603
          %v3171 = vunpack.c.l.b16 %v2604
          %v3172 = vunpack.c.h.b16 %v2604
          %v3173 = vunpack.c.l.b16 %v2605
          %v3174 = vunpack.c.h.b16 %v2605
          %v3175 = vunpack.c.l.b16 %v2606
          %v3176 = vunpack.c.h.b16 %v2606
          %v3177 = vunpack.c.l.b16 %v2607
          %v3178 = vunpack.c.h.b16 %v2607
          %v3179 = vunpack.c.l.b16 %v2608
          %v3180 = vunpack.c.h.b16 %v2608
          %v3181 = vunpack.c.l.b16 %v2609
          %v3182 = vunpack.c.h.b16 %v2609
          %v3183 = vunpack.c.l.b16 %v2610
          %v3184 = vunpack.c.h.b16 %v2610
          %v3185 = vunpack.c.l.b16 %v2611
          %v3186 = vunpack.c.h.b16 %v2611
          %v3187 = vunpack.c.l.b16 %v2612
          %v3188 = vunpack.c.h.b16 %v2612
          %v3189 = vunpack.c.l.b16 %v2613
          %v3190 = vunpack.c.h.b16 %v2613
          %v3191 = vunpack.c.l.b16 %v2614
          %v3192 = vunpack.c.h.b16 %v2614
          %v3193 = vunpack.c.l.b16 %v2615
          %v3194 = vunpack.c.h.b16 %v2615
          %v3195 = vunpack.c.l.b16 %v2616
          %v3196 = vunpack.c.h.b16 %v2616
          %v3197 = vunpack.c.l.b16 %v2617
          %v3198 = vunpack.c.h.b16 %v2617
          %v3199 = vunpack.c.l.b16 %v2618
          %v3200 = vunpack.c.h.b16 %v2618
          %v3201 = vunpack.c.l.b16 %v2619
          %v3202 = vunpack.c.h.b16 %v2619
          %v3203 = vunpack.c.l.b16 %v2620
          %v3204 = vunpack.c.h.b16 %v2620
          %v3205 = vunpack.c.l.b16 %v2621
          %v3206 = vunpack.c.h.b16 %v2621
          %v3207 = vunpack.c.l.b16 %v2622
          %v3208 = vunpack.c.h.b16 %v2622
          %v3209 = vunpack.c.l.b16 %v2623
          %v3210 = vunpack.c.h.b16 %v2623
          %v3211 = vunpack.c.l.b16 %v2624
          %v3212 = vunpack.c.h.b16 %v2624
          %v3213 = vunpack.c.l.b16 %v2625
          %v3214 = vunpack.c.h.b16 %v2625
          %v3215 = vunpack.c.l.b16 %v2626
          %v3216 = vunpack.c.h.b16 %v2626
          %v3217 = vunpack.c.l.b16 %v2627
          %v3218 = vunpack.c.h.b16 %v2627
          %v3219 = vunpack.c.l.b16 %v2628
          %v3220 = vunpack.c.h.b16 %v2628
          %v3221 = vunpack.c.l.b16 %v2629
          %v3222 = vunpack.c.h.b16 %v2629
          %v3223 = vunpack.c.l.b16 %v2630
          %v3224 = vunpack.c.h.b16 %v2630
          %v3225 = vunpack.c.l.b16 %v2631
          %v3226 = vunpack.c.h.b16 %v2631
          %v3227 = vunpack.c.l.b16 %v2632
          %v3228 = vunpack.c.h.b16 %v2632
          %v3229 = vunpack.c.l.b16 %v2633
          %v3230 = vunpack.c.h.b16 %v2633
          %v3231 = vunpack.c.l.b16 %v2634
          %v3232 = vunpack.c.h.b16 %v2634
          %v3233 = vunpack.c.l.b16 %v2635
          %v3234 = vunpack.c.h.b16 %v2635
          %v3235 = vunpack.c.l.b16 %v2636
          %v3236 = vunpack.c.h.b16 %v2636
          %v3237 = vunpack.c.l.b16 %v2637
          %v3238 = vunpack.c.h.b16 %v2637
          %v3239 = vunpack.c.l.b16 %v2638
          %v3240 = vunpack.c.h.b16 %v2638
          %v3241 = vunpack.c.l.b16 %v2639
          %v3242 = vunpack.c.h.b16 %v2639
          %v3243 = vunpack.c.l.b16 %v2640
          %v3244 = vunpack.c.h.b16 %v2640
          %v3245 = vunpack.c.l.b16 %v2641
          %v3246 = vunpack.c.h.b16 %v2641
          %v3247 = vunpack.c.l.b16 %v2642
          %v3248 = vunpack.c.h.b16 %v2642
          %v3249 = vunpack.c.l.b16 %v2643
          %v3250 = vunpack.c.h.b16 %v2643
          %v3251 = vunpack.c.l.b16 %v2644
          %v3252 = vunpack.c.h.b16 %v2644
          %v3253 = vunpack.c.l.b16 %v2645
          %v3254 = vunpack.c.h.b16 %v2645
          %v3255 = vunpack.c.l.b16 %v2646
          %v3256 = vunpack.c.h.b16 %v2646
          %v3257 = vunpack.c.l.b16 %v2647
          %v3258 = vunpack.c.h.b16 %v2647
          %v3259 = vunpack.c.l.b16 %v2648
          %v3260 = vunpack.c.h.b16 %v2648
          %v3261 = vunpack.c.l.b16 %v2649
          %v3262 = vunpack.c.h.b16 %v2649
          %v3263 = vunpack.c.l.b16 %v2650
          %v3264 = vunpack.c.h.b16 %v2650
          %v3265 = vunpack.c.l.b16 %v2651
          %v3266 = vunpack.c.h.b16 %v2651
          %v3267 = vunpack.c.l.b16 %v2652
          %v3268 = vunpack.c.h.b16 %v2652
          %v3269 = vunpack.c.l.b16 %v2653
          %v3270 = vunpack.c.h.b16 %v2653
          %v3271 = vunpack.c.l.b16 %v2654
          %v3272 = vunpack.c.h.b16 %v2654
          %v3273 = vunpack.c.l.b16 %v2655
          %v3274 = vunpack.c.h.b16 %v2655
          %v3275 = vunpack.c.l.b16 %v2656
          %v3276 = vunpack.c.h.b16 %v2656
          %v3277 = vunpack.c.l.b16 %v2657
          %v3278 = vunpack.c.h.b16 %v2657
          %v3279 = vunpack.c.l.b16 %v2658
          %v3280 = vunpack.c.h.b16 %v2658
          %v3281 = vunpack.c.l.b16 %v2659
          %v3282 = vunpack.c.h.b16 %v2659
          %v3283 = vunpack.c.l.b16 %v2660
          %v3284 = vunpack.c.h.b16 %v2660
          %v3285 = vunpack.c.l.b16 %v2661
          %v3286 = vunpack.c.h.b16 %v2661
          %v3287 = vunpack.c.l.b16 %v2662
          %v3288 = vunpack.c.h.b16 %v2662
          %v3289 = vunpack.c.l.b16 %v2663
          %v3290 = vunpack.c.h.b16 %v2663
          %v3291 = vunpack.c.l.b16 %v2664
          %v3292 = vunpack.c.h.b16 %v2664
          %v3293 = vunpack.c.l.b16 %v2665
          %v3294 = vunpack.c.h.b16 %v2665
          %v3295 = vunpack.c.l.b16 %v2666
          %v3296 = vunpack.c.h.b16 %v2666
          %v3297 = vunpack.c.l.b16 %v2667
          %v3298 = vunpack.c.h.b16 %v2667
          %v3299 = vunpack.c.l.b16 %v2668
          %v3300 = vunpack.c.h.b16 %v2668
          %v3301 = vunpack.c.l.b16 %v2669
          %v3302 = vunpack.c.h.b16 %v2669
          %v3303 = vunpack.c.l.b16 %v2670
          %v3304 = vunpack.c.h.b16 %v2670
          %v3305 = vunpack.c.l.b16 %v2671
          %v3306 = vunpack.c.h.b16 %v2671
          %v3307 = vunpack.c.l.b16 %v2672
          %v3308 = vunpack.c.h.b16 %v2672
          %v3309 = vunpack.c.l.b16 %v2673
          %v3310 = vunpack.c.h.b16 %v2673
          %v3311 = vunpack.c.l.b16 %v2674
          %v3312 = vunpack.c.h.b16 %v2674
          %v3313 = vunpack.c.l.b16 %v2675
          %v3314 = vunpack.c.h.b16 %v2675
          %v3315 = vunpack.c.l.b16 %v2676
          %v3316 = vunpack.c.h.b16 %v2676
          %v3317 = vunpack.c.l.b16 %v2677
          %v3318 = vunpack.c.h.b16 %v2677
          %v3319 = vunpack.c.l.b16 %v2678
          %v3320 = vunpack.c.h.b16 %v2678
          %v3321 = vunpack.c.l.b16 %v2679
          %v3322 = vunpack.c.h.b16 %v2679
          %v3323 = vunpack.c.l.b16 %v2680
          %v3324 = vunpack.c.h.b16 %v2680
          %v3325 = vunpack.c.l.b16 %v2681
          %v3326 = vunpack.c.h.b16 %v2681
          %v3327 = vunpack.c.l.b16 %v2682
          %v3328 = vunpack.c.h.b16 %v2682
          %v3329 = vunpack.c.l.b16 %v2683
          %v3330 = vunpack.c.h.b16 %v2683
          %v3331 = vunpack.c.l.b16 %v2684
          %v3332 = vunpack.c.h.b16 %v2684
          %v3333 = vunpack.c.l.b16 %v2685
          %v3334 = vunpack.c.h.b16 %v2685
          %v3335 = vunpack.c.l.b16 %v2686
          %v3336 = vunpack.c.h.b16 %v2686
          %v3337 = vunpack.c.l.b16 %v2687
          %v3338 = vunpack.c.h.b16 %v2687
          %v3339 = vunpack.c.l.b16 %v2688
          %v3340 = vunpack.c.h.b16 %v2688
          %v3341 = vunpack.c.l.b16 %v2689
          %v3342 = vunpack.c.h.b16 %v2689
          %v3343 = vunpack.c.l.b16 %v2690
          %v3344 = vunpack.c.h.b16 %v2690
          %v3345 = vunpack.c.l.b16 %v2691
          %v3346 = vunpack.c.h.b16 %v2691
          %v3347 = vunpack.c.l.b16 %v2692
          %v3348 = vunpack.c.h.b16 %v2692
          %v3349 = vunpack.c.l.b16 %v2693
          %v3350 = vunpack.c.h.b16 %v2693
          %v3351 = vunpack.c.l.b16 %v2694
          %v3352 = vunpack.c.h.b16 %v2694
          %v3353 = vunpack.c.l.b16 %v2695
          %v3354 = vunpack.c.h.b16 %v2695
          %v3355 = vunpack.c.l.b16 %v2696
          %v3356 = vunpack.c.h.b16 %v2696
          %v3357 = vunpack.c.l.b16 %v2697
          %v3358 = vunpack.c.h.b16 %v2697
          %v3359 = vunpack.c.l.b16 %v2698
          %v3360 = vunpack.c.h.b16 %v2698
          %v3361 = vunpack.c.l.b16 %v2699
          %v3362 = vunpack.c.h.b16 %v2699
          %v3363 = vunpack.c.l.b16 %v2700
          %v3364 = vunpack.c.h.b16 %v2700
          %v3365 = vunpack.c.l.b16 %v2701
          %v3366 = vunpack.c.h.b16 %v2701
          %v3367 = vunpack.c.l.b16 %v2702
          %v3368 = vunpack.c.h.b16 %v2702
          %v3369 = vunpack.c.l.b16 %v2703
          %v3370 = vunpack.c.h.b16 %v2703
          %v3371 = vunpack.c.l.b16 %v2704
          %v3372 = vunpack.c.h.b16 %v2704
          %v3373 = vunpack.c.l.b16 %v2705
          %v3374 = vunpack.c.h.b16 %v2705
          %v3375 = vunpack.c.l.b16 %v2706
          %v3376 = vunpack.c.h.b16 %v2706
          %v3377 = vunpack.c.l.b16 %v2707
          %v3378 = vunpack.c.h.b16 %v2707
          %v3379 = vunpack.c.l.b16 %v2708
          %v3380 = vunpack.c.h.b16 %v2708
          %v3381 = vunpack.c.l.b16 %v2709
          %v3382 = vunpack.c.h.b16 %v2709
          %v3383 = vunpack.c.l.b16 %v2710
          %v3384 = vunpack.c.h.b16 %v2710
          %v3385 = vunpack.c.l.b16 %v2711
          %v3386 = vunpack.c.h.b16 %v2711
          %v3387 = vunpack.c.l.b16 %v2712
          %v3388 = vunpack.c.h.b16 %v2712
          %v3389 = vunpack.c.l.b16 %v2713
          %v3390 = vunpack.c.h.b16 %v2713
          %v3391 = vunpack.c.l.b16 %v2714
          %v3392 = vunpack.c.h.b16 %v2714
          %v3393 = vunpack.c.l.b16 %v2715
          %v3394 = vunpack.c.h.b16 %v2715
          %v3395 = vunpack.c.l.b16 %v2716
          %v3396 = vunpack.c.h.b16 %v2716
          %v3397 = vunpack.c.l.b16 %v2717
          %v3398 = vunpack.c.h.b16 %v2717
          %v3399 = vunpack.c.l.b16 %v2718
          %v3400 = vunpack.c.h.b16 %v2718
          %v3401 = vunpack.c.l.b16 %v2719
          %v3402 = vunpack.c.h.b16 %v2719
          %v3403 = vunpack.c.l.b16 %v2720
          %v3404 = vunpack.c.h.b16 %v2720
          %v3405 = vunpack.c.l.b16 %v2721
          %v3406 = vunpack.c.h.b16 %v2721
          %v3407 = vunpack.c.l.b16 %v2722
          %v3408 = vunpack.c.h.b16 %v2722
          %v3409 = vunpack.c.l.b16 %v2723
          %v3410 = vunpack.c.h.b16 %v2723
          %v3411 = vunpack.c.l.b16 %v2724
          %v3412 = vunpack.c.h.b16 %v2724
          %v3413 = vunpack.c.l.b16 %v2725
          %v3414 = vunpack.c.h.b16 %v2725
          %v3415 = vunpack.c.l.b16 %v2726
          %v3416 = vunpack.c.h.b16 %v2726
          %v3417 = vunpack.c.l.b16 %v2727
          %v3418 = vunpack.c.h.b16 %v2727
          %v3419 = vunpack.c.l.b16 %v2728
          %v3420 = vunpack.c.h.b16 %v2728
          %v3421 = vunpack.c.l.b16 %v2729
          %v3422 = vunpack.c.h.b16 %v2729
          %v3423 = vunpack.c.l.b16 %v2730
          %v3424 = vunpack.c.h.b16 %v2730
          %v3425 = vunpack.c.l.b16 %v2731
          %v3426 = vunpack.c.h.b16 %v2731
          %v3427 = vunpack.c.l.b16 %v2732
          %v3428 = vunpack.c.h.b16 %v2732
          %v3429 = vunpack.c.l.b16 %v2733
          %v3430 = vunpack.c.h.b16 %v2733
          %v3431 = vunpack.c.l.b16 %v2734
          %v3432 = vunpack.c.h.b16 %v2734
          %v3433 = vunpack.c.l.b16 %v2735
          %v3434 = vunpack.c.h.b16 %v2735
          %v3435 = vunpack.c.l.b16 %v2736
          %v3436 = vunpack.c.h.b16 %v2736
          %v3437 = vunpack.c.l.b16 %v2737
          %v3438 = vunpack.c.h.b16 %v2737
          %v3439 = vunpack.c.l.b16 %v2738
          %v3440 = vunpack.c.h.b16 %v2738
          %v3441 = vunpack.c.l.b16 %v2739
          %v3442 = vunpack.c.h.b16 %v2739
          %v3443 = vunpack.c.l.b16 %v2740
          %v3444 = vunpack.c.h.b16 %v2740
          %v3445 = vunpack.c.l.b16 %v2741
          %v3446 = vunpack.c.h.b16 %v2741
          %v3447 = vunpack.c.l.b16 %v2742
          %v3448 = vunpack.c.h.b16 %v2742
          %v3449 = vunpack.c.l.b16 %v2743
          %v3450 = vunpack.c.h.b16 %v2743
          %v3451 = vunpack.c.l.b16 %v2744
          %v3452 = vunpack.c.h.b16 %v2744
          %v3453 = vunpack.c.l.b16 %v2745
          %v3454 = vunpack.c.h.b16 %v2745
          %v3455 = vunpack.c.l.b16 %v2746
          %v3456 = vunpack.c.h.b16 %v2746
          %v3457 = vunpack.c.l.b16 %v2747
          %v3458 = vunpack.c.h.b16 %v2747
          %v3459 = vunpack.c.l.b16 %v2748
          %v3460 = vunpack.c.h.b16 %v2748
          %v3461 = vunpack.c.l.b16 %v2749
          %v3462 = vunpack.c.h.b16 %v2749
          %v3463 = vunpack.c.l.b16 %v2750
          %v3464 = vunpack.c.h.b16 %v2750
          %v3465 = vunpack.c.l.b16 %v2751
          %v3466 = vunpack.c.h.b16 %v2751
          %v3467 = vunpack.c.l.b16 %v2752
          %v3468 = vunpack.c.h.b16 %v2752
          %v3469 = vunpack.c.l.b16 %v2753
          %v3470 = vunpack.c.h.b16 %v2753
          %v3471 = vunpack.c.l.b16 %v2754
          %v3472 = vunpack.c.h.b16 %v2754
          %v3473 = vunpack.c.l.b16 %v2755
          %v3474 = vunpack.c.h.b16 %v2755
          %v3475 = vunpack.c.l.b16 %v2756
          %v3476 = vunpack.c.h.b16 %v2756
          %v3477 = vunpack.c.l.b16 %v2757
          %v3478 = vunpack.c.h.b16 %v2757
          %v3479 = vunpack.c.l.b16 %v2758
          %v3480 = vunpack.c.h.b16 %v2758
          %v3481 = vunpack.c.l.b16 %v2759
          %v3482 = vunpack.c.h.b16 %v2759
          %v3483 = vunpack.c.l.b16 %v2760
          %v3484 = vunpack.c.h.b16 %v2760
          %v3485 = vunpack.c.l.b16 %v2761
          %v3486 = vunpack.c.h.b16 %v2761
          %v3487 = vunpack.c.l.b16 %v2762
          %v3488 = vunpack.c.h.b16 %v2762
          %v3489 = vunpack.c.l.b16 %v2763
          %v3490 = vunpack.c.h.b16 %v2763
          %v3491 = vunpack.c.l.b16 %v2764
          %v3492 = vunpack.c.h.b16 %v2764
          %v3493 = vunpack.c.l.b16 %v2765
          %v3494 = vunpack.c.h.b16 %v2765
          %v3495 = vunpack.c.l.b16 %v2766
          %v3496 = vunpack.c.h.b16 %v2766
          %v3497 = vunpack.c.l.b16 %v2767
          %v3498 = vunpack.c.h.b16 %v2767
          %v3499 = vunpack.c.l.b16 %v2768
          %v3500 = vunpack.c.h.b16 %v2768
          %v3501 = vunpack.c.l.b16 %v2769
          %v3502 = vunpack.c.h.b16 %v2769
          %v3503 = vunpack.c.l.b16 %v2770
          %v3504 = vunpack.c.h.b16 %v2770
          %v3505 = vunpack.c.l.b16 %v2771
          %v3506 = vunpack.c.h.b16 %v2771
          %v3507 = vunpack.c.l.b16 %v2772
          %v3508 = vunpack.c.h.b16 %v2772
          %v3509 = vunpack.c.l.b16 %v2773
          %v3510 = vunpack.c.h.b16 %v2773
          %v3511 = vunpack.c.l.b16 %v2774
          %v3512 = vunpack.c.h.b16 %v2774
          %v3513 = vunpack.c.l.b16 %v2775
          %v3514 = vunpack.c.h.b16 %v2775
          %v3515 = vunpack.c.l.b16 %v2776
          %v3516 = vunpack.c.h.b16 %v2776
          %v3517 = vunpack.c.l.b16 %v2777
          %v3518 = vunpack.c.h.b16 %v2777
          %v3519 = vunpack.c.l.b16 %v2778
          %v3520 = vunpack.c.h.b16 %v2778
          %v3521 = vunpack.c.l.b16 %v2779
          %v3522 = vunpack.c.h.b16 %v2779
          %v3523 = vunpack.c.l.b16 %v2780
          %v3524 = vunpack.c.h.b16 %v2780
          %v3525 = vunpack.c.l.b16 %v2781
          %v3526 = vunpack.c.h.b16 %v2781
          %v3527 = vunpack.c.l.b16 %v2782
          %v3528 = vunpack.c.h.b16 %v2782
          %v3529 = vunpack.c.l.b16 %v2783
          %v3530 = vunpack.c.h.b16 %v2783
          %v3531 = vunpack.c.l.b16 %v2784
          %v3532 = vunpack.c.h.b16 %v2784
          %v3533 = vunpack.c.l.b16 %v2785
          %v3534 = vunpack.c.h.b16 %v2785
          %v3535 = vunpack.c.l.b16 %v2786
          %v3536 = vunpack.c.h.b16 %v2786
          %v3537 = vunpack.c.l.b16 %v2787
          %v3538 = vunpack.c.h.b16 %v2787
          %v3539 = vunpack.c.l.b16 %v2788
          %v3540 = vunpack.c.h.b16 %v2788
          %v3541 = vunpack.c.l.b16 %v2789
          %v3542 = vunpack.c.h.b16 %v2789
          %v3543 = vunpack.c.l.b16 %v2790
          %v3544 = vunpack.c.h.b16 %v2790
          %v3545 = vunpack.c.l.b16 %v2791
          %v3546 = vunpack.c.h.b16 %v2791
          %v3547 = vunpack.c.l.b16 %v2792
          %v3548 = vunpack.c.h.b16 %v2792
          %v3549 = vunpack.c.l.b16 %v2793
          %v3550 = vunpack.c.h.b16 %v2793
          %v3551 = vunpack.c.l.b16 %v2794
          %v3552 = vunpack.c.h.b16 %v2794
          %v3553 = vunpack.c.l.b16 %v2795
          %v3554 = vunpack.c.h.b16 %v2795
          %v3555 = vunpack.c.l.b16 %v2796
          %v3556 = vunpack.c.h.b16 %v2796
          %v3557 = vunpack.c.l.b16 %v2797
          %v3558 = vunpack.c.h.b16 %v2797
          %v3559 = vunpack.c.l.b16 %v2798
          %v3560 = vunpack.c.h.b16 %v2798
          %v3561 = vunpack.c.l.b16 %v2799
          %v3562 = vunpack.c.h.b16 %v2799
          %v3563 = vunpack.c.l.b16 %v2800
          %v3564 = vunpack.c.h.b16 %v2800
          %v3565 = vunpack.c.l.b16 %v2801
          %v3566 = vunpack.c.h.b16 %v2801
          %v3567 = vunpack.c.l.b16 %v2802
          %v3568 = vunpack.c.h.b16 %v2802
          %v3569 = vunpack.c.l.b16 %v2803
          %v3570 = vunpack.c.h.b16 %v2803
          %v3571 = vunpack.c.l.b16 %v2804
          %v3572 = vunpack.c.h.b16 %v2804
          %v3573 = vunpack.c.l.b16 %v2805
          %v3574 = vunpack.c.h.b16 %v2805
          %v3575 = vpack.c.b16 %v3067, %v3063
          %v3576 = vpack.c.b16 %v3068, %v3064
          %v3577 = vpack.c.b16 %v3069, %v3065
          %v3578 = vpack.c.b16 %v3070, %v3066
          %v3579 = vpack.c.b16 %v3075, %v3071
          %v3580 = vpack.c.b16 %v3076, %v3072
          %v3581 = vpack.c.b16 %v3077, %v3073
          %v3582 = vpack.c.b16 %v3078, %v3074
          %v3583 = vpack.c.b16 %v3083, %v3079
          %v3584 = vpack.c.b16 %v3084, %v3080
          %v3585 = vpack.c.b16 %v3085, %v3081
          %v3586 = vpack.c.b16 %v3086, %v3082
          %v3587 = vpack.c.b16 %v3091, %v3087
          %v3588 = vpack.c.b16 %v3092, %v3088
          %v3589 = vpack.c.b16 %v3093, %v3089
          %v3590 = vpack.c.b16 %v3094, %v3090
          %v3591 = vpack.c.b16 %v3099, %v3095
          %v3592 = vpack.c.b16 %v3100, %v3096
          %v3593 = vpack.c.b16 %v3101, %v3097
          %v3594 = vpack.c.b16 %v3102, %v3098
          %v3595 = vpack.c.b16 %v3107, %v3103
          %v3596 = vpack.c.b16 %v3108, %v3104
          %v3597 = vpack.c.b16 %v3109, %v3105
          %v3598 = vpack.c.b16 %v3110, %v3106
          %v3599 = vpack.c.b16 %v3115, %v3111
          %v3600 = vpack.c.b16 %v3116, %v3112
          %v3601 = vpack.c.b16 %v3117, %v3113
          %v3602 = vpack.c.b16 %v3118, %v3114
          %v3603 = vpack.c.b16 %v3123, %v3119
          %v3604 = vpack.c.b16 %v3124, %v3120
          %v3605 = vpack.c.b16 %v3125, %v3121
          %v3606 = vpack.c.b16 %v3126, %v3122
          %v3607 = vpack.c.b16 %v3131, %v3127
          %v3608 = vpack.c.b16 %v3132, %v3128
          %v3609 = vpack.c.b16 %v3133, %v3129
          %v3610 = vpack.c.b16 %v3134, %v3130
          %v3611 = vpack.c.b16 %v3139, %v3135
          %v3612 = vpack.c.b16 %v3140, %v3136
          %v3613 = vpack.c.b16 %v3141, %v3137
          %v3614 = vpack.c.b16 %v3142, %v3138
          %v3615 = vpack.c.b16 %v3147, %v3143
          %v3616 = vpack.c.b16 %v3148, %v3144
          %v3617 = vpack.c.b16 %v3149, %v3145
          %v3618 = vpack.c.b16 %v3150, %v3146
          %v3619 = vpack.c.b16 %v3155, %v3151
          %v3620 = vpack.c.b16 %v3156, %v3152
          %v3621 = vpack.c.b16 %v3157, %v3153
          %v3622 = vpack.c.b16 %v3158, %v3154
          %v3623 = vpack.c.b16 %v3163, %v3159
          %v3624 = vpack.c.b16 %v3164, %v3160
          %v3625 = vpack.c.b16 %v3165, %v3161
          %v3626 = vpack.c.b16 %v3166, %v3162
          %v3627 = vpack.c.b16 %v3171, %v3167
          %v3628 = vpack.c.b16 %v3172, %v3168
          %v3629 = vpack.c.b16 %v3173, %v3169
          %v3630 = vpack.c.b16 %v3174, %v3170
          %v3631 = vpack.c.b16 %v3179, %v3175
          %v3632 = vpack.c.b16 %v3180, %v3176
          %v3633 = vpack.c.b16 %v3181, %v3177
          %v3634 = vpack.c.b16 %v3182, %v3178
          %v3635 = vpack.c.b16 %v3187, %v3183
          %v3636 = vpack.c.b16 %v3188, %v3184
          %v3637 = vpack.c.b16 %v3189, %v3185
          %v3638 = vpack.c.b16 %v3190, %v3186
          %v3639 = vpack.c.b16 %v3195, %v3191
          %v3640 = vpack.c.b16 %v3196, %v3192
          %v3641 = vpack.c.b16 %v3197, %v3193
          %v3642 = vpack.c.b16 %v3198, %v3194
          %v3643 = vpack.c.b16 %v3203, %v3199
          %v3644 = vpack.c.b16 %v3204, %v3200
          %v3645 = vpack.c.b16 %v3205, %v3201
          %v3646 = vpack.c.b16 %v3206, %v3202
          %v3647 = vpack.c.b16 %v3211, %v3207
          %v3648 = vpack.c.b16 %v3212, %v3208
          %v3649 = vpack.c.b16 %v3213, %v3209
          %v3650 = vpack.c.b16 %v3214, %v3210
          %v3651 = vpack.c.b16 %v3219, %v3215
          %v3652 = vpack.c.b16 %v3220, %v3216
          %v3653 = vpack.c.b16 %v3221, %v3217
          %v3654 = vpack.c.b16 %v3222, %v3218
          %v3655 = vpack.c.b16 %v3227, %v3223
          %v3656 = vpack.c.b16 %v3228, %v3224
          %v3657 = vpack.c.b16 %v3229, %v3225
          %v3658 = vpack.c.b16 %v3230, %v3226
          %v3659 = vpack.c.b16 %v3235, %v3231
          %v3660 = vpack.c.b16 %v3236, %v3232
          %v3661 = vpack.c.b16 %v3237, %v3233
          %v3662 = vpack.c.b16 %v3238, %v3234
          %v3663 = vpack.c.b16 %v3243, %v3239
          %v3664 = vpack.c.b16 %v3244, %v3240
          %v3665 = vpack.c.b16 %v3245, %v3241
          %v3666 = vpack.c.b16 %v3246, %v3242
          %v3667 = vpack.c.b16 %v3251, %v3247
          %v3668 = vpack.c.b16 %v3252, %v3248
          %v3669 = vpack.c.b16 %v3253, %v3249
          %v3670 = vpack.c.b16 %v3254, %v3250
          %v3671 = vpack.c.b16 %v3259, %v3255
          %v3672 = vpack.c.b16 %v3260, %v3256
          %v3673 = vpack.c.b16 %v3261, %v3257
          %v3674 = vpack.c.b16 %v3262, %v3258
          %v3675 = vpack.c.b16 %v3267, %v3263
          %v3676 = vpack.c.b16 %v3268, %v3264
          %v3677 = vpack.c.b16 %v3269, %v3265
          %v3678 = vpack.c.b16 %v3270, %v3266
          %v3679 = vpack.c.b16 %v3275, %v3271
          %v3680 = vpack.c.b16 %v3276, %v3272
          %v3681 = vpack.c.b16 %v3277, %v3273
          %v3682 = vpack.c.b16 %v3278, %v3274
          %v3683 = vpack.c.b16 %v3283, %v3279
          %v3684 = vpack.c.b16 %v3284, %v3280
          %v3685 = vpack.c.b16 %v3285, %v3281
          %v3686 = vpack.c.b16 %v3286, %v3282
          %v3687 = vpack.c.b16 %v3291, %v3287
          %v3688 = vpack.c.b16 %v3292, %v3288
          %v3689 = vpack.c.b16 %v3293, %v3289
          %v3690 = vpack.c.b16 %v3294, %v3290
          %v3691 = vpack.c.b16 %v3299, %v3295
          %v3692 = vpack.c.b16 %v3300, %v3296
          %v3693 = vpack.c.b16 %v3301, %v3297
          %v3694 = vpack.c.b16 %v3302, %v3298
          %v3695 = vpack.c.b16 %v3307, %v3303
          %v3696 = vpack.c.b16 %v3308, %v3304
          %v3697 = vpack.c.b16 %v3309, %v3305
          %v3698 = vpack.c.b16 %v3310, %v3306
          %v3699 = vpack.c.b16 %v3315, %v3311
          %v3700 = vpack.c.b16 %v3316, %v3312
          %v3701 = vpack.c.b16 %v3317, %v3313
          %v3702 = vpack.c.b16 %v3318, %v3314
          %v3703 = vpack.c.b16 %v3323, %v3319
          %v3704 = vpack.c.b16 %v3324, %v3320
          %v3705 = vpack.c.b16 %v3325, %v3321
          %v3706 = vpack.c.b16 %v3326, %v3322
          %v3707 = vpack.c.b16 %v3331, %v3327
          %v3708 = vpack.c.b16 %v3332, %v3328
          %v3709 = vpack.c.b16 %v3333, %v3329
          %v3710 = vpack.c.b16 %v3334, %v3330
          %v3711 = vpack.c.b16 %v3339, %v3335
          %v3712 = vpack.c.b16 %v3340, %v3336
          %v3713 = vpack.c.b16 %v3341, %v3337
          %v3714 = vpack.c.b16 %v3342, %v3338
          %v3715 = vpack.c.b16 %v3347, %v3343
          %v3716 = vpack.c.b16 %v3348, %v3344
          %v3717 = vpack.c.b16 %v3349, %v3345
          %v3718 = vpack.c.b16 %v3350, %v3346
          %v3719 = vpack.c.b16 %v3355, %v3351
          %v3720 = vpack.c.b16 %v3356, %v3352
          %v3721 = vpack.c.b16 %v3357, %v3353
          %v3722 = vpack.c.b16 %v3358, %v3354
          %v3723 = vpack.c.b16 %v3363, %v3359
          %v3724 = vpack.c.b16 %v3364, %v3360
          %v3725 = vpack.c.b16 %v3365, %v3361
          %v3726 = vpack.c.b16 %v3366, %v3362
          %v3727 = vpack.c.b16 %v3371, %v3367
          %v3728 = vpack.c.b16 %v3372, %v3368
          %v3729 = vpack.c.b16 %v3373, %v3369
          %v3730 = vpack.c.b16 %v3374, %v3370
          %v3731 = vpack.c.b16 %v3379, %v3375
          %v3732 = vpack.c.b16 %v3380, %v3376
          %v3733 = vpack.c.b16 %v3381, %v3377
          %v3734 = vpack.c.b16 %v3382, %v3378
          %v3735 = vpack.c.b16 %v3387, %v3383
          %v3736 = vpack.c.b16 %v3388, %v3384
          %v3737 = vpack.c.b16 %v3389, %v3385
          %v3738 = vpack.c.b16 %v3390, %v3386
          %v3739 = vpack.c.b16 %v3395, %v3391
          %v3740 = vpack.c.b16 %v3396, %v3392
          %v3741 = vpack.c.b16 %v3397, %v3393
          %v3742 = vpack.c.b16 %v3398, %v3394
          %v3743 = vpack.c.b16 %v3403, %v3399
          %v3744 = vpack.c.b16 %v3404, %v3400
          %v3745 = vpack.c.b16 %v3405, %v3401
          %v3746 = vpack.c.b16 %v3406, %v3402
          %v3747 = vpack.c.b16 %v3411, %v3407
          %v3748 = vpack.c.b16 %v3412, %v3408
          %v3749 = vpack.c.b16 %v3413, %v3409
          %v3750 = vpack.c.b16 %v3414, %v3410
          %v3751 = vpack.c.b16 %v3419, %v3415
          %v3752 = vpack.c.b16 %v3420, %v3416
          %v3753 = vpack.c.b16 %v3421, %v3417
          %v3754 = vpack.c.b16 %v3422, %v3418
          %v3755 = vpack.c.b16 %v3427, %v3423
          %v3756 = vpack.c.b16 %v3428, %v3424
          %v3757 = vpack.c.b16 %v3429, %v3425
          %v3758 = vpack.c.b16 %v3430, %v3426
          %v3759 = vpack.c.b16 %v3435, %v3431
          %v3760 = vpack.c.b16 %v3436, %v3432
          %v3761 = vpack.c.b16 %v3437, %v3433
          %v3762 = vpack.c.b16 %v3438, %v3434
          %v3763 = vpack.c.b16 %v3443, %v3439
          %v3764 = vpack.c.b16 %v3444, %v3440
          %v3765 = vpack.c.b16 %v3445, %v3441
          %v3766 = vpack.c.b16 %v3446, %v3442
          %v3767 = vpack.c.b16 %v3451, %v3447
          %v3768 = vpack.c.b16 %v3452, %v3448
          %v3769 = vpack.c.b16 %v3453, %v3449
          %v3770 = vpack.c.b16 %v3454, %v3450
          %v3771 = vpack.c.b16 %v3459, %v3455
          %v3772 = vpack.c.b16 %v3460, %v3456
          %v3773 = vpack.c.b16 %v3461, %v3457
          %v3774 = vpack.c.b16 %v3462, %v3458
          %v3775 = vpack.c.b16 %v3467, %v3463
          %v3776 = vpack.c.b16 %v3468, %v3464
          %v3777 = vpack.c.b16 %v3469, %v3465
          %v3778 = vpack.c.b16 %v3470, %v3466
          %v3779 = vpack.c.b16 %v3475, %v3471
          %v3780 = vpack.c.b16 %v3476, %v3472
          %v3781 = vpack.c.b16 %v3477, %v3473
          %v3782 = vpack.c.b16 %v3478, %v3474
          %v3783 = vpack.c.b16 %v3483, %v3479
          %v3784 = vpack.c.b16 %v3484, %v3480
          %v3785 = vpack.c.b16 %v3485, %v3481
          %v3786 = vpack.c.b16 %v3486, %v3482
          %v3787 = vpack.c.b16 %v3491, %v3487
          %v3788 = vpack.c.b16 %v3492, %v3488
          %v3789 = vpack.c.b16 %v3493, %v3489
          %v3790 = vpack.c.b16 %v3494, %v3490
          %v3791 = vpack.c.b16 %v3499, %v3495
          %v3792 = vpack.c.b16 %v3500, %v3496
          %v3793 = vpack.c.b16 %v3501, %v3497
          %v3794 = vpack.c.b16 %v3502, %v3498
          %v3795 = vpack.c.b16 %v3507, %v3503
          %v3796 = vpack.c.b16 %v3508, %v3504
          %v3797 = vpack.c.b16 %v3509, %v3505
          %v3798 = vpack.c.b16 %v3510, %v3506
          %v3799 = vpack.c.b16 %v3515, %v3511
          %v3800 = vpack.c.b16 %v3516, %v3512
          %v3801 = vpack.c.b16 %v3517, %v3513
          %v3802 = vpack.c.b16 %v3518, %v3514
          %v3803 = vpack.c.b16 %v3523, %v3519
          %v3804 = vpack.c.b16 %v3524, %v3520
          %v3805 = vpack.c.b16 %v3525, %v3521
          %v3806 = vpack.c.b16 %v3526, %v3522
          %v3807 = vpack.c.b16 %v3531, %v3527
          %v3808 = vpack.c.b16 %v3532, %v3528
          %v3809 = vpack.c.b16 %v3533, %v3529
          %v3810 = vpack.c.b16 %v3534, %v3530
          %v3811 = vpack.c.b16 %v3539, %v3535
          %v3812 = vpack.c.b16 %v3540, %v3536
          %v3813 = vpack.c.b16 %v3541, %v3537
          %v3814 = vpack.c.b16 %v3542, %v3538
          %v3815 = vpack.c.b16 %v3547, %v3543
          %v3816 = vpack.c.b16 %v3548, %v3544
          %v3817 = vpack.c.b16 %v3549, %v3545
          %v3818 = vpack.c.b16 %v3550, %v3546
          %v3819 = vpack.c.b16 %v3555, %v3551
          %v3820 = vpack.c.b16 %v3556, %v3552
          %v3821 = vpack.c.b16 %v3557, %v3553
          %v3822 = vpack.c.b16 %v3558, %v3554
          %v3823 = vpack.c.b16 %v3563, %v3559
          %v3824 = vpack.c.b16 %v3564, %v3560
          %v3825 = vpack.c.b16 %v3565, %v3561
          %v3826 = vpack.c.b16 %v3566, %v3562
          %v3827 = vpack.c.b16 %v3571, %v3567
          %v3828 = vpack.c.b16 %v3572, %v3568
          %v3829 = vpack.c.b16 %v3573, %v3569
          %v3830 = vpack.c.b16 %v3574, %v3570
          %v4088 = vperm.slane %v2806, 0
          %v4089 = vperm.slane %v2806, 1
          %v4090 = vperm.slane %v2806, 2
          %v4091 = vperm.slane %v2806, 3
          %4096 = vmatpush.bf16.msra.mxu0 %v3603
          %4097 = vmatpush.bf16.msra.mxu0 %v3599
          %4098 = vmatpush.bf16.msra.mxu0 %v3595
          %4099 = vmatpush.bf16.msra.mxu0 %v3591
          %4100 = vmatpush.bf16.msra.mxu0 %v3587
          %4101 = vmatpush.bf16.msra.mxu0 %v3583
          %4102 = vmatpush.bf16.msra.mxu0 %v3579
          %4103 = vmatpush.bf16.msra.mxu0 %v3575
          %4104 = vmatmul.bf16.gmra.mxu0 %v2542
          %v4105 = vpop.f32.mrf.mxu0
          %v4106 = vadd.f32 %v4088, %v4105
          %v4107 = vpop.f32.mrf.mxu0
          %4108 = vdwg.mxu0
          %4109 = vmatpush.bf16.msra.mxu0 %v3635
          %4110 = vmatpush.bf16.msra.mxu0 %v3631
          %4111 = vmatpush.bf16.msra.mxu0 %v3627
          %4112 = vmatpush.bf16.msra.mxu0 %v3623
          %4113 = vmatpush.bf16.msra.mxu0 %v3619
          %4114 = vmatpush.bf16.msra.mxu0 %v3615
          %4115 = vmatpush.bf16.msra.mxu0 %v3611
          %4116 = vmatpush.bf16.msra.mxu0 %v3607
          %4117 = vmatmul.bf16.gmra.mxu0 %v2543
          %v4118 = vpop.f32.mrf.mxu0
          %v4119 = vadd.f32 %v4106, %v4118
          %v4120 = vpop.f32.mrf.mxu0
          %4121 = vdwg.mxu0
          %4122 = vmatpush.bf16.msra.mxu0 %v3667
          %4123 = vmatpush.bf16.msra.mxu0 %v3663
          %4124 = vmatpush.bf16.msra.mxu0 %v3659
          %4125 = vmatpush.bf16.msra.mxu0 %v3655
          %4126 = vmatpush.bf16.msra.mxu0 %v3651
          %4127 = vmatpush.bf16.msra.mxu0 %v3647
          %4128 = vmatpush.bf16.msra.mxu0 %v3643
          %4129 = vmatpush.bf16.msra.mxu0 %v3639
          %4130 = vmatmul.bf16.gmra.mxu0 %v2544
          %v4131 = vpop.f32.mrf.mxu0
          %v4132 = vadd.f32 %v4119, %v4131
          %v4133 = vpop.f32.mrf.mxu0
          %4134 = vdwg.mxu0
          %4135 = vmatpush.bf16.msra.mxu0 %v3699
          %4136 = vmatpush.bf16.msra.mxu0 %v3695
          %4137 = vmatpush.bf16.msra.mxu0 %v3691
          %4138 = vmatpush.bf16.msra.mxu0 %v3687
          %4139 = vmatpush.bf16.msra.mxu0 %v3683
          %4140 = vmatpush.bf16.msra.mxu0 %v3679
          %4141 = vmatpush.bf16.msra.mxu0 %v3675
          %4142 = vmatpush.bf16.msra.mxu0 %v3671
          %4143 = vmatmul.bf16.gmra.mxu0 %v2545
          %v4144 = vpop.f32.mrf.mxu0
          %v4145 = vadd.f32 %v4132, %v4144
          %v4146 = vpop.f32.mrf.mxu0
          %4147 = vdwg.mxu0
          %4148 = vmatpush.bf16.msra.mxu0 %v3731
          %4149 = vmatpush.bf16.msra.mxu0 %v3727
          %4150 = vmatpush.bf16.msra.mxu0 %v3723
          %4151 = vmatpush.bf16.msra.mxu0 %v3719
          %4152 = vmatpush.bf16.msra.mxu0 %v3715
          %4153 = vmatpush.bf16.msra.mxu0 %v3711
          %4154 = vmatpush.bf16.msra.mxu0 %v3707
          %4155 = vmatpush.bf16.msra.mxu0 %v3703
          %4156 = vmatmul.bf16.gmra.mxu0 %v2546
          %v4157 = vpop.f32.mrf.mxu0
          %v4158 = vadd.f32 %v4145, %v4157
          %v4159 = vpop.f32.mrf.mxu0
          %4160 = vdwg.mxu0
          %4161 = vmatpush.bf16.msra.mxu0 %v3763
          %4162 = vmatpush.bf16.msra.mxu0 %v3759
          %4163 = vmatpush.bf16.msra.mxu0 %v3755
          %4164 = vmatpush.bf16.msra.mxu0 %v3751
          %4165 = vmatpush.bf16.msra.mxu0 %v3747
          %4166 = vmatpush.bf16.msra.mxu0 %v3743
          %4167 = vmatpush.bf16.msra.mxu0 %v3739
          %4168 = vmatpush.bf16.msra.mxu0 %v3735
          %4169 = vmatmul.bf16.gmra.mxu0 %v2547
          %v4170 = vpop.f32.mrf.mxu0
          %v4171 = vadd.f32 %v4158, %v4170
          %v4172 = vpop.f32.mrf.mxu0
          %4173 = vdwg.mxu0
          %4174 = vmatpush.bf16.msra.mxu0 %v3795
          %4175 = vmatpush.bf16.msra.mxu0 %v3791
          %4176 = vmatpush.bf16.msra.mxu0 %v3787
          %4177 = vmatpush.bf16.msra.mxu0 %v3783
          %4178 = vmatpush.bf16.msra.mxu0 %v3779
          %4179 = vmatpush.bf16.msra.mxu0 %v3775
          %4180 = vmatpush.bf16.msra.mxu0 %v3771
          %4181 = vmatpush.bf16.msra.mxu0 %v3767
          %4182 = vmatmul.bf16.gmra.mxu0 %v2548
          %v4183 = vpop.f32.mrf.mxu0
          %v4184 = vadd.f32 %v4171, %v4183
          %v4185 = vpop.f32.mrf.mxu0
          %4186 = vdwg.mxu0
          %4187 = vmatpush.bf16.msra.mxu0 %v3827
          %4188 = vmatpush.bf16.msra.mxu0 %v3823
          %4189 = vmatpush.bf16.msra.mxu0 %v3819
          %4190 = vmatpush.bf16.msra.mxu0 %v3815
          %4191 = vmatpush.bf16.msra.mxu0 %v3811
          %4192 = vmatpush.bf16.msra.mxu0 %v3807
          %4193 = vmatpush.bf16.msra.mxu0 %v3803
          %4194 = vmatpush.bf16.msra.mxu0 %v3799
          %4195 = vmatmul.bf16.gmra.mxu0 %v2549
          %v4196 = vpop.f32.mrf.mxu0
          %v4197 = vadd.f32 %v4184, %v4196
          %v4198 = vpop.f32.mrf.mxu0
          %4199 = vdwg.mxu0
          %4200 = vmatpush.bf16.msra.mxu0 %v3604
          %4201 = vmatpush.bf16.msra.mxu0 %v3600
          %4202 = vmatpush.bf16.msra.mxu0 %v3596
          %4203 = vmatpush.bf16.msra.mxu0 %v3592
          %4204 = vmatpush.bf16.msra.mxu0 %v3588
          %4205 = vmatpush.bf16.msra.mxu0 %v3584
          %4206 = vmatpush.bf16.msra.mxu0 %v3580
          %4207 = vmatpush.bf16.msra.mxu0 %v3576
          %4208 = vmatmul.bf16.gmra.mxu0 %v2542
          %v4209 = vpop.f32.mrf.mxu0
          %v4210 = vadd.f32 %v4089, %v4209
          %v4211 = vpop.f32.mrf.mxu0
          %4212 = vdwg.mxu0
          %4213 = vmatpush.bf16.msra.mxu0 %v3636
          %4214 = vmatpush.bf16.msra.mxu0 %v3632
          %4215 = vmatpush.bf16.msra.mxu0 %v3628
          %4216 = vmatpush.bf16.msra.mxu0 %v3624
          %4217 = vmatpush.bf16.msra.mxu0 %v3620
          %4218 = vmatpush.bf16.msra.mxu0 %v3616
          %4219 = vmatpush.bf16.msra.mxu0 %v3612
          %4220 = vmatpush.bf16.msra.mxu0 %v3608
          %4221 = vmatmul.bf16.gmra.mxu0 %v2543
          %v4222 = vpop.f32.mrf.mxu0
          %v4223 = vadd.f32 %v4210, %v4222
          %v4224 = vpop.f32.mrf.mxu0
          %4225 = vdwg.mxu0
          %4226 = vmatpush.bf16.msra.mxu0 %v3668
          %4227 = vmatpush.bf16.msra.mxu0 %v3664
          %4228 = vmatpush.bf16.msra.mxu0 %v3660
          %4229 = vmatpush.bf16.msra.mxu0 %v3656
          %4230 = vmatpush.bf16.msra.mxu0 %v3652
          %4231 = vmatpush.bf16.msra.mxu0 %v3648
          %4232 = vmatpush.bf16.msra.mxu0 %v3644
          %4233 = vmatpush.bf16.msra.mxu0 %v3640
          %4234 = vmatmul.bf16.gmra.mxu0 %v2544
          %v4235 = vpop.f32.mrf.mxu0
          %v4236 = vadd.f32 %v4223, %v4235
          %v4237 = vpop.f32.mrf.mxu0
          %4238 = vdwg.mxu0
          %4239 = vmatpush.bf16.msra.mxu0 %v3700
          %4240 = vmatpush.bf16.msra.mxu0 %v3696
          %4241 = vmatpush.bf16.msra.mxu0 %v3692
          %4242 = vmatpush.bf16.msra.mxu0 %v3688
          %4243 = vmatpush.bf16.msra.mxu0 %v3684
          %4244 = vmatpush.bf16.msra.mxu0 %v3680
          %4245 = vmatpush.bf16.msra.mxu0 %v3676
          %4246 = vmatpush.bf16.msra.mxu0 %v3672
          %4247 = vmatmul.bf16.gmra.mxu0 %v2545
          %v4248 = vpop.f32.mrf.mxu0
          %v4249 = vadd.f32 %v4236, %v4248
          %v4250 = vpop.f32.mrf.mxu0
          %4251 = vdwg.mxu0
          %4252 = vmatpush.bf16.msra.mxu0 %v3732
          %4253 = vmatpush.bf16.msra.mxu0 %v3728
          %4254 = vmatpush.bf16.msra.mxu0 %v3724
          %4255 = vmatpush.bf16.msra.mxu0 %v3720
          %4256 = vmatpush.bf16.msra.mxu0 %v3716
          %4257 = vmatpush.bf16.msra.mxu0 %v3712
          %4258 = vmatpush.bf16.msra.mxu0 %v3708
          %4259 = vmatpush.bf16.msra.mxu0 %v3704
          %4260 = vmatmul.bf16.gmra.mxu0 %v2546
          %v4261 = vpop.f32.mrf.mxu0
          %v4262 = vadd.f32 %v4249, %v4261
          %v4263 = vpop.f32.mrf.mxu0
          %4264 = vdwg.mxu0
          %4265 = vmatpush.bf16.msra.mxu0 %v3764
          %4266 = vmatpush.bf16.msra.mxu0 %v3760
          %4267 = vmatpush.bf16.msra.mxu0 %v3756
          %4268 = vmatpush.bf16.msra.mxu0 %v3752
          %4269 = vmatpush.bf16.msra.mxu0 %v3748
          %4270 = vmatpush.bf16.msra.mxu0 %v3744
          %4271 = vmatpush.bf16.msra.mxu0 %v3740
          %4272 = vmatpush.bf16.msra.mxu0 %v3736
          %4273 = vmatmul.bf16.gmra.mxu0 %v2547
          %v4274 = vpop.f32.mrf.mxu0
          %v4275 = vadd.f32 %v4262, %v4274
          %v4276 = vpop.f32.mrf.mxu0
          %4277 = vdwg.mxu0
          %4278 = vmatpush.bf16.msra.mxu0 %v3796
          %4279 = vmatpush.bf16.msra.mxu0 %v3792
          %4280 = vmatpush.bf16.msra.mxu0 %v3788
          %4281 = vmatpush.bf16.msra.mxu0 %v3784
          %4282 = vmatpush.bf16.msra.mxu0 %v3780
          %4283 = vmatpush.bf16.msra.mxu0 %v3776
          %4284 = vmatpush.bf16.msra.mxu0 %v3772
          %4285 = vmatpush.bf16.msra.mxu0 %v3768
          %4286 = vmatmul.bf16.gmra.mxu0 %v2548
          %v4287 = vpop.f32.mrf.mxu0
          %v4288 = vadd.f32 %v4275, %v4287
          %v4289 = vpop.f32.mrf.mxu0
          %4290 = vdwg.mxu0
          %4291 = vmatpush.bf16.msra.mxu0 %v3828
          %4292 = vmatpush.bf16.msra.mxu0 %v3824
          %4293 = vmatpush.bf16.msra.mxu0 %v3820
          %4294 = vmatpush.bf16.msra.mxu0 %v3816
          %4295 = vmatpush.bf16.msra.mxu0 %v3812
          %4296 = vmatpush.bf16.msra.mxu0 %v3808
          %4297 = vmatpush.bf16.msra.mxu0 %v3804
          %4298 = vmatpush.bf16.msra.mxu0 %v3800
          %4299 = vmatmul.bf16.gmra.mxu0 %v2549
          %v4300 = vpop.f32.mrf.mxu0
          %v4301 = vadd.f32 %v4288, %v4300
          %v4302 = vpop.f32.mrf.mxu0
          %4303 = vdwg.mxu0
          %4304 = vmatpush.bf16.msra.mxu0 %v3605
          %4305 = vmatpush.bf16.msra.mxu0 %v3601
          %4306 = vmatpush.bf16.msra.mxu0 %v3597
          %4307 = vmatpush.bf16.msra.mxu0 %v3593
          %4308 = vmatpush.bf16.msra.mxu0 %v3589
          %4309 = vmatpush.bf16.msra.mxu0 %v3585
          %4310 = vmatpush.bf16.msra.mxu0 %v3581
          %4311 = vmatpush.bf16.msra.mxu0 %v3577
          %4312 = vmatmul.bf16.gmra.mxu0 %v2542
          %v4313 = vpop.f32.mrf.mxu0
          %v4314 = vadd.f32 %v4090, %v4313
          %v4315 = vpop.f32.mrf.mxu0
          %4316 = vdwg.mxu0
          %4317 = vmatpush.bf16.msra.mxu0 %v3637
          %4318 = vmatpush.bf16.msra.mxu0 %v3633
          %4319 = vmatpush.bf16.msra.mxu0 %v3629
          %4320 = vmatpush.bf16.msra.mxu0 %v3625
          %4321 = vmatpush.bf16.msra.mxu0 %v3621
          %4322 = vmatpush.bf16.msra.mxu0 %v3617
          %4323 = vmatpush.bf16.msra.mxu0 %v3613
          %4324 = vmatpush.bf16.msra.mxu0 %v3609
          %4325 = vmatmul.bf16.gmra.mxu0 %v2543
          %v4326 = vpop.f32.mrf.mxu0
          %v4327 = vadd.f32 %v4314, %v4326
          %v4328 = vpop.f32.mrf.mxu0
          %4329 = vdwg.mxu0
          %4330 = vmatpush.bf16.msra.mxu0 %v3669
          %4331 = vmatpush.bf16.msra.mxu0 %v3665
          %4332 = vmatpush.bf16.msra.mxu0 %v3661
          %4333 = vmatpush.bf16.msra.mxu0 %v3657
          %4334 = vmatpush.bf16.msra.mxu0 %v3653
          %4335 = vmatpush.bf16.msra.mxu0 %v3649
          %4336 = vmatpush.bf16.msra.mxu0 %v3645
          %4337 = vmatpush.bf16.msra.mxu0 %v3641
          %4338 = vmatmul.bf16.gmra.mxu0 %v2544
          %v4339 = vpop.f32.mrf.mxu0
          %v4340 = vadd.f32 %v4327, %v4339
          %v4341 = vpop.f32.mrf.mxu0
          %4342 = vdwg.mxu0
          %4343 = vmatpush.bf16.msra.mxu0 %v3701
          %4344 = vmatpush.bf16.msra.mxu0 %v3697
          %4345 = vmatpush.bf16.msra.mxu0 %v3693
          %4346 = vmatpush.bf16.msra.mxu0 %v3689
          %4347 = vmatpush.bf16.msra.mxu0 %v3685
          %4348 = vmatpush.bf16.msra.mxu0 %v3681
          %4349 = vmatpush.bf16.msra.mxu0 %v3677
          %4350 = vmatpush.bf16.msra.mxu0 %v3673
          %4351 = vmatmul.bf16.gmra.mxu0 %v2545
          %v4352 = vpop.f32.mrf.mxu0
          %v4353 = vadd.f32 %v4340, %v4352
          %v4354 = vpop.f32.mrf.mxu0
          %4355 = vdwg.mxu0
          %4356 = vmatpush.bf16.msra.mxu0 %v3733
          %4357 = vmatpush.bf16.msra.mxu0 %v3729
          %4358 = vmatpush.bf16.msra.mxu0 %v3725
          %4359 = vmatpush.bf16.msra.mxu0 %v3721
          %4360 = vmatpush.bf16.msra.mxu0 %v3717
          %4361 = vmatpush.bf16.msra.mxu0 %v3713
          %4362 = vmatpush.bf16.msra.mxu0 %v3709
          %4363 = vmatpush.bf16.msra.mxu0 %v3705
          %4364 = vmatmul.bf16.gmra.mxu0 %v2546
          %v4365 = vpop.f32.mrf.mxu0
          %v4366 = vadd.f32 %v4353, %v4365
          %v4367 = vpop.f32.mrf.mxu0
          %4368 = vdwg.mxu0
          %4369 = vmatpush.bf16.msra.mxu0 %v3765
          %4370 = vmatpush.bf16.msra.mxu0 %v3761
          %4371 = vmatpush.bf16.msra.mxu0 %v3757
          %4372 = vmatpush.bf16.msra.mxu0 %v3753
          %4373 = vmatpush.bf16.msra.mxu0 %v3749
          %4374 = vmatpush.bf16.msra.mxu0 %v3745
          %4375 = vmatpush.bf16.msra.mxu0 %v3741
          %4376 = vmatpush.bf16.msra.mxu0 %v3737
          %4377 = vmatmul.bf16.gmra.mxu0 %v2547
          %v4378 = vpop.f32.mrf.mxu0
          %v4379 = vadd.f32 %v4366, %v4378
          %v4380 = vpop.f32.mrf.mxu0
          %4381 = vdwg.mxu0
          %4382 = vmatpush.bf16.msra.mxu0 %v3797
          %4383 = vmatpush.bf16.msra.mxu0 %v3793
          %4384 = vmatpush.bf16.msra.mxu0 %v3789
          %4385 = vmatpush.bf16.msra.mxu0 %v3785
          %4386 = vmatpush.bf16.msra.mxu0 %v3781
          %4387 = vmatpush.bf16.msra.mxu0 %v3777
          %4388 = vmatpush.bf16.msra.mxu0 %v3773
          %4389 = vmatpush.bf16.msra.mxu0 %v3769
          %4390 = vmatmul.bf16.gmra.mxu0 %v2548
          %v4391 = vpop.f32.mrf.mxu0
          %v4392 = vadd.f32 %v4379, %v4391
          %v4393 = vpop.f32.mrf.mxu0
          %4394 = vdwg.mxu0
          %4395 = vmatpush.bf16.msra.mxu0 %v3829
          %4396 = vmatpush.bf16.msra.mxu0 %v3825
          %4397 = vmatpush.bf16.msra.mxu0 %v3821
          %4398 = vmatpush.bf16.msra.mxu0 %v3817
          %4399 = vmatpush.bf16.msra.mxu0 %v3813
          %4400 = vmatpush.bf16.msra.mxu0 %v3809
          %4401 = vmatpush.bf16.msra.mxu0 %v3805
          %4402 = vmatpush.bf16.msra.mxu0 %v3801
          %4403 = vmatmul.bf16.gmra.mxu0 %v2549
          %v4404 = vpop.f32.mrf.mxu0
          %v4405 = vadd.f32 %v4392, %v4404
          %v4406 = vpop.f32.mrf.mxu0
          %4407 = vdwg.mxu0
          %4408 = vmatpush.bf16.msra.mxu0 %v3606
          %4409 = vmatpush.bf16.msra.mxu0 %v3602
          %4410 = vmatpush.bf16.msra.mxu0 %v3598
          %4411 = vmatpush.bf16.msra.mxu0 %v3594
          %4412 = vmatpush.bf16.msra.mxu0 %v3590
          %4413 = vmatpush.bf16.msra.mxu0 %v3586
          %4414 = vmatpush.bf16.msra.mxu0 %v3582
          %4415 = vmatpush.bf16.msra.mxu0 %v3578
          %4416 = vmatmul.bf16.gmra.mxu0 %v2542
          %v4417 = vpop.f32.mrf.mxu0
          %v4418 = vadd.f32 %v4091, %v4417
          %v4419 = vpop.f32.mrf.mxu0
          %4420 = vdwg.mxu0
          %4421 = vmatpush.bf16.msra.mxu0 %v3638
          %4422 = vmatpush.bf16.msra.mxu0 %v3634
          %4423 = vmatpush.bf16.msra.mxu0 %v3630
          %4424 = vmatpush.bf16.msra.mxu0 %v3626
          %4425 = vmatpush.bf16.msra.mxu0 %v3622
          %4426 = vmatpush.bf16.msra.mxu0 %v3618
          %4427 = vmatpush.bf16.msra.mxu0 %v3614
          %4428 = vmatpush.bf16.msra.mxu0 %v3610
          %4429 = vmatmul.bf16.gmra.mxu0 %v2543
          %v4430 = vpop.f32.mrf.mxu0
          %v4431 = vadd.f32 %v4418, %v4430
          %v4432 = vpop.f32.mrf.mxu0
          %4433 = vdwg.mxu0
          %4434 = vmatpush.bf16.msra.mxu0 %v3670
          %4435 = vmatpush.bf16.msra.mxu0 %v3666
          %4436 = vmatpush.bf16.msra.mxu0 %v3662
          %4437 = vmatpush.bf16.msra.mxu0 %v3658
          %4438 = vmatpush.bf16.msra.mxu0 %v3654
          %4439 = vmatpush.bf16.msra.mxu0 %v3650
          %4440 = vmatpush.bf16.msra.mxu0 %v3646
          %4441 = vmatpush.bf16.msra.mxu0 %v3642
          %4442 = vmatmul.bf16.gmra.mxu0 %v2544
          %v4443 = vpop.f32.mrf.mxu0
          %v4444 = vadd.f32 %v4431, %v4443
          %v4445 = vpop.f32.mrf.mxu0
          %4446 = vdwg.mxu0
          %4447 = vmatpush.bf16.msra.mxu0 %v3702
          %4448 = vmatpush.bf16.msra.mxu0 %v3698
          %4449 = vmatpush.bf16.msra.mxu0 %v3694
          %4450 = vmatpush.bf16.msra.mxu0 %v3690
          %4451 = vmatpush.bf16.msra.mxu0 %v3686
          %4452 = vmatpush.bf16.msra.mxu0 %v3682
          %4453 = vmatpush.bf16.msra.mxu0 %v3678
          %4454 = vmatpush.bf16.msra.mxu0 %v3674
          %4455 = vmatmul.bf16.gmra.mxu0 %v2545
          %v4456 = vpop.f32.mrf.mxu0
          %v4457 = vadd.f32 %v4444, %v4456
          %v4458 = vpop.f32.mrf.mxu0
          %4459 = vdwg.mxu0
          %4460 = vmatpush.bf16.msra.mxu0 %v3734
          %4461 = vmatpush.bf16.msra.mxu0 %v3730
          %4462 = vmatpush.bf16.msra.mxu0 %v3726
          %4463 = vmatpush.bf16.msra.mxu0 %v3722
          %4464 = vmatpush.bf16.msra.mxu0 %v3718
          %4465 = vmatpush.bf16.msra.mxu0 %v3714
          %4466 = vmatpush.bf16.msra.mxu0 %v3710
          %4467 = vmatpush.bf16.msra.mxu0 %v3706
          %4468 = vmatmul.bf16.gmra.mxu0 %v2546
          %v4469 = vpop.f32.mrf.mxu0
          %v4470 = vadd.f32 %v4457, %v4469
          %v4471 = vpop.f32.mrf.mxu0
          %4472 = vdwg.mxu0
          %4473 = vmatpush.bf16.msra.mxu0 %v3766
          %4474 = vmatpush.bf16.msra.mxu0 %v3762
          %4475 = vmatpush.bf16.msra.mxu0 %v3758
          %4476 = vmatpush.bf16.msra.mxu0 %v3754
          %4477 = vmatpush.bf16.msra.mxu0 %v3750
          %4478 = vmatpush.bf16.msra.mxu0 %v3746
          %4479 = vmatpush.bf16.msra.mxu0 %v3742
          %4480 = vmatpush.bf16.msra.mxu0 %v3738
          %4481 = vmatmul.bf16.gmra.mxu0 %v2547
          %v4482 = vpop.f32.mrf.mxu0
          %v4483 = vadd.f32 %v4470, %v4482
          %v4484 = vpop.f32.mrf.mxu0
          %4485 = vdwg.mxu0
          %4486 = vmatpush.bf16.msra.mxu0 %v3798
          %4487 = vmatpush.bf16.msra.mxu0 %v3794
          %4488 = vmatpush.bf16.msra.mxu0 %v3790
          %4489 = vmatpush.bf16.msra.mxu0 %v3786
          %4490 = vmatpush.bf16.msra.mxu0 %v3782
          %4491 = vmatpush.bf16.msra.mxu0 %v3778
          %4492 = vmatpush.bf16.msra.mxu0 %v3774
          %4493 = vmatpush.bf16.msra.mxu0 %v3770
          %4494 = vmatmul.bf16.gmra.mxu0 %v2548
          %v4495 = vpop.f32.mrf.mxu0
          %v4496 = vadd.f32 %v4483, %v4495
          %v4497 = vpop.f32.mrf.mxu0
          %4498 = vdwg.mxu0
          %4499 = vmatpush.bf16.msra.mxu0 %v3830
          %4500 = vmatpush.bf16.msra.mxu0 %v3826
          %4501 = vmatpush.bf16.msra.mxu0 %v3822
          %4502 = vmatpush.bf16.msra.mxu0 %v3818
          %4503 = vmatpush.bf16.msra.mxu0 %v3814
          %4504 = vmatpush.bf16.msra.mxu0 %v3810
          %4505 = vmatpush.bf16.msra.mxu0 %v3806
          %4506 = vmatpush.bf16.msra.mxu0 %v3802
          %4507 = vmatmul.bf16.gmra.mxu0 %v2549
          %v4508 = vpop.f32.mrf.mxu0
          %v4509 = vadd.f32 %v4496, %v4508
          %v4510 = vpop.f32.mrf.mxu0
          %4511 = vdwg.mxu0
          %v4512 = vmax.f32 %v4197, 0.0
          %v4513 = vmax.f32 %v4301, 0.0
          %v4514 = vmax.f32 %v4405, 0.0
          %v4515 = vmax.f32 %v4509, 0.0
          %v4516 = vpack.c.bf16 %v4512, %v4512
          %v4517 = vpack.c.bf16 %v4513, %v4513
          %v4518 = vpack.c.bf16 %v4514, %v4514
          %v4519 = vpack.c.bf16 %v4515, %v4515
          %v4520 = vld [vmem:[%s9] sm:$0xff]
          %v4521 = vld [vmem:[%s9 + $0x8] sm:$0xff]
          %v4522 = vld [vmem:[%s9 + $0x10] sm:$0xff]
          %v4523 = vld [vmem:[%s9 + $0x18] sm:$0xff]
          %v4524 = vld [vmem:[%s9 + $0x20] sm:$0xff]
          %v4525 = vld [vmem:[%s9 + $0x28] sm:$0xff]
          %v4526 = vld [vmem:[%s9 + $0x30] sm:$0xff]
          %v4527 = vld [vmem:[%s9 + $0x38] sm:$0xff]
          %v4528 = vld [vmem:[%s9 + $0x40] sm:$0xff]
          %v4529 = vld [vmem:[%s9 + $0x48] sm:$0xff]
          %v4530 = vld [vmem:[%s9 + $0x50] sm:$0xff]
          %v4531 = vld [vmem:[%s9 + $0x58] sm:$0xff]
          %v4532 = vld [vmem:[%s9 + $0x60] sm:$0xff]
          %v4533 = vld [vmem:[%s9 + $0x68] sm:$0xff]
          %v4534 = vld [vmem:[%s9 + $0x70] sm:$0xff]
          %v4535 = vld [vmem:[%s9 + $0x78] sm:$0xff]
          %v4536 = vld [vmem:[%s9 + $0x80] sm:$0xff]
          %v4537 = vld [vmem:[%s9 + $0x88] sm:$0xff]
          %v4538 = vld [vmem:[%s9 + $0x90] sm:$0xff]
          %v4539 = vld [vmem:[%s9 + $0x98] sm:$0xff]
          %v4540 = vld [vmem:[%s9 + $0xa0] sm:$0xff]
          %v4541 = vld [vmem:[%s9 + $0xa8] sm:$0xff]
          %v4542 = vld [vmem:[%s9 + $0xb0] sm:$0xff]
          %v4543 = vld [vmem:[%s9 + $0xb8] sm:$0xff]
          %v4544 = vld [vmem:[%s9 + $0xc0] sm:$0xff]
          %v4545 = vld [vmem:[%s9 + $0xc8] sm:$0xff]
          %v4546 = vld [vmem:[%s9 + $0xd0] sm:$0xff]
          %v4547 = vld [vmem:[%s9 + $0xd8] sm:$0xff]
          %v4548 = vld [vmem:[%s9 + $0xe0] sm:$0xff]
          %v4549 = vld [vmem:[%s9 + $0xe8] sm:$0xff]
          %v4550 = vld [vmem:[%s9 + $0xf0] sm:$0xff]
          %v4551 = vld [vmem:[%s9 + $0xf8] sm:$0xff]
          %v4552 = vld [vmem:[%s9 + $0x100] sm:$0xff]
          %v4553 = vld [vmem:[%s9 + $0x108] sm:$0xff]
          %v4554 = vld [vmem:[%s9 + $0x110] sm:$0xff]
          %v4555 = vld [vmem:[%s9 + $0x118] sm:$0xff]
          %v4556 = vld [vmem:[%s9 + $0x120] sm:$0xff]
          %v4557 = vld [vmem:[%s9 + $0x128] sm:$0xff]
          %v4558 = vld [vmem:[%s9 + $0x130] sm:$0xff]
          %v4559 = vld [vmem:[%s9 + $0x138] sm:$0xff]
          %v4560 = vld [vmem:[%s9 + $0x140] sm:$0xff]
          %v4561 = vld [vmem:[%s9 + $0x148] sm:$0xff]
          %v4562 = vld [vmem:[%s9 + $0x150] sm:$0xff]
          %v4563 = vld [vmem:[%s9 + $0x158] sm:$0xff]
          %v4564 = vld [vmem:[%s9 + $0x160] sm:$0xff]
          %v4565 = vld [vmem:[%s9 + $0x168] sm:$0xff]
          %v4566 = vld [vmem:[%s9 + $0x170] sm:$0xff]
          %v4567 = vld [vmem:[%s9 + $0x178] sm:$0xff]
          %v4568 = vld [vmem:[%s9 + $0x180] sm:$0xff]
          %v4569 = vld [vmem:[%s9 + $0x188] sm:$0xff]
          %v4570 = vld [vmem:[%s9 + $0x190] sm:$0xff]
          %v4571 = vld [vmem:[%s9 + $0x198] sm:$0xff]
          %v4572 = vld [vmem:[%s9 + $0x1a0] sm:$0xff]
          %v4573 = vld [vmem:[%s9 + $0x1a8] sm:$0xff]
          %v4574 = vld [vmem:[%s9 + $0x1b0] sm:$0xff]
          %v4575 = vld [vmem:[%s9 + $0x1b8] sm:$0xff]
          %v4576 = vld [vmem:[%s9 + $0x1c0] sm:$0xff]
          %v4577 = vld [vmem:[%s9 + $0x1c8] sm:$0xff]
          %v4578 = vld [vmem:[%s9 + $0x1d0] sm:$0xff]
          %v4579 = vld [vmem:[%s9 + $0x1d8] sm:$0xff]
          %v4580 = vld [vmem:[%s9 + $0x1e0] sm:$0xff]
          %v4581 = vld [vmem:[%s9 + $0x1e8] sm:$0xff]
          %v4582 = vld [vmem:[%s9 + $0x1f0] sm:$0xff]
          %v4583 = vld [vmem:[%s9 + $0x1f8] sm:$0xff]
          %v4584 = vld [vmem:[%s10] sm:$0x3]
          %v4649 = vunpack.c.l.b16 %v4520
          %v4650 = vunpack.c.h.b16 %v4520
          %v4651 = vunpack.c.l.b16 %v4521
          %v4652 = vunpack.c.h.b16 %v4521
          %v4653 = vunpack.c.l.b16 %v4522
          %v4654 = vunpack.c.h.b16 %v4522
          %v4655 = vunpack.c.l.b16 %v4523
          %v4656 = vunpack.c.h.b16 %v4523
          %v4657 = vunpack.c.l.b16 %v4524
          %v4658 = vunpack.c.h.b16 %v4524
          %v4659 = vunpack.c.l.b16 %v4525
          %v4660 = vunpack.c.h.b16 %v4525
          %v4661 = vunpack.c.l.b16 %v4526
          %v4662 = vunpack.c.h.b16 %v4526
          %v4663 = vunpack.c.l.b16 %v4527
          %v4664 = vunpack.c.h.b16 %v4527
          %v4665 = vunpack.c.l.b16 %v4528
          %v4666 = vunpack.c.h.b16 %v4528
          %v4667 = vunpack.c.l.b16 %v4529
          %v4668 = vunpack.c.h.b16 %v4529
          %v4669 = vunpack.c.l.b16 %v4530
          %v4670 = vunpack.c.h.b16 %v4530
          %v4671 = vunpack.c.l.b16 %v4531
          %v4672 = vunpack.c.h.b16 %v4531
          %v4673 = vunpack.c.l.b16 %v4532
          %v4674 = vunpack.c.h.b16 %v4532
          %v4675 = vunpack.c.l.b16 %v4533
          %v4676 = vunpack.c.h.b16 %v4533
          %v4677 = vunpack.c.l.b16 %v4534
          %v4678 = vunpack.c.h.b16 %v4534
          %v4679 = vunpack.c.l.b16 %v4535
          %v4680 = vunpack.c.h.b16 %v4535
          %v4681 = vunpack.c.l.b16 %v4536
          %v4682 = vunpack.c.h.b16 %v4536
          %v4683 = vunpack.c.l.b16 %v4537
          %v4684 = vunpack.c.h.b16 %v4537
          %v4685 = vunpack.c.l.b16 %v4538
          %v4686 = vunpack.c.h.b16 %v4538
          %v4687 = vunpack.c.l.b16 %v4539
          %v4688 = vunpack.c.h.b16 %v4539
          %v4689 = vunpack.c.l.b16 %v4540
          %v4690 = vunpack.c.h.b16 %v4540
          %v4691 = vunpack.c.l.b16 %v4541
          %v4692 = vunpack.c.h.b16 %v4541
          %v4693 = vunpack.c.l.b16 %v4542
          %v4694 = vunpack.c.h.b16 %v4542
          %v4695 = vunpack.c.l.b16 %v4543
          %v4696 = vunpack.c.h.b16 %v4543
          %v4697 = vunpack.c.l.b16 %v4544
          %v4698 = vunpack.c.h.b16 %v4544
          %v4699 = vunpack.c.l.b16 %v4545
          %v4700 = vunpack.c.h.b16 %v4545
          %v4701 = vunpack.c.l.b16 %v4546
          %v4702 = vunpack.c.h.b16 %v4546
          %v4703 = vunpack.c.l.b16 %v4547
          %v4704 = vunpack.c.h.b16 %v4547
          %v4705 = vunpack.c.l.b16 %v4548
          %v4706 = vunpack.c.h.b16 %v4548
          %v4707 = vunpack.c.l.b16 %v4549
          %v4708 = vunpack.c.h.b16 %v4549
          %v4709 = vunpack.c.l.b16 %v4550
          %v4710 = vunpack.c.h.b16 %v4550
          %v4711 = vunpack.c.l.b16 %v4551
          %v4712 = vunpack.c.h.b16 %v4551
          %v4713 = vunpack.c.l.b16 %v4552
          %v4714 = vunpack.c.h.b16 %v4552
          %v4715 = vunpack.c.l.b16 %v4553
          %v4716 = vunpack.c.h.b16 %v4553
          %v4717 = vunpack.c.l.b16 %v4554
          %v4718 = vunpack.c.h.b16 %v4554
          %v4719 = vunpack.c.l.b16 %v4555
          %v4720 = vunpack.c.h.b16 %v4555
          %v4721 = vunpack.c.l.b16 %v4556
          %v4722 = vunpack.c.h.b16 %v4556
          %v4723 = vunpack.c.l.b16 %v4557
          %v4724 = vunpack.c.h.b16 %v4557
          %v4725 = vunpack.c.l.b16 %v4558
          %v4726 = vunpack.c.h.b16 %v4558
          %v4727 = vunpack.c.l.b16 %v4559
          %v4728 = vunpack.c.h.b16 %v4559
          %v4729 = vunpack.c.l.b16 %v4560
          %v4730 = vunpack.c.h.b16 %v4560
          %v4731 = vunpack.c.l.b16 %v4561
          %v4732 = vunpack.c.h.b16 %v4561
          %v4733 = vunpack.c.l.b16 %v4562
          %v4734 = vunpack.c.h.b16 %v4562
          %v4735 = vunpack.c.l.b16 %v4563
          %v4736 = vunpack.c.h.b16 %v4563
          %v4737 = vunpack.c.l.b16 %v4564
          %v4738 = vunpack.c.h.b16 %v4564
          %v4739 = vunpack.c.l.b16 %v4565
          %v4740 = vunpack.c.h.b16 %v4565
          %v4741 = vunpack.c.l.b16 %v4566
          %v4742 = vunpack.c.h.b16 %v4566
          %v4743 = vunpack.c.l.b16 %v4567
          %v4744 = vunpack.c.h.b16 %v4567
          %v4745 = vunpack.c.l.b16 %v4568
          %v4746 = vunpack.c.h.b16 %v4568
          %v4747 = vunpack.c.l.b16 %v4569
          %v4748 = vunpack.c.h.b16 %v4569
          %v4749 = vunpack.c.l.b16 %v4570
          %v4750 = vunpack.c.h.b16 %v4570
          %v4751 = vunpack.c.l.b16 %v4571
          %v4752 = vunpack.c.h.b16 %v4571
          %v4753 = vunpack.c.l.b16 %v4572
          %v4754 = vunpack.c.h.b16 %v4572
          %v4755 = vunpack.c.l.b16 %v4573
          %v4756 = vunpack.c.h.b16 %v4573
          %v4757 = vunpack.c.l.b16 %v4574
          %v4758 = vunpack.c.h.b16 %v4574
          %v4759 = vunpack.c.l.b16 %v4575
          %v4760 = vunpack.c.h.b16 %v4575
          %v4761 = vunpack.c.l.b16 %v4576
          %v4762 = vunpack.c.h.b16 %v4576
          %v4763 = vunpack.c.l.b16 %v4577
          %v4764 = vunpack.c.h.b16 %v4577
          %v4765 = vunpack.c.l.b16 %v4578
          %v4766 = vunpack.c.h.b16 %v4578
          %v4767 = vunpack.c.l.b16 %v4579
          %v4768 = vunpack.c.h.b16 %v4579
          %v4769 = vunpack.c.l.b16 %v4580
          %v4770 = vunpack.c.h.b16 %v4580
          %v4771 = vunpack.c.l.b16 %v4581
          %v4772 = vunpack.c.h.b16 %v4581
          %v4773 = vunpack.c.l.b16 %v4582
          %v4774 = vunpack.c.h.b16 %v4582
          %v4775 = vunpack.c.l.b16 %v4583
          %v4776 = vunpack.c.h.b16 %v4583
          %v4777 = vpack.c.b16 %v4651, %v4649
          %v4778 = vpack.c.b16 %v4652, %v4650
          %v4779 = vpack.c.b16 %v4655, %v4653
          %v4780 = vpack.c.b16 %v4656, %v4654
          %v4781 = vpack.c.b16 %v4659, %v4657
          %v4782 = vpack.c.b16 %v4660, %v4658
          %v4783 = vpack.c.b16 %v4663, %v4661
          %v4784 = vpack.c.b16 %v4664, %v4662
          %v4785 = vpack.c.b16 %v4667, %v4665
          %v4786 = vpack.c.b16 %v4668, %v4666
          %v4787 = vpack.c.b16 %v4671, %v4669
          %v4788 = vpack.c.b16 %v4672, %v4670
          %v4789 = vpack.c.b16 %v4675, %v4673
          %v4790 = vpack.c.b16 %v4676, %v4674
          %v4791 = vpack.c.b16 %v4679, %v4677
          %v4792 = vpack.c.b16 %v4680, %v4678
          %v4793 = vpack.c.b16 %v4683, %v4681
          %v4794 = vpack.c.b16 %v4684, %v4682
          %v4795 = vpack.c.b16 %v4687, %v4685
          %v4796 = vpack.c.b16 %v4688, %v4686
          %v4797 = vpack.c.b16 %v4691, %v4689
          %v4798 = vpack.c.b16 %v4692, %v4690
          %v4799 = vpack.c.b16 %v4695, %v4693
          %v4800 = vpack.c.b16 %v4696, %v4694
          %v4801 = vpack.c.b16 %v4699, %v4697
          %v4802 = vpack.c.b16 %v4700, %v4698
          %v4803 = vpack.c.b16 %v4703, %v4701
          %v4804 = vpack.c.b16 %v4704, %v4702
          %v4805 = vpack.c.b16 %v4707, %v4705
          %v4806 = vpack.c.b16 %v4708, %v4706
          %v4807 = vpack.c.b16 %v4711, %v4709
          %v4808 = vpack.c.b16 %v4712, %v4710
          %v4809 = vpack.c.b16 %v4715, %v4713
          %v4810 = vpack.c.b16 %v4716, %v4714
          %v4811 = vpack.c.b16 %v4719, %v4717
          %v4812 = vpack.c.b16 %v4720, %v4718
          %v4813 = vpack.c.b16 %v4723, %v4721
          %v4814 = vpack.c.b16 %v4724, %v4722
          %v4815 = vpack.c.b16 %v4727, %v4725
          %v4816 = vpack.c.b16 %v4728, %v4726
          %v4817 = vpack.c.b16 %v4731, %v4729
          %v4818 = vpack.c.b16 %v4732, %v4730
          %v4819 = vpack.c.b16 %v4735, %v4733
          %v4820 = vpack.c.b16 %v4736, %v4734
          %v4821 = vpack.c.b16 %v4739, %v4737
          %v4822 = vpack.c.b16 %v4740, %v4738
          %v4823 = vpack.c.b16 %v4743, %v4741
          %v4824 = vpack.c.b16 %v4744, %v4742
          %v4825 = vpack.c.b16 %v4747, %v4745
          %v4826 = vpack.c.b16 %v4748, %v4746
          %v4827 = vpack.c.b16 %v4751, %v4749
          %v4828 = vpack.c.b16 %v4752, %v4750
          %v4829 = vpack.c.b16 %v4755, %v4753
          %v4830 = vpack.c.b16 %v4756, %v4754
          %v4831 = vpack.c.b16 %v4759, %v4757
          %v4832 = vpack.c.b16 %v4760, %v4758
          %v4833 = vpack.c.b16 %v4763, %v4761
          %v4834 = vpack.c.b16 %v4764, %v4762
          %v4835 = vpack.c.b16 %v4767, %v4765
          %v4836 = vpack.c.b16 %v4768, %v4766
          %v4837 = vpack.c.b16 %v4771, %v4769
          %v4838 = vpack.c.b16 %v4772, %v4770
          %v4839 = vpack.c.b16 %v4775, %v4773
          %v4840 = vpack.c.b16 %v4776, %v4774
          %v4906 = vperm.slane %v4584, 0
          %v4907 = vperm.slane %v4584, 1
          %4910 = vmatpush.bf16.msra.mxu0 %v4791
          %4911 = vmatpush.bf16.msra.mxu0 %v4789
          %4912 = vmatpush.bf16.msra.mxu0 %v4787
          %4913 = vmatpush.bf16.msra.mxu0 %v4785
          %4914 = vmatpush.bf16.msra.mxu0 %v4783
          %4915 = vmatpush.bf16.msra.mxu0 %v4781
          %4916 = vmatpush.bf16.msra.mxu0 %v4779
          %4917 = vmatpush.bf16.msra.mxu0 %v4777
          %4918 = vmatmul.bf16.gmra.mxu0 %v4516
          %v4919 = vpop.f32.mrf.mxu0
          %v4920 = vadd.f32 %v4906, %v4919
          %v4921 = vpop.f32.mrf.mxu0
          %4922 = vdwg.mxu0
          %4923 = vmatpush.bf16.msra.mxu0 %v4807
          %4924 = vmatpush.bf16.msra.mxu0 %v4805
          %4925 = vmatpush.bf16.msra.mxu0 %v4803
          %4926 = vmatpush.bf16.msra.mxu0 %v4801
          %4927 = vmatpush.bf16.msra.mxu0 %v4799
          %4928 = vmatpush.bf16.msra.mxu0 %v4797
          %4929 = vmatpush.bf16.msra.mxu0 %v4795
          %4930 = vmatpush.bf16.msra.mxu0 %v4793
          %4931 = vmatmul.bf16.gmra.mxu0 %v4517
          %v4932 = vpop.f32.mrf.mxu0
          %v4933 = vadd.f32 %v4920, %v4932
          %v4934 = vpop.f32.mrf.mxu0
          %4935 = vdwg.mxu0
          %4936 = vmatpush.bf16.msra.mxu0 %v4823
          %4937 = vmatpush.bf16.msra.mxu0 %v4821
          %4938 = vmatpush.bf16.msra.mxu0 %v4819
          %4939 = vmatpush.bf16.msra.mxu0 %v4817
          %4940 = vmatpush.bf16.msra.mxu0 %v4815
          %4941 = vmatpush.bf16.msra.mxu0 %v4813
          %4942 = vmatpush.bf16.msra.mxu0 %v4811
          %4943 = vmatpush.bf16.msra.mxu0 %v4809
          %4944 = vmatmul.bf16.gmra.mxu0 %v4518
          %v4945 = vpop.f32.mrf.mxu0
          %v4946 = vadd.f32 %v4933, %v4945
          %v4947 = vpop.f32.mrf.mxu0
          %4948 = vdwg.mxu0
          %4949 = vmatpush.bf16.msra.mxu0 %v4839
          %4950 = vmatpush.bf16.msra.mxu0 %v4837
          %4951 = vmatpush.bf16.msra.mxu0 %v4835
          %4952 = vmatpush.bf16.msra.mxu0 %v4833
          %4953 = vmatpush.bf16.msra.mxu0 %v4831
          %4954 = vmatpush.bf16.msra.mxu0 %v4829
          %4955 = vmatpush.bf16.msra.mxu0 %v4827
          %4956 = vmatpush.bf16.msra.mxu0 %v4825
          %4957 = vmatmul.bf16.gmra.mxu0 %v4519
          %v4958 = vpop.f32.mrf.mxu0
          %v4959 = vadd.f32 %v4946, %v4958
          %v4960 = vpop.f32.mrf.mxu0
          %4961 = vdwg.mxu0
          %4962 = vmatpush.bf16.msra.mxu0 %v4792
          %4963 = vmatpush.bf16.msra.mxu0 %v4790
          %4964 = vmatpush.bf16.msra.mxu0 %v4788
          %4965 = vmatpush.bf16.msra.mxu0 %v4786
          %4966 = vmatpush.bf16.msra.mxu0 %v4784
          %4967 = vmatpush.bf16.msra.mxu0 %v4782
          %4968 = vmatpush.bf16.msra.mxu0 %v4780
          %4969 = vmatpush.bf16.msra.mxu0 %v4778
          %4970 = vmatmul.bf16.gmra.mxu0 %v4516
          %v4971 = vpop.f32.mrf.mxu0
          %v4972 = vadd.f32 %v4907, %v4971
          %v4973 = vpop.f32.mrf.mxu0
          %4974 = vdwg.mxu0
          %4975 = vmatpush.bf16.msra.mxu0 %v4808
          %4976 = vmatpush.bf16.msra.mxu0 %v4806
          %4977 = vmatpush.bf16.msra.mxu0 %v4804
          %4978 = vmatpush.bf16.msra.mxu0 %v4802
          %4979 = vmatpush.bf16.msra.mxu0 %v4800
          %4980 = vmatpush.bf16.msra.mxu0 %v4798
          %4981 = vmatpush.bf16.msra.mxu0 %v4796
          %4982 = vmatpush.bf16.msra.mxu0 %v4794
          %4983 = vmatmul.bf16.gmra.mxu0 %v4517
          %v4984 = vpop.f32.mrf.mxu0
          %v4985 = vadd.f32 %v4972, %v4984
          %v4986 = vpop.f32.mrf.mxu0
          %4987 = vdwg.mxu0
          %4988 = vmatpush.bf16.msra.mxu0 %v4824
          %4989 = vmatpush.bf16.msra.mxu0 %v4822
          %4990 = vmatpush.bf16.msra.mxu0 %v4820
          %4991 = vmatpush.bf16.msra.mxu0 %v4818
          %4992 = vmatpush.bf16.msra.mxu0 %v4816
          %4993 = vmatpush.bf16.msra.mxu0 %v4814
          %4994 = vmatpush.bf16.msra.mxu0 %v4812
          %4995 = vmatpush.bf16.msra.mxu0 %v4810
          %4996 = vmatmul.bf16.gmra.mxu0 %v4518
          %v4997 = vpop.f32.mrf.mxu0
          %v4998 = vadd.f32 %v4985, %v4997
          %v4999 = vpop.f32.mrf.mxu0
          %5000 = vdwg.mxu0
          %5001 = vmatpush.bf16.msra.mxu0 %v4840
          %5002 = vmatpush.bf16.msra.mxu0 %v4838
          %5003 = vmatpush.bf16.msra.mxu0 %v4836
          %5004 = vmatpush.bf16.msra.mxu0 %v4834
          %5005 = vmatpush.bf16.msra.mxu0 %v4832
          %5006 = vmatpush.bf16.msra.mxu0 %v4830
          %5007 = vmatpush.bf16.msra.mxu0 %v4828
          %5008 = vmatpush.bf16.msra.mxu0 %v4826
          %5009 = vmatmul.bf16.gmra.mxu0 %v4519
          %v5010 = vpop.f32.mrf.mxu0
          %v5011 = vadd.f32 %v4998, %v5010
          %v5012 = vpop.f32.mrf.mxu0
          %5013 = vdwg.mxu0
          %v5014 = vmax.f32 %v4959, 0.0
          %v5015 = vmax.f32 %v5011, 0.0
          %v5016 = vld [vmem:[%s11] sm:$0xff]
          %v5017 = vld [vmem:[%s11 + $0x8] sm:$0xff]
          %v5018 = vld [vmem:[%s11 + $0x10] sm:$0xff]
          %v5019 = vld [vmem:[%s11 + $0x18] sm:$0xff]
          %v5020 = vld [vmem:[%s11 + $0x20] sm:$0xff]
          %v5021 = vld [vmem:[%s11 + $0x28] sm:$0xff]
          %v5022 = vld [vmem:[%s11 + $0x30] sm:$0xff]
          %v5023 = vld [vmem:[%s11 + $0x38] sm:$0xff]
          %v5024 = vld [vmem:[%s11 + $0x40] sm:$0xff]
          %v5025 = vld [vmem:[%s11 + $0x48] sm:$0xff]
          %v5026 = vld [vmem:[%s11 + $0x50] sm:$0xff]
          %v5027 = vld [vmem:[%s11 + $0x58] sm:$0xff]
          %v5028 = vld [vmem:[%s11 + $0x60] sm:$0xff]
          %v5029 = vld [vmem:[%s11 + $0x68] sm:$0xff]
          %v5030 = vld [vmem:[%s11 + $0x70] sm:$0xff]
          %v5031 = vld [vmem:[%s11 + $0x78] sm:$0xff]
          %v5032 = vld [vmem:[%s11 + $0x80] sm:$0xff]
          %v5033 = vld [vmem:[%s11 + $0x88] sm:$0xff]
          %v5034 = vld [vmem:[%s11 + $0x90] sm:$0xff]
          %v5035 = vld [vmem:[%s11 + $0x98] sm:$0xff]
          %v5036 = vld [vmem:[%s11 + $0xa0] sm:$0xff]
          %v5037 = vld [vmem:[%s11 + $0xa8] sm:$0xff]
          %v5038 = vld [vmem:[%s11 + $0xb0] sm:$0xff]
          %v5039 = vld [vmem:[%s11 + $0xb8] sm:$0xff]
          %v5040 = vld [vmem:[%s11 + $0xc0] sm:$0xff]
          %v5041 = vld [vmem:[%s11 + $0xc8] sm:$0xff]
          %v5042 = vld [vmem:[%s11 + $0xd0] sm:$0xff]
          %v5043 = vld [vmem:[%s11 + $0xd8] sm:$0xff]
          %v5044 = vld [vmem:[%s11 + $0xe0] sm:$0xff]
          %v5045 = vld [vmem:[%s11 + $0xe8] sm:$0xff]
          %v5046 = vld [vmem:[%s11 + $0xf0] sm:$0xff]
          %v5047 = vld [vmem:[%s11 + $0xf8] sm:$0xff]
          %v5048 = vld [vmem:[#allocation8] sm:$0x1]
          %5049 = vmatpush.msra.mxu0 %v5031
          %5050 = vmatpush.msra.mxu0 %v5030
          %5051 = vmatpush.msra.mxu0 %v5029
          %5052 = vmatpush.msra.mxu0 %v5028
          %5053 = vmatpush.msra.mxu0 %v5027
          %5054 = vmatpush.msra.mxu0 %v5026
          %5055 = vmatpush.msra.mxu0 %v5025
          %5056 = vmatpush.msra.mxu0 %v5024
          %5057 = vmatpush.msra.mxu0 %v5023
          %5058 = vmatpush.msra.mxu0 %v5022
          %5059 = vmatpush.msra.mxu0 %v5021
          %5060 = vmatpush.msra.mxu0 %v5020
          %5061 = vmatpush.msra.mxu0 %v5019
          %5062 = vmatpush.msra.mxu0 %v5018
          %5063 = vmatpush.msra.mxu0 %v5017
          %5064 = vmatpush.msra.mxu0 %v5016
          %5065 = vmatmul.f32.gmra.mxu0 %v5014
          %v5066 = vpop.f32.mrf.mxu0
          %v5067 = vadd.f32 %v5048, %v5066
          %5068 = vdwg.mxu0
          %5069 = vmatpush.msra.mxu0 %v5047
          %5070 = vmatpush.msra.mxu0 %v5046
          %5071 = vmatpush.msra.mxu0 %v5045
          %5072 = vmatpush.msra.mxu0 %v5044
          %5073 = vmatpush.msra.mxu0 %v5043
          %5074 = vmatpush.msra.mxu0 %v5042
          %5075 = vmatpush.msra.mxu0 %v5041
          %5076 = vmatpush.msra.mxu0 %v5040
          %5077 = vmatpush.msra.mxu0 %v5039
          %5078 = vmatpush.msra.mxu0 %v5038
          %5079 = vmatpush.msra.mxu0 %v5037
          %5080 = vmatpush.msra.mxu0 %v5036
          %5081 = vmatpush.msra.mxu0 %v5035
          %5082 = vmatpush.msra.mxu0 %v5034
          %5083 = vmatpush.msra.mxu0 %v5033
          %5084 = vmatpush.msra.mxu0 %v5032
          %5085 = vmatmul.f32.gmra.mxu0 %v5015
          %v5086 = vpop.f32.mrf.mxu0
          %v5087 = vadd.f32 %v5067, %v5086
          %5088 = vdwg.mxu0
          %vm5089 = vcmask 65536
          %5090 = vst.msk [vmem:[%s525] sm:$0x1] %vm5089, %v5087
        $region100: #{forward.3} parent=71 // pred_fallthru
          _
        %p5091 = scmp.lt.s32.totalorder %s31, 3
        %s5092 = scalar_select %p5091, %s31, 3
        %s5093 = scalar_lea.vmem %s13, %s5092
        // Predicated region
        $region101: #{forward.3} parent=71 // pred_check
          %p5094 = pneg %p337
        $region102: #{forward.3} parent=71 // pred_check_branch
          %5096 = sbr.rel (%p5094) target = $region104
        $region103: #{forward.3} parent=71 // pred_region
          _
        $region104: #{forward.3} parent=71 // pred_fallthru
          _
      $region72: #{forward.3} parent=5 // pred_fallthru
        _
      %p5097 = scmp.le.s32.totalorder 2, %s22
      // Predicated region
      $region105: #{forward.3} parent=5 // pred_check
        %p5098 = pneg %p5097
      $region106: #{forward.3} parent=5 // pred_check_branch
        %5100 = sbr.rel (%p5098) target = $region108
      $region107: #{forward.3} parent=5 // pred_region
        %s5101 = ssub.s32 %s22, 2
        // Predicated region
        $region109: #{forward.3} parent=107 // pred_check
          %p5102 = pneg %p343
        $region110: #{forward.3} parent=107 // pred_check_branch
          %5104 = sbr.rel (%p5102) target = $region112
        $region111: #{forward.3} parent=107 // pred_region
          %p5105 = scmp.lt.s32.totalorder %s33, 3
          %s5106 = scalar_select %p5105, %s33, 3
          %s5107 = scalar_lea.vmem %s13, %s5106
        $region112: #{forward.3} parent=107 // pred_fallthru
          _
      $region108: #{forward.3} parent=5 // pred_fallthru
        _
    $region6: #{forward.3} parent=1 // loop_footer
      %s26 = sadd.s32 1, %s22
    $region7: #{forward.3} parent=1 // loop_footer_branch
      %21 = sbr.rel target = $region3
    $region8: #{forward.3} parent=1 // loop_exit
      _
    %5108 = vsyncpa [#allocation4], 1
    %s5109 = scalar_lea.sflag [#allocation4], 1
    %5110 = vsyncpa %s5109, 1
    %5111 = vsyncpa [#allocation6], 1
    %5112 = vsyncpa [#allocation9], 1

</llo_original>
